<compile_context>
chip_gen: v7x
topology: tpu7x:2x2x1
jax: 0.10.0
libtpu: 0.0.40
codegen_flags: <defaults>
</compile_context>

<pallas_src>
import functools

import jax
import jax.numpy as jnp
from jax import lax
from jax.experimental import pallas as pl
from jax.experimental.pallas import tpu as pltpu

_INV_SQRT2 = 0.7071067811865475


def _gelu_exact(x):
    # Matches PyTorch F.gelu default (erf-based, exact).
    return 0.5 * x * (1.0 + lax.erf(x * _INV_SQRT2))


def _sgffn_kernel(x_ref, hidx_ref, widx_ref, win_ref, bin_ref, wdw_ref,
                  bdw_ref, wsp_ref, wout_ref, bout_ref, o_ref, *, H, W, hidden):
    """Fused SGFeedForward for one batch image.

    Layout: channels-first, spatial flattened onto the lane axis:
      x_ref   : (1, dim, H*W)      activations (lane-dense, 128-multiple lanes)
      win_ref : (3*hidden, dim)    project_in weight
      wdw_ref : (9, 3*hidden, 1)   depthwise taps, row dy*3+dx = column weights
      wsp_ref : (98,) in SMEM      7x7 attn taps, (dy*7+dx)*2 + {0:avg, 1:max}
      wout_ref: (dim, hidden)      project_out weight
    """
    HW = H * W
    c3 = 3 * hidden

    # Precomputed flat-index -> (row, col) tables (avoids in-kernel int div/mod).
    h_idx = hidx_ref[...]          # (1, HW) int32
    w_idx = widx_ref[...]          # (1, HW) int32

    def shift2d(plane, oy, ox):
        # plane of the image shifted by (oy, ox): value at (h+oy, w+ox),
        # zero outside the image (== zero padding). Wrap-around values from
        # the roll are always masked off, so roll direction is safe.
        s = oy * W + ox                                     # flat source offset
        rolled = plane if s == 0 else pltpu.roll(plane, (-s) % HW, axis=1)
        valid = ((h_idx + oy >= 0) & (h_idx + oy < H) &
                 (w_idx + ox >= 0) & (w_idx + ox < W))
        return jnp.where(valid, rolled, 0.0)

    # ---- project_in : 1x1 conv == (c3, dim) @ (dim, HW) matmul (MXU) -------
    x = x_ref[0].astype(jnp.float32)                        # (dim, HW)
    y = jnp.dot(win_ref[...], x, preferred_element_type=jnp.float32)
    y = y + bin_ref[...]                                    # (c3, HW)

    # ---- depthwise 3x3 conv, zero padding via boundary masks ---------------
    acc = jnp.zeros((c3, HW), jnp.float32)
    for dy in range(3):
        for dx in range(3):
            acc = acc + shift2d(y, dy - 1, dx - 1) * wdw_ref[dy * 3 + dx]
    acc = acc + bdw_ref[...]                                # (c3, HW)

    x1 = acc[:hidden]                                       # (hidden, HW)
    x2 = acc[hidden:2 * hidden]
    x3 = acc[2 * hidden:]

    x1s = jax.nn.sigmoid(_gelu_exact(x1))                   # sigmoid(gelu(x1))
    g2 = _gelu_exact(x2)                                    # gelu(x2) -> attention
    avg = jnp.mean(g2, axis=0, keepdims=True)               # (1, HW)
    mx = jnp.max(g2, axis=0, keepdims=True)                 # (1, HW)

    # ---- 7x7 spatial attention: scalar (SMEM) FMAs on two dense planes -----
    conv = jnp.zeros((1, HW), jnp.float32)
    for dy in range(7):
        for dx in range(7):
            k = (dy * 7 + dx) * 2
            conv = conv + wsp_ref[k] * shift2d(avg, dy - 3, dx - 3)
            conv = conv + wsp_ref[k + 1] * shift2d(mx, dy - 3, dx - 3)
    att = jax.nn.sigmoid(conv)                              # (1, HW)

    gated = x3 * x1s * att                                  # (hidden, HW)

    # ---- project_out : 1x1 conv == (dim, hidden) @ (hidden, HW) matmul -----
    out = jnp.dot(wout_ref[...], gated, preferred_element_type=jnp.float32)
    out = out + bout_ref[...]                               # (dim, HW)
    o_ref[0] = out.astype(o_ref.dtype)


def sg_feed_forward(x_nchw, params):
    """SGFeedForward forward pass. x_nchw: (N, dim, H, W), PyTorch layout."""
    w_in, b_in, w_dw, b_dw, w_sp, w_out, b_out = params
    N, dim, H, W = x_nchw.shape
    hidden = w_out.shape[1]
    c3 = 3 * hidden
    HW = H * W

    # Free reshapes only (channels stay leading; spatial -> lane axis).
    x_flat = x_nchw.reshape(N, dim, HW)

    # Flat-index -> (row, col) lookup tables for the in-kernel boundary masks.
    flat = jnp.arange(HW, dtype=jnp.int32)
    h_idx = (flat // W).reshape(1, HW)
    w_idx = (flat % W).reshape(1, HW)

    # Weight plumbing (tiny, once per call).
    b_in_c = b_in.reshape(c3, 1).astype(jnp.float32)
    b_dw_c = b_dw.reshape(c3, 1).astype(jnp.float32)
    b_out_c = b_out.reshape(dim, 1).astype(jnp.float32)
    # Depthwise taps, tap-major: row dy*3+dx holds w_dw[:, dy, dx] as a column.
    w_dw_taps = jnp.transpose(w_dw, (1, 2, 0)).reshape(9, c3, 1).astype(jnp.float32)
    # 7x7 attention taps flattened for SMEM scalar reads:
    #   index (dy*7+dx)*2 + {0: avg-plane weight, 1: max-plane weight}.
    w_sp_flat = jnp.transpose(w_sp, (1, 2, 0)).reshape(-1).astype(jnp.float32)

    kernel = functools.partial(_sgffn_kernel, H=H, W=W, hidden=hidden)

    cost = pl.CostEstimate(
        flops=int(N * HW * (2 * dim * c3 + 18 * c3 + 4 * 49
                            + 2 * hidden * dim + 6 * hidden)),
        transcendentals=int(N * HW * (3 * hidden + 1)),
        bytes_accessed=int(4 * (x_flat.size + N * dim * HW + w_in.size
                                + w_dw.size + w_sp.size + w_out.size
                                + b_in.size + b_dw.size + b_out.size)),
    )

    out_flat = pl.pallas_call(
        kernel,
        out_shape=jax.ShapeDtypeStruct((N, dim, HW), x_nchw.dtype),
        grid=(N,),
        in_specs=[
            pl.BlockSpec((1, dim, HW), lambda n: (n, 0, 0)),    # x (per image)
            pl.BlockSpec((1, HW), lambda n: (0, 0)),            # h_idx table
            pl.BlockSpec((1, HW), lambda n: (0, 0)),            # w_idx table
            pl.BlockSpec((c3, dim), lambda n: (0, 0)),          # project_in W
            pl.BlockSpec((c3, 1), lambda n: (0, 0)),            # project_in b
            pl.BlockSpec((9, c3, 1), lambda n: (0, 0, 0)),      # depthwise taps
            pl.BlockSpec((c3, 1), lambda n: (0, 0)),            # depthwise b
            pl.BlockSpec(memory_space=pltpu.MemorySpace.SMEM),  # 7x7 taps (scalars)
            pl.BlockSpec((dim, hidden), lambda n: (0, 0)),      # project_out W
            pl.BlockSpec((dim, 1), lambda n: (0, 0)),           # project_out b
        ],
        out_specs=pl.BlockSpec((1, dim, HW), lambda n: (n, 0, 0)),
        compiler_params=pltpu.CompilerParams(
            dimension_semantics=("parallel",),
            vmem_limit_bytes=32 * 1024 * 1024,
        ),
        cost_estimate=cost,
    )(x_flat, h_idx, w_idx, w_in.astype(jnp.float32), b_in_c, w_dw_taps,
      b_dw_c, w_sp_flat, w_out.astype(jnp.float32), b_out_c)

    return out_flat.reshape(N, dim, H, W)


# ---------------------------------------------------------------------------
# Pure-JAX (XLA conv) reference for verification
# ---------------------------------------------------------------------------
def reference(x, params):
    w_in, b_in, w_dw, b_dw, w_sp, w_out, b_out = params
    dn = ("NCHW", "OIHW", "NCHW")
    c3 = w_in.shape[0]
    gelu = lambda t: jax.nn.gelu(t, approximate=False)

    y = lax.conv_general_dilated(x, w_in[:, :, None, None], (1, 1), "VALID",
                                 dimension_numbers=dn) + b_in[None, :, None, None]
    y = lax.conv_general_dilated(y, w_dw[:, None, :, :], (1, 1), ((1, 1), (1, 1)),
                                 dimension_numbers=dn,
                                 feature_group_count=c3) + b_dw[None, :, None, None]
    x1, x2, x3 = jnp.split(y, 3, axis=1)
    x1 = jax.nn.sigmoid(gelu(x1))
    g2 = gelu(x2)
    cat = jnp.concatenate([jnp.mean(g2, axis=1, keepdims=True),
                           jnp.max(g2, axis=1, keepdims=True)], axis=1)
    att = jax.nn.sigmoid(
        lax.conv_general_dilated(cat, w_sp[None, :, :, :], (1, 1),
                                 ((3, 3), (3, 3)), dimension_numbers=dn))
    x3 = x3 * x1 * att
    return lax.conv_general_dilated(x3, w_out[:, :, None, None], (1, 1), "VALID",
                                    dimension_numbers=dn) + b_out[None, :, None, None]


if __name__ == "__main__":
    # Module config: dim=4, ffn_expansion_factor=2, bias=True -> hidden=8, 3*hidden=24
    dim, ffn_factor = 4, 2
    hidden = int(dim * ffn_factor)
    c3 = 3 * hidden
    N, H, W = 2, 16, 16

    key = jax.random.PRNGKey(0)
    ks = jax.random.split(key, 8)
    w_in = jax.random.normal(ks[0], (c3, dim), jnp.float32) * 0.2       # project_in (O, I)
    b_in = jax.random.normal(ks[1], (c3,), jnp.float32) * 0.1
    w_dw = jax.random.normal(ks[2], (c3, 3, 3), jnp.float32) * 0.2      # depthwise (C, kh, kw)
    b_dw = jax.random.normal(ks[3], (c3,), jnp.float32) * 0.1
    w_sp = jax.random.normal(ks[4], (2, 7, 7), jnp.float32) * 0.2       # 7x7 attn (in=[avg,max], kh, kw)
    w_out = jax.random.normal(ks[5], (dim, hidden), jnp.float32) * 0.2  # project_out (O, I)
    b_out = jax.random.normal(ks[6], (dim,), jnp.float32) * 0.1
    params = (w_in, b_in, w_dw, b_dw, w_sp, w_out, b_out)

    x = jax.random.normal(ks[7], (N, dim, H, W), jnp.float32)           # NCHW, like PyTorch

    out = jax.block_until_ready(sg_feed_forward(x, params))
    ref = jax.block_until_ready(reference(x, params))

    assert out.shape == ref.shape == (N, dim, H, W)
    max_err = float(jnp.max(jnp.abs(out - ref)))
    assert jnp.allclose(out, ref, atol=1e-4, rtol=1e-4), f"max abs err = {max_err}"
    print("KERNEL_OK")
</pallas_src>

<mosaic_0001>
module attributes {stable_mosaic.version = 11 : i64} {
  func.func @_sgffn_kernel(%arg0: i32, %arg1: memref<1x4x256xf32, #tpu.memory_space<vmem>>, %arg2: memref<1x256xi32, #tpu.memory_space<vmem>>, %arg3: memref<1x256xi32, #tpu.memory_space<vmem>>, %arg4: memref<24x4xf32, #tpu.memory_space<vmem>>, %arg5: memref<24x1xf32, #tpu.memory_space<vmem>>, %arg6: memref<9x24x1xf32, #tpu.memory_space<vmem>>, %arg7: memref<24x1xf32, #tpu.memory_space<vmem>>, %arg8: memref<98xf32, #tpu.memory_space<smem>>, %arg9: memref<4x8xf32, #tpu.memory_space<vmem>>, %arg10: memref<4x1xf32, #tpu.memory_space<vmem>>, %arg11: memref<1x4x256xf32, #tpu.memory_space<vmem>>) attributes {dimension_semantics = [#tpu.dimension_semantics<parallel>], iteration_bounds = array<i64: 2>, scalar_prefetch = 0 : i64, scratch_operands = 0 : i64, tpu.core_type = #tpu.core_type<tc>, window_params = [{transform_indices = @transform_0, window_bounds = array<i64: 1, 4, 256>}, {pipeline_mode = #tpu.pipeline_mode<synchronous>, transform_indices = @transform_1, window_bounds = array<i64: 1, 256>}, {pipeline_mode = #tpu.pipeline_mode<synchronous>, transform_indices = @transform_2, window_bounds = array<i64: 1, 256>}, {pipeline_mode = #tpu.pipeline_mode<synchronous>, transform_indices = @transform_3, window_bounds = array<i64: 24, 4>}, {pipeline_mode = #tpu.pipeline_mode<synchronous>, transform_indices = @transform_4, window_bounds = array<i64: 24, 1>}, {pipeline_mode = #tpu.pipeline_mode<synchronous>, transform_indices = @transform_5, window_bounds = array<i64: 9, 24, 1>}, {pipeline_mode = #tpu.pipeline_mode<synchronous>, transform_indices = @transform_6, window_bounds = array<i64: 24, 1>}, {transform_indices = @transform_7, window_bounds = array<i64: 98>}, {pipeline_mode = #tpu.pipeline_mode<synchronous>, transform_indices = @transform_8, window_bounds = array<i64: 4, 8>}, {pipeline_mode = #tpu.pipeline_mode<synchronous>, transform_indices = @transform_9, window_bounds = array<i64: 4, 1>}, {transform_indices = @transform_10, window_bounds = array<i64: 1, 4, 256>}]} {
    %c0 = arith.constant 0 : index
    %c0_0 = arith.constant 0 : index
    %0 = vector.load %arg2[%c0, %c0_0] : memref<1x256xi32, #tpu.memory_space<vmem>>, vector<1x256xi32>
    %c0_1 = arith.constant 0 : index
    %c0_2 = arith.constant 0 : index
    %1 = vector.load %arg3[%c0_1, %c0_2] : memref<1x256xi32, #tpu.memory_space<vmem>>, vector<1x256xi32>
    %c0_3 = arith.constant 0 : index
    %c0_4 = arith.constant 0 : index
    %c0_5 = arith.constant 0 : index
    %2 = vector.load %arg1[%c0_3, %c0_4, %c0_5] : memref<1x4x256xf32, #tpu.memory_space<vmem>>, vector<1x4x256xf32>
    %3 = vector.shape_cast %2 : vector<1x4x256xf32> to vector<4x256xf32>
    %c0_6 = arith.constant 0 : index
    %c0_7 = arith.constant 0 : index
    %4 = vector.load %arg4[%c0_6, %c0_7] : memref<24x4xf32, #tpu.memory_space<vmem>>, vector<24x4xf32>
    %cst = arith.constant dense<0.000000e+00> : vector<24x256xf32>
    %5 = tpu.matmul %4, %3, %cst {dimension_numbers = #tpu.dot_dimension_numbers<[1], [0], [0], [1], [0, 0, 1, 1], [], []>} : vector<24x4xf32>, vector<4x256xf32>, vector<24x256xf32> -> vector<24x256xf32>
    %c0_8 = arith.constant 0 : index
    %c0_9 = arith.constant 0 : index
    %6 = vector.load %arg5[%c0_8, %c0_9] : memref<24x1xf32, #tpu.memory_space<vmem>>, vector<24x1xf32>
    %7 = vector.broadcast %6 : vector<24x1xf32> to vector<24x256xf32>
    %8 = arith.addf %5, %7 : vector<24x256xf32>
    %cst_10 = arith.constant 0.000000e+00 : f32
    %9 = vector.broadcast %cst_10 : f32 to vector<24x256xf32>
    %c17_i32 = arith.constant 17 : i32
    %10 = tpu.dynamic_rotate %8 by %c17_i32 dim 1 : vector<24x256xf32>, i32 -> vector<24x256xf32>
    %c-1_i32 = arith.constant -1 : i32
    %11 = vector.broadcast %c-1_i32 : i32 to vector<1x256xi32>
    %12 = arith.addi %0, %11 : vector<1x256xi32>
    %c0_i32 = arith.constant 0 : i32
    %13 = vector.broadcast %c0_i32 : i32 to vector<1x256xi32>
    %14 = arith.cmpi sge, %12, %13 : vector<1x256xi32>
    %c-1_i32_11 = arith.constant -1 : i32
    %15 = vector.broadcast %c-1_i32_11 : i32 to vector<1x256xi32>
    %16 = arith.addi %0, %15 : vector<1x256xi32>
    %c16_i32 = arith.constant 16 : i32
    %17 = vector.broadcast %c16_i32 : i32 to vector<1x256xi32>
    %18 = arith.cmpi slt, %16, %17 : vector<1x256xi32>
    %19 = arith.andi %14, %18 : vector<1x256xi1>
    %c-1_i32_12 = arith.constant -1 : i32
    %20 = vector.broadcast %c-1_i32_12 : i32 to vector<1x256xi32>
    %21 = arith.addi %1, %20 : vector<1x256xi32>
    %c0_i32_13 = arith.constant 0 : i32
    %22 = vector.broadcast %c0_i32_13 : i32 to vector<1x256xi32>
    %23 = arith.cmpi sge, %21, %22 : vector<1x256xi32>
    %24 = arith.andi %19, %23 : vector<1x256xi1>
    %c-1_i32_14 = arith.constant -1 : i32
    %25 = vector.broadcast %c-1_i32_14 : i32 to vector<1x256xi32>
    %26 = arith.addi %1, %25 : vector<1x256xi32>
    %c16_i32_15 = arith.constant 16 : i32
    %27 = vector.broadcast %c16_i32_15 : i32 to vector<1x256xi32>
    %28 = arith.cmpi slt, %26, %27 : vector<1x256xi32>
    %29 = arith.andi %24, %28 : vector<1x256xi1>
    %cst_16 = arith.constant 0.000000e+00 : f32
    %30 = vector.shape_cast %29 : vector<1x256xi1> to vector<1x256xi1>
    %31 = vector.broadcast %30 : vector<1x256xi1> to vector<24x256xi1>
    %32 = vector.broadcast %cst_16 : f32 to vector<24x256xf32>
    %33 = arith.select %31, %10, %32 : vector<24x256xi1>, vector<24x256xf32>
    %c0_17 = arith.constant 0 : index
    %c0_18 = arith.constant 0 : index
    %c0_19 = arith.constant 0 : index
    %34 = vector.load %arg6[%c0_17, %c0_18, %c0_19] : memref<9x24x1xf32, #tpu.memory_space<vmem>>, vector<1x24x1xf32>
    %35 = vector.shape_cast %34 : vector<1x24x1xf32> to vector<24x1xf32>
    %36 = vector.broadcast %35 : vector<24x1xf32> to vector<24x256xf32>
    %37 = arith.mulf %33, %36 : vector<24x256xf32>
    %38 = arith.addf %9, %37 : vector<24x256xf32>
    %c16_i32_20 = arith.constant 16 : i32
    %39 = tpu.dynamic_rotate %8 by %c16_i32_20 dim 1 : vector<24x256xf32>, i32 -> vector<24x256xf32>
    %c-1_i32_21 = arith.constant -1 : i32
    %40 = vector.broadcast %c-1_i32_21 : i32 to vector<1x256xi32>
    %41 = arith.addi %0, %40 : vector<1x256xi32>
    %c0_i32_22 = arith.constant 0 : i32
    %42 = vector.broadcast %c0_i32_22 : i32 to vector<1x256xi32>
    %43 = arith.cmpi sge, %41, %42 : vector<1x256xi32>
    %c-1_i32_23 = arith.constant -1 : i32
    %44 = vector.broadcast %c-1_i32_23 : i32 to vector<1x256xi32>
    %45 = arith.addi %0, %44 : vector<1x256xi32>
    %c16_i32_24 = arith.constant 16 : i32
    %46 = vector.broadcast %c16_i32_24 : i32 to vector<1x256xi32>
    %47 = arith.cmpi slt, %45, %46 : vector<1x256xi32>
    %48 = arith.andi %43, %47 : vector<1x256xi1>
    %c0_i32_25 = arith.constant 0 : i32
    %49 = vector.broadcast %c0_i32_25 : i32 to vector<1x256xi32>
    %50 = arith.addi %1, %49 : vector<1x256xi32>
    %c0_i32_26 = arith.constant 0 : i32
    %51 = vector.broadcast %c0_i32_26 : i32 to vector<1x256xi32>
    %52 = arith.cmpi sge, %50, %51 : vector<1x256xi32>
    %53 = arith.andi %48, %52 : vector<1x256xi1>
    %c0_i32_27 = arith.constant 0 : i32
    %54 = vector.broadcast %c0_i32_27 : i32 to vector<1x256xi32>
    %55 = arith.addi %1, %54 : vector<1x256xi32>
    %c16_i32_28 = arith.constant 16 : i32
    %56 = vector.broadcast %c16_i32_28 : i32 to vector<1x256xi32>
    %57 = arith.cmpi slt, %55, %56 : vector<1x256xi32>
    %58 = arith.andi %53, %57 : vector<1x256xi1>
    %cst_29 = arith.constant 0.000000e+00 : f32
    %59 = vector.shape_cast %58 : vector<1x256xi1> to vector<1x256xi1>
    %60 = vector.broadcast %59 : vector<1x256xi1> to vector<24x256xi1>
    %61 = vector.broadcast %cst_29 : f32 to vector<24x256xf32>
    %62 = arith.select %60, %39, %61 : vector<24x256xi1>, vector<24x256xf32>
    %c1 = arith.constant 1 : index
    %c0_30 = arith.constant 0 : index
    %c0_31 = arith.constant 0 : index
    %63 = vector.load %arg6[%c1, %c0_30, %c0_31] : memref<9x24x1xf32, #tpu.memory_space<vmem>>, vector<1x24x1xf32>
    %64 = vector.shape_cast %63 : vector<1x24x1xf32> to vector<24x1xf32>
    %65 = vector.broadcast %64 : vector<24x1xf32> to vector<24x256xf32>
    %66 = arith.mulf %62, %65 : vector<24x256xf32>
    %67 = arith.addf %38, %66 : vector<24x256xf32>
    %c15_i32 = arith.constant 15 : i32
    %68 = tpu.dynamic_rotate %8 by %c15_i32 dim 1 : vector<24x256xf32>, i32 -> vector<24x256xf32>
    %c-1_i32_32 = arith.constant -1 : i32
    %69 = vector.broadcast %c-1_i32_32 : i32 to vector<1x256xi32>
    %70 = arith.addi %0, %69 : vector<1x256xi32>
    %c0_i32_33 = arith.constant 0 : i32
    %71 = vector.broadcast %c0_i32_33 : i32 to vector<1x256xi32>
    %72 = arith.cmpi sge, %70, %71 : vector<1x256xi32>
    %c-1_i32_34 = arith.constant -1 : i32
    %73 = vector.broadcast %c-1_i32_34 : i32 to vector<1x256xi32>
    %74 = arith.addi %0, %73 : vector<1x256xi32>
    %c16_i32_35 = arith.constant 16 : i32
    %75 = vector.broadcast %c16_i32_35 : i32 to vector<1x256xi32>
    %76 = arith.cmpi slt, %74, %75 : vector<1x256xi32>
    %77 = arith.andi %72, %76 : vector<1x256xi1>
    %c1_i32 = arith.constant 1 : i32
    %78 = vector.broadcast %c1_i32 : i32 to vector<1x256xi32>
    %79 = arith.addi %1, %78 : vector<1x256xi32>
    %c0_i32_36 = arith.constant 0 : i32
    %80 = vector.broadcast %c0_i32_36 : i32 to vector<1x256xi32>
    %81 = arith.cmpi sge, %79, %80 : vector<1x256xi32>
    %82 = arith.andi %77, %81 : vector<1x256xi1>
    %c1_i32_37 = arith.constant 1 : i32
    %83 = vector.broadcast %c1_i32_37 : i32 to vector<1x256xi32>
    %84 = arith.addi %1, %83 : vector<1x256xi32>
    %c16_i32_38 = arith.constant 16 : i32
    %85 = vector.broadcast %c16_i32_38 : i32 to vector<1x256xi32>
    %86 = arith.cmpi slt, %84, %85 : vector<1x256xi32>
    %87 = arith.andi %82, %86 : vector<1x256xi1>
    %cst_39 = arith.constant 0.000000e+00 : f32
    %88 = vector.shape_cast %87 : vector<1x256xi1> to vector<1x256xi1>
    %89 = vector.broadcast %88 : vector<1x256xi1> to vector<24x256xi1>
    %90 = vector.broadcast %cst_39 : f32 to vector<24x256xf32>
    %91 = arith.select %89, %68, %90 : vector<24x256xi1>, vector<24x256xf32>
    %c2 = arith.constant 2 : index
    %c0_40 = arith.constant 0 : index
    %c0_41 = arith.constant 0 : index
    %92 = vector.load %arg6[%c2, %c0_40, %c0_41] : memref<9x24x1xf32, #tpu.memory_space<vmem>>, vector<1x24x1xf32>
    %93 = vector.shape_cast %92 : vector<1x24x1xf32> to vector<24x1xf32>
    %94 = vector.broadcast %93 : vector<24x1xf32> to vector<24x256xf32>
    %95 = arith.mulf %91, %94 : vector<24x256xf32>
    %96 = arith.addf %67, %95 : vector<24x256xf32>
    %c1_i32_42 = arith.constant 1 : i32
    %97 = tpu.dynamic_rotate %8 by %c1_i32_42 dim 1 : vector<24x256xf32>, i32 -> vector<24x256xf32>
    %c0_i32_43 = arith.constant 0 : i32
    %98 = vector.broadcast %c0_i32_43 : i32 to vector<1x256xi32>
    %99 = arith.addi %0, %98 : vector<1x256xi32>
    %c0_i32_44 = arith.constant 0 : i32
    %100 = vector.broadcast %c0_i32_44 : i32 to vector<1x256xi32>
    %101 = arith.cmpi sge, %99, %100 : vector<1x256xi32>
    %c0_i32_45 = arith.constant 0 : i32
    %102 = vector.broadcast %c0_i32_45 : i32 to vector<1x256xi32>
    %103 = arith.addi %0, %102 : vector<1x256xi32>
    %c16_i32_46 = arith.constant 16 : i32
    %104 = vector.broadcast %c16_i32_46 : i32 to vector<1x256xi32>
    %105 = arith.cmpi slt, %103, %104 : vector<1x256xi32>
    %106 = arith.andi %101, %105 : vector<1x256xi1>
    %c-1_i32_47 = arith.constant -1 : i32
    %107 = vector.broadcast %c-1_i32_47 : i32 to vector<1x256xi32>
    %108 = arith.addi %1, %107 : vector<1x256xi32>
    %c0_i32_48 = arith.constant 0 : i32
    %109 = vector.broadcast %c0_i32_48 : i32 to vector<1x256xi32>
    %110 = arith.cmpi sge, %108, %109 : vector<1x256xi32>
    %111 = arith.andi %106, %110 : vector<1x256xi1>
    %c-1_i32_49 = arith.constant -1 : i32
    %112 = vector.broadcast %c-1_i32_49 : i32 to vector<1x256xi32>
    %113 = arith.addi %1, %112 : vector<1x256xi32>
    %c16_i32_50 = arith.constant 16 : i32
    %114 = vector.broadcast %c16_i32_50 : i32 to vector<1x256xi32>
    %115 = arith.cmpi slt, %113, %114 : vector<1x256xi32>
    %116 = arith.andi %111, %115 : vector<1x256xi1>
    %cst_51 = arith.constant 0.000000e+00 : f32
    %117 = vector.shape_cast %116 : vector<1x256xi1> to vector<1x256xi1>
    %118 = vector.broadcast %117 : vector<1x256xi1> to vector<24x256xi1>
    %119 = vector.broadcast %cst_51 : f32 to vector<24x256xf32>
    %120 = arith.select %118, %97, %119 : vector<24x256xi1>, vector<24x256xf32>
    %c3 = arith.constant 3 : index
    %c0_52 = arith.constant 0 : index
    %c0_53 = arith.constant 0 : index
    %121 = vector.load %arg6[%c3, %c0_52, %c0_53] : memref<9x24x1xf32, #tpu.memory_space<vmem>>, vector<1x24x1xf32>
    %122 = vector.shape_cast %121 : vector<1x24x1xf32> to vector<24x1xf32>
    %123 = vector.broadcast %122 : vector<24x1xf32> to vector<24x256xf32>
    %124 = arith.mulf %120, %123 : vector<24x256xf32>
    %125 = arith.addf %96, %124 : vector<24x256xf32>
    %c0_i32_54 = arith.constant 0 : i32
    %126 = vector.broadcast %c0_i32_54 : i32 to vector<1x256xi32>
    %127 = arith.addi %0, %126 : vector<1x256xi32>
    %c0_i32_55 = arith.constant 0 : i32
    %128 = vector.broadcast %c0_i32_55 : i32 to vector<1x256xi32>
    %129 = arith.cmpi sge, %127, %128 : vector<1x256xi32>
    %c0_i32_56 = arith.constant 0 : i32
    %130 = vector.broadcast %c0_i32_56 : i32 to vector<1x256xi32>
    %131 = arith.addi %0, %130 : vector<1x256xi32>
    %c16_i32_57 = arith.constant 16 : i32
    %132 = vector.broadcast %c16_i32_57 : i32 to vector<1x256xi32>
    %133 = arith.cmpi slt, %131, %132 : vector<1x256xi32>
    %134 = arith.andi %129, %133 : vector<1x256xi1>
    %c0_i32_58 = arith.constant 0 : i32
    %135 = vector.broadcast %c0_i32_58 : i32 to vector<1x256xi32>
    %136 = arith.addi %1, %135 : vector<1x256xi32>
    %c0_i32_59 = arith.constant 0 : i32
    %137 = vector.broadcast %c0_i32_59 : i32 to vector<1x256xi32>
    %138 = arith.cmpi sge, %136, %137 : vector<1x256xi32>
    %139 = arith.andi %134, %138 : vector<1x256xi1>
    %c0_i32_60 = arith.constant 0 : i32
    %140 = vector.broadcast %c0_i32_60 : i32 to vector<1x256xi32>
    %141 = arith.addi %1, %140 : vector<1x256xi32>
    %c16_i32_61 = arith.constant 16 : i32
    %142 = vector.broadcast %c16_i32_61 : i32 to vector<1x256xi32>
    %143 = arith.cmpi slt, %141, %142 : vector<1x256xi32>
    %144 = arith.andi %139, %143 : vector<1x256xi1>
    %cst_62 = arith.constant 0.000000e+00 : f32
    %145 = vector.shape_cast %144 : vector<1x256xi1> to vector<1x256xi1>
    %146 = vector.broadcast %145 : vector<1x256xi1> to vector<24x256xi1>
    %147 = vector.broadcast %cst_62 : f32 to vector<24x256xf32>
    %148 = arith.select %146, %8, %147 : vector<24x256xi1>, vector<24x256xf32>
    %c4 = arith.constant 4 : index
    %c0_63 = arith.constant 0 : index
    %c0_64 = arith.constant 0 : index
    %149 = vector.load %arg6[%c4, %c0_63, %c0_64] : memref<9x24x1xf32, #tpu.memory_space<vmem>>, vector<1x24x1xf32>
    %150 = vector.shape_cast %149 : vector<1x24x1xf32> to vector<24x1xf32>
    %151 = vector.broadcast %150 : vector<24x1xf32> to vector<24x256xf32>
    %152 = arith.mulf %148, %151 : vector<24x256xf32>
    %153 = arith.addf %125, %152 : vector<24x256xf32>
    %c255_i32 = arith.constant 255 : i32
    %154 = tpu.dynamic_rotate %8 by %c255_i32 dim 1 : vector<24x256xf32>, i32 -> vector<24x256xf32>
    %c0_i32_65 = arith.constant 0 : i32
    %155 = vector.broadcast %c0_i32_65 : i32 to vector<1x256xi32>
    %156 = arith.addi %0, %155 : vector<1x256xi32>
    %c0_i32_66 = arith.constant 0 : i32
    %157 = vector.broadcast %c0_i32_66 : i32 to vector<1x256xi32>
    %158 = arith.cmpi sge, %156, %157 : vector<1x256xi32>
    %c0_i32_67 = arith.constant 0 : i32
    %159 = vector.broadcast %c0_i32_67 : i32 to vector<1x256xi32>
    %160 = arith.addi %0, %159 : vector<1x256xi32>
    %c16_i32_68 = arith.constant 16 : i32
    %161 = vector.broadcast %c16_i32_68 : i32 to vector<1x256xi32>
    %162 = arith.cmpi slt, %160, %161 : vector<1x256xi32>
    %163 = arith.andi %158, %162 : vector<1x256xi1>
    %c1_i32_69 = arith.constant 1 : i32
    %164 = vector.broadcast %c1_i32_69 : i32 to vector<1x256xi32>
    %165 = arith.addi %1, %164 : vector<1x256xi32>
    %c0_i32_70 = arith.constant 0 : i32
    %166 = vector.broadcast %c0_i32_70 : i32 to vector<1x256xi32>
    %167 = arith.cmpi sge, %165, %166 : vector<1x256xi32>
    %168 = arith.andi %163, %167 : vector<1x256xi1>
    %c1_i32_71 = arith.constant 1 : i32
    %169 = vector.broadcast %c1_i32_71 : i32 to vector<1x256xi32>
    %170 = arith.addi %1, %169 : vector<1x256xi32>
    %c16_i32_72 = arith.constant 16 : i32
    %171 = vector.broadcast %c16_i32_72 : i32 to vector<1x256xi32>
    %172 = arith.cmpi slt, %170, %171 : vector<1x256xi32>
    %173 = arith.andi %168, %172 : vector<1x256xi1>
    %cst_73 = arith.constant 0.000000e+00 : f32
    %174 = vector.shape_cast %173 : vector<1x256xi1> to vector<1x256xi1>
    %175 = vector.broadcast %174 : vector<1x256xi1> to vector<24x256xi1>
    %176 = vector.broadcast %cst_73 : f32 to vector<24x256xf32>
    %177 = arith.select %175, %154, %176 : vector<24x256xi1>, vector<24x256xf32>
    %c5 = arith.constant 5 : index
    %c0_74 = arith.constant 0 : index
    %c0_75 = arith.constant 0 : index
    %178 = vector.load %arg6[%c5, %c0_74, %c0_75] : memref<9x24x1xf32, #tpu.memory_space<vmem>>, vector<1x24x1xf32>
    %179 = vector.shape_cast %178 : vector<1x24x1xf32> to vector<24x1xf32>
    %180 = vector.broadcast %179 : vector<24x1xf32> to vector<24x256xf32>
    %181 = arith.mulf %177, %180 : vector<24x256xf32>
    %182 = arith.addf %153, %181 : vector<24x256xf32>
    %c241_i32 = arith.constant 241 : i32
    %183 = tpu.dynamic_rotate %8 by %c241_i32 dim 1 : vector<24x256xf32>, i32 -> vector<24x256xf32>
    %c1_i32_76 = arith.constant 1 : i32
    %184 = vector.broadcast %c1_i32_76 : i32 to vector<1x256xi32>
    %185 = arith.addi %0, %184 : vector<1x256xi32>
    %c0_i32_77 = arith.constant 0 : i32
    %186 = vector.broadcast %c0_i32_77 : i32 to vector<1x256xi32>
    %187 = arith.cmpi sge, %185, %186 : vector<1x256xi32>
    %c1_i32_78 = arith.constant 1 : i32
    %188 = vector.broadcast %c1_i32_78 : i32 to vector<1x256xi32>
    %189 = arith.addi %0, %188 : vector<1x256xi32>
    %c16_i32_79 = arith.constant 16 : i32
    %190 = vector.broadcast %c16_i32_79 : i32 to vector<1x256xi32>
    %191 = arith.cmpi slt, %189, %190 : vector<1x256xi32>
    %192 = arith.andi %187, %191 : vector<1x256xi1>
    %c-1_i32_80 = arith.constant -1 : i32
    %193 = vector.broadcast %c-1_i32_80 : i32 to vector<1x256xi32>
    %194 = arith.addi %1, %193 : vector<1x256xi32>
    %c0_i32_81 = arith.constant 0 : i32
    %195 = vector.broadcast %c0_i32_81 : i32 to vector<1x256xi32>
    %196 = arith.cmpi sge, %194, %195 : vector<1x256xi32>
    %197 = arith.andi %192, %196 : vector<1x256xi1>
    %c-1_i32_82 = arith.constant -1 : i32
    %198 = vector.broadcast %c-1_i32_82 : i32 to vector<1x256xi32>
    %199 = arith.addi %1, %198 : vector<1x256xi32>
    %c16_i32_83 = arith.constant 16 : i32
    %200 = vector.broadcast %c16_i32_83 : i32 to vector<1x256xi32>
    %201 = arith.cmpi slt, %199, %200 : vector<1x256xi32>
    %202 = arith.andi %197, %201 : vector<1x256xi1>
    %cst_84 = arith.constant 0.000000e+00 : f32
    %203 = vector.shape_cast %202 : vector<1x256xi1> to vector<1x256xi1>
    %204 = vector.broadcast %203 : vector<1x256xi1> to vector<24x256xi1>
    %205 = vector.broadcast %cst_84 : f32 to vector<24x256xf32>
    %206 = arith.select %204, %183, %205 : vector<24x256xi1>, vector<24x256xf32>
    %c6 = arith.constant 6 : index
    %c0_85 = arith.constant 0 : index
    %c0_86 = arith.constant 0 : index
    %207 = vector.load %arg6[%c6, %c0_85, %c0_86] : memref<9x24x1xf32, #tpu.memory_space<vmem>>, vector<1x24x1xf32>
    %208 = vector.shape_cast %207 : vector<1x24x1xf32> to vector<24x1xf32>
    %209 = vector.broadcast %208 : vector<24x1xf32> to vector<24x256xf32>
    %210 = arith.mulf %206, %209 : vector<24x256xf32>
    %211 = arith.addf %182, %210 : vector<24x256xf32>
    %c240_i32 = arith.constant 240 : i32
    %212 = tpu.dynamic_rotate %8 by %c240_i32 dim 1 : vector<24x256xf32>, i32 -> vector<24x256xf32>
    %c1_i32_87 = arith.constant 1 : i32
    %213 = vector.broadcast %c1_i32_87 : i32 to vector<1x256xi32>
    %214 = arith.addi %0, %213 : vector<1x256xi32>
    %c0_i32_88 = arith.constant 0 : i32
    %215 = vector.broadcast %c0_i32_88 : i32 to vector<1x256xi32>
    %216 = arith.cmpi sge, %214, %215 : vector<1x256xi32>
    %c1_i32_89 = arith.constant 1 : i32
    %217 = vector.broadcast %c1_i32_89 : i32 to vector<1x256xi32>
    %218 = arith.addi %0, %217 : vector<1x256xi32>
    %c16_i32_90 = arith.constant 16 : i32
    %219 = vector.broadcast %c16_i32_90 : i32 to vector<1x256xi32>
    %220 = arith.cmpi slt, %218, %219 : vector<1x256xi32>
    %221 = arith.andi %216, %220 : vector<1x256xi1>
    %c0_i32_91 = arith.constant 0 : i32
    %222 = vector.broadcast %c0_i32_91 : i32 to vector<1x256xi32>
    %223 = arith.addi %1, %222 : vector<1x256xi32>
    %c0_i32_92 = arith.constant 0 : i32
    %224 = vector.broadcast %c0_i32_92 : i32 to vector<1x256xi32>
    %225 = arith.cmpi sge, %223, %224 : vector<1x256xi32>
    %226 = arith.andi %221, %225 : vector<1x256xi1>
    %c0_i32_93 = arith.constant 0 : i32
    %227 = vector.broadcast %c0_i32_93 : i32 to vector<1x256xi32>
    %228 = arith.addi %1, %227 : vector<1x256xi32>
    %c16_i32_94 = arith.constant 16 : i32
    %229 = vector.broadcast %c16_i32_94 : i32 to vector<1x256xi32>
    %230 = arith.cmpi slt, %228, %229 : vector<1x256xi32>
    %231 = arith.andi %226, %230 : vector<1x256xi1>
    %cst_95 = arith.constant 0.000000e+00 : f32
    %232 = vector.shape_cast %231 : vector<1x256xi1> to vector<1x256xi1>
    %233 = vector.broadcast %232 : vector<1x256xi1> to vector<24x256xi1>
    %234 = vector.broadcast %cst_95 : f32 to vector<24x256xf32>
    %235 = arith.select %233, %212, %234 : vector<24x256xi1>, vector<24x256xf32>
    %c7 = arith.constant 7 : index
    %c0_96 = arith.constant 0 : index
    %c0_97 = arith.constant 0 : index
    %236 = vector.load %arg6[%c7, %c0_96, %c0_97] : memref<9x24x1xf32, #tpu.memory_space<vmem>>, vector<1x24x1xf32>
    %237 = vector.shape_cast %236 : vector<1x24x1xf32> to vector<24x1xf32>
    %238 = vector.broadcast %237 : vector<24x1xf32> to vector<24x256xf32>
    %239 = arith.mulf %235, %238 : vector<24x256xf32>
    %240 = arith.addf %211, %239 : vector<24x256xf32>
    %c239_i32 = arith.constant 239 : i32
    %241 = tpu.dynamic_rotate %8 by %c239_i32 dim 1 : vector<24x256xf32>, i32 -> vector<24x256xf32>
    %c1_i32_98 = arith.constant 1 : i32
    %242 = vector.broadcast %c1_i32_98 : i32 to vector<1x256xi32>
    %243 = arith.addi %0, %242 : vector<1x256xi32>
    %c0_i32_99 = arith.constant 0 : i32
    %244 = vector.broadcast %c0_i32_99 : i32 to vector<1x256xi32>
    %245 = arith.cmpi sge, %243, %244 : vector<1x256xi32>
    %c1_i32_100 = arith.constant 1 : i32
    %246 = vector.broadcast %c1_i32_100 : i32 to vector<1x256xi32>
    %247 = arith.addi %0, %246 : vector<1x256xi32>
    %c16_i32_101 = arith.constant 16 : i32
    %248 = vector.broadcast %c16_i32_101 : i32 to vector<1x256xi32>
    %249 = arith.cmpi slt, %247, %248 : vector<1x256xi32>
    %250 = arith.andi %245, %249 : vector<1x256xi1>
    %c1_i32_102 = arith.constant 1 : i32
    %251 = vector.broadcast %c1_i32_102 : i32 to vector<1x256xi32>
    %252 = arith.addi %1, %251 : vector<1x256xi32>
    %c0_i32_103 = arith.constant 0 : i32
    %253 = vector.broadcast %c0_i32_103 : i32 to vector<1x256xi32>
    %254 = arith.cmpi sge, %252, %253 : vector<1x256xi32>
    %255 = arith.andi %250, %254 : vector<1x256xi1>
    %c1_i32_104 = arith.constant 1 : i32
    %256 = vector.broadcast %c1_i32_104 : i32 to vector<1x256xi32>
    %257 = arith.addi %1, %256 : vector<1x256xi32>
    %c16_i32_105 = arith.constant 16 : i32
    %258 = vector.broadcast %c16_i32_105 : i32 to vector<1x256xi32>
    %259 = arith.cmpi slt, %257, %258 : vector<1x256xi32>
    %260 = arith.andi %255, %259 : vector<1x256xi1>
    %cst_106 = arith.constant 0.000000e+00 : f32
    %261 = vector.shape_cast %260 : vector<1x256xi1> to vector<1x256xi1>
    %262 = vector.broadcast %261 : vector<1x256xi1> to vector<24x256xi1>
    %263 = vector.broadcast %cst_106 : f32 to vector<24x256xf32>
    %264 = arith.select %262, %241, %263 : vector<24x256xi1>, vector<24x256xf32>
    %c8 = arith.constant 8 : index
    %c0_107 = arith.constant 0 : index
    %c0_108 = arith.constant 0 : index
    %265 = vector.load %arg6[%c8, %c0_107, %c0_108] : memref<9x24x1xf32, #tpu.memory_space<vmem>>, vector<1x24x1xf32>
    %266 = vector.shape_cast %265 : vector<1x24x1xf32> to vector<24x1xf32>
    %267 = vector.broadcast %266 : vector<24x1xf32> to vector<24x256xf32>
    %268 = arith.mulf %264, %267 : vector<24x256xf32>
    %269 = arith.addf %240, %268 : vector<24x256xf32>
    %c0_109 = arith.constant 0 : index
    %c0_110 = arith.constant 0 : index
    %270 = vector.load %arg7[%c0_109, %c0_110] : memref<24x1xf32, #tpu.memory_space<vmem>>, vector<24x1xf32>
    %271 = vector.broadcast %270 : vector<24x1xf32> to vector<24x256xf32>
    %272 = arith.addf %269, %271 : vector<24x256xf32>
    %273 = vector.extract_strided_slice %272 {offsets = [0, 0], sizes = [8, 256], strides = [1, 1]} : vector<24x256xf32> to vector<8x256xf32>
    %274 = vector.extract_strided_slice %272 {offsets = [8, 0], sizes = [8, 256], strides = [1, 1]} : vector<24x256xf32> to vector<8x256xf32>
    %275 = vector.extract_strided_slice %272 {offsets = [16, 0], sizes = [8, 256], strides = [1, 1]} : vector<24x256xf32> to vector<8x256xf32>
    %cst_111 = arith.constant 5.000000e-01 : f32
    %276 = vector.broadcast %cst_111 : f32 to vector<8x256xf32>
    %277 = arith.mulf %276, %273 : vector<8x256xf32>
    %cst_112 = arith.constant 0.707106769 : f32
    %278 = vector.broadcast %cst_112 : f32 to vector<8x256xf32>
    %279 = arith.mulf %273, %278 : vector<8x256xf32>
    %280 = math.erf %279 : vector<8x256xf32>
    %cst_113 = arith.constant 1.000000e+00 : f32
    %281 = vector.broadcast %cst_113 : f32 to vector<8x256xf32>
    %282 = arith.addf %281, %280 : vector<8x256xf32>
    %283 = arith.mulf %277, %282 : vector<8x256xf32>
    %284 = arith.negf %283 : vector<8x256xf32>
    %285 = math.exp %284 : vector<8x256xf32>
    %cst_114 = arith.constant 1.000000e+00 : f32
    %286 = vector.broadcast %cst_114 : f32 to vector<8x256xf32>
    %287 = arith.addf %286, %285 : vector<8x256xf32>
    %288 = arith.divf %286, %287 : vector<8x256xf32>
    %cst_115 = arith.constant 5.000000e-01 : f32
    %289 = vector.broadcast %cst_115 : f32 to vector<8x256xf32>
    %290 = arith.mulf %289, %274 : vector<8x256xf32>
    %cst_116 = arith.constant 0.707106769 : f32
    %291 = vector.broadcast %cst_116 : f32 to vector<8x256xf32>
    %292 = arith.mulf %274, %291 : vector<8x256xf32>
    %293 = math.erf %292 : vector<8x256xf32>
    %cst_117 = arith.constant 1.000000e+00 : f32
    %294 = vector.broadcast %cst_117 : f32 to vector<8x256xf32>
    %295 = arith.addf %294, %293 : vector<8x256xf32>
    %296 = arith.mulf %290, %295 : vector<8x256xf32>
    %cst_118 = arith.constant dense<0.000000e+00> : vector<256xf32>
    %297 = vector.multi_reduction <add>, %296, %cst_118 [0] : vector<8x256xf32> to vector<256xf32>
    %298 = vector.shape_cast %297 : vector<256xf32> to vector<1x256xf32>
    %cst_119 = arith.constant 8.000000e+00 : f32
    %299 = vector.broadcast %cst_119 : f32 to vector<1x256xf32>
    %300 = arith.divf %298, %299 : vector<1x256xf32>
    %cst_120 = arith.constant dense<0xFF800000> : vector<256xf32>
    %301 = vector.multi_reduction <maximumf>, %296, %cst_120 [0] : vector<8x256xf32> to vector<256xf32>
    %302 = vector.shape_cast %301 : vector<256xf32> to vector<1x256xf32>
    %cst_121 = arith.constant 0.000000e+00 : f32
    %303 = vector.broadcast %cst_121 : f32 to vector<1x256xf32>
    %c0_122 = arith.constant 0 : index
    %304 = memref.load %arg8[%c0_122] : memref<98xf32, #tpu.memory_space<smem>>
    %c51_i32 = arith.constant 51 : i32
    %305 = tpu.dynamic_rotate %300 by %c51_i32 dim 1 : vector<1x256xf32>, i32 -> vector<1x256xf32>
    %c-3_i32 = arith.constant -3 : i32
    %306 = vector.broadcast %c-3_i32 : i32 to vector<1x256xi32>
    %307 = arith.addi %0, %306 : vector<1x256xi32>
    %c0_i32_123 = arith.constant 0 : i32
    %308 = vector.broadcast %c0_i32_123 : i32 to vector<1x256xi32>
    %309 = arith.cmpi sge, %307, %308 : vector<1x256xi32>
    %c-3_i32_124 = arith.constant -3 : i32
    %310 = vector.broadcast %c-3_i32_124 : i32 to vector<1x256xi32>
    %311 = arith.addi %0, %310 : vector<1x256xi32>
    %c16_i32_125 = arith.constant 16 : i32
    %312 = vector.broadcast %c16_i32_125 : i32 to vector<1x256xi32>
    %313 = arith.cmpi slt, %311, %312 : vector<1x256xi32>
    %314 = arith.andi %309, %313 : vector<1x256xi1>
    %c-3_i32_126 = arith.constant -3 : i32
    %315 = vector.broadcast %c-3_i32_126 : i32 to vector<1x256xi32>
    %316 = arith.addi %1, %315 : vector<1x256xi32>
    %c0_i32_127 = arith.constant 0 : i32
    %317 = vector.broadcast %c0_i32_127 : i32 to vector<1x256xi32>
    %318 = arith.cmpi sge, %316, %317 : vector<1x256xi32>
    %319 = arith.andi %314, %318 : vector<1x256xi1>
    %c-3_i32_128 = arith.constant -3 : i32
    %320 = vector.broadcast %c-3_i32_128 : i32 to vector<1x256xi32>
    %321 = arith.addi %1, %320 : vector<1x256xi32>
    %c16_i32_129 = arith.constant 16 : i32
    %322 = vector.broadcast %c16_i32_129 : i32 to vector<1x256xi32>
    %323 = arith.cmpi slt, %321, %322 : vector<1x256xi32>
    %324 = arith.andi %319, %323 : vector<1x256xi1>
    %cst_130 = arith.constant 0.000000e+00 : f32
    %325 = vector.broadcast %cst_130 : f32 to vector<1x256xf32>
    %326 = arith.select %324, %305, %325 : vector<1x256xi1>, vector<1x256xf32>
    %327 = vector.broadcast %304 : f32 to vector<1x256xf32>
    %328 = arith.mulf %327, %326 : vector<1x256xf32>
    %329 = arith.addf %303, %328 : vector<1x256xf32>
    %c1_131 = arith.constant 1 : index
    %330 = memref.load %arg8[%c1_131] : memref<98xf32, #tpu.memory_space<smem>>
    %c51_i32_132 = arith.constant 51 : i32
    %331 = tpu.dynamic_rotate %302 by %c51_i32_132 dim 1 : vector<1x256xf32>, i32 -> vector<1x256xf32>
    %c-3_i32_133 = arith.constant -3 : i32
    %332 = vector.broadcast %c-3_i32_133 : i32 to vector<1x256xi32>
    %333 = arith.addi %0, %332 : vector<1x256xi32>
    %c0_i32_134 = arith.constant 0 : i32
    %334 = vector.broadcast %c0_i32_134 : i32 to vector<1x256xi32>
    %335 = arith.cmpi sge, %333, %334 : vector<1x256xi32>
    %c-3_i32_135 = arith.constant -3 : i32
    %336 = vector.broadcast %c-3_i32_135 : i32 to vector<1x256xi32>
    %337 = arith.addi %0, %336 : vector<1x256xi32>
    %c16_i32_136 = arith.constant 16 : i32
    %338 = vector.broadcast %c16_i32_136 : i32 to vector<1x256xi32>
    %339 = arith.cmpi slt, %337, %338 : vector<1x256xi32>
    %340 = arith.andi %335, %339 : vector<1x256xi1>
    %c-3_i32_137 = arith.constant -3 : i32
    %341 = vector.broadcast %c-3_i32_137 : i32 to vector<1x256xi32>
    %342 = arith.addi %1, %341 : vector<1x256xi32>
    %c0_i32_138 = arith.constant 0 : i32
    %343 = vector.broadcast %c0_i32_138 : i32 to vector<1x256xi32>
    %344 = arith.cmpi sge, %342, %343 : vector<1x256xi32>
    %345 = arith.andi %340, %344 : vector<1x256xi1>
    %c-3_i32_139 = arith.constant -3 : i32
    %346 = vector.broadcast %c-3_i32_139 : i32 to vector<1x256xi32>
    %347 = arith.addi %1, %346 : vector<1x256xi32>
    %c16_i32_140 = arith.constant 16 : i32
    %348 = vector.broadcast %c16_i32_140 : i32 to vector<1x256xi32>
    %349 = arith.cmpi slt, %347, %348 : vector<1x256xi32>
    %350 = arith.andi %345, %349 : vector<1x256xi1>
    %cst_141 = arith.constant 0.000000e+00 : f32
    %351 = vector.broadcast %cst_141 : f32 to vector<1x256xf32>
    %352 = arith.select %350, %331, %351 : vector<1x256xi1>, vector<1x256xf32>
    %353 = vector.broadcast %330 : f32 to vector<1x256xf32>
    %354 = arith.mulf %353, %352 : vector<1x256xf32>
    %355 = arith.addf %329, %354 : vector<1x256xf32>
    %c2_142 = arith.constant 2 : index
    %356 = memref.load %arg8[%c2_142] : memref<98xf32, #tpu.memory_space<smem>>
    %c50_i32 = arith.constant 50 : i32
    %357 = tpu.dynamic_rotate %300 by %c50_i32 dim 1 : vector<1x256xf32>, i32 -> vector<1x256xf32>
    %c-3_i32_143 = arith.constant -3 : i32
    %358 = vector.broadcast %c-3_i32_143 : i32 to vector<1x256xi32>
    %359 = arith.addi %0, %358 : vector<1x256xi32>
    %c0_i32_144 = arith.constant 0 : i32
    %360 = vector.broadcast %c0_i32_144 : i32 to vector<1x256xi32>
    %361 = arith.cmpi sge, %359, %360 : vector<1x256xi32>
    %c-3_i32_145 = arith.constant -3 : i32
    %362 = vector.broadcast %c-3_i32_145 : i32 to vector<1x256xi32>
    %363 = arith.addi %0, %362 : vector<1x256xi32>
    %c16_i32_146 = arith.constant 16 : i32
    %364 = vector.broadcast %c16_i32_146 : i32 to vector<1x256xi32>
    %365 = arith.cmpi slt, %363, %364 : vector<1x256xi32>
    %366 = arith.andi %361, %365 : vector<1x256xi1>
    %c-2_i32 = arith.constant -2 : i32
    %367 = vector.broadcast %c-2_i32 : i32 to vector<1x256xi32>
    %368 = arith.addi %1, %367 : vector<1x256xi32>
    %c0_i32_147 = arith.constant 0 : i32
    %369 = vector.broadcast %c0_i32_147 : i32 to vector<1x256xi32>
    %370 = arith.cmpi sge, %368, %369 : vector<1x256xi32>
    %371 = arith.andi %366, %370 : vector<1x256xi1>
    %c-2_i32_148 = arith.constant -2 : i32
    %372 = vector.broadcast %c-2_i32_148 : i32 to vector<1x256xi32>
    %373 = arith.addi %1, %372 : vector<1x256xi32>
    %c16_i32_149 = arith.constant 16 : i32
    %374 = vector.broadcast %c16_i32_149 : i32 to vector<1x256xi32>
    %375 = arith.cmpi slt, %373, %374 : vector<1x256xi32>
    %376 = arith.andi %371, %375 : vector<1x256xi1>
    %cst_150 = arith.constant 0.000000e+00 : f32
    %377 = vector.broadcast %cst_150 : f32 to vector<1x256xf32>
    %378 = arith.select %376, %357, %377 : vector<1x256xi1>, vector<1x256xf32>
    %379 = vector.broadcast %356 : f32 to vector<1x256xf32>
    %380 = arith.mulf %379, %378 : vector<1x256xf32>
    %381 = arith.addf %355, %380 : vector<1x256xf32>
    %c3_151 = arith.constant 3 : index
    %382 = memref.load %arg8[%c3_151] : memref<98xf32, #tpu.memory_space<smem>>
    %c50_i32_152 = arith.constant 50 : i32
    %383 = tpu.dynamic_rotate %302 by %c50_i32_152 dim 1 : vector<1x256xf32>, i32 -> vector<1x256xf32>
    %c-3_i32_153 = arith.constant -3 : i32
    %384 = vector.broadcast %c-3_i32_153 : i32 to vector<1x256xi32>
    %385 = arith.addi %0, %384 : vector<1x256xi32>
    %c0_i32_154 = arith.constant 0 : i32
    %386 = vector.broadcast %c0_i32_154 : i32 to vector<1x256xi32>
    %387 = arith.cmpi sge, %385, %386 : vector<1x256xi32>
    %c-3_i32_155 = arith.constant -3 : i32
    %388 = vector.broadcast %c-3_i32_155 : i32 to vector<1x256xi32>
    %389 = arith.addi %0, %388 : vector<1x256xi32>
    %c16_i32_156 = arith.constant 16 : i32
    %390 = vector.broadcast %c16_i32_156 : i32 to vector<1x256xi32>
    %391 = arith.cmpi slt, %389, %390 : vector<1x256xi32>
    %392 = arith.andi %387, %391 : vector<1x256xi1>
    %c-2_i32_157 = arith.constant -2 : i32
    %393 = vector.broadcast %c-2_i32_157 : i32 to vector<1x256xi32>
    %394 = arith.addi %1, %393 : vector<1x256xi32>
    %c0_i32_158 = arith.constant 0 : i32
    %395 = vector.broadcast %c0_i32_158 : i32 to vector<1x256xi32>
    %396 = arith.cmpi sge, %394, %395 : vector<1x256xi32>
    %397 = arith.andi %392, %396 : vector<1x256xi1>
    %c-2_i32_159 = arith.constant -2 : i32
    %398 = vector.broadcast %c-2_i32_159 : i32 to vector<1x256xi32>
    %399 = arith.addi %1, %398 : vector<1x256xi32>
    %c16_i32_160 = arith.constant 16 : i32
    %400 = vector.broadcast %c16_i32_160 : i32 to vector<1x256xi32>
    %401 = arith.cmpi slt, %399, %400 : vector<1x256xi32>
    %402 = arith.andi %397, %401 : vector<1x256xi1>
    %cst_161 = arith.constant 0.000000e+00 : f32
    %403 = vector.broadcast %cst_161 : f32 to vector<1x256xf32>
    %404 = arith.select %402, %383, %403 : vector<1x256xi1>, vector<1x256xf32>
    %405 = vector.broadcast %382 : f32 to vector<1x256xf32>
    %406 = arith.mulf %405, %404 : vector<1x256xf32>
    %407 = arith.addf %381, %406 : vector<1x256xf32>
    %c4_162 = arith.constant 4 : index
    %408 = memref.load %arg8[%c4_162] : memref<98xf32, #tpu.memory_space<smem>>
    %c49_i32 = arith.constant 49 : i32
    %409 = tpu.dynamic_rotate %300 by %c49_i32 dim 1 : vector<1x256xf32>, i32 -> vector<1x256xf32>
    %c-3_i32_163 = arith.constant -3 : i32
    %410 = vector.broadcast %c-3_i32_163 : i32 to vector<1x256xi32>
    %411 = arith.addi %0, %410 : vector<1x256xi32>
    %c0_i32_164 = arith.constant 0 : i32
    %412 = vector.broadcast %c0_i32_164 : i32 to vector<1x256xi32>
    %413 = arith.cmpi sge, %411, %412 : vector<1x256xi32>
    %c-3_i32_165 = arith.constant -3 : i32
    %414 = vector.broadcast %c-3_i32_165 : i32 to vector<1x256xi32>
    %415 = arith.addi %0, %414 : vector<1x256xi32>
    %c16_i32_166 = arith.constant 16 : i32
    %416 = vector.broadcast %c16_i32_166 : i32 to vector<1x256xi32>
    %417 = arith.cmpi slt, %415, %416 : vector<1x256xi32>
    %418 = arith.andi %413, %417 : vector<1x256xi1>
    %c-1_i32_167 = arith.constant -1 : i32
    %419 = vector.broadcast %c-1_i32_167 : i32 to vector<1x256xi32>
    %420 = arith.addi %1, %419 : vector<1x256xi32>
    %c0_i32_168 = arith.constant 0 : i32
    %421 = vector.broadcast %c0_i32_168 : i32 to vector<1x256xi32>
    %422 = arith.cmpi sge, %420, %421 : vector<1x256xi32>
    %423 = arith.andi %418, %422 : vector<1x256xi1>
    %c-1_i32_169 = arith.constant -1 : i32
    %424 = vector.broadcast %c-1_i32_169 : i32 to vector<1x256xi32>
    %425 = arith.addi %1, %424 : vector<1x256xi32>
    %c16_i32_170 = arith.constant 16 : i32
    %426 = vector.broadcast %c16_i32_170 : i32 to vector<1x256xi32>
    %427 = arith.cmpi slt, %425, %426 : vector<1x256xi32>
    %428 = arith.andi %423, %427 : vector<1x256xi1>
    %cst_171 = arith.constant 0.000000e+00 : f32
    %429 = vector.broadcast %cst_171 : f32 to vector<1x256xf32>
    %430 = arith.select %428, %409, %429 : vector<1x256xi1>, vector<1x256xf32>
    %431 = vector.broadcast %408 : f32 to vector<1x256xf32>
    %432 = arith.mulf %431, %430 : vector<1x256xf32>
    %433 = arith.addf %407, %432 : vector<1x256xf32>
    %c5_172 = arith.constant 5 : index
    %434 = memref.load %arg8[%c5_172] : memref<98xf32, #tpu.memory_space<smem>>
    %c49_i32_173 = arith.constant 49 : i32
    %435 = tpu.dynamic_rotate %302 by %c49_i32_173 dim 1 : vector<1x256xf32>, i32 -> vector<1x256xf32>
    %c-3_i32_174 = arith.constant -3 : i32
    %436 = vector.broadcast %c-3_i32_174 : i32 to vector<1x256xi32>
    %437 = arith.addi %0, %436 : vector<1x256xi32>
    %c0_i32_175 = arith.constant 0 : i32
    %438 = vector.broadcast %c0_i32_175 : i32 to vector<1x256xi32>
    %439 = arith.cmpi sge, %437, %438 : vector<1x256xi32>
    %c-3_i32_176 = arith.constant -3 : i32
    %440 = vector.broadcast %c-3_i32_176 : i32 to vector<1x256xi32>
    %441 = arith.addi %0, %440 : vector<1x256xi32>
    %c16_i32_177 = arith.constant 16 : i32
    %442 = vector.broadcast %c16_i32_177 : i32 to vector<1x256xi32>
    %443 = arith.cmpi slt, %441, %442 : vector<1x256xi32>
    %444 = arith.andi %439, %443 : vector<1x256xi1>
    %c-1_i32_178 = arith.constant -1 : i32
    %445 = vector.broadcast %c-1_i32_178 : i32 to vector<1x256xi32>
    %446 = arith.addi %1, %445 : vector<1x256xi32>
    %c0_i32_179 = arith.constant 0 : i32
    %447 = vector.broadcast %c0_i32_179 : i32 to vector<1x256xi32>
    %448 = arith.cmpi sge, %446, %447 : vector<1x256xi32>
    %449 = arith.andi %444, %448 : vector<1x256xi1>
    %c-1_i32_180 = arith.constant -1 : i32
    %450 = vector.broadcast %c-1_i32_180 : i32 to vector<1x256xi32>
    %451 = arith.addi %1, %450 : vector<1x256xi32>
    %c16_i32_181 = arith.constant 16 : i32
    %452 = vector.broadcast %c16_i32_181 : i32 to vector<1x256xi32>
    %453 = arith.cmpi slt, %451, %452 : vector<1x256xi32>
    %454 = arith.andi %449, %453 : vector<1x256xi1>
    %cst_182 = arith.constant 0.000000e+00 : f32
    %455 = vector.broadcast %cst_182 : f32 to vector<1x256xf32>
    %456 = arith.select %454, %435, %455 : vector<1x256xi1>, vector<1x256xf32>
    %457 = vector.broadcast %434 : f32 to vector<1x256xf32>
    %458 = arith.mulf %457, %456 : vector<1x256xf32>
    %459 = arith.addf %433, %458 : vector<1x256xf32>
    %c6_183 = arith.constant 6 : index
    %460 = memref.load %arg8[%c6_183] : memref<98xf32, #tpu.memory_space<smem>>
    %c48_i32 = arith.constant 48 : i32
    %461 = tpu.dynamic_rotate %300 by %c48_i32 dim 1 : vector<1x256xf32>, i32 -> vector<1x256xf32>
    %c-3_i32_184 = arith.constant -3 : i32
    %462 = vector.broadcast %c-3_i32_184 : i32 to vector<1x256xi32>
    %463 = arith.addi %0, %462 : vector<1x256xi32>
    %c0_i32_185 = arith.constant 0 : i32
    %464 = vector.broadcast %c0_i32_185 : i32 to vector<1x256xi32>
    %465 = arith.cmpi sge, %463, %464 : vector<1x256xi32>
    %c-3_i32_186 = arith.constant -3 : i32
    %466 = vector.broadcast %c-3_i32_186 : i32 to vector<1x256xi32>
    %467 = arith.addi %0, %466 : vector<1x256xi32>
    %c16_i32_187 = arith.constant 16 : i32
    %468 = vector.broadcast %c16_i32_187 : i32 to vector<1x256xi32>
    %469 = arith.cmpi slt, %467, %468 : vector<1x256xi32>
    %470 = arith.andi %465, %469 : vector<1x256xi1>
    %c0_i32_188 = arith.constant 0 : i32
    %471 = vector.broadcast %c0_i32_188 : i32 to vector<1x256xi32>
    %472 = arith.addi %1, %471 : vector<1x256xi32>
    %c0_i32_189 = arith.constant 0 : i32
    %473 = vector.broadcast %c0_i32_189 : i32 to vector<1x256xi32>
    %474 = arith.cmpi sge, %472, %473 : vector<1x256xi32>
    %475 = arith.andi %470, %474 : vector<1x256xi1>
    %c0_i32_190 = arith.constant 0 : i32
    %476 = vector.broadcast %c0_i32_190 : i32 to vector<1x256xi32>
    %477 = arith.addi %1, %476 : vector<1x256xi32>
    %c16_i32_191 = arith.constant 16 : i32
    %478 = vector.broadcast %c16_i32_191 : i32 to vector<1x256xi32>
    %479 = arith.cmpi slt, %477, %478 : vector<1x256xi32>
    %480 = arith.andi %475, %479 : vector<1x256xi1>
    %cst_192 = arith.constant 0.000000e+00 : f32
    %481 = vector.broadcast %cst_192 : f32 to vector<1x256xf32>
    %482 = arith.select %480, %461, %481 : vector<1x256xi1>, vector<1x256xf32>
    %483 = vector.broadcast %460 : f32 to vector<1x256xf32>
    %484 = arith.mulf %483, %482 : vector<1x256xf32>
    %485 = arith.addf %459, %484 : vector<1x256xf32>
    %c7_193 = arith.constant 7 : index
    %486 = memref.load %arg8[%c7_193] : memref<98xf32, #tpu.memory_space<smem>>
    %c48_i32_194 = arith.constant 48 : i32
    %487 = tpu.dynamic_rotate %302 by %c48_i32_194 dim 1 : vector<1x256xf32>, i32 -> vector<1x256xf32>
    %c-3_i32_195 = arith.constant -3 : i32
    %488 = vector.broadcast %c-3_i32_195 : i32 to vector<1x256xi32>
    %489 = arith.addi %0, %488 : vector<1x256xi32>
    %c0_i32_196 = arith.constant 0 : i32
    %490 = vector.broadcast %c0_i32_196 : i32 to vector<1x256xi32>
    %491 = arith.cmpi sge, %489, %490 : vector<1x256xi32>
    %c-3_i32_197 = arith.constant -3 : i32
    %492 = vector.broadcast %c-3_i32_197 : i32 to vector<1x256xi32>
    %493 = arith.addi %0, %492 : vector<1x256xi32>
    %c16_i32_198 = arith.constant 16 : i32
    %494 = vector.broadcast %c16_i32_198 : i32 to vector<1x256xi32>
    %495 = arith.cmpi slt, %493, %494 : vector<1x256xi32>
    %496 = arith.andi %491, %495 : vector<1x256xi1>
    %c0_i32_199 = arith.constant 0 : i32
    %497 = vector.broadcast %c0_i32_199 : i32 to vector<1x256xi32>
    %498 = arith.addi %1, %497 : vector<1x256xi32>
    %c0_i32_200 = arith.constant 0 : i32
    %499 = vector.broadcast %c0_i32_200 : i32 to vector<1x256xi32>
    %500 = arith.cmpi sge, %498, %499 : vector<1x256xi32>
    %501 = arith.andi %496, %500 : vector<1x256xi1>
    %c0_i32_201 = arith.constant 0 : i32
    %502 = vector.broadcast %c0_i32_201 : i32 to vector<1x256xi32>
    %503 = arith.addi %1, %502 : vector<1x256xi32>
    %c16_i32_202 = arith.constant 16 : i32
    %504 = vector.broadcast %c16_i32_202 : i32 to vector<1x256xi32>
    %505 = arith.cmpi slt, %503, %504 : vector<1x256xi32>
    %506 = arith.andi %501, %505 : vector<1x256xi1>
    %cst_203 = arith.constant 0.000000e+00 : f32
    %507 = vector.broadcast %cst_203 : f32 to vector<1x256xf32>
    %508 = arith.select %506, %487, %507 : vector<1x256xi1>, vector<1x256xf32>
    %509 = vector.broadcast %486 : f32 to vector<1x256xf32>
    %510 = arith.mulf %509, %508 : vector<1x256xf32>
    %511 = arith.addf %485, %510 : vector<1x256xf32>
    %c8_204 = arith.constant 8 : index
    %512 = memref.load %arg8[%c8_204] : memref<98xf32, #tpu.memory_space<smem>>
    %c47_i32 = arith.constant 47 : i32
    %513 = tpu.dynamic_rotate %300 by %c47_i32 dim 1 : vector<1x256xf32>, i32 -> vector<1x256xf32>
    %c-3_i32_205 = arith.constant -3 : i32
    %514 = vector.broadcast %c-3_i32_205 : i32 to vector<1x256xi32>
    %515 = arith.addi %0, %514 : vector<1x256xi32>
    %c0_i32_206 = arith.constant 0 : i32
    %516 = vector.broadcast %c0_i32_206 : i32 to vector<1x256xi32>
    %517 = arith.cmpi sge, %515, %516 : vector<1x256xi32>
    %c-3_i32_207 = arith.constant -3 : i32
    %518 = vector.broadcast %c-3_i32_207 : i32 to vector<1x256xi32>
    %519 = arith.addi %0, %518 : vector<1x256xi32>
    %c16_i32_208 = arith.constant 16 : i32
    %520 = vector.broadcast %c16_i32_208 : i32 to vector<1x256xi32>
    %521 = arith.cmpi slt, %519, %520 : vector<1x256xi32>
    %522 = arith.andi %517, %521 : vector<1x256xi1>
    %c1_i32_209 = arith.constant 1 : i32
    %523 = vector.broadcast %c1_i32_209 : i32 to vector<1x256xi32>
    %524 = arith.addi %1, %523 : vector<1x256xi32>
    %c0_i32_210 = arith.constant 0 : i32
    %525 = vector.broadcast %c0_i32_210 : i32 to vector<1x256xi32>
    %526 = arith.cmpi sge, %524, %525 : vector<1x256xi32>
    %527 = arith.andi %522, %526 : vector<1x256xi1>
    %c1_i32_211 = arith.constant 1 : i32
    %528 = vector.broadcast %c1_i32_211 : i32 to vector<1x256xi32>
    %529 = arith.addi %1, %528 : vector<1x256xi32>
    %c16_i32_212 = arith.constant 16 : i32
    %530 = vector.broadcast %c16_i32_212 : i32 to vector<1x256xi32>
    %531 = arith.cmpi slt, %529, %530 : vector<1x256xi32>
    %532 = arith.andi %527, %531 : vector<1x256xi1>
    %cst_213 = arith.constant 0.000000e+00 : f32
    %533 = vector.broadcast %cst_213 : f32 to vector<1x256xf32>
    %534 = arith.select %532, %513, %533 : vector<1x256xi1>, vector<1x256xf32>
    %535 = vector.broadcast %512 : f32 to vector<1x256xf32>
    %536 = arith.mulf %535, %534 : vector<1x256xf32>
    %537 = arith.addf %511, %536 : vector<1x256xf32>
    %c9 = arith.constant 9 : index
    %538 = memref.load %arg8[%c9] : memref<98xf32, #tpu.memory_space<smem>>
    %c47_i32_214 = arith.constant 47 : i32
    %539 = tpu.dynamic_rotate %302 by %c47_i32_214 dim 1 : vector<1x256xf32>, i32 -> vector<1x256xf32>
    %c-3_i32_215 = arith.constant -3 : i32
    %540 = vector.broadcast %c-3_i32_215 : i32 to vector<1x256xi32>
    %541 = arith.addi %0, %540 : vector<1x256xi32>
    %c0_i32_216 = arith.constant 0 : i32
    %542 = vector.broadcast %c0_i32_216 : i32 to vector<1x256xi32>
    %543 = arith.cmpi sge, %541, %542 : vector<1x256xi32>
    %c-3_i32_217 = arith.constant -3 : i32
    %544 = vector.broadcast %c-3_i32_217 : i32 to vector<1x256xi32>
    %545 = arith.addi %0, %544 : vector<1x256xi32>
    %c16_i32_218 = arith.constant 16 : i32
    %546 = vector.broadcast %c16_i32_218 : i32 to vector<1x256xi32>
    %547 = arith.cmpi slt, %545, %546 : vector<1x256xi32>
    %548 = arith.andi %543, %547 : vector<1x256xi1>
    %c1_i32_219 = arith.constant 1 : i32
    %549 = vector.broadcast %c1_i32_219 : i32 to vector<1x256xi32>
    %550 = arith.addi %1, %549 : vector<1x256xi32>
    %c0_i32_220 = arith.constant 0 : i32
    %551 = vector.broadcast %c0_i32_220 : i32 to vector<1x256xi32>
    %552 = arith.cmpi sge, %550, %551 : vector<1x256xi32>
    %553 = arith.andi %548, %552 : vector<1x256xi1>
    %c1_i32_221 = arith.constant 1 : i32
    %554 = vector.broadcast %c1_i32_221 : i32 to vector<1x256xi32>
    %555 = arith.addi %1, %554 : vector<1x256xi32>
    %c16_i32_222 = arith.constant 16 : i32
    %556 = vector.broadcast %c16_i32_222 : i32 to vector<1x256xi32>
    %557 = arith.cmpi slt, %555, %556 : vector<1x256xi32>
    %558 = arith.andi %553, %557 : vector<1x256xi1>
    %cst_223 = arith.constant 0.000000e+00 : f32
    %559 = vector.broadcast %cst_223 : f32 to vector<1x256xf32>
    %560 = arith.select %558, %539, %559 : vector<1x256xi1>, vector<1x256xf32>
    %561 = vector.broadcast %538 : f32 to vector<1x256xf32>
    %562 = arith.mulf %561, %560 : vector<1x256xf32>
    %563 = arith.addf %537, %562 : vector<1x256xf32>
    %c10 = arith.constant 10 : index
    %564 = memref.load %arg8[%c10] : memref<98xf32, #tpu.memory_space<smem>>
    %c46_i32 = arith.constant 46 : i32
    %565 = tpu.dynamic_rotate %300 by %c46_i32 dim 1 : vector<1x256xf32>, i32 -> vector<1x256xf32>
    %c-3_i32_224 = arith.constant -3 : i32
    %566 = vector.broadcast %c-3_i32_224 : i32 to vector<1x256xi32>
    %567 = arith.addi %0, %566 : vector<1x256xi32>
    %c0_i32_225 = arith.constant 0 : i32
    %568 = vector.broadcast %c0_i32_225 : i32 to vector<1x256xi32>
    %569 = arith.cmpi sge, %567, %568 : vector<1x256xi32>
    %c-3_i32_226 = arith.constant -3 : i32
    %570 = vector.broadcast %c-3_i32_226 : i32 to vector<1x256xi32>
    %571 = arith.addi %0, %570 : vector<1x256xi32>
    %c16_i32_227 = arith.constant 16 : i32
    %572 = vector.broadcast %c16_i32_227 : i32 to vector<1x256xi32>
    %573 = arith.cmpi slt, %571, %572 : vector<1x256xi32>
    %574 = arith.andi %569, %573 : vector<1x256xi1>
    %c2_i32 = arith.constant 2 : i32
    %575 = vector.broadcast %c2_i32 : i32 to vector<1x256xi32>
    %576 = arith.addi %1, %575 : vector<1x256xi32>
    %c0_i32_228 = arith.constant 0 : i32
    %577 = vector.broadcast %c0_i32_228 : i32 to vector<1x256xi32>
    %578 = arith.cmpi sge, %576, %577 : vector<1x256xi32>
    %579 = arith.andi %574, %578 : vector<1x256xi1>
    %c2_i32_229 = arith.constant 2 : i32
    %580 = vector.broadcast %c2_i32_229 : i32 to vector<1x256xi32>
    %581 = arith.addi %1, %580 : vector<1x256xi32>
    %c16_i32_230 = arith.constant 16 : i32
    %582 = vector.broadcast %c16_i32_230 : i32 to vector<1x256xi32>
    %583 = arith.cmpi slt, %581, %582 : vector<1x256xi32>
    %584 = arith.andi %579, %583 : vector<1x256xi1>
    %cst_231 = arith.constant 0.000000e+00 : f32
    %585 = vector.broadcast %cst_231 : f32 to vector<1x256xf32>
    %586 = arith.select %584, %565, %585 : vector<1x256xi1>, vector<1x256xf32>
    %587 = vector.broadcast %564 : f32 to vector<1x256xf32>
    %588 = arith.mulf %587, %586 : vector<1x256xf32>
    %589 = arith.addf %563, %588 : vector<1x256xf32>
    %c11 = arith.constant 11 : index
    %590 = memref.load %arg8[%c11] : memref<98xf32, #tpu.memory_space<smem>>
    %c46_i32_232 = arith.constant 46 : i32
    %591 = tpu.dynamic_rotate %302 by %c46_i32_232 dim 1 : vector<1x256xf32>, i32 -> vector<1x256xf32>
    %c-3_i32_233 = arith.constant -3 : i32
    %592 = vector.broadcast %c-3_i32_233 : i32 to vector<1x256xi32>
    %593 = arith.addi %0, %592 : vector<1x256xi32>
    %c0_i32_234 = arith.constant 0 : i32
    %594 = vector.broadcast %c0_i32_234 : i32 to vector<1x256xi32>
    %595 = arith.cmpi sge, %593, %594 : vector<1x256xi32>
    %c-3_i32_235 = arith.constant -3 : i32
    %596 = vector.broadcast %c-3_i32_235 : i32 to vector<1x256xi32>
    %597 = arith.addi %0, %596 : vector<1x256xi32>
    %c16_i32_236 = arith.constant 16 : i32
    %598 = vector.broadcast %c16_i32_236 : i32 to vector<1x256xi32>
    %599 = arith.cmpi slt, %597, %598 : vector<1x256xi32>
    %600 = arith.andi %595, %599 : vector<1x256xi1>
    %c2_i32_237 = arith.constant 2 : i32
    %601 = vector.broadcast %c2_i32_237 : i32 to vector<1x256xi32>
    %602 = arith.addi %1, %601 : vector<1x256xi32>
    %c0_i32_238 = arith.constant 0 : i32
    %603 = vector.broadcast %c0_i32_238 : i32 to vector<1x256xi32>
    %604 = arith.cmpi sge, %602, %603 : vector<1x256xi32>
    %605 = arith.andi %600, %604 : vector<1x256xi1>
    %c2_i32_239 = arith.constant 2 : i32
    %606 = vector.broadcast %c2_i32_239 : i32 to vector<1x256xi32>
    %607 = arith.addi %1, %606 : vector<1x256xi32>
    %c16_i32_240 = arith.constant 16 : i32
    %608 = vector.broadcast %c16_i32_240 : i32 to vector<1x256xi32>
    %609 = arith.cmpi slt, %607, %608 : vector<1x256xi32>
    %610 = arith.andi %605, %609 : vector<1x256xi1>
    %cst_241 = arith.constant 0.000000e+00 : f32
    %611 = vector.broadcast %cst_241 : f32 to vector<1x256xf32>
    %612 = arith.select %610, %591, %611 : vector<1x256xi1>, vector<1x256xf32>
    %613 = vector.broadcast %590 : f32 to vector<1x256xf32>
    %614 = arith.mulf %613, %612 : vector<1x256xf32>
    %615 = arith.addf %589, %614 : vector<1x256xf32>
    %c12 = arith.constant 12 : index
    %616 = memref.load %arg8[%c12] : memref<98xf32, #tpu.memory_space<smem>>
    %c45_i32 = arith.constant 45 : i32
    %617 = tpu.dynamic_rotate %300 by %c45_i32 dim 1 : vector<1x256xf32>, i32 -> vector<1x256xf32>
    %c-3_i32_242 = arith.constant -3 : i32
    %618 = vector.broadcast %c-3_i32_242 : i32 to vector<1x256xi32>
    %619 = arith.addi %0, %618 : vector<1x256xi32>
    %c0_i32_243 = arith.constant 0 : i32
    %620 = vector.broadcast %c0_i32_243 : i32 to vector<1x256xi32>
    %621 = arith.cmpi sge, %619, %620 : vector<1x256xi32>
    %c-3_i32_244 = arith.constant -3 : i32
    %622 = vector.broadcast %c-3_i32_244 : i32 to vector<1x256xi32>
    %623 = arith.addi %0, %622 : vector<1x256xi32>
    %c16_i32_245 = arith.constant 16 : i32
    %624 = vector.broadcast %c16_i32_245 : i32 to vector<1x256xi32>
    %625 = arith.cmpi slt, %623, %624 : vector<1x256xi32>
    %626 = arith.andi %621, %625 : vector<1x256xi1>
    %c3_i32 = arith.constant 3 : i32
    %627 = vector.broadcast %c3_i32 : i32 to vector<1x256xi32>
    %628 = arith.addi %1, %627 : vector<1x256xi32>
    %c0_i32_246 = arith.constant 0 : i32
    %629 = vector.broadcast %c0_i32_246 : i32 to vector<1x256xi32>
    %630 = arith.cmpi sge, %628, %629 : vector<1x256xi32>
    %631 = arith.andi %626, %630 : vector<1x256xi1>
    %c3_i32_247 = arith.constant 3 : i32
    %632 = vector.broadcast %c3_i32_247 : i32 to vector<1x256xi32>
    %633 = arith.addi %1, %632 : vector<1x256xi32>
    %c16_i32_248 = arith.constant 16 : i32
    %634 = vector.broadcast %c16_i32_248 : i32 to vector<1x256xi32>
    %635 = arith.cmpi slt, %633, %634 : vector<1x256xi32>
    %636 = arith.andi %631, %635 : vector<1x256xi1>
    %cst_249 = arith.constant 0.000000e+00 : f32
    %637 = vector.broadcast %cst_249 : f32 to vector<1x256xf32>
    %638 = arith.select %636, %617, %637 : vector<1x256xi1>, vector<1x256xf32>
    %639 = vector.broadcast %616 : f32 to vector<1x256xf32>
    %640 = arith.mulf %639, %638 : vector<1x256xf32>
    %641 = arith.addf %615, %640 : vector<1x256xf32>
    %c13 = arith.constant 13 : index
    %642 = memref.load %arg8[%c13] : memref<98xf32, #tpu.memory_space<smem>>
    %c45_i32_250 = arith.constant 45 : i32
    %643 = tpu.dynamic_rotate %302 by %c45_i32_250 dim 1 : vector<1x256xf32>, i32 -> vector<1x256xf32>
    %c-3_i32_251 = arith.constant -3 : i32
    %644 = vector.broadcast %c-3_i32_251 : i32 to vector<1x256xi32>
    %645 = arith.addi %0, %644 : vector<1x256xi32>
    %c0_i32_252 = arith.constant 0 : i32
    %646 = vector.broadcast %c0_i32_252 : i32 to vector<1x256xi32>
    %647 = arith.cmpi sge, %645, %646 : vector<1x256xi32>
    %c-3_i32_253 = arith.constant -3 : i32
    %648 = vector.broadcast %c-3_i32_253 : i32 to vector<1x256xi32>
    %649 = arith.addi %0, %648 : vector<1x256xi32>
    %c16_i32_254 = arith.constant 16 : i32
    %650 = vector.broadcast %c16_i32_254 : i32 to vector<1x256xi32>
    %651 = arith.cmpi slt, %649, %650 : vector<1x256xi32>
    %652 = arith.andi %647, %651 : vector<1x256xi1>
    %c3_i32_255 = arith.constant 3 : i32
    %653 = vector.broadcast %c3_i32_255 : i32 to vector<1x256xi32>
    %654 = arith.addi %1, %653 : vector<1x256xi32>
    %c0_i32_256 = arith.constant 0 : i32
    %655 = vector.broadcast %c0_i32_256 : i32 to vector<1x256xi32>
    %656 = arith.cmpi sge, %654, %655 : vector<1x256xi32>
    %657 = arith.andi %652, %656 : vector<1x256xi1>
    %c3_i32_257 = arith.constant 3 : i32
    %658 = vector.broadcast %c3_i32_257 : i32 to vector<1x256xi32>
    %659 = arith.addi %1, %658 : vector<1x256xi32>
    %c16_i32_258 = arith.constant 16 : i32
    %660 = vector.broadcast %c16_i32_258 : i32 to vector<1x256xi32>
    %661 = arith.cmpi slt, %659, %660 : vector<1x256xi32>
    %662 = arith.andi %657, %661 : vector<1x256xi1>
    %cst_259 = arith.constant 0.000000e+00 : f32
    %663 = vector.broadcast %cst_259 : f32 to vector<1x256xf32>
    %664 = arith.select %662, %643, %663 : vector<1x256xi1>, vector<1x256xf32>
    %665 = vector.broadcast %642 : f32 to vector<1x256xf32>
    %666 = arith.mulf %665, %664 : vector<1x256xf32>
    %667 = arith.addf %641, %666 : vector<1x256xf32>
    %c14 = arith.constant 14 : index
    %668 = memref.load %arg8[%c14] : memref<98xf32, #tpu.memory_space<smem>>
    %c35_i32 = arith.constant 35 : i32
    %669 = tpu.dynamic_rotate %300 by %c35_i32 dim 1 : vector<1x256xf32>, i32 -> vector<1x256xf32>
    %c-2_i32_260 = arith.constant -2 : i32
    %670 = vector.broadcast %c-2_i32_260 : i32 to vector<1x256xi32>
    %671 = arith.addi %0, %670 : vector<1x256xi32>
    %c0_i32_261 = arith.constant 0 : i32
    %672 = vector.broadcast %c0_i32_261 : i32 to vector<1x256xi32>
    %673 = arith.cmpi sge, %671, %672 : vector<1x256xi32>
    %c-2_i32_262 = arith.constant -2 : i32
    %674 = vector.broadcast %c-2_i32_262 : i32 to vector<1x256xi32>
    %675 = arith.addi %0, %674 : vector<1x256xi32>
    %c16_i32_263 = arith.constant 16 : i32
    %676 = vector.broadcast %c16_i32_263 : i32 to vector<1x256xi32>
    %677 = arith.cmpi slt, %675, %676 : vector<1x256xi32>
    %678 = arith.andi %673, %677 : vector<1x256xi1>
    %c-3_i32_264 = arith.constant -3 : i32
    %679 = vector.broadcast %c-3_i32_264 : i32 to vector<1x256xi32>
    %680 = arith.addi %1, %679 : vector<1x256xi32>
    %c0_i32_265 = arith.constant 0 : i32
    %681 = vector.broadcast %c0_i32_265 : i32 to vector<1x256xi32>
    %682 = arith.cmpi sge, %680, %681 : vector<1x256xi32>
    %683 = arith.andi %678, %682 : vector<1x256xi1>
    %c-3_i32_266 = arith.constant -3 : i32
    %684 = vector.broadcast %c-3_i32_266 : i32 to vector<1x256xi32>
    %685 = arith.addi %1, %684 : vector<1x256xi32>
    %c16_i32_267 = arith.constant 16 : i32
    %686 = vector.broadcast %c16_i32_267 : i32 to vector<1x256xi32>
    %687 = arith.cmpi slt, %685, %686 : vector<1x256xi32>
    %688 = arith.andi %683, %687 : vector<1x256xi1>
    %cst_268 = arith.constant 0.000000e+00 : f32
    %689 = vector.broadcast %cst_268 : f32 to vector<1x256xf32>
    %690 = arith.select %688, %669, %689 : vector<1x256xi1>, vector<1x256xf32>
    %691 = vector.broadcast %668 : f32 to vector<1x256xf32>
    %692 = arith.mulf %691, %690 : vector<1x256xf32>
    %693 = arith.addf %667, %692 : vector<1x256xf32>
    %c15 = arith.constant 15 : index
    %694 = memref.load %arg8[%c15] : memref<98xf32, #tpu.memory_space<smem>>
    %c35_i32_269 = arith.constant 35 : i32
    %695 = tpu.dynamic_rotate %302 by %c35_i32_269 dim 1 : vector<1x256xf32>, i32 -> vector<1x256xf32>
    %c-2_i32_270 = arith.constant -2 : i32
    %696 = vector.broadcast %c-2_i32_270 : i32 to vector<1x256xi32>
    %697 = arith.addi %0, %696 : vector<1x256xi32>
    %c0_i32_271 = arith.constant 0 : i32
    %698 = vector.broadcast %c0_i32_271 : i32 to vector<1x256xi32>
    %699 = arith.cmpi sge, %697, %698 : vector<1x256xi32>
    %c-2_i32_272 = arith.constant -2 : i32
    %700 = vector.broadcast %c-2_i32_272 : i32 to vector<1x256xi32>
    %701 = arith.addi %0, %700 : vector<1x256xi32>
    %c16_i32_273 = arith.constant 16 : i32
    %702 = vector.broadcast %c16_i32_273 : i32 to vector<1x256xi32>
    %703 = arith.cmpi slt, %701, %702 : vector<1x256xi32>
    %704 = arith.andi %699, %703 : vector<1x256xi1>
    %c-3_i32_274 = arith.constant -3 : i32
    %705 = vector.broadcast %c-3_i32_274 : i32 to vector<1x256xi32>
    %706 = arith.addi %1, %705 : vector<1x256xi32>
    %c0_i32_275 = arith.constant 0 : i32
    %707 = vector.broadcast %c0_i32_275 : i32 to vector<1x256xi32>
    %708 = arith.cmpi sge, %706, %707 : vector<1x256xi32>
    %709 = arith.andi %704, %708 : vector<1x256xi1>
    %c-3_i32_276 = arith.constant -3 : i32
    %710 = vector.broadcast %c-3_i32_276 : i32 to vector<1x256xi32>
    %711 = arith.addi %1, %710 : vector<1x256xi32>
    %c16_i32_277 = arith.constant 16 : i32
    %712 = vector.broadcast %c16_i32_277 : i32 to vector<1x256xi32>
    %713 = arith.cmpi slt, %711, %712 : vector<1x256xi32>
    %714 = arith.andi %709, %713 : vector<1x256xi1>
    %cst_278 = arith.constant 0.000000e+00 : f32
    %715 = vector.broadcast %cst_278 : f32 to vector<1x256xf32>
    %716 = arith.select %714, %695, %715 : vector<1x256xi1>, vector<1x256xf32>
    %717 = vector.broadcast %694 : f32 to vector<1x256xf32>
    %718 = arith.mulf %717, %716 : vector<1x256xf32>
    %719 = arith.addf %693, %718 : vector<1x256xf32>
    %c16 = arith.constant 16 : index
    %720 = memref.load %arg8[%c16] : memref<98xf32, #tpu.memory_space<smem>>
    %c34_i32 = arith.constant 34 : i32
    %721 = tpu.dynamic_rotate %300 by %c34_i32 dim 1 : vector<1x256xf32>, i32 -> vector<1x256xf32>
    %c-2_i32_279 = arith.constant -2 : i32
    %722 = vector.broadcast %c-2_i32_279 : i32 to vector<1x256xi32>
    %723 = arith.addi %0, %722 : vector<1x256xi32>
    %c0_i32_280 = arith.constant 0 : i32
    %724 = vector.broadcast %c0_i32_280 : i32 to vector<1x256xi32>
    %725 = arith.cmpi sge, %723, %724 : vector<1x256xi32>
    %c-2_i32_281 = arith.constant -2 : i32
    %726 = vector.broadcast %c-2_i32_281 : i32 to vector<1x256xi32>
    %727 = arith.addi %0, %726 : vector<1x256xi32>
    %c16_i32_282 = arith.constant 16 : i32
    %728 = vector.broadcast %c16_i32_282 : i32 to vector<1x256xi32>
    %729 = arith.cmpi slt, %727, %728 : vector<1x256xi32>
    %730 = arith.andi %725, %729 : vector<1x256xi1>
    %c-2_i32_283 = arith.constant -2 : i32
    %731 = vector.broadcast %c-2_i32_283 : i32 to vector<1x256xi32>
    %732 = arith.addi %1, %731 : vector<1x256xi32>
    %c0_i32_284 = arith.constant 0 : i32
    %733 = vector.broadcast %c0_i32_284 : i32 to vector<1x256xi32>
    %734 = arith.cmpi sge, %732, %733 : vector<1x256xi32>
    %735 = arith.andi %730, %734 : vector<1x256xi1>
    %c-2_i32_285 = arith.constant -2 : i32
    %736 = vector.broadcast %c-2_i32_285 : i32 to vector<1x256xi32>
    %737 = arith.addi %1, %736 : vector<1x256xi32>
    %c16_i32_286 = arith.constant 16 : i32
    %738 = vector.broadcast %c16_i32_286 : i32 to vector<1x256xi32>
    %739 = arith.cmpi slt, %737, %738 : vector<1x256xi32>
    %740 = arith.andi %735, %739 : vector<1x256xi1>
    %cst_287 = arith.constant 0.000000e+00 : f32
    %741 = vector.broadcast %cst_287 : f32 to vector<1x256xf32>
    %742 = arith.select %740, %721, %741 : vector<1x256xi1>, vector<1x256xf32>
    %743 = vector.broadcast %720 : f32 to vector<1x256xf32>
    %744 = arith.mulf %743, %742 : vector<1x256xf32>
    %745 = arith.addf %719, %744 : vector<1x256xf32>
    %c17 = arith.constant 17 : index
    %746 = memref.load %arg8[%c17] : memref<98xf32, #tpu.memory_space<smem>>
    %c34_i32_288 = arith.constant 34 : i32
    %747 = tpu.dynamic_rotate %302 by %c34_i32_288 dim 1 : vector<1x256xf32>, i32 -> vector<1x256xf32>
    %c-2_i32_289 = arith.constant -2 : i32
    %748 = vector.broadcast %c-2_i32_289 : i32 to vector<1x256xi32>
    %749 = arith.addi %0, %748 : vector<1x256xi32>
    %c0_i32_290 = arith.constant 0 : i32
    %750 = vector.broadcast %c0_i32_290 : i32 to vector<1x256xi32>
    %751 = arith.cmpi sge, %749, %750 : vector<1x256xi32>
    %c-2_i32_291 = arith.constant -2 : i32
    %752 = vector.broadcast %c-2_i32_291 : i32 to vector<1x256xi32>
    %753 = arith.addi %0, %752 : vector<1x256xi32>
    %c16_i32_292 = arith.constant 16 : i32
    %754 = vector.broadcast %c16_i32_292 : i32 to vector<1x256xi32>
    %755 = arith.cmpi slt, %753, %754 : vector<1x256xi32>
    %756 = arith.andi %751, %755 : vector<1x256xi1>
    %c-2_i32_293 = arith.constant -2 : i32
    %757 = vector.broadcast %c-2_i32_293 : i32 to vector<1x256xi32>
    %758 = arith.addi %1, %757 : vector<1x256xi32>
    %c0_i32_294 = arith.constant 0 : i32
    %759 = vector.broadcast %c0_i32_294 : i32 to vector<1x256xi32>
    %760 = arith.cmpi sge, %758, %759 : vector<1x256xi32>
    %761 = arith.andi %756, %760 : vector<1x256xi1>
    %c-2_i32_295 = arith.constant -2 : i32
    %762 = vector.broadcast %c-2_i32_295 : i32 to vector<1x256xi32>
    %763 = arith.addi %1, %762 : vector<1x256xi32>
    %c16_i32_296 = arith.constant 16 : i32
    %764 = vector.broadcast %c16_i32_296 : i32 to vector<1x256xi32>
    %765 = arith.cmpi slt, %763, %764 : vector<1x256xi32>
    %766 = arith.andi %761, %765 : vector<1x256xi1>
    %cst_297 = arith.constant 0.000000e+00 : f32
    %767 = vector.broadcast %cst_297 : f32 to vector<1x256xf32>
    %768 = arith.select %766, %747, %767 : vector<1x256xi1>, vector<1x256xf32>
    %769 = vector.broadcast %746 : f32 to vector<1x256xf32>
    %770 = arith.mulf %769, %768 : vector<1x256xf32>
    %771 = arith.addf %745, %770 : vector<1x256xf32>
    %c18 = arith.constant 18 : index
    %772 = memref.load %arg8[%c18] : memref<98xf32, #tpu.memory_space<smem>>
    %c33_i32 = arith.constant 33 : i32
    %773 = tpu.dynamic_rotate %300 by %c33_i32 dim 1 : vector<1x256xf32>, i32 -> vector<1x256xf32>
    %c-2_i32_298 = arith.constant -2 : i32
    %774 = vector.broadcast %c-2_i32_298 : i32 to vector<1x256xi32>
    %775 = arith.addi %0, %774 : vector<1x256xi32>
    %c0_i32_299 = arith.constant 0 : i32
    %776 = vector.broadcast %c0_i32_299 : i32 to vector<1x256xi32>
    %777 = arith.cmpi sge, %775, %776 : vector<1x256xi32>
    %c-2_i32_300 = arith.constant -2 : i32
    %778 = vector.broadcast %c-2_i32_300 : i32 to vector<1x256xi32>
    %779 = arith.addi %0, %778 : vector<1x256xi32>
    %c16_i32_301 = arith.constant 16 : i32
    %780 = vector.broadcast %c16_i32_301 : i32 to vector<1x256xi32>
    %781 = arith.cmpi slt, %779, %780 : vector<1x256xi32>
    %782 = arith.andi %777, %781 : vector<1x256xi1>
    %c-1_i32_302 = arith.constant -1 : i32
    %783 = vector.broadcast %c-1_i32_302 : i32 to vector<1x256xi32>
    %784 = arith.addi %1, %783 : vector<1x256xi32>
    %c0_i32_303 = arith.constant 0 : i32
    %785 = vector.broadcast %c0_i32_303 : i32 to vector<1x256xi32>
    %786 = arith.cmpi sge, %784, %785 : vector<1x256xi32>
    %787 = arith.andi %782, %786 : vector<1x256xi1>
    %c-1_i32_304 = arith.constant -1 : i32
    %788 = vector.broadcast %c-1_i32_304 : i32 to vector<1x256xi32>
    %789 = arith.addi %1, %788 : vector<1x256xi32>
    %c16_i32_305 = arith.constant 16 : i32
    %790 = vector.broadcast %c16_i32_305 : i32 to vector<1x256xi32>
    %791 = arith.cmpi slt, %789, %790 : vector<1x256xi32>
    %792 = arith.andi %787, %791 : vector<1x256xi1>
    %cst_306 = arith.constant 0.000000e+00 : f32
    %793 = vector.broadcast %cst_306 : f32 to vector<1x256xf32>
    %794 = arith.select %792, %773, %793 : vector<1x256xi1>, vector<1x256xf32>
    %795 = vector.broadcast %772 : f32 to vector<1x256xf32>
    %796 = arith.mulf %795, %794 : vector<1x256xf32>
    %797 = arith.addf %771, %796 : vector<1x256xf32>
    %c19 = arith.constant 19 : index
    %798 = memref.load %arg8[%c19] : memref<98xf32, #tpu.memory_space<smem>>
    %c33_i32_307 = arith.constant 33 : i32
    %799 = tpu.dynamic_rotate %302 by %c33_i32_307 dim 1 : vector<1x256xf32>, i32 -> vector<1x256xf32>
    %c-2_i32_308 = arith.constant -2 : i32
    %800 = vector.broadcast %c-2_i32_308 : i32 to vector<1x256xi32>
    %801 = arith.addi %0, %800 : vector<1x256xi32>
    %c0_i32_309 = arith.constant 0 : i32
    %802 = vector.broadcast %c0_i32_309 : i32 to vector<1x256xi32>
    %803 = arith.cmpi sge, %801, %802 : vector<1x256xi32>
    %c-2_i32_310 = arith.constant -2 : i32
    %804 = vector.broadcast %c-2_i32_310 : i32 to vector<1x256xi32>
    %805 = arith.addi %0, %804 : vector<1x256xi32>
    %c16_i32_311 = arith.constant 16 : i32
    %806 = vector.broadcast %c16_i32_311 : i32 to vector<1x256xi32>
    %807 = arith.cmpi slt, %805, %806 : vector<1x256xi32>
    %808 = arith.andi %803, %807 : vector<1x256xi1>
    %c-1_i32_312 = arith.constant -1 : i32
    %809 = vector.broadcast %c-1_i32_312 : i32 to vector<1x256xi32>
    %810 = arith.addi %1, %809 : vector<1x256xi32>
    %c0_i32_313 = arith.constant 0 : i32
    %811 = vector.broadcast %c0_i32_313 : i32 to vector<1x256xi32>
    %812 = arith.cmpi sge, %810, %811 : vector<1x256xi32>
    %813 = arith.andi %808, %812 : vector<1x256xi1>
    %c-1_i32_314 = arith.constant -1 : i32
    %814 = vector.broadcast %c-1_i32_314 : i32 to vector<1x256xi32>
    %815 = arith.addi %1, %814 : vector<1x256xi32>
    %c16_i32_315 = arith.constant 16 : i32
    %816 = vector.broadcast %c16_i32_315 : i32 to vector<1x256xi32>
    %817 = arith.cmpi slt, %815, %816 : vector<1x256xi32>
    %818 = arith.andi %813, %817 : vector<1x256xi1>
    %cst_316 = arith.constant 0.000000e+00 : f32
    %819 = vector.broadcast %cst_316 : f32 to vector<1x256xf32>
    %820 = arith.select %818, %799, %819 : vector<1x256xi1>, vector<1x256xf32>
    %821 = vector.broadcast %798 : f32 to vector<1x256xf32>
    %822 = arith.mulf %821, %820 : vector<1x256xf32>
    %823 = arith.addf %797, %822 : vector<1x256xf32>
    %c20 = arith.constant 20 : index
    %824 = memref.load %arg8[%c20] : memref<98xf32, #tpu.memory_space<smem>>
    %c32_i32 = arith.constant 32 : i32
    %825 = tpu.dynamic_rotate %300 by %c32_i32 dim 1 : vector<1x256xf32>, i32 -> vector<1x256xf32>
    %c-2_i32_317 = arith.constant -2 : i32
    %826 = vector.broadcast %c-2_i32_317 : i32 to vector<1x256xi32>
    %827 = arith.addi %0, %826 : vector<1x256xi32>
    %c0_i32_318 = arith.constant 0 : i32
    %828 = vector.broadcast %c0_i32_318 : i32 to vector<1x256xi32>
    %829 = arith.cmpi sge, %827, %828 : vector<1x256xi32>
    %c-2_i32_319 = arith.constant -2 : i32
    %830 = vector.broadcast %c-2_i32_319 : i32 to vector<1x256xi32>
    %831 = arith.addi %0, %830 : vector<1x256xi32>
    %c16_i32_320 = arith.constant 16 : i32
    %832 = vector.broadcast %c16_i32_320 : i32 to vector<1x256xi32>
    %833 = arith.cmpi slt, %831, %832 : vector<1x256xi32>
    %834 = arith.andi %829, %833 : vector<1x256xi1>
    %c0_i32_321 = arith.constant 0 : i32
    %835 = vector.broadcast %c0_i32_321 : i32 to vector<1x256xi32>
    %836 = arith.addi %1, %835 : vector<1x256xi32>
    %c0_i32_322 = arith.constant 0 : i32
    %837 = vector.broadcast %c0_i32_322 : i32 to vector<1x256xi32>
    %838 = arith.cmpi sge, %836, %837 : vector<1x256xi32>
    %839 = arith.andi %834, %838 : vector<1x256xi1>
    %c0_i32_323 = arith.constant 0 : i32
    %840 = vector.broadcast %c0_i32_323 : i32 to vector<1x256xi32>
    %841 = arith.addi %1, %840 : vector<1x256xi32>
    %c16_i32_324 = arith.constant 16 : i32
    %842 = vector.broadcast %c16_i32_324 : i32 to vector<1x256xi32>
    %843 = arith.cmpi slt, %841, %842 : vector<1x256xi32>
    %844 = arith.andi %839, %843 : vector<1x256xi1>
    %cst_325 = arith.constant 0.000000e+00 : f32
    %845 = vector.broadcast %cst_325 : f32 to vector<1x256xf32>
    %846 = arith.select %844, %825, %845 : vector<1x256xi1>, vector<1x256xf32>
    %847 = vector.broadcast %824 : f32 to vector<1x256xf32>
    %848 = arith.mulf %847, %846 : vector<1x256xf32>
    %849 = arith.addf %823, %848 : vector<1x256xf32>
    %c21 = arith.constant 21 : index
    %850 = memref.load %arg8[%c21] : memref<98xf32, #tpu.memory_space<smem>>
    %c32_i32_326 = arith.constant 32 : i32
    %851 = tpu.dynamic_rotate %302 by %c32_i32_326 dim 1 : vector<1x256xf32>, i32 -> vector<1x256xf32>
    %c-2_i32_327 = arith.constant -2 : i32
    %852 = vector.broadcast %c-2_i32_327 : i32 to vector<1x256xi32>
    %853 = arith.addi %0, %852 : vector<1x256xi32>
    %c0_i32_328 = arith.constant 0 : i32
    %854 = vector.broadcast %c0_i32_328 : i32 to vector<1x256xi32>
    %855 = arith.cmpi sge, %853, %854 : vector<1x256xi32>
    %c-2_i32_329 = arith.constant -2 : i32
    %856 = vector.broadcast %c-2_i32_329 : i32 to vector<1x256xi32>
    %857 = arith.addi %0, %856 : vector<1x256xi32>
    %c16_i32_330 = arith.constant 16 : i32
    %858 = vector.broadcast %c16_i32_330 : i32 to vector<1x256xi32>
    %859 = arith.cmpi slt, %857, %858 : vector<1x256xi32>
    %860 = arith.andi %855, %859 : vector<1x256xi1>
    %c0_i32_331 = arith.constant 0 : i32
    %861 = vector.broadcast %c0_i32_331 : i32 to vector<1x256xi32>
    %862 = arith.addi %1, %861 : vector<1x256xi32>
    %c0_i32_332 = arith.constant 0 : i32
    %863 = vector.broadcast %c0_i32_332 : i32 to vector<1x256xi32>
    %864 = arith.cmpi sge, %862, %863 : vector<1x256xi32>
    %865 = arith.andi %860, %864 : vector<1x256xi1>
    %c0_i32_333 = arith.constant 0 : i32
    %866 = vector.broadcast %c0_i32_333 : i32 to vector<1x256xi32>
    %867 = arith.addi %1, %866 : vector<1x256xi32>
    %c16_i32_334 = arith.constant 16 : i32
    %868 = vector.broadcast %c16_i32_334 : i32 to vector<1x256xi32>
    %869 = arith.cmpi slt, %867, %868 : vector<1x256xi32>
    %870 = arith.andi %865, %869 : vector<1x256xi1>
    %cst_335 = arith.constant 0.000000e+00 : f32
    %871 = vector.broadcast %cst_335 : f32 to vector<1x256xf32>
    %872 = arith.select %870, %851, %871 : vector<1x256xi1>, vector<1x256xf32>
    %873 = vector.broadcast %850 : f32 to vector<1x256xf32>
    %874 = arith.mulf %873, %872 : vector<1x256xf32>
    %875 = arith.addf %849, %874 : vector<1x256xf32>
    %c22 = arith.constant 22 : index
    %876 = memref.load %arg8[%c22] : memref<98xf32, #tpu.memory_space<smem>>
    %c31_i32 = arith.constant 31 : i32
    %877 = tpu.dynamic_rotate %300 by %c31_i32 dim 1 : vector<1x256xf32>, i32 -> vector<1x256xf32>
    %c-2_i32_336 = arith.constant -2 : i32
    %878 = vector.broadcast %c-2_i32_336 : i32 to vector<1x256xi32>
    %879 = arith.addi %0, %878 : vector<1x256xi32>
    %c0_i32_337 = arith.constant 0 : i32
    %880 = vector.broadcast %c0_i32_337 : i32 to vector<1x256xi32>
    %881 = arith.cmpi sge, %879, %880 : vector<1x256xi32>
    %c-2_i32_338 = arith.constant -2 : i32
    %882 = vector.broadcast %c-2_i32_338 : i32 to vector<1x256xi32>
    %883 = arith.addi %0, %882 : vector<1x256xi32>
    %c16_i32_339 = arith.constant 16 : i32
    %884 = vector.broadcast %c16_i32_339 : i32 to vector<1x256xi32>
    %885 = arith.cmpi slt, %883, %884 : vector<1x256xi32>
    %886 = arith.andi %881, %885 : vector<1x256xi1>
    %c1_i32_340 = arith.constant 1 : i32
    %887 = vector.broadcast %c1_i32_340 : i32 to vector<1x256xi32>
    %888 = arith.addi %1, %887 : vector<1x256xi32>
    %c0_i32_341 = arith.constant 0 : i32
    %889 = vector.broadcast %c0_i32_341 : i32 to vector<1x256xi32>
    %890 = arith.cmpi sge, %888, %889 : vector<1x256xi32>
    %891 = arith.andi %886, %890 : vector<1x256xi1>
    %c1_i32_342 = arith.constant 1 : i32
    %892 = vector.broadcast %c1_i32_342 : i32 to vector<1x256xi32>
    %893 = arith.addi %1, %892 : vector<1x256xi32>
    %c16_i32_343 = arith.constant 16 : i32
    %894 = vector.broadcast %c16_i32_343 : i32 to vector<1x256xi32>
    %895 = arith.cmpi slt, %893, %894 : vector<1x256xi32>
    %896 = arith.andi %891, %895 : vector<1x256xi1>
    %cst_344 = arith.constant 0.000000e+00 : f32
    %897 = vector.broadcast %cst_344 : f32 to vector<1x256xf32>
    %898 = arith.select %896, %877, %897 : vector<1x256xi1>, vector<1x256xf32>
    %899 = vector.broadcast %876 : f32 to vector<1x256xf32>
    %900 = arith.mulf %899, %898 : vector<1x256xf32>
    %901 = arith.addf %875, %900 : vector<1x256xf32>
    %c23 = arith.constant 23 : index
    %902 = memref.load %arg8[%c23] : memref<98xf32, #tpu.memory_space<smem>>
    %c31_i32_345 = arith.constant 31 : i32
    %903 = tpu.dynamic_rotate %302 by %c31_i32_345 dim 1 : vector<1x256xf32>, i32 -> vector<1x256xf32>
    %c-2_i32_346 = arith.constant -2 : i32
    %904 = vector.broadcast %c-2_i32_346 : i32 to vector<1x256xi32>
    %905 = arith.addi %0, %904 : vector<1x256xi32>
    %c0_i32_347 = arith.constant 0 : i32
    %906 = vector.broadcast %c0_i32_347 : i32 to vector<1x256xi32>
    %907 = arith.cmpi sge, %905, %906 : vector<1x256xi32>
    %c-2_i32_348 = arith.constant -2 : i32
    %908 = vector.broadcast %c-2_i32_348 : i32 to vector<1x256xi32>
    %909 = arith.addi %0, %908 : vector<1x256xi32>
    %c16_i32_349 = arith.constant 16 : i32
    %910 = vector.broadcast %c16_i32_349 : i32 to vector<1x256xi32>
    %911 = arith.cmpi slt, %909, %910 : vector<1x256xi32>
    %912 = arith.andi %907, %911 : vector<1x256xi1>
    %c1_i32_350 = arith.constant 1 : i32
    %913 = vector.broadcast %c1_i32_350 : i32 to vector<1x256xi32>
    %914 = arith.addi %1, %913 : vector<1x256xi32>
    %c0_i32_351 = arith.constant 0 : i32
    %915 = vector.broadcast %c0_i32_351 : i32 to vector<1x256xi32>
    %916 = arith.cmpi sge, %914, %915 : vector<1x256xi32>
    %917 = arith.andi %912, %916 : vector<1x256xi1>
    %c1_i32_352 = arith.constant 1 : i32
    %918 = vector.broadcast %c1_i32_352 : i32 to vector<1x256xi32>
    %919 = arith.addi %1, %918 : vector<1x256xi32>
    %c16_i32_353 = arith.constant 16 : i32
    %920 = vector.broadcast %c16_i32_353 : i32 to vector<1x256xi32>
    %921 = arith.cmpi slt, %919, %920 : vector<1x256xi32>
    %922 = arith.andi %917, %921 : vector<1x256xi1>
    %cst_354 = arith.constant 0.000000e+00 : f32
    %923 = vector.broadcast %cst_354 : f32 to vector<1x256xf32>
    %924 = arith.select %922, %903, %923 : vector<1x256xi1>, vector<1x256xf32>
    %925 = vector.broadcast %902 : f32 to vector<1x256xf32>
    %926 = arith.mulf %925, %924 : vector<1x256xf32>
    %927 = arith.addf %901, %926 : vector<1x256xf32>
    %c24 = arith.constant 24 : index
    %928 = memref.load %arg8[%c24] : memref<98xf32, #tpu.memory_space<smem>>
    %c30_i32 = arith.constant 30 : i32
    %929 = tpu.dynamic_rotate %300 by %c30_i32 dim 1 : vector<1x256xf32>, i32 -> vector<1x256xf32>
    %c-2_i32_355 = arith.constant -2 : i32
    %930 = vector.broadcast %c-2_i32_355 : i32 to vector<1x256xi32>
    %931 = arith.addi %0, %930 : vector<1x256xi32>
    %c0_i32_356 = arith.constant 0 : i32
    %932 = vector.broadcast %c0_i32_356 : i32 to vector<1x256xi32>
    %933 = arith.cmpi sge, %931, %932 : vector<1x256xi32>
    %c-2_i32_357 = arith.constant -2 : i32
    %934 = vector.broadcast %c-2_i32_357 : i32 to vector<1x256xi32>
    %935 = arith.addi %0, %934 : vector<1x256xi32>
    %c16_i32_358 = arith.constant 16 : i32
    %936 = vector.broadcast %c16_i32_358 : i32 to vector<1x256xi32>
    %937 = arith.cmpi slt, %935, %936 : vector<1x256xi32>
    %938 = arith.andi %933, %937 : vector<1x256xi1>
    %c2_i32_359 = arith.constant 2 : i32
    %939 = vector.broadcast %c2_i32_359 : i32 to vector<1x256xi32>
    %940 = arith.addi %1, %939 : vector<1x256xi32>
    %c0_i32_360 = arith.constant 0 : i32
    %941 = vector.broadcast %c0_i32_360 : i32 to vector<1x256xi32>
    %942 = arith.cmpi sge, %940, %941 : vector<1x256xi32>
    %943 = arith.andi %938, %942 : vector<1x256xi1>
    %c2_i32_361 = arith.constant 2 : i32
    %944 = vector.broadcast %c2_i32_361 : i32 to vector<1x256xi32>
    %945 = arith.addi %1, %944 : vector<1x256xi32>
    %c16_i32_362 = arith.constant 16 : i32
    %946 = vector.broadcast %c16_i32_362 : i32 to vector<1x256xi32>
    %947 = arith.cmpi slt, %945, %946 : vector<1x256xi32>
    %948 = arith.andi %943, %947 : vector<1x256xi1>
    %cst_363 = arith.constant 0.000000e+00 : f32
    %949 = vector.broadcast %cst_363 : f32 to vector<1x256xf32>
    %950 = arith.select %948, %929, %949 : vector<1x256xi1>, vector<1x256xf32>
    %951 = vector.broadcast %928 : f32 to vector<1x256xf32>
    %952 = arith.mulf %951, %950 : vector<1x256xf32>
    %953 = arith.addf %927, %952 : vector<1x256xf32>
    %c25 = arith.constant 25 : index
    %954 = memref.load %arg8[%c25] : memref<98xf32, #tpu.memory_space<smem>>
    %c30_i32_364 = arith.constant 30 : i32
    %955 = tpu.dynamic_rotate %302 by %c30_i32_364 dim 1 : vector<1x256xf32>, i32 -> vector<1x256xf32>
    %c-2_i32_365 = arith.constant -2 : i32
    %956 = vector.broadcast %c-2_i32_365 : i32 to vector<1x256xi32>
    %957 = arith.addi %0, %956 : vector<1x256xi32>
    %c0_i32_366 = arith.constant 0 : i32
    %958 = vector.broadcast %c0_i32_366 : i32 to vector<1x256xi32>
    %959 = arith.cmpi sge, %957, %958 : vector<1x256xi32>
    %c-2_i32_367 = arith.constant -2 : i32
    %960 = vector.broadcast %c-2_i32_367 : i32 to vector<1x256xi32>
    %961 = arith.addi %0, %960 : vector<1x256xi32>
    %c16_i32_368 = arith.constant 16 : i32
    %962 = vector.broadcast %c16_i32_368 : i32 to vector<1x256xi32>
    %963 = arith.cmpi slt, %961, %962 : vector<1x256xi32>
    %964 = arith.andi %959, %963 : vector<1x256xi1>
    %c2_i32_369 = arith.constant 2 : i32
    %965 = vector.broadcast %c2_i32_369 : i32 to vector<1x256xi32>
    %966 = arith.addi %1, %965 : vector<1x256xi32>
    %c0_i32_370 = arith.constant 0 : i32
    %967 = vector.broadcast %c0_i32_370 : i32 to vector<1x256xi32>
    %968 = arith.cmpi sge, %966, %967 : vector<1x256xi32>
    %969 = arith.andi %964, %968 : vector<1x256xi1>
    %c2_i32_371 = arith.constant 2 : i32
    %970 = vector.broadcast %c2_i32_371 : i32 to vector<1x256xi32>
    %971 = arith.addi %1, %970 : vector<1x256xi32>
    %c16_i32_372 = arith.constant 16 : i32
    %972 = vector.broadcast %c16_i32_372 : i32 to vector<1x256xi32>
    %973 = arith.cmpi slt, %971, %972 : vector<1x256xi32>
    %974 = arith.andi %969, %973 : vector<1x256xi1>
    %cst_373 = arith.constant 0.000000e+00 : f32
    %975 = vector.broadcast %cst_373 : f32 to vector<1x256xf32>
    %976 = arith.select %974, %955, %975 : vector<1x256xi1>, vector<1x256xf32>
    %977 = vector.broadcast %954 : f32 to vector<1x256xf32>
    %978 = arith.mulf %977, %976 : vector<1x256xf32>
    %979 = arith.addf %953, %978 : vector<1x256xf32>
    %c26 = arith.constant 26 : index
    %980 = memref.load %arg8[%c26] : memref<98xf32, #tpu.memory_space<smem>>
    %c29_i32 = arith.constant 29 : i32
    %981 = tpu.dynamic_rotate %300 by %c29_i32 dim 1 : vector<1x256xf32>, i32 -> vector<1x256xf32>
    %c-2_i32_374 = arith.constant -2 : i32
    %982 = vector.broadcast %c-2_i32_374 : i32 to vector<1x256xi32>
    %983 = arith.addi %0, %982 : vector<1x256xi32>
    %c0_i32_375 = arith.constant 0 : i32
    %984 = vector.broadcast %c0_i32_375 : i32 to vector<1x256xi32>
    %985 = arith.cmpi sge, %983, %984 : vector<1x256xi32>
    %c-2_i32_376 = arith.constant -2 : i32
    %986 = vector.broadcast %c-2_i32_376 : i32 to vector<1x256xi32>
    %987 = arith.addi %0, %986 : vector<1x256xi32>
    %c16_i32_377 = arith.constant 16 : i32
    %988 = vector.broadcast %c16_i32_377 : i32 to vector<1x256xi32>
    %989 = arith.cmpi slt, %987, %988 : vector<1x256xi32>
    %990 = arith.andi %985, %989 : vector<1x256xi1>
    %c3_i32_378 = arith.constant 3 : i32
    %991 = vector.broadcast %c3_i32_378 : i32 to vector<1x256xi32>
    %992 = arith.addi %1, %991 : vector<1x256xi32>
    %c0_i32_379 = arith.constant 0 : i32
    %993 = vector.broadcast %c0_i32_379 : i32 to vector<1x256xi32>
    %994 = arith.cmpi sge, %992, %993 : vector<1x256xi32>
    %995 = arith.andi %990, %994 : vector<1x256xi1>
    %c3_i32_380 = arith.constant 3 : i32
    %996 = vector.broadcast %c3_i32_380 : i32 to vector<1x256xi32>
    %997 = arith.addi %1, %996 : vector<1x256xi32>
    %c16_i32_381 = arith.constant 16 : i32
    %998 = vector.broadcast %c16_i32_381 : i32 to vector<1x256xi32>
    %999 = arith.cmpi slt, %997, %998 : vector<1x256xi32>
    %1000 = arith.andi %995, %999 : vector<1x256xi1>
    %cst_382 = arith.constant 0.000000e+00 : f32
    %1001 = vector.broadcast %cst_382 : f32 to vector<1x256xf32>
    %1002 = arith.select %1000, %981, %1001 : vector<1x256xi1>, vector<1x256xf32>
    %1003 = vector.broadcast %980 : f32 to vector<1x256xf32>
    %1004 = arith.mulf %1003, %1002 : vector<1x256xf32>
    %1005 = arith.addf %979, %1004 : vector<1x256xf32>
    %c27 = arith.constant 27 : index
    %1006 = memref.load %arg8[%c27] : memref<98xf32, #tpu.memory_space<smem>>
    %c29_i32_383 = arith.constant 29 : i32
    %1007 = tpu.dynamic_rotate %302 by %c29_i32_383 dim 1 : vector<1x256xf32>, i32 -> vector<1x256xf32>
    %c-2_i32_384 = arith.constant -2 : i32
    %1008 = vector.broadcast %c-2_i32_384 : i32 to vector<1x256xi32>
    %1009 = arith.addi %0, %1008 : vector<1x256xi32>
    %c0_i32_385 = arith.constant 0 : i32
    %1010 = vector.broadcast %c0_i32_385 : i32 to vector<1x256xi32>
    %1011 = arith.cmpi sge, %1009, %1010 : vector<1x256xi32>
    %c-2_i32_386 = arith.constant -2 : i32
    %1012 = vector.broadcast %c-2_i32_386 : i32 to vector<1x256xi32>
    %1013 = arith.addi %0, %1012 : vector<1x256xi32>
    %c16_i32_387 = arith.constant 16 : i32
    %1014 = vector.broadcast %c16_i32_387 : i32 to vector<1x256xi32>
    %1015 = arith.cmpi slt, %1013, %1014 : vector<1x256xi32>
    %1016 = arith.andi %1011, %1015 : vector<1x256xi1>
    %c3_i32_388 = arith.constant 3 : i32
    %1017 = vector.broadcast %c3_i32_388 : i32 to vector<1x256xi32>
    %1018 = arith.addi %1, %1017 : vector<1x256xi32>
    %c0_i32_389 = arith.constant 0 : i32
    %1019 = vector.broadcast %c0_i32_389 : i32 to vector<1x256xi32>
    %1020 = arith.cmpi sge, %1018, %1019 : vector<1x256xi32>
    %1021 = arith.andi %1016, %1020 : vector<1x256xi1>
    %c3_i32_390 = arith.constant 3 : i32
    %1022 = vector.broadcast %c3_i32_390 : i32 to vector<1x256xi32>
    %1023 = arith.addi %1, %1022 : vector<1x256xi32>
    %c16_i32_391 = arith.constant 16 : i32
    %1024 = vector.broadcast %c16_i32_391 : i32 to vector<1x256xi32>
    %1025 = arith.cmpi slt, %1023, %1024 : vector<1x256xi32>
    %1026 = arith.andi %1021, %1025 : vector<1x256xi1>
    %cst_392 = arith.constant 0.000000e+00 : f32
    %1027 = vector.broadcast %cst_392 : f32 to vector<1x256xf32>
    %1028 = arith.select %1026, %1007, %1027 : vector<1x256xi1>, vector<1x256xf32>
    %1029 = vector.broadcast %1006 : f32 to vector<1x256xf32>
    %1030 = arith.mulf %1029, %1028 : vector<1x256xf32>
    %1031 = arith.addf %1005, %1030 : vector<1x256xf32>
    %c28 = arith.constant 28 : index
    %1032 = memref.load %arg8[%c28] : memref<98xf32, #tpu.memory_space<smem>>
    %c19_i32 = arith.constant 19 : i32
    %1033 = tpu.dynamic_rotate %300 by %c19_i32 dim 1 : vector<1x256xf32>, i32 -> vector<1x256xf32>
    %c-1_i32_393 = arith.constant -1 : i32
    %1034 = vector.broadcast %c-1_i32_393 : i32 to vector<1x256xi32>
    %1035 = arith.addi %0, %1034 : vector<1x256xi32>
    %c0_i32_394 = arith.constant 0 : i32
    %1036 = vector.broadcast %c0_i32_394 : i32 to vector<1x256xi32>
    %1037 = arith.cmpi sge, %1035, %1036 : vector<1x256xi32>
    %c-1_i32_395 = arith.constant -1 : i32
    %1038 = vector.broadcast %c-1_i32_395 : i32 to vector<1x256xi32>
    %1039 = arith.addi %0, %1038 : vector<1x256xi32>
    %c16_i32_396 = arith.constant 16 : i32
    %1040 = vector.broadcast %c16_i32_396 : i32 to vector<1x256xi32>
    %1041 = arith.cmpi slt, %1039, %1040 : vector<1x256xi32>
    %1042 = arith.andi %1037, %1041 : vector<1x256xi1>
    %c-3_i32_397 = arith.constant -3 : i32
    %1043 = vector.broadcast %c-3_i32_397 : i32 to vector<1x256xi32>
    %1044 = arith.addi %1, %1043 : vector<1x256xi32>
    %c0_i32_398 = arith.constant 0 : i32
    %1045 = vector.broadcast %c0_i32_398 : i32 to vector<1x256xi32>
    %1046 = arith.cmpi sge, %1044, %1045 : vector<1x256xi32>
    %1047 = arith.andi %1042, %1046 : vector<1x256xi1>
    %c-3_i32_399 = arith.constant -3 : i32
    %1048 = vector.broadcast %c-3_i32_399 : i32 to vector<1x256xi32>
    %1049 = arith.addi %1, %1048 : vector<1x256xi32>
    %c16_i32_400 = arith.constant 16 : i32
    %1050 = vector.broadcast %c16_i32_400 : i32 to vector<1x256xi32>
    %1051 = arith.cmpi slt, %1049, %1050 : vector<1x256xi32>
    %1052 = arith.andi %1047, %1051 : vector<1x256xi1>
    %cst_401 = arith.constant 0.000000e+00 : f32
    %1053 = vector.broadcast %cst_401 : f32 to vector<1x256xf32>
    %1054 = arith.select %1052, %1033, %1053 : vector<1x256xi1>, vector<1x256xf32>
    %1055 = vector.broadcast %1032 : f32 to vector<1x256xf32>
    %1056 = arith.mulf %1055, %1054 : vector<1x256xf32>
    %1057 = arith.addf %1031, %1056 : vector<1x256xf32>
    %c29 = arith.constant 29 : index
    %1058 = memref.load %arg8[%c29] : memref<98xf32, #tpu.memory_space<smem>>
    %c19_i32_402 = arith.constant 19 : i32
    %1059 = tpu.dynamic_rotate %302 by %c19_i32_402 dim 1 : vector<1x256xf32>, i32 -> vector<1x256xf32>
    %c-1_i32_403 = arith.constant -1 : i32
    %1060 = vector.broadcast %c-1_i32_403 : i32 to vector<1x256xi32>
    %1061 = arith.addi %0, %1060 : vector<1x256xi32>
    %c0_i32_404 = arith.constant 0 : i32
    %1062 = vector.broadcast %c0_i32_404 : i32 to vector<1x256xi32>
    %1063 = arith.cmpi sge, %1061, %1062 : vector<1x256xi32>
    %c-1_i32_405 = arith.constant -1 : i32
    %1064 = vector.broadcast %c-1_i32_405 : i32 to vector<1x256xi32>
    %1065 = arith.addi %0, %1064 : vector<1x256xi32>
    %c16_i32_406 = arith.constant 16 : i32
    %1066 = vector.broadcast %c16_i32_406 : i32 to vector<1x256xi32>
    %1067 = arith.cmpi slt, %1065, %1066 : vector<1x256xi32>
    %1068 = arith.andi %1063, %1067 : vector<1x256xi1>
    %c-3_i32_407 = arith.constant -3 : i32
    %1069 = vector.broadcast %c-3_i32_407 : i32 to vector<1x256xi32>
    %1070 = arith.addi %1, %1069 : vector<1x256xi32>
    %c0_i32_408 = arith.constant 0 : i32
    %1071 = vector.broadcast %c0_i32_408 : i32 to vector<1x256xi32>
    %1072 = arith.cmpi sge, %1070, %1071 : vector<1x256xi32>
    %1073 = arith.andi %1068, %1072 : vector<1x256xi1>
    %c-3_i32_409 = arith.constant -3 : i32
    %1074 = vector.broadcast %c-3_i32_409 : i32 to vector<1x256xi32>
    %1075 = arith.addi %1, %1074 : vector<1x256xi32>
    %c16_i32_410 = arith.constant 16 : i32
    %1076 = vector.broadcast %c16_i32_410 : i32 to vector<1x256xi32>
    %1077 = arith.cmpi slt, %1075, %1076 : vector<1x256xi32>
    %1078 = arith.andi %1073, %1077 : vector<1x256xi1>
    %cst_411 = arith.constant 0.000000e+00 : f32
    %1079 = vector.broadcast %cst_411 : f32 to vector<1x256xf32>
    %1080 = arith.select %1078, %1059, %1079 : vector<1x256xi1>, vector<1x256xf32>
    %1081 = vector.broadcast %1058 : f32 to vector<1x256xf32>
    %1082 = arith.mulf %1081, %1080 : vector<1x256xf32>
    %1083 = arith.addf %1057, %1082 : vector<1x256xf32>
    %c30 = arith.constant 30 : index
    %1084 = memref.load %arg8[%c30] : memref<98xf32, #tpu.memory_space<smem>>
    %c18_i32 = arith.constant 18 : i32
    %1085 = tpu.dynamic_rotate %300 by %c18_i32 dim 1 : vector<1x256xf32>, i32 -> vector<1x256xf32>
    %c-1_i32_412 = arith.constant -1 : i32
    %1086 = vector.broadcast %c-1_i32_412 : i32 to vector<1x256xi32>
    %1087 = arith.addi %0, %1086 : vector<1x256xi32>
    %c0_i32_413 = arith.constant 0 : i32
    %1088 = vector.broadcast %c0_i32_413 : i32 to vector<1x256xi32>
    %1089 = arith.cmpi sge, %1087, %1088 : vector<1x256xi32>
    %c-1_i32_414 = arith.constant -1 : i32
    %1090 = vector.broadcast %c-1_i32_414 : i32 to vector<1x256xi32>
    %1091 = arith.addi %0, %1090 : vector<1x256xi32>
    %c16_i32_415 = arith.constant 16 : i32
    %1092 = vector.broadcast %c16_i32_415 : i32 to vector<1x256xi32>
    %1093 = arith.cmpi slt, %1091, %1092 : vector<1x256xi32>
    %1094 = arith.andi %1089, %1093 : vector<1x256xi1>
    %c-2_i32_416 = arith.constant -2 : i32
    %1095 = vector.broadcast %c-2_i32_416 : i32 to vector<1x256xi32>
    %1096 = arith.addi %1, %1095 : vector<1x256xi32>
    %c0_i32_417 = arith.constant 0 : i32
    %1097 = vector.broadcast %c0_i32_417 : i32 to vector<1x256xi32>
    %1098 = arith.cmpi sge, %1096, %1097 : vector<1x256xi32>
    %1099 = arith.andi %1094, %1098 : vector<1x256xi1>
    %c-2_i32_418 = arith.constant -2 : i32
    %1100 = vector.broadcast %c-2_i32_418 : i32 to vector<1x256xi32>
    %1101 = arith.addi %1, %1100 : vector<1x256xi32>
    %c16_i32_419 = arith.constant 16 : i32
    %1102 = vector.broadcast %c16_i32_419 : i32 to vector<1x256xi32>
    %1103 = arith.cmpi slt, %1101, %1102 : vector<1x256xi32>
    %1104 = arith.andi %1099, %1103 : vector<1x256xi1>
    %cst_420 = arith.constant 0.000000e+00 : f32
    %1105 = vector.broadcast %cst_420 : f32 to vector<1x256xf32>
    %1106 = arith.select %1104, %1085, %1105 : vector<1x256xi1>, vector<1x256xf32>
    %1107 = vector.broadcast %1084 : f32 to vector<1x256xf32>
    %1108 = arith.mulf %1107, %1106 : vector<1x256xf32>
    %1109 = arith.addf %1083, %1108 : vector<1x256xf32>
    %c31 = arith.constant 31 : index
    %1110 = memref.load %arg8[%c31] : memref<98xf32, #tpu.memory_space<smem>>
    %c18_i32_421 = arith.constant 18 : i32
    %1111 = tpu.dynamic_rotate %302 by %c18_i32_421 dim 1 : vector<1x256xf32>, i32 -> vector<1x256xf32>
    %c-1_i32_422 = arith.constant -1 : i32
    %1112 = vector.broadcast %c-1_i32_422 : i32 to vector<1x256xi32>
    %1113 = arith.addi %0, %1112 : vector<1x256xi32>
    %c0_i32_423 = arith.constant 0 : i32
    %1114 = vector.broadcast %c0_i32_423 : i32 to vector<1x256xi32>
    %1115 = arith.cmpi sge, %1113, %1114 : vector<1x256xi32>
    %c-1_i32_424 = arith.constant -1 : i32
    %1116 = vector.broadcast %c-1_i32_424 : i32 to vector<1x256xi32>
    %1117 = arith.addi %0, %1116 : vector<1x256xi32>
    %c16_i32_425 = arith.constant 16 : i32
    %1118 = vector.broadcast %c16_i32_425 : i32 to vector<1x256xi32>
    %1119 = arith.cmpi slt, %1117, %1118 : vector<1x256xi32>
    %1120 = arith.andi %1115, %1119 : vector<1x256xi1>
    %c-2_i32_426 = arith.constant -2 : i32
    %1121 = vector.broadcast %c-2_i32_426 : i32 to vector<1x256xi32>
    %1122 = arith.addi %1, %1121 : vector<1x256xi32>
    %c0_i32_427 = arith.constant 0 : i32
    %1123 = vector.broadcast %c0_i32_427 : i32 to vector<1x256xi32>
    %1124 = arith.cmpi sge, %1122, %1123 : vector<1x256xi32>
    %1125 = arith.andi %1120, %1124 : vector<1x256xi1>
    %c-2_i32_428 = arith.constant -2 : i32
    %1126 = vector.broadcast %c-2_i32_428 : i32 to vector<1x256xi32>
    %1127 = arith.addi %1, %1126 : vector<1x256xi32>
    %c16_i32_429 = arith.constant 16 : i32
    %1128 = vector.broadcast %c16_i32_429 : i32 to vector<1x256xi32>
    %1129 = arith.cmpi slt, %1127, %1128 : vector<1x256xi32>
    %1130 = arith.andi %1125, %1129 : vector<1x256xi1>
    %cst_430 = arith.constant 0.000000e+00 : f32
    %1131 = vector.broadcast %cst_430 : f32 to vector<1x256xf32>
    %1132 = arith.select %1130, %1111, %1131 : vector<1x256xi1>, vector<1x256xf32>
    %1133 = vector.broadcast %1110 : f32 to vector<1x256xf32>
    %1134 = arith.mulf %1133, %1132 : vector<1x256xf32>
    %1135 = arith.addf %1109, %1134 : vector<1x256xf32>
    %c32 = arith.constant 32 : index
    %1136 = memref.load %arg8[%c32] : memref<98xf32, #tpu.memory_space<smem>>
    %c17_i32_431 = arith.constant 17 : i32
    %1137 = tpu.dynamic_rotate %300 by %c17_i32_431 dim 1 : vector<1x256xf32>, i32 -> vector<1x256xf32>
    %c-1_i32_432 = arith.constant -1 : i32
    %1138 = vector.broadcast %c-1_i32_432 : i32 to vector<1x256xi32>
    %1139 = arith.addi %0, %1138 : vector<1x256xi32>
    %c0_i32_433 = arith.constant 0 : i32
    %1140 = vector.broadcast %c0_i32_433 : i32 to vector<1x256xi32>
    %1141 = arith.cmpi sge, %1139, %1140 : vector<1x256xi32>
    %c-1_i32_434 = arith.constant -1 : i32
    %1142 = vector.broadcast %c-1_i32_434 : i32 to vector<1x256xi32>
    %1143 = arith.addi %0, %1142 : vector<1x256xi32>
    %c16_i32_435 = arith.constant 16 : i32
    %1144 = vector.broadcast %c16_i32_435 : i32 to vector<1x256xi32>
    %1145 = arith.cmpi slt, %1143, %1144 : vector<1x256xi32>
    %1146 = arith.andi %1141, %1145 : vector<1x256xi1>
    %c-1_i32_436 = arith.constant -1 : i32
    %1147 = vector.broadcast %c-1_i32_436 : i32 to vector<1x256xi32>
    %1148 = arith.addi %1, %1147 : vector<1x256xi32>
    %c0_i32_437 = arith.constant 0 : i32
    %1149 = vector.broadcast %c0_i32_437 : i32 to vector<1x256xi32>
    %1150 = arith.cmpi sge, %1148, %1149 : vector<1x256xi32>
    %1151 = arith.andi %1146, %1150 : vector<1x256xi1>
    %c-1_i32_438 = arith.constant -1 : i32
    %1152 = vector.broadcast %c-1_i32_438 : i32 to vector<1x256xi32>
    %1153 = arith.addi %1, %1152 : vector<1x256xi32>
    %c16_i32_439 = arith.constant 16 : i32
    %1154 = vector.broadcast %c16_i32_439 : i32 to vector<1x256xi32>
    %1155 = arith.cmpi slt, %1153, %1154 : vector<1x256xi32>
    %1156 = arith.andi %1151, %1155 : vector<1x256xi1>
    %cst_440 = arith.constant 0.000000e+00 : f32
    %1157 = vector.broadcast %cst_440 : f32 to vector<1x256xf32>
    %1158 = arith.select %1156, %1137, %1157 : vector<1x256xi1>, vector<1x256xf32>
    %1159 = vector.broadcast %1136 : f32 to vector<1x256xf32>
    %1160 = arith.mulf %1159, %1158 : vector<1x256xf32>
    %1161 = arith.addf %1135, %1160 : vector<1x256xf32>
    %c33 = arith.constant 33 : index
    %1162 = memref.load %arg8[%c33] : memref<98xf32, #tpu.memory_space<smem>>
    %c17_i32_441 = arith.constant 17 : i32
    %1163 = tpu.dynamic_rotate %302 by %c17_i32_441 dim 1 : vector<1x256xf32>, i32 -> vector<1x256xf32>
    %c-1_i32_442 = arith.constant -1 : i32
    %1164 = vector.broadcast %c-1_i32_442 : i32 to vector<1x256xi32>
    %1165 = arith.addi %0, %1164 : vector<1x256xi32>
    %c0_i32_443 = arith.constant 0 : i32
    %1166 = vector.broadcast %c0_i32_443 : i32 to vector<1x256xi32>
    %1167 = arith.cmpi sge, %1165, %1166 : vector<1x256xi32>
    %c-1_i32_444 = arith.constant -1 : i32
    %1168 = vector.broadcast %c-1_i32_444 : i32 to vector<1x256xi32>
    %1169 = arith.addi %0, %1168 : vector<1x256xi32>
    %c16_i32_445 = arith.constant 16 : i32
    %1170 = vector.broadcast %c16_i32_445 : i32 to vector<1x256xi32>
    %1171 = arith.cmpi slt, %1169, %1170 : vector<1x256xi32>
    %1172 = arith.andi %1167, %1171 : vector<1x256xi1>
    %c-1_i32_446 = arith.constant -1 : i32
    %1173 = vector.broadcast %c-1_i32_446 : i32 to vector<1x256xi32>
    %1174 = arith.addi %1, %1173 : vector<1x256xi32>
    %c0_i32_447 = arith.constant 0 : i32
    %1175 = vector.broadcast %c0_i32_447 : i32 to vector<1x256xi32>
    %1176 = arith.cmpi sge, %1174, %1175 : vector<1x256xi32>
    %1177 = arith.andi %1172, %1176 : vector<1x256xi1>
    %c-1_i32_448 = arith.constant -1 : i32
    %1178 = vector.broadcast %c-1_i32_448 : i32 to vector<1x256xi32>
    %1179 = arith.addi %1, %1178 : vector<1x256xi32>
    %c16_i32_449 = arith.constant 16 : i32
    %1180 = vector.broadcast %c16_i32_449 : i32 to vector<1x256xi32>
    %1181 = arith.cmpi slt, %1179, %1180 : vector<1x256xi32>
    %1182 = arith.andi %1177, %1181 : vector<1x256xi1>
    %cst_450 = arith.constant 0.000000e+00 : f32
    %1183 = vector.broadcast %cst_450 : f32 to vector<1x256xf32>
    %1184 = arith.select %1182, %1163, %1183 : vector<1x256xi1>, vector<1x256xf32>
    %1185 = vector.broadcast %1162 : f32 to vector<1x256xf32>
    %1186 = arith.mulf %1185, %1184 : vector<1x256xf32>
    %1187 = arith.addf %1161, %1186 : vector<1x256xf32>
    %c34 = arith.constant 34 : index
    %1188 = memref.load %arg8[%c34] : memref<98xf32, #tpu.memory_space<smem>>
    %c16_i32_451 = arith.constant 16 : i32
    %1189 = tpu.dynamic_rotate %300 by %c16_i32_451 dim 1 : vector<1x256xf32>, i32 -> vector<1x256xf32>
    %c-1_i32_452 = arith.constant -1 : i32
    %1190 = vector.broadcast %c-1_i32_452 : i32 to vector<1x256xi32>
    %1191 = arith.addi %0, %1190 : vector<1x256xi32>
    %c0_i32_453 = arith.constant 0 : i32
    %1192 = vector.broadcast %c0_i32_453 : i32 to vector<1x256xi32>
    %1193 = arith.cmpi sge, %1191, %1192 : vector<1x256xi32>
    %c-1_i32_454 = arith.constant -1 : i32
    %1194 = vector.broadcast %c-1_i32_454 : i32 to vector<1x256xi32>
    %1195 = arith.addi %0, %1194 : vector<1x256xi32>
    %c16_i32_455 = arith.constant 16 : i32
    %1196 = vector.broadcast %c16_i32_455 : i32 to vector<1x256xi32>
    %1197 = arith.cmpi slt, %1195, %1196 : vector<1x256xi32>
    %1198 = arith.andi %1193, %1197 : vector<1x256xi1>
    %c0_i32_456 = arith.constant 0 : i32
    %1199 = vector.broadcast %c0_i32_456 : i32 to vector<1x256xi32>
    %1200 = arith.addi %1, %1199 : vector<1x256xi32>
    %c0_i32_457 = arith.constant 0 : i32
    %1201 = vector.broadcast %c0_i32_457 : i32 to vector<1x256xi32>
    %1202 = arith.cmpi sge, %1200, %1201 : vector<1x256xi32>
    %1203 = arith.andi %1198, %1202 : vector<1x256xi1>
    %c0_i32_458 = arith.constant 0 : i32
    %1204 = vector.broadcast %c0_i32_458 : i32 to vector<1x256xi32>
    %1205 = arith.addi %1, %1204 : vector<1x256xi32>
    %c16_i32_459 = arith.constant 16 : i32
    %1206 = vector.broadcast %c16_i32_459 : i32 to vector<1x256xi32>
    %1207 = arith.cmpi slt, %1205, %1206 : vector<1x256xi32>
    %1208 = arith.andi %1203, %1207 : vector<1x256xi1>
    %cst_460 = arith.constant 0.000000e+00 : f32
    %1209 = vector.broadcast %cst_460 : f32 to vector<1x256xf32>
    %1210 = arith.select %1208, %1189, %1209 : vector<1x256xi1>, vector<1x256xf32>
    %1211 = vector.broadcast %1188 : f32 to vector<1x256xf32>
    %1212 = arith.mulf %1211, %1210 : vector<1x256xf32>
    %1213 = arith.addf %1187, %1212 : vector<1x256xf32>
    %c35 = arith.constant 35 : index
    %1214 = memref.load %arg8[%c35] : memref<98xf32, #tpu.memory_space<smem>>
    %c16_i32_461 = arith.constant 16 : i32
    %1215 = tpu.dynamic_rotate %302 by %c16_i32_461 dim 1 : vector<1x256xf32>, i32 -> vector<1x256xf32>
    %c-1_i32_462 = arith.constant -1 : i32
    %1216 = vector.broadcast %c-1_i32_462 : i32 to vector<1x256xi32>
    %1217 = arith.addi %0, %1216 : vector<1x256xi32>
    %c0_i32_463 = arith.constant 0 : i32
    %1218 = vector.broadcast %c0_i32_463 : i32 to vector<1x256xi32>
    %1219 = arith.cmpi sge, %1217, %1218 : vector<1x256xi32>
    %c-1_i32_464 = arith.constant -1 : i32
    %1220 = vector.broadcast %c-1_i32_464 : i32 to vector<1x256xi32>
    %1221 = arith.addi %0, %1220 : vector<1x256xi32>
    %c16_i32_465 = arith.constant 16 : i32
    %1222 = vector.broadcast %c16_i32_465 : i32 to vector<1x256xi32>
    %1223 = arith.cmpi slt, %1221, %1222 : vector<1x256xi32>
    %1224 = arith.andi %1219, %1223 : vector<1x256xi1>
    %c0_i32_466 = arith.constant 0 : i32
    %1225 = vector.broadcast %c0_i32_466 : i32 to vector<1x256xi32>
    %1226 = arith.addi %1, %1225 : vector<1x256xi32>
    %c0_i32_467 = arith.constant 0 : i32
    %1227 = vector.broadcast %c0_i32_467 : i32 to vector<1x256xi32>
    %1228 = arith.cmpi sge, %1226, %1227 : vector<1x256xi32>
    %1229 = arith.andi %1224, %1228 : vector<1x256xi1>
    %c0_i32_468 = arith.constant 0 : i32
    %1230 = vector.broadcast %c0_i32_468 : i32 to vector<1x256xi32>
    %1231 = arith.addi %1, %1230 : vector<1x256xi32>
    %c16_i32_469 = arith.constant 16 : i32
    %1232 = vector.broadcast %c16_i32_469 : i32 to vector<1x256xi32>
    %1233 = arith.cmpi slt, %1231, %1232 : vector<1x256xi32>
    %1234 = arith.andi %1229, %1233 : vector<1x256xi1>
    %cst_470 = arith.constant 0.000000e+00 : f32
    %1235 = vector.broadcast %cst_470 : f32 to vector<1x256xf32>
    %1236 = arith.select %1234, %1215, %1235 : vector<1x256xi1>, vector<1x256xf32>
    %1237 = vector.broadcast %1214 : f32 to vector<1x256xf32>
    %1238 = arith.mulf %1237, %1236 : vector<1x256xf32>
    %1239 = arith.addf %1213, %1238 : vector<1x256xf32>
    %c36 = arith.constant 36 : index
    %1240 = memref.load %arg8[%c36] : memref<98xf32, #tpu.memory_space<smem>>
    %c15_i32_471 = arith.constant 15 : i32
    %1241 = tpu.dynamic_rotate %300 by %c15_i32_471 dim 1 : vector<1x256xf32>, i32 -> vector<1x256xf32>
    %c-1_i32_472 = arith.constant -1 : i32
    %1242 = vector.broadcast %c-1_i32_472 : i32 to vector<1x256xi32>
    %1243 = arith.addi %0, %1242 : vector<1x256xi32>
    %c0_i32_473 = arith.constant 0 : i32
    %1244 = vector.broadcast %c0_i32_473 : i32 to vector<1x256xi32>
    %1245 = arith.cmpi sge, %1243, %1244 : vector<1x256xi32>
    %c-1_i32_474 = arith.constant -1 : i32
    %1246 = vector.broadcast %c-1_i32_474 : i32 to vector<1x256xi32>
    %1247 = arith.addi %0, %1246 : vector<1x256xi32>
    %c16_i32_475 = arith.constant 16 : i32
    %1248 = vector.broadcast %c16_i32_475 : i32 to vector<1x256xi32>
    %1249 = arith.cmpi slt, %1247, %1248 : vector<1x256xi32>
    %1250 = arith.andi %1245, %1249 : vector<1x256xi1>
    %c1_i32_476 = arith.constant 1 : i32
    %1251 = vector.broadcast %c1_i32_476 : i32 to vector<1x256xi32>
    %1252 = arith.addi %1, %1251 : vector<1x256xi32>
    %c0_i32_477 = arith.constant 0 : i32
    %1253 = vector.broadcast %c0_i32_477 : i32 to vector<1x256xi32>
    %1254 = arith.cmpi sge, %1252, %1253 : vector<1x256xi32>
    %1255 = arith.andi %1250, %1254 : vector<1x256xi1>
    %c1_i32_478 = arith.constant 1 : i32
    %1256 = vector.broadcast %c1_i32_478 : i32 to vector<1x256xi32>
    %1257 = arith.addi %1, %1256 : vector<1x256xi32>
    %c16_i32_479 = arith.constant 16 : i32
    %1258 = vector.broadcast %c16_i32_479 : i32 to vector<1x256xi32>
    %1259 = arith.cmpi slt, %1257, %1258 : vector<1x256xi32>
    %1260 = arith.andi %1255, %1259 : vector<1x256xi1>
    %cst_480 = arith.constant 0.000000e+00 : f32
    %1261 = vector.broadcast %cst_480 : f32 to vector<1x256xf32>
    %1262 = arith.select %1260, %1241, %1261 : vector<1x256xi1>, vector<1x256xf32>
    %1263 = vector.broadcast %1240 : f32 to vector<1x256xf32>
    %1264 = arith.mulf %1263, %1262 : vector<1x256xf32>
    %1265 = arith.addf %1239, %1264 : vector<1x256xf32>
    %c37 = arith.constant 37 : index
    %1266 = memref.load %arg8[%c37] : memref<98xf32, #tpu.memory_space<smem>>
    %c15_i32_481 = arith.constant 15 : i32
    %1267 = tpu.dynamic_rotate %302 by %c15_i32_481 dim 1 : vector<1x256xf32>, i32 -> vector<1x256xf32>
    %c-1_i32_482 = arith.constant -1 : i32
    %1268 = vector.broadcast %c-1_i32_482 : i32 to vector<1x256xi32>
    %1269 = arith.addi %0, %1268 : vector<1x256xi32>
    %c0_i32_483 = arith.constant 0 : i32
    %1270 = vector.broadcast %c0_i32_483 : i32 to vector<1x256xi32>
    %1271 = arith.cmpi sge, %1269, %1270 : vector<1x256xi32>
    %c-1_i32_484 = arith.constant -1 : i32
    %1272 = vector.broadcast %c-1_i32_484 : i32 to vector<1x256xi32>
    %1273 = arith.addi %0, %1272 : vector<1x256xi32>
    %c16_i32_485 = arith.constant 16 : i32
    %1274 = vector.broadcast %c16_i32_485 : i32 to vector<1x256xi32>
    %1275 = arith.cmpi slt, %1273, %1274 : vector<1x256xi32>
    %1276 = arith.andi %1271, %1275 : vector<1x256xi1>
    %c1_i32_486 = arith.constant 1 : i32
    %1277 = vector.broadcast %c1_i32_486 : i32 to vector<1x256xi32>
    %1278 = arith.addi %1, %1277 : vector<1x256xi32>
    %c0_i32_487 = arith.constant 0 : i32
    %1279 = vector.broadcast %c0_i32_487 : i32 to vector<1x256xi32>
    %1280 = arith.cmpi sge, %1278, %1279 : vector<1x256xi32>
    %1281 = arith.andi %1276, %1280 : vector<1x256xi1>
    %c1_i32_488 = arith.constant 1 : i32
    %1282 = vector.broadcast %c1_i32_488 : i32 to vector<1x256xi32>
    %1283 = arith.addi %1, %1282 : vector<1x256xi32>
    %c16_i32_489 = arith.constant 16 : i32
    %1284 = vector.broadcast %c16_i32_489 : i32 to vector<1x256xi32>
    %1285 = arith.cmpi slt, %1283, %1284 : vector<1x256xi32>
    %1286 = arith.andi %1281, %1285 : vector<1x256xi1>
    %cst_490 = arith.constant 0.000000e+00 : f32
    %1287 = vector.broadcast %cst_490 : f32 to vector<1x256xf32>
    %1288 = arith.select %1286, %1267, %1287 : vector<1x256xi1>, vector<1x256xf32>
    %1289 = vector.broadcast %1266 : f32 to vector<1x256xf32>
    %1290 = arith.mulf %1289, %1288 : vector<1x256xf32>
    %1291 = arith.addf %1265, %1290 : vector<1x256xf32>
    %c38 = arith.constant 38 : index
    %1292 = memref.load %arg8[%c38] : memref<98xf32, #tpu.memory_space<smem>>
    %c14_i32 = arith.constant 14 : i32
    %1293 = tpu.dynamic_rotate %300 by %c14_i32 dim 1 : vector<1x256xf32>, i32 -> vector<1x256xf32>
    %c-1_i32_491 = arith.constant -1 : i32
    %1294 = vector.broadcast %c-1_i32_491 : i32 to vector<1x256xi32>
    %1295 = arith.addi %0, %1294 : vector<1x256xi32>
    %c0_i32_492 = arith.constant 0 : i32
    %1296 = vector.broadcast %c0_i32_492 : i32 to vector<1x256xi32>
    %1297 = arith.cmpi sge, %1295, %1296 : vector<1x256xi32>
    %c-1_i32_493 = arith.constant -1 : i32
    %1298 = vector.broadcast %c-1_i32_493 : i32 to vector<1x256xi32>
    %1299 = arith.addi %0, %1298 : vector<1x256xi32>
    %c16_i32_494 = arith.constant 16 : i32
    %1300 = vector.broadcast %c16_i32_494 : i32 to vector<1x256xi32>
    %1301 = arith.cmpi slt, %1299, %1300 : vector<1x256xi32>
    %1302 = arith.andi %1297, %1301 : vector<1x256xi1>
    %c2_i32_495 = arith.constant 2 : i32
    %1303 = vector.broadcast %c2_i32_495 : i32 to vector<1x256xi32>
    %1304 = arith.addi %1, %1303 : vector<1x256xi32>
    %c0_i32_496 = arith.constant 0 : i32
    %1305 = vector.broadcast %c0_i32_496 : i32 to vector<1x256xi32>
    %1306 = arith.cmpi sge, %1304, %1305 : vector<1x256xi32>
    %1307 = arith.andi %1302, %1306 : vector<1x256xi1>
    %c2_i32_497 = arith.constant 2 : i32
    %1308 = vector.broadcast %c2_i32_497 : i32 to vector<1x256xi32>
    %1309 = arith.addi %1, %1308 : vector<1x256xi32>
    %c16_i32_498 = arith.constant 16 : i32
    %1310 = vector.broadcast %c16_i32_498 : i32 to vector<1x256xi32>
    %1311 = arith.cmpi slt, %1309, %1310 : vector<1x256xi32>
    %1312 = arith.andi %1307, %1311 : vector<1x256xi1>
    %cst_499 = arith.constant 0.000000e+00 : f32
    %1313 = vector.broadcast %cst_499 : f32 to vector<1x256xf32>
    %1314 = arith.select %1312, %1293, %1313 : vector<1x256xi1>, vector<1x256xf32>
    %1315 = vector.broadcast %1292 : f32 to vector<1x256xf32>
    %1316 = arith.mulf %1315, %1314 : vector<1x256xf32>
    %1317 = arith.addf %1291, %1316 : vector<1x256xf32>
    %c39 = arith.constant 39 : index
    %1318 = memref.load %arg8[%c39] : memref<98xf32, #tpu.memory_space<smem>>
    %c14_i32_500 = arith.constant 14 : i32
    %1319 = tpu.dynamic_rotate %302 by %c14_i32_500 dim 1 : vector<1x256xf32>, i32 -> vector<1x256xf32>
    %c-1_i32_501 = arith.constant -1 : i32
    %1320 = vector.broadcast %c-1_i32_501 : i32 to vector<1x256xi32>
    %1321 = arith.addi %0, %1320 : vector<1x256xi32>
    %c0_i32_502 = arith.constant 0 : i32
    %1322 = vector.broadcast %c0_i32_502 : i32 to vector<1x256xi32>
    %1323 = arith.cmpi sge, %1321, %1322 : vector<1x256xi32>
    %c-1_i32_503 = arith.constant -1 : i32
    %1324 = vector.broadcast %c-1_i32_503 : i32 to vector<1x256xi32>
    %1325 = arith.addi %0, %1324 : vector<1x256xi32>
    %c16_i32_504 = arith.constant 16 : i32
    %1326 = vector.broadcast %c16_i32_504 : i32 to vector<1x256xi32>
    %1327 = arith.cmpi slt, %1325, %1326 : vector<1x256xi32>
    %1328 = arith.andi %1323, %1327 : vector<1x256xi1>
    %c2_i32_505 = arith.constant 2 : i32
    %1329 = vector.broadcast %c2_i32_505 : i32 to vector<1x256xi32>
    %1330 = arith.addi %1, %1329 : vector<1x256xi32>
    %c0_i32_506 = arith.constant 0 : i32
    %1331 = vector.broadcast %c0_i32_506 : i32 to vector<1x256xi32>
    %1332 = arith.cmpi sge, %1330, %1331 : vector<1x256xi32>
    %1333 = arith.andi %1328, %1332 : vector<1x256xi1>
    %c2_i32_507 = arith.constant 2 : i32
    %1334 = vector.broadcast %c2_i32_507 : i32 to vector<1x256xi32>
    %1335 = arith.addi %1, %1334 : vector<1x256xi32>
    %c16_i32_508 = arith.constant 16 : i32
    %1336 = vector.broadcast %c16_i32_508 : i32 to vector<1x256xi32>
    %1337 = arith.cmpi slt, %1335, %1336 : vector<1x256xi32>
    %1338 = arith.andi %1333, %1337 : vector<1x256xi1>
    %cst_509 = arith.constant 0.000000e+00 : f32
    %1339 = vector.broadcast %cst_509 : f32 to vector<1x256xf32>
    %1340 = arith.select %1338, %1319, %1339 : vector<1x256xi1>, vector<1x256xf32>
    %1341 = vector.broadcast %1318 : f32 to vector<1x256xf32>
    %1342 = arith.mulf %1341, %1340 : vector<1x256xf32>
    %1343 = arith.addf %1317, %1342 : vector<1x256xf32>
    %c40 = arith.constant 40 : index
    %1344 = memref.load %arg8[%c40] : memref<98xf32, #tpu.memory_space<smem>>
    %c13_i32 = arith.constant 13 : i32
    %1345 = tpu.dynamic_rotate %300 by %c13_i32 dim 1 : vector<1x256xf32>, i32 -> vector<1x256xf32>
    %c-1_i32_510 = arith.constant -1 : i32
    %1346 = vector.broadcast %c-1_i32_510 : i32 to vector<1x256xi32>
    %1347 = arith.addi %0, %1346 : vector<1x256xi32>
    %c0_i32_511 = arith.constant 0 : i32
    %1348 = vector.broadcast %c0_i32_511 : i32 to vector<1x256xi32>
    %1349 = arith.cmpi sge, %1347, %1348 : vector<1x256xi32>
    %c-1_i32_512 = arith.constant -1 : i32
    %1350 = vector.broadcast %c-1_i32_512 : i32 to vector<1x256xi32>
    %1351 = arith.addi %0, %1350 : vector<1x256xi32>
    %c16_i32_513 = arith.constant 16 : i32
    %1352 = vector.broadcast %c16_i32_513 : i32 to vector<1x256xi32>
    %1353 = arith.cmpi slt, %1351, %1352 : vector<1x256xi32>
    %1354 = arith.andi %1349, %1353 : vector<1x256xi1>
    %c3_i32_514 = arith.constant 3 : i32
    %1355 = vector.broadcast %c3_i32_514 : i32 to vector<1x256xi32>
    %1356 = arith.addi %1, %1355 : vector<1x256xi32>
    %c0_i32_515 = arith.constant 0 : i32
    %1357 = vector.broadcast %c0_i32_515 : i32 to vector<1x256xi32>
    %1358 = arith.cmpi sge, %1356, %1357 : vector<1x256xi32>
    %1359 = arith.andi %1354, %1358 : vector<1x256xi1>
    %c3_i32_516 = arith.constant 3 : i32
    %1360 = vector.broadcast %c3_i32_516 : i32 to vector<1x256xi32>
    %1361 = arith.addi %1, %1360 : vector<1x256xi32>
    %c16_i32_517 = arith.constant 16 : i32
    %1362 = vector.broadcast %c16_i32_517 : i32 to vector<1x256xi32>
    %1363 = arith.cmpi slt, %1361, %1362 : vector<1x256xi32>
    %1364 = arith.andi %1359, %1363 : vector<1x256xi1>
    %cst_518 = arith.constant 0.000000e+00 : f32
    %1365 = vector.broadcast %cst_518 : f32 to vector<1x256xf32>
    %1366 = arith.select %1364, %1345, %1365 : vector<1x256xi1>, vector<1x256xf32>
    %1367 = vector.broadcast %1344 : f32 to vector<1x256xf32>
    %1368 = arith.mulf %1367, %1366 : vector<1x256xf32>
    %1369 = arith.addf %1343, %1368 : vector<1x256xf32>
    %c41 = arith.constant 41 : index
    %1370 = memref.load %arg8[%c41] : memref<98xf32, #tpu.memory_space<smem>>
    %c13_i32_519 = arith.constant 13 : i32
    %1371 = tpu.dynamic_rotate %302 by %c13_i32_519 dim 1 : vector<1x256xf32>, i32 -> vector<1x256xf32>
    %c-1_i32_520 = arith.constant -1 : i32
    %1372 = vector.broadcast %c-1_i32_520 : i32 to vector<1x256xi32>
    %1373 = arith.addi %0, %1372 : vector<1x256xi32>
    %c0_i32_521 = arith.constant 0 : i32
    %1374 = vector.broadcast %c0_i32_521 : i32 to vector<1x256xi32>
    %1375 = arith.cmpi sge, %1373, %1374 : vector<1x256xi32>
    %c-1_i32_522 = arith.constant -1 : i32
    %1376 = vector.broadcast %c-1_i32_522 : i32 to vector<1x256xi32>
    %1377 = arith.addi %0, %1376 : vector<1x256xi32>
    %c16_i32_523 = arith.constant 16 : i32
    %1378 = vector.broadcast %c16_i32_523 : i32 to vector<1x256xi32>
    %1379 = arith.cmpi slt, %1377, %1378 : vector<1x256xi32>
    %1380 = arith.andi %1375, %1379 : vector<1x256xi1>
    %c3_i32_524 = arith.constant 3 : i32
    %1381 = vector.broadcast %c3_i32_524 : i32 to vector<1x256xi32>
    %1382 = arith.addi %1, %1381 : vector<1x256xi32>
    %c0_i32_525 = arith.constant 0 : i32
    %1383 = vector.broadcast %c0_i32_525 : i32 to vector<1x256xi32>
    %1384 = arith.cmpi sge, %1382, %1383 : vector<1x256xi32>
    %1385 = arith.andi %1380, %1384 : vector<1x256xi1>
    %c3_i32_526 = arith.constant 3 : i32
    %1386 = vector.broadcast %c3_i32_526 : i32 to vector<1x256xi32>
    %1387 = arith.addi %1, %1386 : vector<1x256xi32>
    %c16_i32_527 = arith.constant 16 : i32
    %1388 = vector.broadcast %c16_i32_527 : i32 to vector<1x256xi32>
    %1389 = arith.cmpi slt, %1387, %1388 : vector<1x256xi32>
    %1390 = arith.andi %1385, %1389 : vector<1x256xi1>
    %cst_528 = arith.constant 0.000000e+00 : f32
    %1391 = vector.broadcast %cst_528 : f32 to vector<1x256xf32>
    %1392 = arith.select %1390, %1371, %1391 : vector<1x256xi1>, vector<1x256xf32>
    %1393 = vector.broadcast %1370 : f32 to vector<1x256xf32>
    %1394 = arith.mulf %1393, %1392 : vector<1x256xf32>
    %1395 = arith.addf %1369, %1394 : vector<1x256xf32>
    %c42 = arith.constant 42 : index
    %1396 = memref.load %arg8[%c42] : memref<98xf32, #tpu.memory_space<smem>>
    %c3_i32_529 = arith.constant 3 : i32
    %1397 = tpu.dynamic_rotate %300 by %c3_i32_529 dim 1 : vector<1x256xf32>, i32 -> vector<1x256xf32>
    %c0_i32_530 = arith.constant 0 : i32
    %1398 = vector.broadcast %c0_i32_530 : i32 to vector<1x256xi32>
    %1399 = arith.addi %0, %1398 : vector<1x256xi32>
    %c0_i32_531 = arith.constant 0 : i32
    %1400 = vector.broadcast %c0_i32_531 : i32 to vector<1x256xi32>
    %1401 = arith.cmpi sge, %1399, %1400 : vector<1x256xi32>
    %c0_i32_532 = arith.constant 0 : i32
    %1402 = vector.broadcast %c0_i32_532 : i32 to vector<1x256xi32>
    %1403 = arith.addi %0, %1402 : vector<1x256xi32>
    %c16_i32_533 = arith.constant 16 : i32
    %1404 = vector.broadcast %c16_i32_533 : i32 to vector<1x256xi32>
    %1405 = arith.cmpi slt, %1403, %1404 : vector<1x256xi32>
    %1406 = arith.andi %1401, %1405 : vector<1x256xi1>
    %c-3_i32_534 = arith.constant -3 : i32
    %1407 = vector.broadcast %c-3_i32_534 : i32 to vector<1x256xi32>
    %1408 = arith.addi %1, %1407 : vector<1x256xi32>
    %c0_i32_535 = arith.constant 0 : i32
    %1409 = vector.broadcast %c0_i32_535 : i32 to vector<1x256xi32>
    %1410 = arith.cmpi sge, %1408, %1409 : vector<1x256xi32>
    %1411 = arith.andi %1406, %1410 : vector<1x256xi1>
    %c-3_i32_536 = arith.constant -3 : i32
    %1412 = vector.broadcast %c-3_i32_536 : i32 to vector<1x256xi32>
    %1413 = arith.addi %1, %1412 : vector<1x256xi32>
    %c16_i32_537 = arith.constant 16 : i32
    %1414 = vector.broadcast %c16_i32_537 : i32 to vector<1x256xi32>
    %1415 = arith.cmpi slt, %1413, %1414 : vector<1x256xi32>
    %1416 = arith.andi %1411, %1415 : vector<1x256xi1>
    %cst_538 = arith.constant 0.000000e+00 : f32
    %1417 = vector.broadcast %cst_538 : f32 to vector<1x256xf32>
    %1418 = arith.select %1416, %1397, %1417 : vector<1x256xi1>, vector<1x256xf32>
    %1419 = vector.broadcast %1396 : f32 to vector<1x256xf32>
    %1420 = arith.mulf %1419, %1418 : vector<1x256xf32>
    %1421 = arith.addf %1395, %1420 : vector<1x256xf32>
    %c43 = arith.constant 43 : index
    %1422 = memref.load %arg8[%c43] : memref<98xf32, #tpu.memory_space<smem>>
    %c3_i32_539 = arith.constant 3 : i32
    %1423 = tpu.dynamic_rotate %302 by %c3_i32_539 dim 1 : vector<1x256xf32>, i32 -> vector<1x256xf32>
    %c0_i32_540 = arith.constant 0 : i32
    %1424 = vector.broadcast %c0_i32_540 : i32 to vector<1x256xi32>
    %1425 = arith.addi %0, %1424 : vector<1x256xi32>
    %c0_i32_541 = arith.constant 0 : i32
    %1426 = vector.broadcast %c0_i32_541 : i32 to vector<1x256xi32>
    %1427 = arith.cmpi sge, %1425, %1426 : vector<1x256xi32>
    %c0_i32_542 = arith.constant 0 : i32
    %1428 = vector.broadcast %c0_i32_542 : i32 to vector<1x256xi32>
    %1429 = arith.addi %0, %1428 : vector<1x256xi32>
    %c16_i32_543 = arith.constant 16 : i32
    %1430 = vector.broadcast %c16_i32_543 : i32 to vector<1x256xi32>
    %1431 = arith.cmpi slt, %1429, %1430 : vector<1x256xi32>
    %1432 = arith.andi %1427, %1431 : vector<1x256xi1>
    %c-3_i32_544 = arith.constant -3 : i32
    %1433 = vector.broadcast %c-3_i32_544 : i32 to vector<1x256xi32>
    %1434 = arith.addi %1, %1433 : vector<1x256xi32>
    %c0_i32_545 = arith.constant 0 : i32
    %1435 = vector.broadcast %c0_i32_545 : i32 to vector<1x256xi32>
    %1436 = arith.cmpi sge, %1434, %1435 : vector<1x256xi32>
    %1437 = arith.andi %1432, %1436 : vector<1x256xi1>
    %c-3_i32_546 = arith.constant -3 : i32
    %1438 = vector.broadcast %c-3_i32_546 : i32 to vector<1x256xi32>
    %1439 = arith.addi %1, %1438 : vector<1x256xi32>
    %c16_i32_547 = arith.constant 16 : i32
    %1440 = vector.broadcast %c16_i32_547 : i32 to vector<1x256xi32>
    %1441 = arith.cmpi slt, %1439, %1440 : vector<1x256xi32>
    %1442 = arith.andi %1437, %1441 : vector<1x256xi1>
    %cst_548 = arith.constant 0.000000e+00 : f32
    %1443 = vector.broadcast %cst_548 : f32 to vector<1x256xf32>
    %1444 = arith.select %1442, %1423, %1443 : vector<1x256xi1>, vector<1x256xf32>
    %1445 = vector.broadcast %1422 : f32 to vector<1x256xf32>
    %1446 = arith.mulf %1445, %1444 : vector<1x256xf32>
    %1447 = arith.addf %1421, %1446 : vector<1x256xf32>
    %c44 = arith.constant 44 : index
    %1448 = memref.load %arg8[%c44] : memref<98xf32, #tpu.memory_space<smem>>
    %c2_i32_549 = arith.constant 2 : i32
    %1449 = tpu.dynamic_rotate %300 by %c2_i32_549 dim 1 : vector<1x256xf32>, i32 -> vector<1x256xf32>
    %c0_i32_550 = arith.constant 0 : i32
    %1450 = vector.broadcast %c0_i32_550 : i32 to vector<1x256xi32>
    %1451 = arith.addi %0, %1450 : vector<1x256xi32>
    %c0_i32_551 = arith.constant 0 : i32
    %1452 = vector.broadcast %c0_i32_551 : i32 to vector<1x256xi32>
    %1453 = arith.cmpi sge, %1451, %1452 : vector<1x256xi32>
    %c0_i32_552 = arith.constant 0 : i32
    %1454 = vector.broadcast %c0_i32_552 : i32 to vector<1x256xi32>
    %1455 = arith.addi %0, %1454 : vector<1x256xi32>
    %c16_i32_553 = arith.constant 16 : i32
    %1456 = vector.broadcast %c16_i32_553 : i32 to vector<1x256xi32>
    %1457 = arith.cmpi slt, %1455, %1456 : vector<1x256xi32>
    %1458 = arith.andi %1453, %1457 : vector<1x256xi1>
    %c-2_i32_554 = arith.constant -2 : i32
    %1459 = vector.broadcast %c-2_i32_554 : i32 to vector<1x256xi32>
    %1460 = arith.addi %1, %1459 : vector<1x256xi32>
    %c0_i32_555 = arith.constant 0 : i32
    %1461 = vector.broadcast %c0_i32_555 : i32 to vector<1x256xi32>
    %1462 = arith.cmpi sge, %1460, %1461 : vector<1x256xi32>
    %1463 = arith.andi %1458, %1462 : vector<1x256xi1>
    %c-2_i32_556 = arith.constant -2 : i32
    %1464 = vector.broadcast %c-2_i32_556 : i32 to vector<1x256xi32>
    %1465 = arith.addi %1, %1464 : vector<1x256xi32>
    %c16_i32_557 = arith.constant 16 : i32
    %1466 = vector.broadcast %c16_i32_557 : i32 to vector<1x256xi32>
    %1467 = arith.cmpi slt, %1465, %1466 : vector<1x256xi32>
    %1468 = arith.andi %1463, %1467 : vector<1x256xi1>
    %cst_558 = arith.constant 0.000000e+00 : f32
    %1469 = vector.broadcast %cst_558 : f32 to vector<1x256xf32>
    %1470 = arith.select %1468, %1449, %1469 : vector<1x256xi1>, vector<1x256xf32>
    %1471 = vector.broadcast %1448 : f32 to vector<1x256xf32>
    %1472 = arith.mulf %1471, %1470 : vector<1x256xf32>
    %1473 = arith.addf %1447, %1472 : vector<1x256xf32>
    %c45 = arith.constant 45 : index
    %1474 = memref.load %arg8[%c45] : memref<98xf32, #tpu.memory_space<smem>>
    %c2_i32_559 = arith.constant 2 : i32
    %1475 = tpu.dynamic_rotate %302 by %c2_i32_559 dim 1 : vector<1x256xf32>, i32 -> vector<1x256xf32>
    %c0_i32_560 = arith.constant 0 : i32
    %1476 = vector.broadcast %c0_i32_560 : i32 to vector<1x256xi32>
    %1477 = arith.addi %0, %1476 : vector<1x256xi32>
    %c0_i32_561 = arith.constant 0 : i32
    %1478 = vector.broadcast %c0_i32_561 : i32 to vector<1x256xi32>
    %1479 = arith.cmpi sge, %1477, %1478 : vector<1x256xi32>
    %c0_i32_562 = arith.constant 0 : i32
    %1480 = vector.broadcast %c0_i32_562 : i32 to vector<1x256xi32>
    %1481 = arith.addi %0, %1480 : vector<1x256xi32>
    %c16_i32_563 = arith.constant 16 : i32
    %1482 = vector.broadcast %c16_i32_563 : i32 to vector<1x256xi32>
    %1483 = arith.cmpi slt, %1481, %1482 : vector<1x256xi32>
    %1484 = arith.andi %1479, %1483 : vector<1x256xi1>
    %c-2_i32_564 = arith.constant -2 : i32
    %1485 = vector.broadcast %c-2_i32_564 : i32 to vector<1x256xi32>
    %1486 = arith.addi %1, %1485 : vector<1x256xi32>
    %c0_i32_565 = arith.constant 0 : i32
    %1487 = vector.broadcast %c0_i32_565 : i32 to vector<1x256xi32>
    %1488 = arith.cmpi sge, %1486, %1487 : vector<1x256xi32>
    %1489 = arith.andi %1484, %1488 : vector<1x256xi1>
    %c-2_i32_566 = arith.constant -2 : i32
    %1490 = vector.broadcast %c-2_i32_566 : i32 to vector<1x256xi32>
    %1491 = arith.addi %1, %1490 : vector<1x256xi32>
    %c16_i32_567 = arith.constant 16 : i32
    %1492 = vector.broadcast %c16_i32_567 : i32 to vector<1x256xi32>
    %1493 = arith.cmpi slt, %1491, %1492 : vector<1x256xi32>
    %1494 = arith.andi %1489, %1493 : vector<1x256xi1>
    %cst_568 = arith.constant 0.000000e+00 : f32
    %1495 = vector.broadcast %cst_568 : f32 to vector<1x256xf32>
    %1496 = arith.select %1494, %1475, %1495 : vector<1x256xi1>, vector<1x256xf32>
    %1497 = vector.broadcast %1474 : f32 to vector<1x256xf32>
    %1498 = arith.mulf %1497, %1496 : vector<1x256xf32>
    %1499 = arith.addf %1473, %1498 : vector<1x256xf32>
    %c46 = arith.constant 46 : index
    %1500 = memref.load %arg8[%c46] : memref<98xf32, #tpu.memory_space<smem>>
    %c1_i32_569 = arith.constant 1 : i32
    %1501 = tpu.dynamic_rotate %300 by %c1_i32_569 dim 1 : vector<1x256xf32>, i32 -> vector<1x256xf32>
    %c0_i32_570 = arith.constant 0 : i32
    %1502 = vector.broadcast %c0_i32_570 : i32 to vector<1x256xi32>
    %1503 = arith.addi %0, %1502 : vector<1x256xi32>
    %c0_i32_571 = arith.constant 0 : i32
    %1504 = vector.broadcast %c0_i32_571 : i32 to vector<1x256xi32>
    %1505 = arith.cmpi sge, %1503, %1504 : vector<1x256xi32>
    %c0_i32_572 = arith.constant 0 : i32
    %1506 = vector.broadcast %c0_i32_572 : i32 to vector<1x256xi32>
    %1507 = arith.addi %0, %1506 : vector<1x256xi32>
    %c16_i32_573 = arith.constant 16 : i32
    %1508 = vector.broadcast %c16_i32_573 : i32 to vector<1x256xi32>
    %1509 = arith.cmpi slt, %1507, %1508 : vector<1x256xi32>
    %1510 = arith.andi %1505, %1509 : vector<1x256xi1>
    %c-1_i32_574 = arith.constant -1 : i32
    %1511 = vector.broadcast %c-1_i32_574 : i32 to vector<1x256xi32>
    %1512 = arith.addi %1, %1511 : vector<1x256xi32>
    %c0_i32_575 = arith.constant 0 : i32
    %1513 = vector.broadcast %c0_i32_575 : i32 to vector<1x256xi32>
    %1514 = arith.cmpi sge, %1512, %1513 : vector<1x256xi32>
    %1515 = arith.andi %1510, %1514 : vector<1x256xi1>
    %c-1_i32_576 = arith.constant -1 : i32
    %1516 = vector.broadcast %c-1_i32_576 : i32 to vector<1x256xi32>
    %1517 = arith.addi %1, %1516 : vector<1x256xi32>
    %c16_i32_577 = arith.constant 16 : i32
    %1518 = vector.broadcast %c16_i32_577 : i32 to vector<1x256xi32>
    %1519 = arith.cmpi slt, %1517, %1518 : vector<1x256xi32>
    %1520 = arith.andi %1515, %1519 : vector<1x256xi1>
    %cst_578 = arith.constant 0.000000e+00 : f32
    %1521 = vector.broadcast %cst_578 : f32 to vector<1x256xf32>
    %1522 = arith.select %1520, %1501, %1521 : vector<1x256xi1>, vector<1x256xf32>
    %1523 = vector.broadcast %1500 : f32 to vector<1x256xf32>
    %1524 = arith.mulf %1523, %1522 : vector<1x256xf32>
    %1525 = arith.addf %1499, %1524 : vector<1x256xf32>
    %c47 = arith.constant 47 : index
    %1526 = memref.load %arg8[%c47] : memref<98xf32, #tpu.memory_space<smem>>
    %c1_i32_579 = arith.constant 1 : i32
    %1527 = tpu.dynamic_rotate %302 by %c1_i32_579 dim 1 : vector<1x256xf32>, i32 -> vector<1x256xf32>
    %c0_i32_580 = arith.constant 0 : i32
    %1528 = vector.broadcast %c0_i32_580 : i32 to vector<1x256xi32>
    %1529 = arith.addi %0, %1528 : vector<1x256xi32>
    %c0_i32_581 = arith.constant 0 : i32
    %1530 = vector.broadcast %c0_i32_581 : i32 to vector<1x256xi32>
    %1531 = arith.cmpi sge, %1529, %1530 : vector<1x256xi32>
    %c0_i32_582 = arith.constant 0 : i32
    %1532 = vector.broadcast %c0_i32_582 : i32 to vector<1x256xi32>
    %1533 = arith.addi %0, %1532 : vector<1x256xi32>
    %c16_i32_583 = arith.constant 16 : i32
    %1534 = vector.broadcast %c16_i32_583 : i32 to vector<1x256xi32>
    %1535 = arith.cmpi slt, %1533, %1534 : vector<1x256xi32>
    %1536 = arith.andi %1531, %1535 : vector<1x256xi1>
    %c-1_i32_584 = arith.constant -1 : i32
    %1537 = vector.broadcast %c-1_i32_584 : i32 to vector<1x256xi32>
    %1538 = arith.addi %1, %1537 : vector<1x256xi32>
    %c0_i32_585 = arith.constant 0 : i32
    %1539 = vector.broadcast %c0_i32_585 : i32 to vector<1x256xi32>
    %1540 = arith.cmpi sge, %1538, %1539 : vector<1x256xi32>
    %1541 = arith.andi %1536, %1540 : vector<1x256xi1>
    %c-1_i32_586 = arith.constant -1 : i32
    %1542 = vector.broadcast %c-1_i32_586 : i32 to vector<1x256xi32>
    %1543 = arith.addi %1, %1542 : vector<1x256xi32>
    %c16_i32_587 = arith.constant 16 : i32
    %1544 = vector.broadcast %c16_i32_587 : i32 to vector<1x256xi32>
    %1545 = arith.cmpi slt, %1543, %1544 : vector<1x256xi32>
    %1546 = arith.andi %1541, %1545 : vector<1x256xi1>
    %cst_588 = arith.constant 0.000000e+00 : f32
    %1547 = vector.broadcast %cst_588 : f32 to vector<1x256xf32>
    %1548 = arith.select %1546, %1527, %1547 : vector<1x256xi1>, vector<1x256xf32>
    %1549 = vector.broadcast %1526 : f32 to vector<1x256xf32>
    %1550 = arith.mulf %1549, %1548 : vector<1x256xf32>
    %1551 = arith.addf %1525, %1550 : vector<1x256xf32>
    %c48 = arith.constant 48 : index
    %1552 = memref.load %arg8[%c48] : memref<98xf32, #tpu.memory_space<smem>>
    %c0_i32_589 = arith.constant 0 : i32
    %1553 = vector.broadcast %c0_i32_589 : i32 to vector<1x256xi32>
    %1554 = arith.addi %0, %1553 : vector<1x256xi32>
    %c0_i32_590 = arith.constant 0 : i32
    %1555 = vector.broadcast %c0_i32_590 : i32 to vector<1x256xi32>
    %1556 = arith.cmpi sge, %1554, %1555 : vector<1x256xi32>
    %c0_i32_591 = arith.constant 0 : i32
    %1557 = vector.broadcast %c0_i32_591 : i32 to vector<1x256xi32>
    %1558 = arith.addi %0, %1557 : vector<1x256xi32>
    %c16_i32_592 = arith.constant 16 : i32
    %1559 = vector.broadcast %c16_i32_592 : i32 to vector<1x256xi32>
    %1560 = arith.cmpi slt, %1558, %1559 : vector<1x256xi32>
    %1561 = arith.andi %1556, %1560 : vector<1x256xi1>
    %c0_i32_593 = arith.constant 0 : i32
    %1562 = vector.broadcast %c0_i32_593 : i32 to vector<1x256xi32>
    %1563 = arith.addi %1, %1562 : vector<1x256xi32>
    %c0_i32_594 = arith.constant 0 : i32
    %1564 = vector.broadcast %c0_i32_594 : i32 to vector<1x256xi32>
    %1565 = arith.cmpi sge, %1563, %1564 : vector<1x256xi32>
    %1566 = arith.andi %1561, %1565 : vector<1x256xi1>
    %c0_i32_595 = arith.constant 0 : i32
    %1567 = vector.broadcast %c0_i32_595 : i32 to vector<1x256xi32>
    %1568 = arith.addi %1, %1567 : vector<1x256xi32>
    %c16_i32_596 = arith.constant 16 : i32
    %1569 = vector.broadcast %c16_i32_596 : i32 to vector<1x256xi32>
    %1570 = arith.cmpi slt, %1568, %1569 : vector<1x256xi32>
    %1571 = arith.andi %1566, %1570 : vector<1x256xi1>
    %cst_597 = arith.constant 0.000000e+00 : f32
    %1572 = vector.broadcast %cst_597 : f32 to vector<1x256xf32>
    %1573 = arith.select %1571, %300, %1572 : vector<1x256xi1>, vector<1x256xf32>
    %1574 = vector.broadcast %1552 : f32 to vector<1x256xf32>
    %1575 = arith.mulf %1574, %1573 : vector<1x256xf32>
    %1576 = arith.addf %1551, %1575 : vector<1x256xf32>
    %c49 = arith.constant 49 : index
    %1577 = memref.load %arg8[%c49] : memref<98xf32, #tpu.memory_space<smem>>
    %c0_i32_598 = arith.constant 0 : i32
    %1578 = vector.broadcast %c0_i32_598 : i32 to vector<1x256xi32>
    %1579 = arith.addi %0, %1578 : vector<1x256xi32>
    %c0_i32_599 = arith.constant 0 : i32
    %1580 = vector.broadcast %c0_i32_599 : i32 to vector<1x256xi32>
    %1581 = arith.cmpi sge, %1579, %1580 : vector<1x256xi32>
    %c0_i32_600 = arith.constant 0 : i32
    %1582 = vector.broadcast %c0_i32_600 : i32 to vector<1x256xi32>
    %1583 = arith.addi %0, %1582 : vector<1x256xi32>
    %c16_i32_601 = arith.constant 16 : i32
    %1584 = vector.broadcast %c16_i32_601 : i32 to vector<1x256xi32>
    %1585 = arith.cmpi slt, %1583, %1584 : vector<1x256xi32>
    %1586 = arith.andi %1581, %1585 : vector<1x256xi1>
    %c0_i32_602 = arith.constant 0 : i32
    %1587 = vector.broadcast %c0_i32_602 : i32 to vector<1x256xi32>
    %1588 = arith.addi %1, %1587 : vector<1x256xi32>
    %c0_i32_603 = arith.constant 0 : i32
    %1589 = vector.broadcast %c0_i32_603 : i32 to vector<1x256xi32>
    %1590 = arith.cmpi sge, %1588, %1589 : vector<1x256xi32>
    %1591 = arith.andi %1586, %1590 : vector<1x256xi1>
    %c0_i32_604 = arith.constant 0 : i32
    %1592 = vector.broadcast %c0_i32_604 : i32 to vector<1x256xi32>
    %1593 = arith.addi %1, %1592 : vector<1x256xi32>
    %c16_i32_605 = arith.constant 16 : i32
    %1594 = vector.broadcast %c16_i32_605 : i32 to vector<1x256xi32>
    %1595 = arith.cmpi slt, %1593, %1594 : vector<1x256xi32>
    %1596 = arith.andi %1591, %1595 : vector<1x256xi1>
    %cst_606 = arith.constant 0.000000e+00 : f32
    %1597 = vector.broadcast %cst_606 : f32 to vector<1x256xf32>
    %1598 = arith.select %1596, %302, %1597 : vector<1x256xi1>, vector<1x256xf32>
    %1599 = vector.broadcast %1577 : f32 to vector<1x256xf32>
    %1600 = arith.mulf %1599, %1598 : vector<1x256xf32>
    %1601 = arith.addf %1576, %1600 : vector<1x256xf32>
    %c50 = arith.constant 50 : index
    %1602 = memref.load %arg8[%c50] : memref<98xf32, #tpu.memory_space<smem>>
    %c255_i32_607 = arith.constant 255 : i32
    %1603 = tpu.dynamic_rotate %300 by %c255_i32_607 dim 1 : vector<1x256xf32>, i32 -> vector<1x256xf32>
    %c0_i32_608 = arith.constant 0 : i32
    %1604 = vector.broadcast %c0_i32_608 : i32 to vector<1x256xi32>
    %1605 = arith.addi %0, %1604 : vector<1x256xi32>
    %c0_i32_609 = arith.constant 0 : i32
    %1606 = vector.broadcast %c0_i32_609 : i32 to vector<1x256xi32>
    %1607 = arith.cmpi sge, %1605, %1606 : vector<1x256xi32>
    %c0_i32_610 = arith.constant 0 : i32
    %1608 = vector.broadcast %c0_i32_610 : i32 to vector<1x256xi32>
    %1609 = arith.addi %0, %1608 : vector<1x256xi32>
    %c16_i32_611 = arith.constant 16 : i32
    %1610 = vector.broadcast %c16_i32_611 : i32 to vector<1x256xi32>
    %1611 = arith.cmpi slt, %1609, %1610 : vector<1x256xi32>
    %1612 = arith.andi %1607, %1611 : vector<1x256xi1>
    %c1_i32_612 = arith.constant 1 : i32
    %1613 = vector.broadcast %c1_i32_612 : i32 to vector<1x256xi32>
    %1614 = arith.addi %1, %1613 : vector<1x256xi32>
    %c0_i32_613 = arith.constant 0 : i32
    %1615 = vector.broadcast %c0_i32_613 : i32 to vector<1x256xi32>
    %1616 = arith.cmpi sge, %1614, %1615 : vector<1x256xi32>
    %1617 = arith.andi %1612, %1616 : vector<1x256xi1>
    %c1_i32_614 = arith.constant 1 : i32
    %1618 = vector.broadcast %c1_i32_614 : i32 to vector<1x256xi32>
    %1619 = arith.addi %1, %1618 : vector<1x256xi32>
    %c16_i32_615 = arith.constant 16 : i32
    %1620 = vector.broadcast %c16_i32_615 : i32 to vector<1x256xi32>
    %1621 = arith.cmpi slt, %1619, %1620 : vector<1x256xi32>
    %1622 = arith.andi %1617, %1621 : vector<1x256xi1>
    %cst_616 = arith.constant 0.000000e+00 : f32
    %1623 = vector.broadcast %cst_616 : f32 to vector<1x256xf32>
    %1624 = arith.select %1622, %1603, %1623 : vector<1x256xi1>, vector<1x256xf32>
    %1625 = vector.broadcast %1602 : f32 to vector<1x256xf32>
    %1626 = arith.mulf %1625, %1624 : vector<1x256xf32>
    %1627 = arith.addf %1601, %1626 : vector<1x256xf32>
    %c51 = arith.constant 51 : index
    %1628 = memref.load %arg8[%c51] : memref<98xf32, #tpu.memory_space<smem>>
    %c255_i32_617 = arith.constant 255 : i32
    %1629 = tpu.dynamic_rotate %302 by %c255_i32_617 dim 1 : vector<1x256xf32>, i32 -> vector<1x256xf32>
    %c0_i32_618 = arith.constant 0 : i32
    %1630 = vector.broadcast %c0_i32_618 : i32 to vector<1x256xi32>
    %1631 = arith.addi %0, %1630 : vector<1x256xi32>
    %c0_i32_619 = arith.constant 0 : i32
    %1632 = vector.broadcast %c0_i32_619 : i32 to vector<1x256xi32>
    %1633 = arith.cmpi sge, %1631, %1632 : vector<1x256xi32>
    %c0_i32_620 = arith.constant 0 : i32
    %1634 = vector.broadcast %c0_i32_620 : i32 to vector<1x256xi32>
    %1635 = arith.addi %0, %1634 : vector<1x256xi32>
    %c16_i32_621 = arith.constant 16 : i32
    %1636 = vector.broadcast %c16_i32_621 : i32 to vector<1x256xi32>
    %1637 = arith.cmpi slt, %1635, %1636 : vector<1x256xi32>
    %1638 = arith.andi %1633, %1637 : vector<1x256xi1>
    %c1_i32_622 = arith.constant 1 : i32
    %1639 = vector.broadcast %c1_i32_622 : i32 to vector<1x256xi32>
    %1640 = arith.addi %1, %1639 : vector<1x256xi32>
    %c0_i32_623 = arith.constant 0 : i32
    %1641 = vector.broadcast %c0_i32_623 : i32 to vector<1x256xi32>
    %1642 = arith.cmpi sge, %1640, %1641 : vector<1x256xi32>
    %1643 = arith.andi %1638, %1642 : vector<1x256xi1>
    %c1_i32_624 = arith.constant 1 : i32
    %1644 = vector.broadcast %c1_i32_624 : i32 to vector<1x256xi32>
    %1645 = arith.addi %1, %1644 : vector<1x256xi32>
    %c16_i32_625 = arith.constant 16 : i32
    %1646 = vector.broadcast %c16_i32_625 : i32 to vector<1x256xi32>
    %1647 = arith.cmpi slt, %1645, %1646 : vector<1x256xi32>
    %1648 = arith.andi %1643, %1647 : vector<1x256xi1>
    %cst_626 = arith.constant 0.000000e+00 : f32
    %1649 = vector.broadcast %cst_626 : f32 to vector<1x256xf32>
    %1650 = arith.select %1648, %1629, %1649 : vector<1x256xi1>, vector<1x256xf32>
    %1651 = vector.broadcast %1628 : f32 to vector<1x256xf32>
    %1652 = arith.mulf %1651, %1650 : vector<1x256xf32>
    %1653 = arith.addf %1627, %1652 : vector<1x256xf32>
    %c52 = arith.constant 52 : index
    %1654 = memref.load %arg8[%c52] : memref<98xf32, #tpu.memory_space<smem>>
    %c254_i32 = arith.constant 254 : i32
    %1655 = tpu.dynamic_rotate %300 by %c254_i32 dim 1 : vector<1x256xf32>, i32 -> vector<1x256xf32>
    %c0_i32_627 = arith.constant 0 : i32
    %1656 = vector.broadcast %c0_i32_627 : i32 to vector<1x256xi32>
    %1657 = arith.addi %0, %1656 : vector<1x256xi32>
    %c0_i32_628 = arith.constant 0 : i32
    %1658 = vector.broadcast %c0_i32_628 : i32 to vector<1x256xi32>
    %1659 = arith.cmpi sge, %1657, %1658 : vector<1x256xi32>
    %c0_i32_629 = arith.constant 0 : i32
    %1660 = vector.broadcast %c0_i32_629 : i32 to vector<1x256xi32>
    %1661 = arith.addi %0, %1660 : vector<1x256xi32>
    %c16_i32_630 = arith.constant 16 : i32
    %1662 = vector.broadcast %c16_i32_630 : i32 to vector<1x256xi32>
    %1663 = arith.cmpi slt, %1661, %1662 : vector<1x256xi32>
    %1664 = arith.andi %1659, %1663 : vector<1x256xi1>
    %c2_i32_631 = arith.constant 2 : i32
    %1665 = vector.broadcast %c2_i32_631 : i32 to vector<1x256xi32>
    %1666 = arith.addi %1, %1665 : vector<1x256xi32>
    %c0_i32_632 = arith.constant 0 : i32
    %1667 = vector.broadcast %c0_i32_632 : i32 to vector<1x256xi32>
    %1668 = arith.cmpi sge, %1666, %1667 : vector<1x256xi32>
    %1669 = arith.andi %1664, %1668 : vector<1x256xi1>
    %c2_i32_633 = arith.constant 2 : i32
    %1670 = vector.broadcast %c2_i32_633 : i32 to vector<1x256xi32>
    %1671 = arith.addi %1, %1670 : vector<1x256xi32>
    %c16_i32_634 = arith.constant 16 : i32
    %1672 = vector.broadcast %c16_i32_634 : i32 to vector<1x256xi32>
    %1673 = arith.cmpi slt, %1671, %1672 : vector<1x256xi32>
    %1674 = arith.andi %1669, %1673 : vector<1x256xi1>
    %cst_635 = arith.constant 0.000000e+00 : f32
    %1675 = vector.broadcast %cst_635 : f32 to vector<1x256xf32>
    %1676 = arith.select %1674, %1655, %1675 : vector<1x256xi1>, vector<1x256xf32>
    %1677 = vector.broadcast %1654 : f32 to vector<1x256xf32>
    %1678 = arith.mulf %1677, %1676 : vector<1x256xf32>
    %1679 = arith.addf %1653, %1678 : vector<1x256xf32>
    %c53 = arith.constant 53 : index
    %1680 = memref.load %arg8[%c53] : memref<98xf32, #tpu.memory_space<smem>>
    %c254_i32_636 = arith.constant 254 : i32
    %1681 = tpu.dynamic_rotate %302 by %c254_i32_636 dim 1 : vector<1x256xf32>, i32 -> vector<1x256xf32>
    %c0_i32_637 = arith.constant 0 : i32
    %1682 = vector.broadcast %c0_i32_637 : i32 to vector<1x256xi32>
    %1683 = arith.addi %0, %1682 : vector<1x256xi32>
    %c0_i32_638 = arith.constant 0 : i32
    %1684 = vector.broadcast %c0_i32_638 : i32 to vector<1x256xi32>
    %1685 = arith.cmpi sge, %1683, %1684 : vector<1x256xi32>
    %c0_i32_639 = arith.constant 0 : i32
    %1686 = vector.broadcast %c0_i32_639 : i32 to vector<1x256xi32>
    %1687 = arith.addi %0, %1686 : vector<1x256xi32>
    %c16_i32_640 = arith.constant 16 : i32
    %1688 = vector.broadcast %c16_i32_640 : i32 to vector<1x256xi32>
    %1689 = arith.cmpi slt, %1687, %1688 : vector<1x256xi32>
    %1690 = arith.andi %1685, %1689 : vector<1x256xi1>
    %c2_i32_641 = arith.constant 2 : i32
    %1691 = vector.broadcast %c2_i32_641 : i32 to vector<1x256xi32>
    %1692 = arith.addi %1, %1691 : vector<1x256xi32>
    %c0_i32_642 = arith.constant 0 : i32
    %1693 = vector.broadcast %c0_i32_642 : i32 to vector<1x256xi32>
    %1694 = arith.cmpi sge, %1692, %1693 : vector<1x256xi32>
    %1695 = arith.andi %1690, %1694 : vector<1x256xi1>
    %c2_i32_643 = arith.constant 2 : i32
    %1696 = vector.broadcast %c2_i32_643 : i32 to vector<1x256xi32>
    %1697 = arith.addi %1, %1696 : vector<1x256xi32>
    %c16_i32_644 = arith.constant 16 : i32
    %1698 = vector.broadcast %c16_i32_644 : i32 to vector<1x256xi32>
    %1699 = arith.cmpi slt, %1697, %1698 : vector<1x256xi32>
    %1700 = arith.andi %1695, %1699 : vector<1x256xi1>
    %cst_645 = arith.constant 0.000000e+00 : f32
    %1701 = vector.broadcast %cst_645 : f32 to vector<1x256xf32>
    %1702 = arith.select %1700, %1681, %1701 : vector<1x256xi1>, vector<1x256xf32>
    %1703 = vector.broadcast %1680 : f32 to vector<1x256xf32>
    %1704 = arith.mulf %1703, %1702 : vector<1x256xf32>
    %1705 = arith.addf %1679, %1704 : vector<1x256xf32>
    %c54 = arith.constant 54 : index
    %1706 = memref.load %arg8[%c54] : memref<98xf32, #tpu.memory_space<smem>>
    %c253_i32 = arith.constant 253 : i32
    %1707 = tpu.dynamic_rotate %300 by %c253_i32 dim 1 : vector<1x256xf32>, i32 -> vector<1x256xf32>
    %c0_i32_646 = arith.constant 0 : i32
    %1708 = vector.broadcast %c0_i32_646 : i32 to vector<1x256xi32>
    %1709 = arith.addi %0, %1708 : vector<1x256xi32>
    %c0_i32_647 = arith.constant 0 : i32
    %1710 = vector.broadcast %c0_i32_647 : i32 to vector<1x256xi32>
    %1711 = arith.cmpi sge, %1709, %1710 : vector<1x256xi32>
    %c0_i32_648 = arith.constant 0 : i32
    %1712 = vector.broadcast %c0_i32_648 : i32 to vector<1x256xi32>
    %1713 = arith.addi %0, %1712 : vector<1x256xi32>
    %c16_i32_649 = arith.constant 16 : i32
    %1714 = vector.broadcast %c16_i32_649 : i32 to vector<1x256xi32>
    %1715 = arith.cmpi slt, %1713, %1714 : vector<1x256xi32>
    %1716 = arith.andi %1711, %1715 : vector<1x256xi1>
    %c3_i32_650 = arith.constant 3 : i32
    %1717 = vector.broadcast %c3_i32_650 : i32 to vector<1x256xi32>
    %1718 = arith.addi %1, %1717 : vector<1x256xi32>
    %c0_i32_651 = arith.constant 0 : i32
    %1719 = vector.broadcast %c0_i32_651 : i32 to vector<1x256xi32>
    %1720 = arith.cmpi sge, %1718, %1719 : vector<1x256xi32>
    %1721 = arith.andi %1716, %1720 : vector<1x256xi1>
    %c3_i32_652 = arith.constant 3 : i32
    %1722 = vector.broadcast %c3_i32_652 : i32 to vector<1x256xi32>
    %1723 = arith.addi %1, %1722 : vector<1x256xi32>
    %c16_i32_653 = arith.constant 16 : i32
    %1724 = vector.broadcast %c16_i32_653 : i32 to vector<1x256xi32>
    %1725 = arith.cmpi slt, %1723, %1724 : vector<1x256xi32>
    %1726 = arith.andi %1721, %1725 : vector<1x256xi1>
    %cst_654 = arith.constant 0.000000e+00 : f32
    %1727 = vector.broadcast %cst_654 : f32 to vector<1x256xf32>
    %1728 = arith.select %1726, %1707, %1727 : vector<1x256xi1>, vector<1x256xf32>
    %1729 = vector.broadcast %1706 : f32 to vector<1x256xf32>
    %1730 = arith.mulf %1729, %1728 : vector<1x256xf32>
    %1731 = arith.addf %1705, %1730 : vector<1x256xf32>
    %c55 = arith.constant 55 : index
    %1732 = memref.load %arg8[%c55] : memref<98xf32, #tpu.memory_space<smem>>
    %c253_i32_655 = arith.constant 253 : i32
    %1733 = tpu.dynamic_rotate %302 by %c253_i32_655 dim 1 : vector<1x256xf32>, i32 -> vector<1x256xf32>
    %c0_i32_656 = arith.constant 0 : i32
    %1734 = vector.broadcast %c0_i32_656 : i32 to vector<1x256xi32>
    %1735 = arith.addi %0, %1734 : vector<1x256xi32>
    %c0_i32_657 = arith.constant 0 : i32
    %1736 = vector.broadcast %c0_i32_657 : i32 to vector<1x256xi32>
    %1737 = arith.cmpi sge, %1735, %1736 : vector<1x256xi32>
    %c0_i32_658 = arith.constant 0 : i32
    %1738 = vector.broadcast %c0_i32_658 : i32 to vector<1x256xi32>
    %1739 = arith.addi %0, %1738 : vector<1x256xi32>
    %c16_i32_659 = arith.constant 16 : i32
    %1740 = vector.broadcast %c16_i32_659 : i32 to vector<1x256xi32>
    %1741 = arith.cmpi slt, %1739, %1740 : vector<1x256xi32>
    %1742 = arith.andi %1737, %1741 : vector<1x256xi1>
    %c3_i32_660 = arith.constant 3 : i32
    %1743 = vector.broadcast %c3_i32_660 : i32 to vector<1x256xi32>
    %1744 = arith.addi %1, %1743 : vector<1x256xi32>
    %c0_i32_661 = arith.constant 0 : i32
    %1745 = vector.broadcast %c0_i32_661 : i32 to vector<1x256xi32>
    %1746 = arith.cmpi sge, %1744, %1745 : vector<1x256xi32>
    %1747 = arith.andi %1742, %1746 : vector<1x256xi1>
    %c3_i32_662 = arith.constant 3 : i32
    %1748 = vector.broadcast %c3_i32_662 : i32 to vector<1x256xi32>
    %1749 = arith.addi %1, %1748 : vector<1x256xi32>
    %c16_i32_663 = arith.constant 16 : i32
    %1750 = vector.broadcast %c16_i32_663 : i32 to vector<1x256xi32>
    %1751 = arith.cmpi slt, %1749, %1750 : vector<1x256xi32>
    %1752 = arith.andi %1747, %1751 : vector<1x256xi1>
    %cst_664 = arith.constant 0.000000e+00 : f32
    %1753 = vector.broadcast %cst_664 : f32 to vector<1x256xf32>
    %1754 = arith.select %1752, %1733, %1753 : vector<1x256xi1>, vector<1x256xf32>
    %1755 = vector.broadcast %1732 : f32 to vector<1x256xf32>
    %1756 = arith.mulf %1755, %1754 : vector<1x256xf32>
    %1757 = arith.addf %1731, %1756 : vector<1x256xf32>
    %c56 = arith.constant 56 : index
    %1758 = memref.load %arg8[%c56] : memref<98xf32, #tpu.memory_space<smem>>
    %c243_i32 = arith.constant 243 : i32
    %1759 = tpu.dynamic_rotate %300 by %c243_i32 dim 1 : vector<1x256xf32>, i32 -> vector<1x256xf32>
    %c1_i32_665 = arith.constant 1 : i32
    %1760 = vector.broadcast %c1_i32_665 : i32 to vector<1x256xi32>
    %1761 = arith.addi %0, %1760 : vector<1x256xi32>
    %c0_i32_666 = arith.constant 0 : i32
    %1762 = vector.broadcast %c0_i32_666 : i32 to vector<1x256xi32>
    %1763 = arith.cmpi sge, %1761, %1762 : vector<1x256xi32>
    %c1_i32_667 = arith.constant 1 : i32
    %1764 = vector.broadcast %c1_i32_667 : i32 to vector<1x256xi32>
    %1765 = arith.addi %0, %1764 : vector<1x256xi32>
    %c16_i32_668 = arith.constant 16 : i32
    %1766 = vector.broadcast %c16_i32_668 : i32 to vector<1x256xi32>
    %1767 = arith.cmpi slt, %1765, %1766 : vector<1x256xi32>
    %1768 = arith.andi %1763, %1767 : vector<1x256xi1>
    %c-3_i32_669 = arith.constant -3 : i32
    %1769 = vector.broadcast %c-3_i32_669 : i32 to vector<1x256xi32>
    %1770 = arith.addi %1, %1769 : vector<1x256xi32>
    %c0_i32_670 = arith.constant 0 : i32
    %1771 = vector.broadcast %c0_i32_670 : i32 to vector<1x256xi32>
    %1772 = arith.cmpi sge, %1770, %1771 : vector<1x256xi32>
    %1773 = arith.andi %1768, %1772 : vector<1x256xi1>
    %c-3_i32_671 = arith.constant -3 : i32
    %1774 = vector.broadcast %c-3_i32_671 : i32 to vector<1x256xi32>
    %1775 = arith.addi %1, %1774 : vector<1x256xi32>
    %c16_i32_672 = arith.constant 16 : i32
    %1776 = vector.broadcast %c16_i32_672 : i32 to vector<1x256xi32>
    %1777 = arith.cmpi slt, %1775, %1776 : vector<1x256xi32>
    %1778 = arith.andi %1773, %1777 : vector<1x256xi1>
    %cst_673 = arith.constant 0.000000e+00 : f32
    %1779 = vector.broadcast %cst_673 : f32 to vector<1x256xf32>
    %1780 = arith.select %1778, %1759, %1779 : vector<1x256xi1>, vector<1x256xf32>
    %1781 = vector.broadcast %1758 : f32 to vector<1x256xf32>
    %1782 = arith.mulf %1781, %1780 : vector<1x256xf32>
    %1783 = arith.addf %1757, %1782 : vector<1x256xf32>
    %c57 = arith.constant 57 : index
    %1784 = memref.load %arg8[%c57] : memref<98xf32, #tpu.memory_space<smem>>
    %c243_i32_674 = arith.constant 243 : i32
    %1785 = tpu.dynamic_rotate %302 by %c243_i32_674 dim 1 : vector<1x256xf32>, i32 -> vector<1x256xf32>
    %c1_i32_675 = arith.constant 1 : i32
    %1786 = vector.broadcast %c1_i32_675 : i32 to vector<1x256xi32>
    %1787 = arith.addi %0, %1786 : vector<1x256xi32>
    %c0_i32_676 = arith.constant 0 : i32
    %1788 = vector.broadcast %c0_i32_676 : i32 to vector<1x256xi32>
    %1789 = arith.cmpi sge, %1787, %1788 : vector<1x256xi32>
    %c1_i32_677 = arith.constant 1 : i32
    %1790 = vector.broadcast %c1_i32_677 : i32 to vector<1x256xi32>
    %1791 = arith.addi %0, %1790 : vector<1x256xi32>
    %c16_i32_678 = arith.constant 16 : i32
    %1792 = vector.broadcast %c16_i32_678 : i32 to vector<1x256xi32>
    %1793 = arith.cmpi slt, %1791, %1792 : vector<1x256xi32>
    %1794 = arith.andi %1789, %1793 : vector<1x256xi1>
    %c-3_i32_679 = arith.constant -3 : i32
    %1795 = vector.broadcast %c-3_i32_679 : i32 to vector<1x256xi32>
    %1796 = arith.addi %1, %1795 : vector<1x256xi32>
    %c0_i32_680 = arith.constant 0 : i32
    %1797 = vector.broadcast %c0_i32_680 : i32 to vector<1x256xi32>
    %1798 = arith.cmpi sge, %1796, %1797 : vector<1x256xi32>
    %1799 = arith.andi %1794, %1798 : vector<1x256xi1>
    %c-3_i32_681 = arith.constant -3 : i32
    %1800 = vector.broadcast %c-3_i32_681 : i32 to vector<1x256xi32>
    %1801 = arith.addi %1, %1800 : vector<1x256xi32>
    %c16_i32_682 = arith.constant 16 : i32
    %1802 = vector.broadcast %c16_i32_682 : i32 to vector<1x256xi32>
    %1803 = arith.cmpi slt, %1801, %1802 : vector<1x256xi32>
    %1804 = arith.andi %1799, %1803 : vector<1x256xi1>
    %cst_683 = arith.constant 0.000000e+00 : f32
    %1805 = vector.broadcast %cst_683 : f32 to vector<1x256xf32>
    %1806 = arith.select %1804, %1785, %1805 : vector<1x256xi1>, vector<1x256xf32>
    %1807 = vector.broadcast %1784 : f32 to vector<1x256xf32>
    %1808 = arith.mulf %1807, %1806 : vector<1x256xf32>
    %1809 = arith.addf %1783, %1808 : vector<1x256xf32>
    %c58 = arith.constant 58 : index
    %1810 = memref.load %arg8[%c58] : memref<98xf32, #tpu.memory_space<smem>>
    %c242_i32 = arith.constant 242 : i32
    %1811 = tpu.dynamic_rotate %300 by %c242_i32 dim 1 : vector<1x256xf32>, i32 -> vector<1x256xf32>
    %c1_i32_684 = arith.constant 1 : i32
    %1812 = vector.broadcast %c1_i32_684 : i32 to vector<1x256xi32>
    %1813 = arith.addi %0, %1812 : vector<1x256xi32>
    %c0_i32_685 = arith.constant 0 : i32
    %1814 = vector.broadcast %c0_i32_685 : i32 to vector<1x256xi32>
    %1815 = arith.cmpi sge, %1813, %1814 : vector<1x256xi32>
    %c1_i32_686 = arith.constant 1 : i32
    %1816 = vector.broadcast %c1_i32_686 : i32 to vector<1x256xi32>
    %1817 = arith.addi %0, %1816 : vector<1x256xi32>
    %c16_i32_687 = arith.constant 16 : i32
    %1818 = vector.broadcast %c16_i32_687 : i32 to vector<1x256xi32>
    %1819 = arith.cmpi slt, %1817, %1818 : vector<1x256xi32>
    %1820 = arith.andi %1815, %1819 : vector<1x256xi1>
    %c-2_i32_688 = arith.constant -2 : i32
    %1821 = vector.broadcast %c-2_i32_688 : i32 to vector<1x256xi32>
    %1822 = arith.addi %1, %1821 : vector<1x256xi32>
    %c0_i32_689 = arith.constant 0 : i32
    %1823 = vector.broadcast %c0_i32_689 : i32 to vector<1x256xi32>
    %1824 = arith.cmpi sge, %1822, %1823 : vector<1x256xi32>
    %1825 = arith.andi %1820, %1824 : vector<1x256xi1>
    %c-2_i32_690 = arith.constant -2 : i32
    %1826 = vector.broadcast %c-2_i32_690 : i32 to vector<1x256xi32>
    %1827 = arith.addi %1, %1826 : vector<1x256xi32>
    %c16_i32_691 = arith.constant 16 : i32
    %1828 = vector.broadcast %c16_i32_691 : i32 to vector<1x256xi32>
    %1829 = arith.cmpi slt, %1827, %1828 : vector<1x256xi32>
    %1830 = arith.andi %1825, %1829 : vector<1x256xi1>
    %cst_692 = arith.constant 0.000000e+00 : f32
    %1831 = vector.broadcast %cst_692 : f32 to vector<1x256xf32>
    %1832 = arith.select %1830, %1811, %1831 : vector<1x256xi1>, vector<1x256xf32>
    %1833 = vector.broadcast %1810 : f32 to vector<1x256xf32>
    %1834 = arith.mulf %1833, %1832 : vector<1x256xf32>
    %1835 = arith.addf %1809, %1834 : vector<1x256xf32>
    %c59 = arith.constant 59 : index
    %1836 = memref.load %arg8[%c59] : memref<98xf32, #tpu.memory_space<smem>>
    %c242_i32_693 = arith.constant 242 : i32
    %1837 = tpu.dynamic_rotate %302 by %c242_i32_693 dim 1 : vector<1x256xf32>, i32 -> vector<1x256xf32>
    %c1_i32_694 = arith.constant 1 : i32
    %1838 = vector.broadcast %c1_i32_694 : i32 to vector<1x256xi32>
    %1839 = arith.addi %0, %1838 : vector<1x256xi32>
    %c0_i32_695 = arith.constant 0 : i32
    %1840 = vector.broadcast %c0_i32_695 : i32 to vector<1x256xi32>
    %1841 = arith.cmpi sge, %1839, %1840 : vector<1x256xi32>
    %c1_i32_696 = arith.constant 1 : i32
    %1842 = vector.broadcast %c1_i32_696 : i32 to vector<1x256xi32>
    %1843 = arith.addi %0, %1842 : vector<1x256xi32>
    %c16_i32_697 = arith.constant 16 : i32
    %1844 = vector.broadcast %c16_i32_697 : i32 to vector<1x256xi32>
    %1845 = arith.cmpi slt, %1843, %1844 : vector<1x256xi32>
    %1846 = arith.andi %1841, %1845 : vector<1x256xi1>
    %c-2_i32_698 = arith.constant -2 : i32
    %1847 = vector.broadcast %c-2_i32_698 : i32 to vector<1x256xi32>
    %1848 = arith.addi %1, %1847 : vector<1x256xi32>
    %c0_i32_699 = arith.constant 0 : i32
    %1849 = vector.broadcast %c0_i32_699 : i32 to vector<1x256xi32>
    %1850 = arith.cmpi sge, %1848, %1849 : vector<1x256xi32>
    %1851 = arith.andi %1846, %1850 : vector<1x256xi1>
    %c-2_i32_700 = arith.constant -2 : i32
    %1852 = vector.broadcast %c-2_i32_700 : i32 to vector<1x256xi32>
    %1853 = arith.addi %1, %1852 : vector<1x256xi32>
    %c16_i32_701 = arith.constant 16 : i32
    %1854 = vector.broadcast %c16_i32_701 : i32 to vector<1x256xi32>
    %1855 = arith.cmpi slt, %1853, %1854 : vector<1x256xi32>
    %1856 = arith.andi %1851, %1855 : vector<1x256xi1>
    %cst_702 = arith.constant 0.000000e+00 : f32
    %1857 = vector.broadcast %cst_702 : f32 to vector<1x256xf32>
    %1858 = arith.select %1856, %1837, %1857 : vector<1x256xi1>, vector<1x256xf32>
    %1859 = vector.broadcast %1836 : f32 to vector<1x256xf32>
    %1860 = arith.mulf %1859, %1858 : vector<1x256xf32>
    %1861 = arith.addf %1835, %1860 : vector<1x256xf32>
    %c60 = arith.constant 60 : index
    %1862 = memref.load %arg8[%c60] : memref<98xf32, #tpu.memory_space<smem>>
    %c241_i32_703 = arith.constant 241 : i32
    %1863 = tpu.dynamic_rotate %300 by %c241_i32_703 dim 1 : vector<1x256xf32>, i32 -> vector<1x256xf32>
    %c1_i32_704 = arith.constant 1 : i32
    %1864 = vector.broadcast %c1_i32_704 : i32 to vector<1x256xi32>
    %1865 = arith.addi %0, %1864 : vector<1x256xi32>
    %c0_i32_705 = arith.constant 0 : i32
    %1866 = vector.broadcast %c0_i32_705 : i32 to vector<1x256xi32>
    %1867 = arith.cmpi sge, %1865, %1866 : vector<1x256xi32>
    %c1_i32_706 = arith.constant 1 : i32
    %1868 = vector.broadcast %c1_i32_706 : i32 to vector<1x256xi32>
    %1869 = arith.addi %0, %1868 : vector<1x256xi32>
    %c16_i32_707 = arith.constant 16 : i32
    %1870 = vector.broadcast %c16_i32_707 : i32 to vector<1x256xi32>
    %1871 = arith.cmpi slt, %1869, %1870 : vector<1x256xi32>
    %1872 = arith.andi %1867, %1871 : vector<1x256xi1>
    %c-1_i32_708 = arith.constant -1 : i32
    %1873 = vector.broadcast %c-1_i32_708 : i32 to vector<1x256xi32>
    %1874 = arith.addi %1, %1873 : vector<1x256xi32>
    %c0_i32_709 = arith.constant 0 : i32
    %1875 = vector.broadcast %c0_i32_709 : i32 to vector<1x256xi32>
    %1876 = arith.cmpi sge, %1874, %1875 : vector<1x256xi32>
    %1877 = arith.andi %1872, %1876 : vector<1x256xi1>
    %c-1_i32_710 = arith.constant -1 : i32
    %1878 = vector.broadcast %c-1_i32_710 : i32 to vector<1x256xi32>
    %1879 = arith.addi %1, %1878 : vector<1x256xi32>
    %c16_i32_711 = arith.constant 16 : i32
    %1880 = vector.broadcast %c16_i32_711 : i32 to vector<1x256xi32>
    %1881 = arith.cmpi slt, %1879, %1880 : vector<1x256xi32>
    %1882 = arith.andi %1877, %1881 : vector<1x256xi1>
    %cst_712 = arith.constant 0.000000e+00 : f32
    %1883 = vector.broadcast %cst_712 : f32 to vector<1x256xf32>
    %1884 = arith.select %1882, %1863, %1883 : vector<1x256xi1>, vector<1x256xf32>
    %1885 = vector.broadcast %1862 : f32 to vector<1x256xf32>
    %1886 = arith.mulf %1885, %1884 : vector<1x256xf32>
    %1887 = arith.addf %1861, %1886 : vector<1x256xf32>
    %c61 = arith.constant 61 : index
    %1888 = memref.load %arg8[%c61] : memref<98xf32, #tpu.memory_space<smem>>
    %c241_i32_713 = arith.constant 241 : i32
    %1889 = tpu.dynamic_rotate %302 by %c241_i32_713 dim 1 : vector<1x256xf32>, i32 -> vector<1x256xf32>
    %c1_i32_714 = arith.constant 1 : i32
    %1890 = vector.broadcast %c1_i32_714 : i32 to vector<1x256xi32>
    %1891 = arith.addi %0, %1890 : vector<1x256xi32>
    %c0_i32_715 = arith.constant 0 : i32
    %1892 = vector.broadcast %c0_i32_715 : i32 to vector<1x256xi32>
    %1893 = arith.cmpi sge, %1891, %1892 : vector<1x256xi32>
    %c1_i32_716 = arith.constant 1 : i32
    %1894 = vector.broadcast %c1_i32_716 : i32 to vector<1x256xi32>
    %1895 = arith.addi %0, %1894 : vector<1x256xi32>
    %c16_i32_717 = arith.constant 16 : i32
    %1896 = vector.broadcast %c16_i32_717 : i32 to vector<1x256xi32>
    %1897 = arith.cmpi slt, %1895, %1896 : vector<1x256xi32>
    %1898 = arith.andi %1893, %1897 : vector<1x256xi1>
    %c-1_i32_718 = arith.constant -1 : i32
    %1899 = vector.broadcast %c-1_i32_718 : i32 to vector<1x256xi32>
    %1900 = arith.addi %1, %1899 : vector<1x256xi32>
    %c0_i32_719 = arith.constant 0 : i32
    %1901 = vector.broadcast %c0_i32_719 : i32 to vector<1x256xi32>
    %1902 = arith.cmpi sge, %1900, %1901 : vector<1x256xi32>
    %1903 = arith.andi %1898, %1902 : vector<1x256xi1>
    %c-1_i32_720 = arith.constant -1 : i32
    %1904 = vector.broadcast %c-1_i32_720 : i32 to vector<1x256xi32>
    %1905 = arith.addi %1, %1904 : vector<1x256xi32>
    %c16_i32_721 = arith.constant 16 : i32
    %1906 = vector.broadcast %c16_i32_721 : i32 to vector<1x256xi32>
    %1907 = arith.cmpi slt, %1905, %1906 : vector<1x256xi32>
    %1908 = arith.andi %1903, %1907 : vector<1x256xi1>
    %cst_722 = arith.constant 0.000000e+00 : f32
    %1909 = vector.broadcast %cst_722 : f32 to vector<1x256xf32>
    %1910 = arith.select %1908, %1889, %1909 : vector<1x256xi1>, vector<1x256xf32>
    %1911 = vector.broadcast %1888 : f32 to vector<1x256xf32>
    %1912 = arith.mulf %1911, %1910 : vector<1x256xf32>
    %1913 = arith.addf %1887, %1912 : vector<1x256xf32>
    %c62 = arith.constant 62 : index
    %1914 = memref.load %arg8[%c62] : memref<98xf32, #tpu.memory_space<smem>>
    %c240_i32_723 = arith.constant 240 : i32
    %1915 = tpu.dynamic_rotate %300 by %c240_i32_723 dim 1 : vector<1x256xf32>, i32 -> vector<1x256xf32>
    %c1_i32_724 = arith.constant 1 : i32
    %1916 = vector.broadcast %c1_i32_724 : i32 to vector<1x256xi32>
    %1917 = arith.addi %0, %1916 : vector<1x256xi32>
    %c0_i32_725 = arith.constant 0 : i32
    %1918 = vector.broadcast %c0_i32_725 : i32 to vector<1x256xi32>
    %1919 = arith.cmpi sge, %1917, %1918 : vector<1x256xi32>
    %c1_i32_726 = arith.constant 1 : i32
    %1920 = vector.broadcast %c1_i32_726 : i32 to vector<1x256xi32>
    %1921 = arith.addi %0, %1920 : vector<1x256xi32>
    %c16_i32_727 = arith.constant 16 : i32
    %1922 = vector.broadcast %c16_i32_727 : i32 to vector<1x256xi32>
    %1923 = arith.cmpi slt, %1921, %1922 : vector<1x256xi32>
    %1924 = arith.andi %1919, %1923 : vector<1x256xi1>
    %c0_i32_728 = arith.constant 0 : i32
    %1925 = vector.broadcast %c0_i32_728 : i32 to vector<1x256xi32>
    %1926 = arith.addi %1, %1925 : vector<1x256xi32>
    %c0_i32_729 = arith.constant 0 : i32
    %1927 = vector.broadcast %c0_i32_729 : i32 to vector<1x256xi32>
    %1928 = arith.cmpi sge, %1926, %1927 : vector<1x256xi32>
    %1929 = arith.andi %1924, %1928 : vector<1x256xi1>
    %c0_i32_730 = arith.constant 0 : i32
    %1930 = vector.broadcast %c0_i32_730 : i32 to vector<1x256xi32>
    %1931 = arith.addi %1, %1930 : vector<1x256xi32>
    %c16_i32_731 = arith.constant 16 : i32
    %1932 = vector.broadcast %c16_i32_731 : i32 to vector<1x256xi32>
    %1933 = arith.cmpi slt, %1931, %1932 : vector<1x256xi32>
    %1934 = arith.andi %1929, %1933 : vector<1x256xi1>
    %cst_732 = arith.constant 0.000000e+00 : f32
    %1935 = vector.broadcast %cst_732 : f32 to vector<1x256xf32>
    %1936 = arith.select %1934, %1915, %1935 : vector<1x256xi1>, vector<1x256xf32>
    %1937 = vector.broadcast %1914 : f32 to vector<1x256xf32>
    %1938 = arith.mulf %1937, %1936 : vector<1x256xf32>
    %1939 = arith.addf %1913, %1938 : vector<1x256xf32>
    %c63 = arith.constant 63 : index
    %1940 = memref.load %arg8[%c63] : memref<98xf32, #tpu.memory_space<smem>>
    %c240_i32_733 = arith.constant 240 : i32
    %1941 = tpu.dynamic_rotate %302 by %c240_i32_733 dim 1 : vector<1x256xf32>, i32 -> vector<1x256xf32>
    %c1_i32_734 = arith.constant 1 : i32
    %1942 = vector.broadcast %c1_i32_734 : i32 to vector<1x256xi32>
    %1943 = arith.addi %0, %1942 : vector<1x256xi32>
    %c0_i32_735 = arith.constant 0 : i32
    %1944 = vector.broadcast %c0_i32_735 : i32 to vector<1x256xi32>
    %1945 = arith.cmpi sge, %1943, %1944 : vector<1x256xi32>
    %c1_i32_736 = arith.constant 1 : i32
    %1946 = vector.broadcast %c1_i32_736 : i32 to vector<1x256xi32>
    %1947 = arith.addi %0, %1946 : vector<1x256xi32>
    %c16_i32_737 = arith.constant 16 : i32
    %1948 = vector.broadcast %c16_i32_737 : i32 to vector<1x256xi32>
    %1949 = arith.cmpi slt, %1947, %1948 : vector<1x256xi32>
    %1950 = arith.andi %1945, %1949 : vector<1x256xi1>
    %c0_i32_738 = arith.constant 0 : i32
    %1951 = vector.broadcast %c0_i32_738 : i32 to vector<1x256xi32>
    %1952 = arith.addi %1, %1951 : vector<1x256xi32>
    %c0_i32_739 = arith.constant 0 : i32
    %1953 = vector.broadcast %c0_i32_739 : i32 to vector<1x256xi32>
    %1954 = arith.cmpi sge, %1952, %1953 : vector<1x256xi32>
    %1955 = arith.andi %1950, %1954 : vector<1x256xi1>
    %c0_i32_740 = arith.constant 0 : i32
    %1956 = vector.broadcast %c0_i32_740 : i32 to vector<1x256xi32>
    %1957 = arith.addi %1, %1956 : vector<1x256xi32>
    %c16_i32_741 = arith.constant 16 : i32
    %1958 = vector.broadcast %c16_i32_741 : i32 to vector<1x256xi32>
    %1959 = arith.cmpi slt, %1957, %1958 : vector<1x256xi32>
    %1960 = arith.andi %1955, %1959 : vector<1x256xi1>
    %cst_742 = arith.constant 0.000000e+00 : f32
    %1961 = vector.broadcast %cst_742 : f32 to vector<1x256xf32>
    %1962 = arith.select %1960, %1941, %1961 : vector<1x256xi1>, vector<1x256xf32>
    %1963 = vector.broadcast %1940 : f32 to vector<1x256xf32>
    %1964 = arith.mulf %1963, %1962 : vector<1x256xf32>
    %1965 = arith.addf %1939, %1964 : vector<1x256xf32>
    %c64 = arith.constant 64 : index
    %1966 = memref.load %arg8[%c64] : memref<98xf32, #tpu.memory_space<smem>>
    %c239_i32_743 = arith.constant 239 : i32
    %1967 = tpu.dynamic_rotate %300 by %c239_i32_743 dim 1 : vector<1x256xf32>, i32 -> vector<1x256xf32>
    %c1_i32_744 = arith.constant 1 : i32
    %1968 = vector.broadcast %c1_i32_744 : i32 to vector<1x256xi32>
    %1969 = arith.addi %0, %1968 : vector<1x256xi32>
    %c0_i32_745 = arith.constant 0 : i32
    %1970 = vector.broadcast %c0_i32_745 : i32 to vector<1x256xi32>
    %1971 = arith.cmpi sge, %1969, %1970 : vector<1x256xi32>
    %c1_i32_746 = arith.constant 1 : i32
    %1972 = vector.broadcast %c1_i32_746 : i32 to vector<1x256xi32>
    %1973 = arith.addi %0, %1972 : vector<1x256xi32>
    %c16_i32_747 = arith.constant 16 : i32
    %1974 = vector.broadcast %c16_i32_747 : i32 to vector<1x256xi32>
    %1975 = arith.cmpi slt, %1973, %1974 : vector<1x256xi32>
    %1976 = arith.andi %1971, %1975 : vector<1x256xi1>
    %c1_i32_748 = arith.constant 1 : i32
    %1977 = vector.broadcast %c1_i32_748 : i32 to vector<1x256xi32>
    %1978 = arith.addi %1, %1977 : vector<1x256xi32>
    %c0_i32_749 = arith.constant 0 : i32
    %1979 = vector.broadcast %c0_i32_749 : i32 to vector<1x256xi32>
    %1980 = arith.cmpi sge, %1978, %1979 : vector<1x256xi32>
    %1981 = arith.andi %1976, %1980 : vector<1x256xi1>
    %c1_i32_750 = arith.constant 1 : i32
    %1982 = vector.broadcast %c1_i32_750 : i32 to vector<1x256xi32>
    %1983 = arith.addi %1, %1982 : vector<1x256xi32>
    %c16_i32_751 = arith.constant 16 : i32
    %1984 = vector.broadcast %c16_i32_751 : i32 to vector<1x256xi32>
    %1985 = arith.cmpi slt, %1983, %1984 : vector<1x256xi32>
    %1986 = arith.andi %1981, %1985 : vector<1x256xi1>
    %cst_752 = arith.constant 0.000000e+00 : f32
    %1987 = vector.broadcast %cst_752 : f32 to vector<1x256xf32>
    %1988 = arith.select %1986, %1967, %1987 : vector<1x256xi1>, vector<1x256xf32>
    %1989 = vector.broadcast %1966 : f32 to vector<1x256xf32>
    %1990 = arith.mulf %1989, %1988 : vector<1x256xf32>
    %1991 = arith.addf %1965, %1990 : vector<1x256xf32>
    %c65 = arith.constant 65 : index
    %1992 = memref.load %arg8[%c65] : memref<98xf32, #tpu.memory_space<smem>>
    %c239_i32_753 = arith.constant 239 : i32
    %1993 = tpu.dynamic_rotate %302 by %c239_i32_753 dim 1 : vector<1x256xf32>, i32 -> vector<1x256xf32>
    %c1_i32_754 = arith.constant 1 : i32
    %1994 = vector.broadcast %c1_i32_754 : i32 to vector<1x256xi32>
    %1995 = arith.addi %0, %1994 : vector<1x256xi32>
    %c0_i32_755 = arith.constant 0 : i32
    %1996 = vector.broadcast %c0_i32_755 : i32 to vector<1x256xi32>
    %1997 = arith.cmpi sge, %1995, %1996 : vector<1x256xi32>
    %c1_i32_756 = arith.constant 1 : i32
    %1998 = vector.broadcast %c1_i32_756 : i32 to vector<1x256xi32>
    %1999 = arith.addi %0, %1998 : vector<1x256xi32>
    %c16_i32_757 = arith.constant 16 : i32
    %2000 = vector.broadcast %c16_i32_757 : i32 to vector<1x256xi32>
    %2001 = arith.cmpi slt, %1999, %2000 : vector<1x256xi32>
    %2002 = arith.andi %1997, %2001 : vector<1x256xi1>
    %c1_i32_758 = arith.constant 1 : i32
    %2003 = vector.broadcast %c1_i32_758 : i32 to vector<1x256xi32>
    %2004 = arith.addi %1, %2003 : vector<1x256xi32>
    %c0_i32_759 = arith.constant 0 : i32
    %2005 = vector.broadcast %c0_i32_759 : i32 to vector<1x256xi32>
    %2006 = arith.cmpi sge, %2004, %2005 : vector<1x256xi32>
    %2007 = arith.andi %2002, %2006 : vector<1x256xi1>
    %c1_i32_760 = arith.constant 1 : i32
    %2008 = vector.broadcast %c1_i32_760 : i32 to vector<1x256xi32>
    %2009 = arith.addi %1, %2008 : vector<1x256xi32>
    %c16_i32_761 = arith.constant 16 : i32
    %2010 = vector.broadcast %c16_i32_761 : i32 to vector<1x256xi32>
    %2011 = arith.cmpi slt, %2009, %2010 : vector<1x256xi32>
    %2012 = arith.andi %2007, %2011 : vector<1x256xi1>
    %cst_762 = arith.constant 0.000000e+00 : f32
    %2013 = vector.broadcast %cst_762 : f32 to vector<1x256xf32>
    %2014 = arith.select %2012, %1993, %2013 : vector<1x256xi1>, vector<1x256xf32>
    %2015 = vector.broadcast %1992 : f32 to vector<1x256xf32>
    %2016 = arith.mulf %2015, %2014 : vector<1x256xf32>
    %2017 = arith.addf %1991, %2016 : vector<1x256xf32>
    %c66 = arith.constant 66 : index
    %2018 = memref.load %arg8[%c66] : memref<98xf32, #tpu.memory_space<smem>>
    %c238_i32 = arith.constant 238 : i32
    %2019 = tpu.dynamic_rotate %300 by %c238_i32 dim 1 : vector<1x256xf32>, i32 -> vector<1x256xf32>
    %c1_i32_763 = arith.constant 1 : i32
    %2020 = vector.broadcast %c1_i32_763 : i32 to vector<1x256xi32>
    %2021 = arith.addi %0, %2020 : vector<1x256xi32>
    %c0_i32_764 = arith.constant 0 : i32
    %2022 = vector.broadcast %c0_i32_764 : i32 to vector<1x256xi32>
    %2023 = arith.cmpi sge, %2021, %2022 : vector<1x256xi32>
    %c1_i32_765 = arith.constant 1 : i32
    %2024 = vector.broadcast %c1_i32_765 : i32 to vector<1x256xi32>
    %2025 = arith.addi %0, %2024 : vector<1x256xi32>
    %c16_i32_766 = arith.constant 16 : i32
    %2026 = vector.broadcast %c16_i32_766 : i32 to vector<1x256xi32>
    %2027 = arith.cmpi slt, %2025, %2026 : vector<1x256xi32>
    %2028 = arith.andi %2023, %2027 : vector<1x256xi1>
    %c2_i32_767 = arith.constant 2 : i32
    %2029 = vector.broadcast %c2_i32_767 : i32 to vector<1x256xi32>
    %2030 = arith.addi %1, %2029 : vector<1x256xi32>
    %c0_i32_768 = arith.constant 0 : i32
    %2031 = vector.broadcast %c0_i32_768 : i32 to vector<1x256xi32>
    %2032 = arith.cmpi sge, %2030, %2031 : vector<1x256xi32>
    %2033 = arith.andi %2028, %2032 : vector<1x256xi1>
    %c2_i32_769 = arith.constant 2 : i32
    %2034 = vector.broadcast %c2_i32_769 : i32 to vector<1x256xi32>
    %2035 = arith.addi %1, %2034 : vector<1x256xi32>
    %c16_i32_770 = arith.constant 16 : i32
    %2036 = vector.broadcast %c16_i32_770 : i32 to vector<1x256xi32>
    %2037 = arith.cmpi slt, %2035, %2036 : vector<1x256xi32>
    %2038 = arith.andi %2033, %2037 : vector<1x256xi1>
    %cst_771 = arith.constant 0.000000e+00 : f32
    %2039 = vector.broadcast %cst_771 : f32 to vector<1x256xf32>
    %2040 = arith.select %2038, %2019, %2039 : vector<1x256xi1>, vector<1x256xf32>
    %2041 = vector.broadcast %2018 : f32 to vector<1x256xf32>
    %2042 = arith.mulf %2041, %2040 : vector<1x256xf32>
    %2043 = arith.addf %2017, %2042 : vector<1x256xf32>
    %c67 = arith.constant 67 : index
    %2044 = memref.load %arg8[%c67] : memref<98xf32, #tpu.memory_space<smem>>
    %c238_i32_772 = arith.constant 238 : i32
    %2045 = tpu.dynamic_rotate %302 by %c238_i32_772 dim 1 : vector<1x256xf32>, i32 -> vector<1x256xf32>
    %c1_i32_773 = arith.constant 1 : i32
    %2046 = vector.broadcast %c1_i32_773 : i32 to vector<1x256xi32>
    %2047 = arith.addi %0, %2046 : vector<1x256xi32>
    %c0_i32_774 = arith.constant 0 : i32
    %2048 = vector.broadcast %c0_i32_774 : i32 to vector<1x256xi32>
    %2049 = arith.cmpi sge, %2047, %2048 : vector<1x256xi32>
    %c1_i32_775 = arith.constant 1 : i32
    %2050 = vector.broadcast %c1_i32_775 : i32 to vector<1x256xi32>
    %2051 = arith.addi %0, %2050 : vector<1x256xi32>
    %c16_i32_776 = arith.constant 16 : i32
    %2052 = vector.broadcast %c16_i32_776 : i32 to vector<1x256xi32>
    %2053 = arith.cmpi slt, %2051, %2052 : vector<1x256xi32>
    %2054 = arith.andi %2049, %2053 : vector<1x256xi1>
    %c2_i32_777 = arith.constant 2 : i32
    %2055 = vector.broadcast %c2_i32_777 : i32 to vector<1x256xi32>
    %2056 = arith.addi %1, %2055 : vector<1x256xi32>
    %c0_i32_778 = arith.constant 0 : i32
    %2057 = vector.broadcast %c0_i32_778 : i32 to vector<1x256xi32>
    %2058 = arith.cmpi sge, %2056, %2057 : vector<1x256xi32>
    %2059 = arith.andi %2054, %2058 : vector<1x256xi1>
    %c2_i32_779 = arith.constant 2 : i32
    %2060 = vector.broadcast %c2_i32_779 : i32 to vector<1x256xi32>
    %2061 = arith.addi %1, %2060 : vector<1x256xi32>
    %c16_i32_780 = arith.constant 16 : i32
    %2062 = vector.broadcast %c16_i32_780 : i32 to vector<1x256xi32>
    %2063 = arith.cmpi slt, %2061, %2062 : vector<1x256xi32>
    %2064 = arith.andi %2059, %2063 : vector<1x256xi1>
    %cst_781 = arith.constant 0.000000e+00 : f32
    %2065 = vector.broadcast %cst_781 : f32 to vector<1x256xf32>
    %2066 = arith.select %2064, %2045, %2065 : vector<1x256xi1>, vector<1x256xf32>
    %2067 = vector.broadcast %2044 : f32 to vector<1x256xf32>
    %2068 = arith.mulf %2067, %2066 : vector<1x256xf32>
    %2069 = arith.addf %2043, %2068 : vector<1x256xf32>
    %c68 = arith.constant 68 : index
    %2070 = memref.load %arg8[%c68] : memref<98xf32, #tpu.memory_space<smem>>
    %c237_i32 = arith.constant 237 : i32
    %2071 = tpu.dynamic_rotate %300 by %c237_i32 dim 1 : vector<1x256xf32>, i32 -> vector<1x256xf32>
    %c1_i32_782 = arith.constant 1 : i32
    %2072 = vector.broadcast %c1_i32_782 : i32 to vector<1x256xi32>
    %2073 = arith.addi %0, %2072 : vector<1x256xi32>
    %c0_i32_783 = arith.constant 0 : i32
    %2074 = vector.broadcast %c0_i32_783 : i32 to vector<1x256xi32>
    %2075 = arith.cmpi sge, %2073, %2074 : vector<1x256xi32>
    %c1_i32_784 = arith.constant 1 : i32
    %2076 = vector.broadcast %c1_i32_784 : i32 to vector<1x256xi32>
    %2077 = arith.addi %0, %2076 : vector<1x256xi32>
    %c16_i32_785 = arith.constant 16 : i32
    %2078 = vector.broadcast %c16_i32_785 : i32 to vector<1x256xi32>
    %2079 = arith.cmpi slt, %2077, %2078 : vector<1x256xi32>
    %2080 = arith.andi %2075, %2079 : vector<1x256xi1>
    %c3_i32_786 = arith.constant 3 : i32
    %2081 = vector.broadcast %c3_i32_786 : i32 to vector<1x256xi32>
    %2082 = arith.addi %1, %2081 : vector<1x256xi32>
    %c0_i32_787 = arith.constant 0 : i32
    %2083 = vector.broadcast %c0_i32_787 : i32 to vector<1x256xi32>
    %2084 = arith.cmpi sge, %2082, %2083 : vector<1x256xi32>
    %2085 = arith.andi %2080, %2084 : vector<1x256xi1>
    %c3_i32_788 = arith.constant 3 : i32
    %2086 = vector.broadcast %c3_i32_788 : i32 to vector<1x256xi32>
    %2087 = arith.addi %1, %2086 : vector<1x256xi32>
    %c16_i32_789 = arith.constant 16 : i32
    %2088 = vector.broadcast %c16_i32_789 : i32 to vector<1x256xi32>
    %2089 = arith.cmpi slt, %2087, %2088 : vector<1x256xi32>
    %2090 = arith.andi %2085, %2089 : vector<1x256xi1>
    %cst_790 = arith.constant 0.000000e+00 : f32
    %2091 = vector.broadcast %cst_790 : f32 to vector<1x256xf32>
    %2092 = arith.select %2090, %2071, %2091 : vector<1x256xi1>, vector<1x256xf32>
    %2093 = vector.broadcast %2070 : f32 to vector<1x256xf32>
    %2094 = arith.mulf %2093, %2092 : vector<1x256xf32>
    %2095 = arith.addf %2069, %2094 : vector<1x256xf32>
    %c69 = arith.constant 69 : index
    %2096 = memref.load %arg8[%c69] : memref<98xf32, #tpu.memory_space<smem>>
    %c237_i32_791 = arith.constant 237 : i32
    %2097 = tpu.dynamic_rotate %302 by %c237_i32_791 dim 1 : vector<1x256xf32>, i32 -> vector<1x256xf32>
    %c1_i32_792 = arith.constant 1 : i32
    %2098 = vector.broadcast %c1_i32_792 : i32 to vector<1x256xi32>
    %2099 = arith.addi %0, %2098 : vector<1x256xi32>
    %c0_i32_793 = arith.constant 0 : i32
    %2100 = vector.broadcast %c0_i32_793 : i32 to vector<1x256xi32>
    %2101 = arith.cmpi sge, %2099, %2100 : vector<1x256xi32>
    %c1_i32_794 = arith.constant 1 : i32
    %2102 = vector.broadcast %c1_i32_794 : i32 to vector<1x256xi32>
    %2103 = arith.addi %0, %2102 : vector<1x256xi32>
    %c16_i32_795 = arith.constant 16 : i32
    %2104 = vector.broadcast %c16_i32_795 : i32 to vector<1x256xi32>
    %2105 = arith.cmpi slt, %2103, %2104 : vector<1x256xi32>
    %2106 = arith.andi %2101, %2105 : vector<1x256xi1>
    %c3_i32_796 = arith.constant 3 : i32
    %2107 = vector.broadcast %c3_i32_796 : i32 to vector<1x256xi32>
    %2108 = arith.addi %1, %2107 : vector<1x256xi32>
    %c0_i32_797 = arith.constant 0 : i32
    %2109 = vector.broadcast %c0_i32_797 : i32 to vector<1x256xi32>
    %2110 = arith.cmpi sge, %2108, %2109 : vector<1x256xi32>
    %2111 = arith.andi %2106, %2110 : vector<1x256xi1>
    %c3_i32_798 = arith.constant 3 : i32
    %2112 = vector.broadcast %c3_i32_798 : i32 to vector<1x256xi32>
    %2113 = arith.addi %1, %2112 : vector<1x256xi32>
    %c16_i32_799 = arith.constant 16 : i32
    %2114 = vector.broadcast %c16_i32_799 : i32 to vector<1x256xi32>
    %2115 = arith.cmpi slt, %2113, %2114 : vector<1x256xi32>
    %2116 = arith.andi %2111, %2115 : vector<1x256xi1>
    %cst_800 = arith.constant 0.000000e+00 : f32
    %2117 = vector.broadcast %cst_800 : f32 to vector<1x256xf32>
    %2118 = arith.select %2116, %2097, %2117 : vector<1x256xi1>, vector<1x256xf32>
    %2119 = vector.broadcast %2096 : f32 to vector<1x256xf32>
    %2120 = arith.mulf %2119, %2118 : vector<1x256xf32>
    %2121 = arith.addf %2095, %2120 : vector<1x256xf32>
    %c70 = arith.constant 70 : index
    %2122 = memref.load %arg8[%c70] : memref<98xf32, #tpu.memory_space<smem>>
    %c227_i32 = arith.constant 227 : i32
    %2123 = tpu.dynamic_rotate %300 by %c227_i32 dim 1 : vector<1x256xf32>, i32 -> vector<1x256xf32>
    %c2_i32_801 = arith.constant 2 : i32
    %2124 = vector.broadcast %c2_i32_801 : i32 to vector<1x256xi32>
    %2125 = arith.addi %0, %2124 : vector<1x256xi32>
    %c0_i32_802 = arith.constant 0 : i32
    %2126 = vector.broadcast %c0_i32_802 : i32 to vector<1x256xi32>
    %2127 = arith.cmpi sge, %2125, %2126 : vector<1x256xi32>
    %c2_i32_803 = arith.constant 2 : i32
    %2128 = vector.broadcast %c2_i32_803 : i32 to vector<1x256xi32>
    %2129 = arith.addi %0, %2128 : vector<1x256xi32>
    %c16_i32_804 = arith.constant 16 : i32
    %2130 = vector.broadcast %c16_i32_804 : i32 to vector<1x256xi32>
    %2131 = arith.cmpi slt, %2129, %2130 : vector<1x256xi32>
    %2132 = arith.andi %2127, %2131 : vector<1x256xi1>
    %c-3_i32_805 = arith.constant -3 : i32
    %2133 = vector.broadcast %c-3_i32_805 : i32 to vector<1x256xi32>
    %2134 = arith.addi %1, %2133 : vector<1x256xi32>
    %c0_i32_806 = arith.constant 0 : i32
    %2135 = vector.broadcast %c0_i32_806 : i32 to vector<1x256xi32>
    %2136 = arith.cmpi sge, %2134, %2135 : vector<1x256xi32>
    %2137 = arith.andi %2132, %2136 : vector<1x256xi1>
    %c-3_i32_807 = arith.constant -3 : i32
    %2138 = vector.broadcast %c-3_i32_807 : i32 to vector<1x256xi32>
    %2139 = arith.addi %1, %2138 : vector<1x256xi32>
    %c16_i32_808 = arith.constant 16 : i32
    %2140 = vector.broadcast %c16_i32_808 : i32 to vector<1x256xi32>
    %2141 = arith.cmpi slt, %2139, %2140 : vector<1x256xi32>
    %2142 = arith.andi %2137, %2141 : vector<1x256xi1>
    %cst_809 = arith.constant 0.000000e+00 : f32
    %2143 = vector.broadcast %cst_809 : f32 to vector<1x256xf32>
    %2144 = arith.select %2142, %2123, %2143 : vector<1x256xi1>, vector<1x256xf32>
    %2145 = vector.broadcast %2122 : f32 to vector<1x256xf32>
    %2146 = arith.mulf %2145, %2144 : vector<1x256xf32>
    %2147 = arith.addf %2121, %2146 : vector<1x256xf32>
    %c71 = arith.constant 71 : index
    %2148 = memref.load %arg8[%c71] : memref<98xf32, #tpu.memory_space<smem>>
    %c227_i32_810 = arith.constant 227 : i32
    %2149 = tpu.dynamic_rotate %302 by %c227_i32_810 dim 1 : vector<1x256xf32>, i32 -> vector<1x256xf32>
    %c2_i32_811 = arith.constant 2 : i32
    %2150 = vector.broadcast %c2_i32_811 : i32 to vector<1x256xi32>
    %2151 = arith.addi %0, %2150 : vector<1x256xi32>
    %c0_i32_812 = arith.constant 0 : i32
    %2152 = vector.broadcast %c0_i32_812 : i32 to vector<1x256xi32>
    %2153 = arith.cmpi sge, %2151, %2152 : vector<1x256xi32>
    %c2_i32_813 = arith.constant 2 : i32
    %2154 = vector.broadcast %c2_i32_813 : i32 to vector<1x256xi32>
    %2155 = arith.addi %0, %2154 : vector<1x256xi32>
    %c16_i32_814 = arith.constant 16 : i32
    %2156 = vector.broadcast %c16_i32_814 : i32 to vector<1x256xi32>
    %2157 = arith.cmpi slt, %2155, %2156 : vector<1x256xi32>
    %2158 = arith.andi %2153, %2157 : vector<1x256xi1>
    %c-3_i32_815 = arith.constant -3 : i32
    %2159 = vector.broadcast %c-3_i32_815 : i32 to vector<1x256xi32>
    %2160 = arith.addi %1, %2159 : vector<1x256xi32>
    %c0_i32_816 = arith.constant 0 : i32
    %2161 = vector.broadcast %c0_i32_816 : i32 to vector<1x256xi32>
    %2162 = arith.cmpi sge, %2160, %2161 : vector<1x256xi32>
    %2163 = arith.andi %2158, %2162 : vector<1x256xi1>
    %c-3_i32_817 = arith.constant -3 : i32
    %2164 = vector.broadcast %c-3_i32_817 : i32 to vector<1x256xi32>
    %2165 = arith.addi %1, %2164 : vector<1x256xi32>
    %c16_i32_818 = arith.constant 16 : i32
    %2166 = vector.broadcast %c16_i32_818 : i32 to vector<1x256xi32>
    %2167 = arith.cmpi slt, %2165, %2166 : vector<1x256xi32>
    %2168 = arith.andi %2163, %2167 : vector<1x256xi1>
    %cst_819 = arith.constant 0.000000e+00 : f32
    %2169 = vector.broadcast %cst_819 : f32 to vector<1x256xf32>
    %2170 = arith.select %2168, %2149, %2169 : vector<1x256xi1>, vector<1x256xf32>
    %2171 = vector.broadcast %2148 : f32 to vector<1x256xf32>
    %2172 = arith.mulf %2171, %2170 : vector<1x256xf32>
    %2173 = arith.addf %2147, %2172 : vector<1x256xf32>
    %c72 = arith.constant 72 : index
    %2174 = memref.load %arg8[%c72] : memref<98xf32, #tpu.memory_space<smem>>
    %c226_i32 = arith.constant 226 : i32
    %2175 = tpu.dynamic_rotate %300 by %c226_i32 dim 1 : vector<1x256xf32>, i32 -> vector<1x256xf32>
    %c2_i32_820 = arith.constant 2 : i32
    %2176 = vector.broadcast %c2_i32_820 : i32 to vector<1x256xi32>
    %2177 = arith.addi %0, %2176 : vector<1x256xi32>
    %c0_i32_821 = arith.constant 0 : i32
    %2178 = vector.broadcast %c0_i32_821 : i32 to vector<1x256xi32>
    %2179 = arith.cmpi sge, %2177, %2178 : vector<1x256xi32>
    %c2_i32_822 = arith.constant 2 : i32
    %2180 = vector.broadcast %c2_i32_822 : i32 to vector<1x256xi32>
    %2181 = arith.addi %0, %2180 : vector<1x256xi32>
    %c16_i32_823 = arith.constant 16 : i32
    %2182 = vector.broadcast %c16_i32_823 : i32 to vector<1x256xi32>
    %2183 = arith.cmpi slt, %2181, %2182 : vector<1x256xi32>
    %2184 = arith.andi %2179, %2183 : vector<1x256xi1>
    %c-2_i32_824 = arith.constant -2 : i32
    %2185 = vector.broadcast %c-2_i32_824 : i32 to vector<1x256xi32>
    %2186 = arith.addi %1, %2185 : vector<1x256xi32>
    %c0_i32_825 = arith.constant 0 : i32
    %2187 = vector.broadcast %c0_i32_825 : i32 to vector<1x256xi32>
    %2188 = arith.cmpi sge, %2186, %2187 : vector<1x256xi32>
    %2189 = arith.andi %2184, %2188 : vector<1x256xi1>
    %c-2_i32_826 = arith.constant -2 : i32
    %2190 = vector.broadcast %c-2_i32_826 : i32 to vector<1x256xi32>
    %2191 = arith.addi %1, %2190 : vector<1x256xi32>
    %c16_i32_827 = arith.constant 16 : i32
    %2192 = vector.broadcast %c16_i32_827 : i32 to vector<1x256xi32>
    %2193 = arith.cmpi slt, %2191, %2192 : vector<1x256xi32>
    %2194 = arith.andi %2189, %2193 : vector<1x256xi1>
    %cst_828 = arith.constant 0.000000e+00 : f32
    %2195 = vector.broadcast %cst_828 : f32 to vector<1x256xf32>
    %2196 = arith.select %2194, %2175, %2195 : vector<1x256xi1>, vector<1x256xf32>
    %2197 = vector.broadcast %2174 : f32 to vector<1x256xf32>
    %2198 = arith.mulf %2197, %2196 : vector<1x256xf32>
    %2199 = arith.addf %2173, %2198 : vector<1x256xf32>
    %c73 = arith.constant 73 : index
    %2200 = memref.load %arg8[%c73] : memref<98xf32, #tpu.memory_space<smem>>
    %c226_i32_829 = arith.constant 226 : i32
    %2201 = tpu.dynamic_rotate %302 by %c226_i32_829 dim 1 : vector<1x256xf32>, i32 -> vector<1x256xf32>
    %c2_i32_830 = arith.constant 2 : i32
    %2202 = vector.broadcast %c2_i32_830 : i32 to vector<1x256xi32>
    %2203 = arith.addi %0, %2202 : vector<1x256xi32>
    %c0_i32_831 = arith.constant 0 : i32
    %2204 = vector.broadcast %c0_i32_831 : i32 to vector<1x256xi32>
    %2205 = arith.cmpi sge, %2203, %2204 : vector<1x256xi32>
    %c2_i32_832 = arith.constant 2 : i32
    %2206 = vector.broadcast %c2_i32_832 : i32 to vector<1x256xi32>
    %2207 = arith.addi %0, %2206 : vector<1x256xi32>
    %c16_i32_833 = arith.constant 16 : i32
    %2208 = vector.broadcast %c16_i32_833 : i32 to vector<1x256xi32>
    %2209 = arith.cmpi slt, %2207, %2208 : vector<1x256xi32>
    %2210 = arith.andi %2205, %2209 : vector<1x256xi1>
    %c-2_i32_834 = arith.constant -2 : i32
    %2211 = vector.broadcast %c-2_i32_834 : i32 to vector<1x256xi32>
    %2212 = arith.addi %1, %2211 : vector<1x256xi32>
    %c0_i32_835 = arith.constant 0 : i32
    %2213 = vector.broadcast %c0_i32_835 : i32 to vector<1x256xi32>
    %2214 = arith.cmpi sge, %2212, %2213 : vector<1x256xi32>
    %2215 = arith.andi %2210, %2214 : vector<1x256xi1>
    %c-2_i32_836 = arith.constant -2 : i32
    %2216 = vector.broadcast %c-2_i32_836 : i32 to vector<1x256xi32>
    %2217 = arith.addi %1, %2216 : vector<1x256xi32>
    %c16_i32_837 = arith.constant 16 : i32
    %2218 = vector.broadcast %c16_i32_837 : i32 to vector<1x256xi32>
    %2219 = arith.cmpi slt, %2217, %2218 : vector<1x256xi32>
    %2220 = arith.andi %2215, %2219 : vector<1x256xi1>
    %cst_838 = arith.constant 0.000000e+00 : f32
    %2221 = vector.broadcast %cst_838 : f32 to vector<1x256xf32>
    %2222 = arith.select %2220, %2201, %2221 : vector<1x256xi1>, vector<1x256xf32>
    %2223 = vector.broadcast %2200 : f32 to vector<1x256xf32>
    %2224 = arith.mulf %2223, %2222 : vector<1x256xf32>
    %2225 = arith.addf %2199, %2224 : vector<1x256xf32>
    %c74 = arith.constant 74 : index
    %2226 = memref.load %arg8[%c74] : memref<98xf32, #tpu.memory_space<smem>>
    %c225_i32 = arith.constant 225 : i32
    %2227 = tpu.dynamic_rotate %300 by %c225_i32 dim 1 : vector<1x256xf32>, i32 -> vector<1x256xf32>
    %c2_i32_839 = arith.constant 2 : i32
    %2228 = vector.broadcast %c2_i32_839 : i32 to vector<1x256xi32>
    %2229 = arith.addi %0, %2228 : vector<1x256xi32>
    %c0_i32_840 = arith.constant 0 : i32
    %2230 = vector.broadcast %c0_i32_840 : i32 to vector<1x256xi32>
    %2231 = arith.cmpi sge, %2229, %2230 : vector<1x256xi32>
    %c2_i32_841 = arith.constant 2 : i32
    %2232 = vector.broadcast %c2_i32_841 : i32 to vector<1x256xi32>
    %2233 = arith.addi %0, %2232 : vector<1x256xi32>
    %c16_i32_842 = arith.constant 16 : i32
    %2234 = vector.broadcast %c16_i32_842 : i32 to vector<1x256xi32>
    %2235 = arith.cmpi slt, %2233, %2234 : vector<1x256xi32>
    %2236 = arith.andi %2231, %2235 : vector<1x256xi1>
    %c-1_i32_843 = arith.constant -1 : i32
    %2237 = vector.broadcast %c-1_i32_843 : i32 to vector<1x256xi32>
    %2238 = arith.addi %1, %2237 : vector<1x256xi32>
    %c0_i32_844 = arith.constant 0 : i32
    %2239 = vector.broadcast %c0_i32_844 : i32 to vector<1x256xi32>
    %2240 = arith.cmpi sge, %2238, %2239 : vector<1x256xi32>
    %2241 = arith.andi %2236, %2240 : vector<1x256xi1>
    %c-1_i32_845 = arith.constant -1 : i32
    %2242 = vector.broadcast %c-1_i32_845 : i32 to vector<1x256xi32>
    %2243 = arith.addi %1, %2242 : vector<1x256xi32>
    %c16_i32_846 = arith.constant 16 : i32
    %2244 = vector.broadcast %c16_i32_846 : i32 to vector<1x256xi32>
    %2245 = arith.cmpi slt, %2243, %2244 : vector<1x256xi32>
    %2246 = arith.andi %2241, %2245 : vector<1x256xi1>
    %cst_847 = arith.constant 0.000000e+00 : f32
    %2247 = vector.broadcast %cst_847 : f32 to vector<1x256xf32>
    %2248 = arith.select %2246, %2227, %2247 : vector<1x256xi1>, vector<1x256xf32>
    %2249 = vector.broadcast %2226 : f32 to vector<1x256xf32>
    %2250 = arith.mulf %2249, %2248 : vector<1x256xf32>
    %2251 = arith.addf %2225, %2250 : vector<1x256xf32>
    %c75 = arith.constant 75 : index
    %2252 = memref.load %arg8[%c75] : memref<98xf32, #tpu.memory_space<smem>>
    %c225_i32_848 = arith.constant 225 : i32
    %2253 = tpu.dynamic_rotate %302 by %c225_i32_848 dim 1 : vector<1x256xf32>, i32 -> vector<1x256xf32>
    %c2_i32_849 = arith.constant 2 : i32
    %2254 = vector.broadcast %c2_i32_849 : i32 to vector<1x256xi32>
    %2255 = arith.addi %0, %2254 : vector<1x256xi32>
    %c0_i32_850 = arith.constant 0 : i32
    %2256 = vector.broadcast %c0_i32_850 : i32 to vector<1x256xi32>
    %2257 = arith.cmpi sge, %2255, %2256 : vector<1x256xi32>
    %c2_i32_851 = arith.constant 2 : i32
    %2258 = vector.broadcast %c2_i32_851 : i32 to vector<1x256xi32>
    %2259 = arith.addi %0, %2258 : vector<1x256xi32>
    %c16_i32_852 = arith.constant 16 : i32
    %2260 = vector.broadcast %c16_i32_852 : i32 to vector<1x256xi32>
    %2261 = arith.cmpi slt, %2259, %2260 : vector<1x256xi32>
    %2262 = arith.andi %2257, %2261 : vector<1x256xi1>
    %c-1_i32_853 = arith.constant -1 : i32
    %2263 = vector.broadcast %c-1_i32_853 : i32 to vector<1x256xi32>
    %2264 = arith.addi %1, %2263 : vector<1x256xi32>
    %c0_i32_854 = arith.constant 0 : i32
    %2265 = vector.broadcast %c0_i32_854 : i32 to vector<1x256xi32>
    %2266 = arith.cmpi sge, %2264, %2265 : vector<1x256xi32>
    %2267 = arith.andi %2262, %2266 : vector<1x256xi1>
    %c-1_i32_855 = arith.constant -1 : i32
    %2268 = vector.broadcast %c-1_i32_855 : i32 to vector<1x256xi32>
    %2269 = arith.addi %1, %2268 : vector<1x256xi32>
    %c16_i32_856 = arith.constant 16 : i32
    %2270 = vector.broadcast %c16_i32_856 : i32 to vector<1x256xi32>
    %2271 = arith.cmpi slt, %2269, %2270 : vector<1x256xi32>
    %2272 = arith.andi %2267, %2271 : vector<1x256xi1>
    %cst_857 = arith.constant 0.000000e+00 : f32
    %2273 = vector.broadcast %cst_857 : f32 to vector<1x256xf32>
    %2274 = arith.select %2272, %2253, %2273 : vector<1x256xi1>, vector<1x256xf32>
    %2275 = vector.broadcast %2252 : f32 to vector<1x256xf32>
    %2276 = arith.mulf %2275, %2274 : vector<1x256xf32>
    %2277 = arith.addf %2251, %2276 : vector<1x256xf32>
    %c76 = arith.constant 76 : index
    %2278 = memref.load %arg8[%c76] : memref<98xf32, #tpu.memory_space<smem>>
    %c224_i32 = arith.constant 224 : i32
    %2279 = tpu.dynamic_rotate %300 by %c224_i32 dim 1 : vector<1x256xf32>, i32 -> vector<1x256xf32>
    %c2_i32_858 = arith.constant 2 : i32
    %2280 = vector.broadcast %c2_i32_858 : i32 to vector<1x256xi32>
    %2281 = arith.addi %0, %2280 : vector<1x256xi32>
    %c0_i32_859 = arith.constant 0 : i32
    %2282 = vector.broadcast %c0_i32_859 : i32 to vector<1x256xi32>
    %2283 = arith.cmpi sge, %2281, %2282 : vector<1x256xi32>
    %c2_i32_860 = arith.constant 2 : i32
    %2284 = vector.broadcast %c2_i32_860 : i32 to vector<1x256xi32>
    %2285 = arith.addi %0, %2284 : vector<1x256xi32>
    %c16_i32_861 = arith.constant 16 : i32
    %2286 = vector.broadcast %c16_i32_861 : i32 to vector<1x256xi32>
    %2287 = arith.cmpi slt, %2285, %2286 : vector<1x256xi32>
    %2288 = arith.andi %2283, %2287 : vector<1x256xi1>
    %c0_i32_862 = arith.constant 0 : i32
    %2289 = vector.broadcast %c0_i32_862 : i32 to vector<1x256xi32>
    %2290 = arith.addi %1, %2289 : vector<1x256xi32>
    %c0_i32_863 = arith.constant 0 : i32
    %2291 = vector.broadcast %c0_i32_863 : i32 to vector<1x256xi32>
    %2292 = arith.cmpi sge, %2290, %2291 : vector<1x256xi32>
    %2293 = arith.andi %2288, %2292 : vector<1x256xi1>
    %c0_i32_864 = arith.constant 0 : i32
    %2294 = vector.broadcast %c0_i32_864 : i32 to vector<1x256xi32>
    %2295 = arith.addi %1, %2294 : vector<1x256xi32>
    %c16_i32_865 = arith.constant 16 : i32
    %2296 = vector.broadcast %c16_i32_865 : i32 to vector<1x256xi32>
    %2297 = arith.cmpi slt, %2295, %2296 : vector<1x256xi32>
    %2298 = arith.andi %2293, %2297 : vector<1x256xi1>
    %cst_866 = arith.constant 0.000000e+00 : f32
    %2299 = vector.broadcast %cst_866 : f32 to vector<1x256xf32>
    %2300 = arith.select %2298, %2279, %2299 : vector<1x256xi1>, vector<1x256xf32>
    %2301 = vector.broadcast %2278 : f32 to vector<1x256xf32>
    %2302 = arith.mulf %2301, %2300 : vector<1x256xf32>
    %2303 = arith.addf %2277, %2302 : vector<1x256xf32>
    %c77 = arith.constant 77 : index
    %2304 = memref.load %arg8[%c77] : memref<98xf32, #tpu.memory_space<smem>>
    %c224_i32_867 = arith.constant 224 : i32
    %2305 = tpu.dynamic_rotate %302 by %c224_i32_867 dim 1 : vector<1x256xf32>, i32 -> vector<1x256xf32>
    %c2_i32_868 = arith.constant 2 : i32
    %2306 = vector.broadcast %c2_i32_868 : i32 to vector<1x256xi32>
    %2307 = arith.addi %0, %2306 : vector<1x256xi32>
    %c0_i32_869 = arith.constant 0 : i32
    %2308 = vector.broadcast %c0_i32_869 : i32 to vector<1x256xi32>
    %2309 = arith.cmpi sge, %2307, %2308 : vector<1x256xi32>
    %c2_i32_870 = arith.constant 2 : i32
    %2310 = vector.broadcast %c2_i32_870 : i32 to vector<1x256xi32>
    %2311 = arith.addi %0, %2310 : vector<1x256xi32>
    %c16_i32_871 = arith.constant 16 : i32
    %2312 = vector.broadcast %c16_i32_871 : i32 to vector<1x256xi32>
    %2313 = arith.cmpi slt, %2311, %2312 : vector<1x256xi32>
    %2314 = arith.andi %2309, %2313 : vector<1x256xi1>
    %c0_i32_872 = arith.constant 0 : i32
    %2315 = vector.broadcast %c0_i32_872 : i32 to vector<1x256xi32>
    %2316 = arith.addi %1, %2315 : vector<1x256xi32>
    %c0_i32_873 = arith.constant 0 : i32
    %2317 = vector.broadcast %c0_i32_873 : i32 to vector<1x256xi32>
    %2318 = arith.cmpi sge, %2316, %2317 : vector<1x256xi32>
    %2319 = arith.andi %2314, %2318 : vector<1x256xi1>
    %c0_i32_874 = arith.constant 0 : i32
    %2320 = vector.broadcast %c0_i32_874 : i32 to vector<1x256xi32>
    %2321 = arith.addi %1, %2320 : vector<1x256xi32>
    %c16_i32_875 = arith.constant 16 : i32
    %2322 = vector.broadcast %c16_i32_875 : i32 to vector<1x256xi32>
    %2323 = arith.cmpi slt, %2321, %2322 : vector<1x256xi32>
    %2324 = arith.andi %2319, %2323 : vector<1x256xi1>
    %cst_876 = arith.constant 0.000000e+00 : f32
    %2325 = vector.broadcast %cst_876 : f32 to vector<1x256xf32>
    %2326 = arith.select %2324, %2305, %2325 : vector<1x256xi1>, vector<1x256xf32>
    %2327 = vector.broadcast %2304 : f32 to vector<1x256xf32>
    %2328 = arith.mulf %2327, %2326 : vector<1x256xf32>
    %2329 = arith.addf %2303, %2328 : vector<1x256xf32>
    %c78 = arith.constant 78 : index
    %2330 = memref.load %arg8[%c78] : memref<98xf32, #tpu.memory_space<smem>>
    %c223_i32 = arith.constant 223 : i32
    %2331 = tpu.dynamic_rotate %300 by %c223_i32 dim 1 : vector<1x256xf32>, i32 -> vector<1x256xf32>
    %c2_i32_877 = arith.constant 2 : i32
    %2332 = vector.broadcast %c2_i32_877 : i32 to vector<1x256xi32>
    %2333 = arith.addi %0, %2332 : vector<1x256xi32>
    %c0_i32_878 = arith.constant 0 : i32
    %2334 = vector.broadcast %c0_i32_878 : i32 to vector<1x256xi32>
    %2335 = arith.cmpi sge, %2333, %2334 : vector<1x256xi32>
    %c2_i32_879 = arith.constant 2 : i32
    %2336 = vector.broadcast %c2_i32_879 : i32 to vector<1x256xi32>
    %2337 = arith.addi %0, %2336 : vector<1x256xi32>
    %c16_i32_880 = arith.constant 16 : i32
    %2338 = vector.broadcast %c16_i32_880 : i32 to vector<1x256xi32>
    %2339 = arith.cmpi slt, %2337, %2338 : vector<1x256xi32>
    %2340 = arith.andi %2335, %2339 : vector<1x256xi1>
    %c1_i32_881 = arith.constant 1 : i32
    %2341 = vector.broadcast %c1_i32_881 : i32 to vector<1x256xi32>
    %2342 = arith.addi %1, %2341 : vector<1x256xi32>
    %c0_i32_882 = arith.constant 0 : i32
    %2343 = vector.broadcast %c0_i32_882 : i32 to vector<1x256xi32>
    %2344 = arith.cmpi sge, %2342, %2343 : vector<1x256xi32>
    %2345 = arith.andi %2340, %2344 : vector<1x256xi1>
    %c1_i32_883 = arith.constant 1 : i32
    %2346 = vector.broadcast %c1_i32_883 : i32 to vector<1x256xi32>
    %2347 = arith.addi %1, %2346 : vector<1x256xi32>
    %c16_i32_884 = arith.constant 16 : i32
    %2348 = vector.broadcast %c16_i32_884 : i32 to vector<1x256xi32>
    %2349 = arith.cmpi slt, %2347, %2348 : vector<1x256xi32>
    %2350 = arith.andi %2345, %2349 : vector<1x256xi1>
    %cst_885 = arith.constant 0.000000e+00 : f32
    %2351 = vector.broadcast %cst_885 : f32 to vector<1x256xf32>
    %2352 = arith.select %2350, %2331, %2351 : vector<1x256xi1>, vector<1x256xf32>
    %2353 = vector.broadcast %2330 : f32 to vector<1x256xf32>
    %2354 = arith.mulf %2353, %2352 : vector<1x256xf32>
    %2355 = arith.addf %2329, %2354 : vector<1x256xf32>
    %c79 = arith.constant 79 : index
    %2356 = memref.load %arg8[%c79] : memref<98xf32, #tpu.memory_space<smem>>
    %c223_i32_886 = arith.constant 223 : i32
    %2357 = tpu.dynamic_rotate %302 by %c223_i32_886 dim 1 : vector<1x256xf32>, i32 -> vector<1x256xf32>
    %c2_i32_887 = arith.constant 2 : i32
    %2358 = vector.broadcast %c2_i32_887 : i32 to vector<1x256xi32>
    %2359 = arith.addi %0, %2358 : vector<1x256xi32>
    %c0_i32_888 = arith.constant 0 : i32
    %2360 = vector.broadcast %c0_i32_888 : i32 to vector<1x256xi32>
    %2361 = arith.cmpi sge, %2359, %2360 : vector<1x256xi32>
    %c2_i32_889 = arith.constant 2 : i32
    %2362 = vector.broadcast %c2_i32_889 : i32 to vector<1x256xi32>
    %2363 = arith.addi %0, %2362 : vector<1x256xi32>
    %c16_i32_890 = arith.constant 16 : i32
    %2364 = vector.broadcast %c16_i32_890 : i32 to vector<1x256xi32>
    %2365 = arith.cmpi slt, %2363, %2364 : vector<1x256xi32>
    %2366 = arith.andi %2361, %2365 : vector<1x256xi1>
    %c1_i32_891 = arith.constant 1 : i32
    %2367 = vector.broadcast %c1_i32_891 : i32 to vector<1x256xi32>
    %2368 = arith.addi %1, %2367 : vector<1x256xi32>
    %c0_i32_892 = arith.constant 0 : i32
    %2369 = vector.broadcast %c0_i32_892 : i32 to vector<1x256xi32>
    %2370 = arith.cmpi sge, %2368, %2369 : vector<1x256xi32>
    %2371 = arith.andi %2366, %2370 : vector<1x256xi1>
    %c1_i32_893 = arith.constant 1 : i32
    %2372 = vector.broadcast %c1_i32_893 : i32 to vector<1x256xi32>
    %2373 = arith.addi %1, %2372 : vector<1x256xi32>
    %c16_i32_894 = arith.constant 16 : i32
    %2374 = vector.broadcast %c16_i32_894 : i32 to vector<1x256xi32>
    %2375 = arith.cmpi slt, %2373, %2374 : vector<1x256xi32>
    %2376 = arith.andi %2371, %2375 : vector<1x256xi1>
    %cst_895 = arith.constant 0.000000e+00 : f32
    %2377 = vector.broadcast %cst_895 : f32 to vector<1x256xf32>
    %2378 = arith.select %2376, %2357, %2377 : vector<1x256xi1>, vector<1x256xf32>
    %2379 = vector.broadcast %2356 : f32 to vector<1x256xf32>
    %2380 = arith.mulf %2379, %2378 : vector<1x256xf32>
    %2381 = arith.addf %2355, %2380 : vector<1x256xf32>
    %c80 = arith.constant 80 : index
    %2382 = memref.load %arg8[%c80] : memref<98xf32, #tpu.memory_space<smem>>
    %c222_i32 = arith.constant 222 : i32
    %2383 = tpu.dynamic_rotate %300 by %c222_i32 dim 1 : vector<1x256xf32>, i32 -> vector<1x256xf32>
    %c2_i32_896 = arith.constant 2 : i32
    %2384 = vector.broadcast %c2_i32_896 : i32 to vector<1x256xi32>
    %2385 = arith.addi %0, %2384 : vector<1x256xi32>
    %c0_i32_897 = arith.constant 0 : i32
    %2386 = vector.broadcast %c0_i32_897 : i32 to vector<1x256xi32>
    %2387 = arith.cmpi sge, %2385, %2386 : vector<1x256xi32>
    %c2_i32_898 = arith.constant 2 : i32
    %2388 = vector.broadcast %c2_i32_898 : i32 to vector<1x256xi32>
    %2389 = arith.addi %0, %2388 : vector<1x256xi32>
    %c16_i32_899 = arith.constant 16 : i32
    %2390 = vector.broadcast %c16_i32_899 : i32 to vector<1x256xi32>
    %2391 = arith.cmpi slt, %2389, %2390 : vector<1x256xi32>
    %2392 = arith.andi %2387, %2391 : vector<1x256xi1>
    %c2_i32_900 = arith.constant 2 : i32
    %2393 = vector.broadcast %c2_i32_900 : i32 to vector<1x256xi32>
    %2394 = arith.addi %1, %2393 : vector<1x256xi32>
    %c0_i32_901 = arith.constant 0 : i32
    %2395 = vector.broadcast %c0_i32_901 : i32 to vector<1x256xi32>
    %2396 = arith.cmpi sge, %2394, %2395 : vector<1x256xi32>
    %2397 = arith.andi %2392, %2396 : vector<1x256xi1>
    %c2_i32_902 = arith.constant 2 : i32
    %2398 = vector.broadcast %c2_i32_902 : i32 to vector<1x256xi32>
    %2399 = arith.addi %1, %2398 : vector<1x256xi32>
    %c16_i32_903 = arith.constant 16 : i32
    %2400 = vector.broadcast %c16_i32_903 : i32 to vector<1x256xi32>
    %2401 = arith.cmpi slt, %2399, %2400 : vector<1x256xi32>
    %2402 = arith.andi %2397, %2401 : vector<1x256xi1>
    %cst_904 = arith.constant 0.000000e+00 : f32
    %2403 = vector.broadcast %cst_904 : f32 to vector<1x256xf32>
    %2404 = arith.select %2402, %2383, %2403 : vector<1x256xi1>, vector<1x256xf32>
    %2405 = vector.broadcast %2382 : f32 to vector<1x256xf32>
    %2406 = arith.mulf %2405, %2404 : vector<1x256xf32>
    %2407 = arith.addf %2381, %2406 : vector<1x256xf32>
    %c81 = arith.constant 81 : index
    %2408 = memref.load %arg8[%c81] : memref<98xf32, #tpu.memory_space<smem>>
    %c222_i32_905 = arith.constant 222 : i32
    %2409 = tpu.dynamic_rotate %302 by %c222_i32_905 dim 1 : vector<1x256xf32>, i32 -> vector<1x256xf32>
    %c2_i32_906 = arith.constant 2 : i32
    %2410 = vector.broadcast %c2_i32_906 : i32 to vector<1x256xi32>
    %2411 = arith.addi %0, %2410 : vector<1x256xi32>
    %c0_i32_907 = arith.constant 0 : i32
    %2412 = vector.broadcast %c0_i32_907 : i32 to vector<1x256xi32>
    %2413 = arith.cmpi sge, %2411, %2412 : vector<1x256xi32>
    %c2_i32_908 = arith.constant 2 : i32
    %2414 = vector.broadcast %c2_i32_908 : i32 to vector<1x256xi32>
    %2415 = arith.addi %0, %2414 : vector<1x256xi32>
    %c16_i32_909 = arith.constant 16 : i32
    %2416 = vector.broadcast %c16_i32_909 : i32 to vector<1x256xi32>
    %2417 = arith.cmpi slt, %2415, %2416 : vector<1x256xi32>
    %2418 = arith.andi %2413, %2417 : vector<1x256xi1>
    %c2_i32_910 = arith.constant 2 : i32
    %2419 = vector.broadcast %c2_i32_910 : i32 to vector<1x256xi32>
    %2420 = arith.addi %1, %2419 : vector<1x256xi32>
    %c0_i32_911 = arith.constant 0 : i32
    %2421 = vector.broadcast %c0_i32_911 : i32 to vector<1x256xi32>
    %2422 = arith.cmpi sge, %2420, %2421 : vector<1x256xi32>
    %2423 = arith.andi %2418, %2422 : vector<1x256xi1>
    %c2_i32_912 = arith.constant 2 : i32
    %2424 = vector.broadcast %c2_i32_912 : i32 to vector<1x256xi32>
    %2425 = arith.addi %1, %2424 : vector<1x256xi32>
    %c16_i32_913 = arith.constant 16 : i32
    %2426 = vector.broadcast %c16_i32_913 : i32 to vector<1x256xi32>
    %2427 = arith.cmpi slt, %2425, %2426 : vector<1x256xi32>
    %2428 = arith.andi %2423, %2427 : vector<1x256xi1>
    %cst_914 = arith.constant 0.000000e+00 : f32
    %2429 = vector.broadcast %cst_914 : f32 to vector<1x256xf32>
    %2430 = arith.select %2428, %2409, %2429 : vector<1x256xi1>, vector<1x256xf32>
    %2431 = vector.broadcast %2408 : f32 to vector<1x256xf32>
    %2432 = arith.mulf %2431, %2430 : vector<1x256xf32>
    %2433 = arith.addf %2407, %2432 : vector<1x256xf32>
    %c82 = arith.constant 82 : index
    %2434 = memref.load %arg8[%c82] : memref<98xf32, #tpu.memory_space<smem>>
    %c221_i32 = arith.constant 221 : i32
    %2435 = tpu.dynamic_rotate %300 by %c221_i32 dim 1 : vector<1x256xf32>, i32 -> vector<1x256xf32>
    %c2_i32_915 = arith.constant 2 : i32
    %2436 = vector.broadcast %c2_i32_915 : i32 to vector<1x256xi32>
    %2437 = arith.addi %0, %2436 : vector<1x256xi32>
    %c0_i32_916 = arith.constant 0 : i32
    %2438 = vector.broadcast %c0_i32_916 : i32 to vector<1x256xi32>
    %2439 = arith.cmpi sge, %2437, %2438 : vector<1x256xi32>
    %c2_i32_917 = arith.constant 2 : i32
    %2440 = vector.broadcast %c2_i32_917 : i32 to vector<1x256xi32>
    %2441 = arith.addi %0, %2440 : vector<1x256xi32>
    %c16_i32_918 = arith.constant 16 : i32
    %2442 = vector.broadcast %c16_i32_918 : i32 to vector<1x256xi32>
    %2443 = arith.cmpi slt, %2441, %2442 : vector<1x256xi32>
    %2444 = arith.andi %2439, %2443 : vector<1x256xi1>
    %c3_i32_919 = arith.constant 3 : i32
    %2445 = vector.broadcast %c3_i32_919 : i32 to vector<1x256xi32>
    %2446 = arith.addi %1, %2445 : vector<1x256xi32>
    %c0_i32_920 = arith.constant 0 : i32
    %2447 = vector.broadcast %c0_i32_920 : i32 to vector<1x256xi32>
    %2448 = arith.cmpi sge, %2446, %2447 : vector<1x256xi32>
    %2449 = arith.andi %2444, %2448 : vector<1x256xi1>
    %c3_i32_921 = arith.constant 3 : i32
    %2450 = vector.broadcast %c3_i32_921 : i32 to vector<1x256xi32>
    %2451 = arith.addi %1, %2450 : vector<1x256xi32>
    %c16_i32_922 = arith.constant 16 : i32
    %2452 = vector.broadcast %c16_i32_922 : i32 to vector<1x256xi32>
    %2453 = arith.cmpi slt, %2451, %2452 : vector<1x256xi32>
    %2454 = arith.andi %2449, %2453 : vector<1x256xi1>
    %cst_923 = arith.constant 0.000000e+00 : f32
    %2455 = vector.broadcast %cst_923 : f32 to vector<1x256xf32>
    %2456 = arith.select %2454, %2435, %2455 : vector<1x256xi1>, vector<1x256xf32>
    %2457 = vector.broadcast %2434 : f32 to vector<1x256xf32>
    %2458 = arith.mulf %2457, %2456 : vector<1x256xf32>
    %2459 = arith.addf %2433, %2458 : vector<1x256xf32>
    %c83 = arith.constant 83 : index
    %2460 = memref.load %arg8[%c83] : memref<98xf32, #tpu.memory_space<smem>>
    %c221_i32_924 = arith.constant 221 : i32
    %2461 = tpu.dynamic_rotate %302 by %c221_i32_924 dim 1 : vector<1x256xf32>, i32 -> vector<1x256xf32>
    %c2_i32_925 = arith.constant 2 : i32
    %2462 = vector.broadcast %c2_i32_925 : i32 to vector<1x256xi32>
    %2463 = arith.addi %0, %2462 : vector<1x256xi32>
    %c0_i32_926 = arith.constant 0 : i32
    %2464 = vector.broadcast %c0_i32_926 : i32 to vector<1x256xi32>
    %2465 = arith.cmpi sge, %2463, %2464 : vector<1x256xi32>
    %c2_i32_927 = arith.constant 2 : i32
    %2466 = vector.broadcast %c2_i32_927 : i32 to vector<1x256xi32>
    %2467 = arith.addi %0, %2466 : vector<1x256xi32>
    %c16_i32_928 = arith.constant 16 : i32
    %2468 = vector.broadcast %c16_i32_928 : i32 to vector<1x256xi32>
    %2469 = arith.cmpi slt, %2467, %2468 : vector<1x256xi32>
    %2470 = arith.andi %2465, %2469 : vector<1x256xi1>
    %c3_i32_929 = arith.constant 3 : i32
    %2471 = vector.broadcast %c3_i32_929 : i32 to vector<1x256xi32>
    %2472 = arith.addi %1, %2471 : vector<1x256xi32>
    %c0_i32_930 = arith.constant 0 : i32
    %2473 = vector.broadcast %c0_i32_930 : i32 to vector<1x256xi32>
    %2474 = arith.cmpi sge, %2472, %2473 : vector<1x256xi32>
    %2475 = arith.andi %2470, %2474 : vector<1x256xi1>
    %c3_i32_931 = arith.constant 3 : i32
    %2476 = vector.broadcast %c3_i32_931 : i32 to vector<1x256xi32>
    %2477 = arith.addi %1, %2476 : vector<1x256xi32>
    %c16_i32_932 = arith.constant 16 : i32
    %2478 = vector.broadcast %c16_i32_932 : i32 to vector<1x256xi32>
    %2479 = arith.cmpi slt, %2477, %2478 : vector<1x256xi32>
    %2480 = arith.andi %2475, %2479 : vector<1x256xi1>
    %cst_933 = arith.constant 0.000000e+00 : f32
    %2481 = vector.broadcast %cst_933 : f32 to vector<1x256xf32>
    %2482 = arith.select %2480, %2461, %2481 : vector<1x256xi1>, vector<1x256xf32>
    %2483 = vector.broadcast %2460 : f32 to vector<1x256xf32>
    %2484 = arith.mulf %2483, %2482 : vector<1x256xf32>
    %2485 = arith.addf %2459, %2484 : vector<1x256xf32>
    %c84 = arith.constant 84 : index
    %2486 = memref.load %arg8[%c84] : memref<98xf32, #tpu.memory_space<smem>>
    %c211_i32 = arith.constant 211 : i32
    %2487 = tpu.dynamic_rotate %300 by %c211_i32 dim 1 : vector<1x256xf32>, i32 -> vector<1x256xf32>
    %c3_i32_934 = arith.constant 3 : i32
    %2488 = vector.broadcast %c3_i32_934 : i32 to vector<1x256xi32>
    %2489 = arith.addi %0, %2488 : vector<1x256xi32>
    %c0_i32_935 = arith.constant 0 : i32
    %2490 = vector.broadcast %c0_i32_935 : i32 to vector<1x256xi32>
    %2491 = arith.cmpi sge, %2489, %2490 : vector<1x256xi32>
    %c3_i32_936 = arith.constant 3 : i32
    %2492 = vector.broadcast %c3_i32_936 : i32 to vector<1x256xi32>
    %2493 = arith.addi %0, %2492 : vector<1x256xi32>
    %c16_i32_937 = arith.constant 16 : i32
    %2494 = vector.broadcast %c16_i32_937 : i32 to vector<1x256xi32>
    %2495 = arith.cmpi slt, %2493, %2494 : vector<1x256xi32>
    %2496 = arith.andi %2491, %2495 : vector<1x256xi1>
    %c-3_i32_938 = arith.constant -3 : i32
    %2497 = vector.broadcast %c-3_i32_938 : i32 to vector<1x256xi32>
    %2498 = arith.addi %1, %2497 : vector<1x256xi32>
    %c0_i32_939 = arith.constant 0 : i32
    %2499 = vector.broadcast %c0_i32_939 : i32 to vector<1x256xi32>
    %2500 = arith.cmpi sge, %2498, %2499 : vector<1x256xi32>
    %2501 = arith.andi %2496, %2500 : vector<1x256xi1>
    %c-3_i32_940 = arith.constant -3 : i32
    %2502 = vector.broadcast %c-3_i32_940 : i32 to vector<1x256xi32>
    %2503 = arith.addi %1, %2502 : vector<1x256xi32>
    %c16_i32_941 = arith.constant 16 : i32
    %2504 = vector.broadcast %c16_i32_941 : i32 to vector<1x256xi32>
    %2505 = arith.cmpi slt, %2503, %2504 : vector<1x256xi32>
    %2506 = arith.andi %2501, %2505 : vector<1x256xi1>
    %cst_942 = arith.constant 0.000000e+00 : f32
    %2507 = vector.broadcast %cst_942 : f32 to vector<1x256xf32>
    %2508 = arith.select %2506, %2487, %2507 : vector<1x256xi1>, vector<1x256xf32>
    %2509 = vector.broadcast %2486 : f32 to vector<1x256xf32>
    %2510 = arith.mulf %2509, %2508 : vector<1x256xf32>
    %2511 = arith.addf %2485, %2510 : vector<1x256xf32>
    %c85 = arith.constant 85 : index
    %2512 = memref.load %arg8[%c85] : memref<98xf32, #tpu.memory_space<smem>>
    %c211_i32_943 = arith.constant 211 : i32
    %2513 = tpu.dynamic_rotate %302 by %c211_i32_943 dim 1 : vector<1x256xf32>, i32 -> vector<1x256xf32>
    %c3_i32_944 = arith.constant 3 : i32
    %2514 = vector.broadcast %c3_i32_944 : i32 to vector<1x256xi32>
    %2515 = arith.addi %0, %2514 : vector<1x256xi32>
    %c0_i32_945 = arith.constant 0 : i32
    %2516 = vector.broadcast %c0_i32_945 : i32 to vector<1x256xi32>
    %2517 = arith.cmpi sge, %2515, %2516 : vector<1x256xi32>
    %c3_i32_946 = arith.constant 3 : i32
    %2518 = vector.broadcast %c3_i32_946 : i32 to vector<1x256xi32>
    %2519 = arith.addi %0, %2518 : vector<1x256xi32>
    %c16_i32_947 = arith.constant 16 : i32
    %2520 = vector.broadcast %c16_i32_947 : i32 to vector<1x256xi32>
    %2521 = arith.cmpi slt, %2519, %2520 : vector<1x256xi32>
    %2522 = arith.andi %2517, %2521 : vector<1x256xi1>
    %c-3_i32_948 = arith.constant -3 : i32
    %2523 = vector.broadcast %c-3_i32_948 : i32 to vector<1x256xi32>
    %2524 = arith.addi %1, %2523 : vector<1x256xi32>
    %c0_i32_949 = arith.constant 0 : i32
    %2525 = vector.broadcast %c0_i32_949 : i32 to vector<1x256xi32>
    %2526 = arith.cmpi sge, %2524, %2525 : vector<1x256xi32>
    %2527 = arith.andi %2522, %2526 : vector<1x256xi1>
    %c-3_i32_950 = arith.constant -3 : i32
    %2528 = vector.broadcast %c-3_i32_950 : i32 to vector<1x256xi32>
    %2529 = arith.addi %1, %2528 : vector<1x256xi32>
    %c16_i32_951 = arith.constant 16 : i32
    %2530 = vector.broadcast %c16_i32_951 : i32 to vector<1x256xi32>
    %2531 = arith.cmpi slt, %2529, %2530 : vector<1x256xi32>
    %2532 = arith.andi %2527, %2531 : vector<1x256xi1>
    %cst_952 = arith.constant 0.000000e+00 : f32
    %2533 = vector.broadcast %cst_952 : f32 to vector<1x256xf32>
    %2534 = arith.select %2532, %2513, %2533 : vector<1x256xi1>, vector<1x256xf32>
    %2535 = vector.broadcast %2512 : f32 to vector<1x256xf32>
    %2536 = arith.mulf %2535, %2534 : vector<1x256xf32>
    %2537 = arith.addf %2511, %2536 : vector<1x256xf32>
    %c86 = arith.constant 86 : index
    %2538 = memref.load %arg8[%c86] : memref<98xf32, #tpu.memory_space<smem>>
    %c210_i32 = arith.constant 210 : i32
    %2539 = tpu.dynamic_rotate %300 by %c210_i32 dim 1 : vector<1x256xf32>, i32 -> vector<1x256xf32>
    %c3_i32_953 = arith.constant 3 : i32
    %2540 = vector.broadcast %c3_i32_953 : i32 to vector<1x256xi32>
    %2541 = arith.addi %0, %2540 : vector<1x256xi32>
    %c0_i32_954 = arith.constant 0 : i32
    %2542 = vector.broadcast %c0_i32_954 : i32 to vector<1x256xi32>
    %2543 = arith.cmpi sge, %2541, %2542 : vector<1x256xi32>
    %c3_i32_955 = arith.constant 3 : i32
    %2544 = vector.broadcast %c3_i32_955 : i32 to vector<1x256xi32>
    %2545 = arith.addi %0, %2544 : vector<1x256xi32>
    %c16_i32_956 = arith.constant 16 : i32
    %2546 = vector.broadcast %c16_i32_956 : i32 to vector<1x256xi32>
    %2547 = arith.cmpi slt, %2545, %2546 : vector<1x256xi32>
    %2548 = arith.andi %2543, %2547 : vector<1x256xi1>
    %c-2_i32_957 = arith.constant -2 : i32
    %2549 = vector.broadcast %c-2_i32_957 : i32 to vector<1x256xi32>
    %2550 = arith.addi %1, %2549 : vector<1x256xi32>
    %c0_i32_958 = arith.constant 0 : i32
    %2551 = vector.broadcast %c0_i32_958 : i32 to vector<1x256xi32>
    %2552 = arith.cmpi sge, %2550, %2551 : vector<1x256xi32>
    %2553 = arith.andi %2548, %2552 : vector<1x256xi1>
    %c-2_i32_959 = arith.constant -2 : i32
    %2554 = vector.broadcast %c-2_i32_959 : i32 to vector<1x256xi32>
    %2555 = arith.addi %1, %2554 : vector<1x256xi32>
    %c16_i32_960 = arith.constant 16 : i32
    %2556 = vector.broadcast %c16_i32_960 : i32 to vector<1x256xi32>
    %2557 = arith.cmpi slt, %2555, %2556 : vector<1x256xi32>
    %2558 = arith.andi %2553, %2557 : vector<1x256xi1>
    %cst_961 = arith.constant 0.000000e+00 : f32
    %2559 = vector.broadcast %cst_961 : f32 to vector<1x256xf32>
    %2560 = arith.select %2558, %2539, %2559 : vector<1x256xi1>, vector<1x256xf32>
    %2561 = vector.broadcast %2538 : f32 to vector<1x256xf32>
    %2562 = arith.mulf %2561, %2560 : vector<1x256xf32>
    %2563 = arith.addf %2537, %2562 : vector<1x256xf32>
    %c87 = arith.constant 87 : index
    %2564 = memref.load %arg8[%c87] : memref<98xf32, #tpu.memory_space<smem>>
    %c210_i32_962 = arith.constant 210 : i32
    %2565 = tpu.dynamic_rotate %302 by %c210_i32_962 dim 1 : vector<1x256xf32>, i32 -> vector<1x256xf32>
    %c3_i32_963 = arith.constant 3 : i32
    %2566 = vector.broadcast %c3_i32_963 : i32 to vector<1x256xi32>
    %2567 = arith.addi %0, %2566 : vector<1x256xi32>
    %c0_i32_964 = arith.constant 0 : i32
    %2568 = vector.broadcast %c0_i32_964 : i32 to vector<1x256xi32>
    %2569 = arith.cmpi sge, %2567, %2568 : vector<1x256xi32>
    %c3_i32_965 = arith.constant 3 : i32
    %2570 = vector.broadcast %c3_i32_965 : i32 to vector<1x256xi32>
    %2571 = arith.addi %0, %2570 : vector<1x256xi32>
    %c16_i32_966 = arith.constant 16 : i32
    %2572 = vector.broadcast %c16_i32_966 : i32 to vector<1x256xi32>
    %2573 = arith.cmpi slt, %2571, %2572 : vector<1x256xi32>
    %2574 = arith.andi %2569, %2573 : vector<1x256xi1>
    %c-2_i32_967 = arith.constant -2 : i32
    %2575 = vector.broadcast %c-2_i32_967 : i32 to vector<1x256xi32>
    %2576 = arith.addi %1, %2575 : vector<1x256xi32>
    %c0_i32_968 = arith.constant 0 : i32
    %2577 = vector.broadcast %c0_i32_968 : i32 to vector<1x256xi32>
    %2578 = arith.cmpi sge, %2576, %2577 : vector<1x256xi32>
    %2579 = arith.andi %2574, %2578 : vector<1x256xi1>
    %c-2_i32_969 = arith.constant -2 : i32
    %2580 = vector.broadcast %c-2_i32_969 : i32 to vector<1x256xi32>
    %2581 = arith.addi %1, %2580 : vector<1x256xi32>
    %c16_i32_970 = arith.constant 16 : i32
    %2582 = vector.broadcast %c16_i32_970 : i32 to vector<1x256xi32>
    %2583 = arith.cmpi slt, %2581, %2582 : vector<1x256xi32>
    %2584 = arith.andi %2579, %2583 : vector<1x256xi1>
    %cst_971 = arith.constant 0.000000e+00 : f32
    %2585 = vector.broadcast %cst_971 : f32 to vector<1x256xf32>
    %2586 = arith.select %2584, %2565, %2585 : vector<1x256xi1>, vector<1x256xf32>
    %2587 = vector.broadcast %2564 : f32 to vector<1x256xf32>
    %2588 = arith.mulf %2587, %2586 : vector<1x256xf32>
    %2589 = arith.addf %2563, %2588 : vector<1x256xf32>
    %c88 = arith.constant 88 : index
    %2590 = memref.load %arg8[%c88] : memref<98xf32, #tpu.memory_space<smem>>
    %c209_i32 = arith.constant 209 : i32
    %2591 = tpu.dynamic_rotate %300 by %c209_i32 dim 1 : vector<1x256xf32>, i32 -> vector<1x256xf32>
    %c3_i32_972 = arith.constant 3 : i32
    %2592 = vector.broadcast %c3_i32_972 : i32 to vector<1x256xi32>
    %2593 = arith.addi %0, %2592 : vector<1x256xi32>
    %c0_i32_973 = arith.constant 0 : i32
    %2594 = vector.broadcast %c0_i32_973 : i32 to vector<1x256xi32>
    %2595 = arith.cmpi sge, %2593, %2594 : vector<1x256xi32>
    %c3_i32_974 = arith.constant 3 : i32
    %2596 = vector.broadcast %c3_i32_974 : i32 to vector<1x256xi32>
    %2597 = arith.addi %0, %2596 : vector<1x256xi32>
    %c16_i32_975 = arith.constant 16 : i32
    %2598 = vector.broadcast %c16_i32_975 : i32 to vector<1x256xi32>
    %2599 = arith.cmpi slt, %2597, %2598 : vector<1x256xi32>
    %2600 = arith.andi %2595, %2599 : vector<1x256xi1>
    %c-1_i32_976 = arith.constant -1 : i32
    %2601 = vector.broadcast %c-1_i32_976 : i32 to vector<1x256xi32>
    %2602 = arith.addi %1, %2601 : vector<1x256xi32>
    %c0_i32_977 = arith.constant 0 : i32
    %2603 = vector.broadcast %c0_i32_977 : i32 to vector<1x256xi32>
    %2604 = arith.cmpi sge, %2602, %2603 : vector<1x256xi32>
    %2605 = arith.andi %2600, %2604 : vector<1x256xi1>
    %c-1_i32_978 = arith.constant -1 : i32
    %2606 = vector.broadcast %c-1_i32_978 : i32 to vector<1x256xi32>
    %2607 = arith.addi %1, %2606 : vector<1x256xi32>
    %c16_i32_979 = arith.constant 16 : i32
    %2608 = vector.broadcast %c16_i32_979 : i32 to vector<1x256xi32>
    %2609 = arith.cmpi slt, %2607, %2608 : vector<1x256xi32>
    %2610 = arith.andi %2605, %2609 : vector<1x256xi1>
    %cst_980 = arith.constant 0.000000e+00 : f32
    %2611 = vector.broadcast %cst_980 : f32 to vector<1x256xf32>
    %2612 = arith.select %2610, %2591, %2611 : vector<1x256xi1>, vector<1x256xf32>
    %2613 = vector.broadcast %2590 : f32 to vector<1x256xf32>
    %2614 = arith.mulf %2613, %2612 : vector<1x256xf32>
    %2615 = arith.addf %2589, %2614 : vector<1x256xf32>
    %c89 = arith.constant 89 : index
    %2616 = memref.load %arg8[%c89] : memref<98xf32, #tpu.memory_space<smem>>
    %c209_i32_981 = arith.constant 209 : i32
    %2617 = tpu.dynamic_rotate %302 by %c209_i32_981 dim 1 : vector<1x256xf32>, i32 -> vector<1x256xf32>
    %c3_i32_982 = arith.constant 3 : i32
    %2618 = vector.broadcast %c3_i32_982 : i32 to vector<1x256xi32>
    %2619 = arith.addi %0, %2618 : vector<1x256xi32>
    %c0_i32_983 = arith.constant 0 : i32
    %2620 = vector.broadcast %c0_i32_983 : i32 to vector<1x256xi32>
    %2621 = arith.cmpi sge, %2619, %2620 : vector<1x256xi32>
    %c3_i32_984 = arith.constant 3 : i32
    %2622 = vector.broadcast %c3_i32_984 : i32 to vector<1x256xi32>
    %2623 = arith.addi %0, %2622 : vector<1x256xi32>
    %c16_i32_985 = arith.constant 16 : i32
    %2624 = vector.broadcast %c16_i32_985 : i32 to vector<1x256xi32>
    %2625 = arith.cmpi slt, %2623, %2624 : vector<1x256xi32>
    %2626 = arith.andi %2621, %2625 : vector<1x256xi1>
    %c-1_i32_986 = arith.constant -1 : i32
    %2627 = vector.broadcast %c-1_i32_986 : i32 to vector<1x256xi32>
    %2628 = arith.addi %1, %2627 : vector<1x256xi32>
    %c0_i32_987 = arith.constant 0 : i32
    %2629 = vector.broadcast %c0_i32_987 : i32 to vector<1x256xi32>
    %2630 = arith.cmpi sge, %2628, %2629 : vector<1x256xi32>
    %2631 = arith.andi %2626, %2630 : vector<1x256xi1>
    %c-1_i32_988 = arith.constant -1 : i32
    %2632 = vector.broadcast %c-1_i32_988 : i32 to vector<1x256xi32>
    %2633 = arith.addi %1, %2632 : vector<1x256xi32>
    %c16_i32_989 = arith.constant 16 : i32
    %2634 = vector.broadcast %c16_i32_989 : i32 to vector<1x256xi32>
    %2635 = arith.cmpi slt, %2633, %2634 : vector<1x256xi32>
    %2636 = arith.andi %2631, %2635 : vector<1x256xi1>
    %cst_990 = arith.constant 0.000000e+00 : f32
    %2637 = vector.broadcast %cst_990 : f32 to vector<1x256xf32>
    %2638 = arith.select %2636, %2617, %2637 : vector<1x256xi1>, vector<1x256xf32>
    %2639 = vector.broadcast %2616 : f32 to vector<1x256xf32>
    %2640 = arith.mulf %2639, %2638 : vector<1x256xf32>
    %2641 = arith.addf %2615, %2640 : vector<1x256xf32>
    %c90 = arith.constant 90 : index
    %2642 = memref.load %arg8[%c90] : memref<98xf32, #tpu.memory_space<smem>>
    %c208_i32 = arith.constant 208 : i32
    %2643 = tpu.dynamic_rotate %300 by %c208_i32 dim 1 : vector<1x256xf32>, i32 -> vector<1x256xf32>
    %c3_i32_991 = arith.constant 3 : i32
    %2644 = vector.broadcast %c3_i32_991 : i32 to vector<1x256xi32>
    %2645 = arith.addi %0, %2644 : vector<1x256xi32>
    %c0_i32_992 = arith.constant 0 : i32
    %2646 = vector.broadcast %c0_i32_992 : i32 to vector<1x256xi32>
    %2647 = arith.cmpi sge, %2645, %2646 : vector<1x256xi32>
    %c3_i32_993 = arith.constant 3 : i32
    %2648 = vector.broadcast %c3_i32_993 : i32 to vector<1x256xi32>
    %2649 = arith.addi %0, %2648 : vector<1x256xi32>
    %c16_i32_994 = arith.constant 16 : i32
    %2650 = vector.broadcast %c16_i32_994 : i32 to vector<1x256xi32>
    %2651 = arith.cmpi slt, %2649, %2650 : vector<1x256xi32>
    %2652 = arith.andi %2647, %2651 : vector<1x256xi1>
    %c0_i32_995 = arith.constant 0 : i32
    %2653 = vector.broadcast %c0_i32_995 : i32 to vector<1x256xi32>
    %2654 = arith.addi %1, %2653 : vector<1x256xi32>
    %c0_i32_996 = arith.constant 0 : i32
    %2655 = vector.broadcast %c0_i32_996 : i32 to vector<1x256xi32>
    %2656 = arith.cmpi sge, %2654, %2655 : vector<1x256xi32>
    %2657 = arith.andi %2652, %2656 : vector<1x256xi1>
    %c0_i32_997 = arith.constant 0 : i32
    %2658 = vector.broadcast %c0_i32_997 : i32 to vector<1x256xi32>
    %2659 = arith.addi %1, %2658 : vector<1x256xi32>
    %c16_i32_998 = arith.constant 16 : i32
    %2660 = vector.broadcast %c16_i32_998 : i32 to vector<1x256xi32>
    %2661 = arith.cmpi slt, %2659, %2660 : vector<1x256xi32>
    %2662 = arith.andi %2657, %2661 : vector<1x256xi1>
    %cst_999 = arith.constant 0.000000e+00 : f32
    %2663 = vector.broadcast %cst_999 : f32 to vector<1x256xf32>
    %2664 = arith.select %2662, %2643, %2663 : vector<1x256xi1>, vector<1x256xf32>
    %2665 = vector.broadcast %2642 : f32 to vector<1x256xf32>
    %2666 = arith.mulf %2665, %2664 : vector<1x256xf32>
    %2667 = arith.addf %2641, %2666 : vector<1x256xf32>
    %c91 = arith.constant 91 : index
    %2668 = memref.load %arg8[%c91] : memref<98xf32, #tpu.memory_space<smem>>
    %c208_i32_1000 = arith.constant 208 : i32
    %2669 = tpu.dynamic_rotate %302 by %c208_i32_1000 dim 1 : vector<1x256xf32>, i32 -> vector<1x256xf32>
    %c3_i32_1001 = arith.constant 3 : i32
    %2670 = vector.broadcast %c3_i32_1001 : i32 to vector<1x256xi32>
    %2671 = arith.addi %0, %2670 : vector<1x256xi32>
    %c0_i32_1002 = arith.constant 0 : i32
    %2672 = vector.broadcast %c0_i32_1002 : i32 to vector<1x256xi32>
    %2673 = arith.cmpi sge, %2671, %2672 : vector<1x256xi32>
    %c3_i32_1003 = arith.constant 3 : i32
    %2674 = vector.broadcast %c3_i32_1003 : i32 to vector<1x256xi32>
    %2675 = arith.addi %0, %2674 : vector<1x256xi32>
    %c16_i32_1004 = arith.constant 16 : i32
    %2676 = vector.broadcast %c16_i32_1004 : i32 to vector<1x256xi32>
    %2677 = arith.cmpi slt, %2675, %2676 : vector<1x256xi32>
    %2678 = arith.andi %2673, %2677 : vector<1x256xi1>
    %c0_i32_1005 = arith.constant 0 : i32
    %2679 = vector.broadcast %c0_i32_1005 : i32 to vector<1x256xi32>
    %2680 = arith.addi %1, %2679 : vector<1x256xi32>
    %c0_i32_1006 = arith.constant 0 : i32
    %2681 = vector.broadcast %c0_i32_1006 : i32 to vector<1x256xi32>
    %2682 = arith.cmpi sge, %2680, %2681 : vector<1x256xi32>
    %2683 = arith.andi %2678, %2682 : vector<1x256xi1>
    %c0_i32_1007 = arith.constant 0 : i32
    %2684 = vector.broadcast %c0_i32_1007 : i32 to vector<1x256xi32>
    %2685 = arith.addi %1, %2684 : vector<1x256xi32>
    %c16_i32_1008 = arith.constant 16 : i32
    %2686 = vector.broadcast %c16_i32_1008 : i32 to vector<1x256xi32>
    %2687 = arith.cmpi slt, %2685, %2686 : vector<1x256xi32>
    %2688 = arith.andi %2683, %2687 : vector<1x256xi1>
    %cst_1009 = arith.constant 0.000000e+00 : f32
    %2689 = vector.broadcast %cst_1009 : f32 to vector<1x256xf32>
    %2690 = arith.select %2688, %2669, %2689 : vector<1x256xi1>, vector<1x256xf32>
    %2691 = vector.broadcast %2668 : f32 to vector<1x256xf32>
    %2692 = arith.mulf %2691, %2690 : vector<1x256xf32>
    %2693 = arith.addf %2667, %2692 : vector<1x256xf32>
    %c92 = arith.constant 92 : index
    %2694 = memref.load %arg8[%c92] : memref<98xf32, #tpu.memory_space<smem>>
    %c207_i32 = arith.constant 207 : i32
    %2695 = tpu.dynamic_rotate %300 by %c207_i32 dim 1 : vector<1x256xf32>, i32 -> vector<1x256xf32>
    %c3_i32_1010 = arith.constant 3 : i32
    %2696 = vector.broadcast %c3_i32_1010 : i32 to vector<1x256xi32>
    %2697 = arith.addi %0, %2696 : vector<1x256xi32>
    %c0_i32_1011 = arith.constant 0 : i32
    %2698 = vector.broadcast %c0_i32_1011 : i32 to vector<1x256xi32>
    %2699 = arith.cmpi sge, %2697, %2698 : vector<1x256xi32>
    %c3_i32_1012 = arith.constant 3 : i32
    %2700 = vector.broadcast %c3_i32_1012 : i32 to vector<1x256xi32>
    %2701 = arith.addi %0, %2700 : vector<1x256xi32>
    %c16_i32_1013 = arith.constant 16 : i32
    %2702 = vector.broadcast %c16_i32_1013 : i32 to vector<1x256xi32>
    %2703 = arith.cmpi slt, %2701, %2702 : vector<1x256xi32>
    %2704 = arith.andi %2699, %2703 : vector<1x256xi1>
    %c1_i32_1014 = arith.constant 1 : i32
    %2705 = vector.broadcast %c1_i32_1014 : i32 to vector<1x256xi32>
    %2706 = arith.addi %1, %2705 : vector<1x256xi32>
    %c0_i32_1015 = arith.constant 0 : i32
    %2707 = vector.broadcast %c0_i32_1015 : i32 to vector<1x256xi32>
    %2708 = arith.cmpi sge, %2706, %2707 : vector<1x256xi32>
    %2709 = arith.andi %2704, %2708 : vector<1x256xi1>
    %c1_i32_1016 = arith.constant 1 : i32
    %2710 = vector.broadcast %c1_i32_1016 : i32 to vector<1x256xi32>
    %2711 = arith.addi %1, %2710 : vector<1x256xi32>
    %c16_i32_1017 = arith.constant 16 : i32
    %2712 = vector.broadcast %c16_i32_1017 : i32 to vector<1x256xi32>
    %2713 = arith.cmpi slt, %2711, %2712 : vector<1x256xi32>
    %2714 = arith.andi %2709, %2713 : vector<1x256xi1>
    %cst_1018 = arith.constant 0.000000e+00 : f32
    %2715 = vector.broadcast %cst_1018 : f32 to vector<1x256xf32>
    %2716 = arith.select %2714, %2695, %2715 : vector<1x256xi1>, vector<1x256xf32>
    %2717 = vector.broadcast %2694 : f32 to vector<1x256xf32>
    %2718 = arith.mulf %2717, %2716 : vector<1x256xf32>
    %2719 = arith.addf %2693, %2718 : vector<1x256xf32>
    %c93 = arith.constant 93 : index
    %2720 = memref.load %arg8[%c93] : memref<98xf32, #tpu.memory_space<smem>>
    %c207_i32_1019 = arith.constant 207 : i32
    %2721 = tpu.dynamic_rotate %302 by %c207_i32_1019 dim 1 : vector<1x256xf32>, i32 -> vector<1x256xf32>
    %c3_i32_1020 = arith.constant 3 : i32
    %2722 = vector.broadcast %c3_i32_1020 : i32 to vector<1x256xi32>
    %2723 = arith.addi %0, %2722 : vector<1x256xi32>
    %c0_i32_1021 = arith.constant 0 : i32
    %2724 = vector.broadcast %c0_i32_1021 : i32 to vector<1x256xi32>
    %2725 = arith.cmpi sge, %2723, %2724 : vector<1x256xi32>
    %c3_i32_1022 = arith.constant 3 : i32
    %2726 = vector.broadcast %c3_i32_1022 : i32 to vector<1x256xi32>
    %2727 = arith.addi %0, %2726 : vector<1x256xi32>
    %c16_i32_1023 = arith.constant 16 : i32
    %2728 = vector.broadcast %c16_i32_1023 : i32 to vector<1x256xi32>
    %2729 = arith.cmpi slt, %2727, %2728 : vector<1x256xi32>
    %2730 = arith.andi %2725, %2729 : vector<1x256xi1>
    %c1_i32_1024 = arith.constant 1 : i32
    %2731 = vector.broadcast %c1_i32_1024 : i32 to vector<1x256xi32>
    %2732 = arith.addi %1, %2731 : vector<1x256xi32>
    %c0_i32_1025 = arith.constant 0 : i32
    %2733 = vector.broadcast %c0_i32_1025 : i32 to vector<1x256xi32>
    %2734 = arith.cmpi sge, %2732, %2733 : vector<1x256xi32>
    %2735 = arith.andi %2730, %2734 : vector<1x256xi1>
    %c1_i32_1026 = arith.constant 1 : i32
    %2736 = vector.broadcast %c1_i32_1026 : i32 to vector<1x256xi32>
    %2737 = arith.addi %1, %2736 : vector<1x256xi32>
    %c16_i32_1027 = arith.constant 16 : i32
    %2738 = vector.broadcast %c16_i32_1027 : i32 to vector<1x256xi32>
    %2739 = arith.cmpi slt, %2737, %2738 : vector<1x256xi32>
    %2740 = arith.andi %2735, %2739 : vector<1x256xi1>
    %cst_1028 = arith.constant 0.000000e+00 : f32
    %2741 = vector.broadcast %cst_1028 : f32 to vector<1x256xf32>
    %2742 = arith.select %2740, %2721, %2741 : vector<1x256xi1>, vector<1x256xf32>
    %2743 = vector.broadcast %2720 : f32 to vector<1x256xf32>
    %2744 = arith.mulf %2743, %2742 : vector<1x256xf32>
    %2745 = arith.addf %2719, %2744 : vector<1x256xf32>
    %c94 = arith.constant 94 : index
    %2746 = memref.load %arg8[%c94] : memref<98xf32, #tpu.memory_space<smem>>
    %c206_i32 = arith.constant 206 : i32
    %2747 = tpu.dynamic_rotate %300 by %c206_i32 dim 1 : vector<1x256xf32>, i32 -> vector<1x256xf32>
    %c3_i32_1029 = arith.constant 3 : i32
    %2748 = vector.broadcast %c3_i32_1029 : i32 to vector<1x256xi32>
    %2749 = arith.addi %0, %2748 : vector<1x256xi32>
    %c0_i32_1030 = arith.constant 0 : i32
    %2750 = vector.broadcast %c0_i32_1030 : i32 to vector<1x256xi32>
    %2751 = arith.cmpi sge, %2749, %2750 : vector<1x256xi32>
    %c3_i32_1031 = arith.constant 3 : i32
    %2752 = vector.broadcast %c3_i32_1031 : i32 to vector<1x256xi32>
    %2753 = arith.addi %0, %2752 : vector<1x256xi32>
    %c16_i32_1032 = arith.constant 16 : i32
    %2754 = vector.broadcast %c16_i32_1032 : i32 to vector<1x256xi32>
    %2755 = arith.cmpi slt, %2753, %2754 : vector<1x256xi32>
    %2756 = arith.andi %2751, %2755 : vector<1x256xi1>
    %c2_i32_1033 = arith.constant 2 : i32
    %2757 = vector.broadcast %c2_i32_1033 : i32 to vector<1x256xi32>
    %2758 = arith.addi %1, %2757 : vector<1x256xi32>
    %c0_i32_1034 = arith.constant 0 : i32
    %2759 = vector.broadcast %c0_i32_1034 : i32 to vector<1x256xi32>
    %2760 = arith.cmpi sge, %2758, %2759 : vector<1x256xi32>
    %2761 = arith.andi %2756, %2760 : vector<1x256xi1>
    %c2_i32_1035 = arith.constant 2 : i32
    %2762 = vector.broadcast %c2_i32_1035 : i32 to vector<1x256xi32>
    %2763 = arith.addi %1, %2762 : vector<1x256xi32>
    %c16_i32_1036 = arith.constant 16 : i32
    %2764 = vector.broadcast %c16_i32_1036 : i32 to vector<1x256xi32>
    %2765 = arith.cmpi slt, %2763, %2764 : vector<1x256xi32>
    %2766 = arith.andi %2761, %2765 : vector<1x256xi1>
    %cst_1037 = arith.constant 0.000000e+00 : f32
    %2767 = vector.broadcast %cst_1037 : f32 to vector<1x256xf32>
    %2768 = arith.select %2766, %2747, %2767 : vector<1x256xi1>, vector<1x256xf32>
    %2769 = vector.broadcast %2746 : f32 to vector<1x256xf32>
    %2770 = arith.mulf %2769, %2768 : vector<1x256xf32>
    %2771 = arith.addf %2745, %2770 : vector<1x256xf32>
    %c95 = arith.constant 95 : index
    %2772 = memref.load %arg8[%c95] : memref<98xf32, #tpu.memory_space<smem>>
    %c206_i32_1038 = arith.constant 206 : i32
    %2773 = tpu.dynamic_rotate %302 by %c206_i32_1038 dim 1 : vector<1x256xf32>, i32 -> vector<1x256xf32>
    %c3_i32_1039 = arith.constant 3 : i32
    %2774 = vector.broadcast %c3_i32_1039 : i32 to vector<1x256xi32>
    %2775 = arith.addi %0, %2774 : vector<1x256xi32>
    %c0_i32_1040 = arith.constant 0 : i32
    %2776 = vector.broadcast %c0_i32_1040 : i32 to vector<1x256xi32>
    %2777 = arith.cmpi sge, %2775, %2776 : vector<1x256xi32>
    %c3_i32_1041 = arith.constant 3 : i32
    %2778 = vector.broadcast %c3_i32_1041 : i32 to vector<1x256xi32>
    %2779 = arith.addi %0, %2778 : vector<1x256xi32>
    %c16_i32_1042 = arith.constant 16 : i32
    %2780 = vector.broadcast %c16_i32_1042 : i32 to vector<1x256xi32>
    %2781 = arith.cmpi slt, %2779, %2780 : vector<1x256xi32>
    %2782 = arith.andi %2777, %2781 : vector<1x256xi1>
    %c2_i32_1043 = arith.constant 2 : i32
    %2783 = vector.broadcast %c2_i32_1043 : i32 to vector<1x256xi32>
    %2784 = arith.addi %1, %2783 : vector<1x256xi32>
    %c0_i32_1044 = arith.constant 0 : i32
    %2785 = vector.broadcast %c0_i32_1044 : i32 to vector<1x256xi32>
    %2786 = arith.cmpi sge, %2784, %2785 : vector<1x256xi32>
    %2787 = arith.andi %2782, %2786 : vector<1x256xi1>
    %c2_i32_1045 = arith.constant 2 : i32
    %2788 = vector.broadcast %c2_i32_1045 : i32 to vector<1x256xi32>
    %2789 = arith.addi %1, %2788 : vector<1x256xi32>
    %c16_i32_1046 = arith.constant 16 : i32
    %2790 = vector.broadcast %c16_i32_1046 : i32 to vector<1x256xi32>
    %2791 = arith.cmpi slt, %2789, %2790 : vector<1x256xi32>
    %2792 = arith.andi %2787, %2791 : vector<1x256xi1>
    %cst_1047 = arith.constant 0.000000e+00 : f32
    %2793 = vector.broadcast %cst_1047 : f32 to vector<1x256xf32>
    %2794 = arith.select %2792, %2773, %2793 : vector<1x256xi1>, vector<1x256xf32>
    %2795 = vector.broadcast %2772 : f32 to vector<1x256xf32>
    %2796 = arith.mulf %2795, %2794 : vector<1x256xf32>
    %2797 = arith.addf %2771, %2796 : vector<1x256xf32>
    %c96 = arith.constant 96 : index
    %2798 = memref.load %arg8[%c96] : memref<98xf32, #tpu.memory_space<smem>>
    %c205_i32 = arith.constant 205 : i32
    %2799 = tpu.dynamic_rotate %300 by %c205_i32 dim 1 : vector<1x256xf32>, i32 -> vector<1x256xf32>
    %c3_i32_1048 = arith.constant 3 : i32
    %2800 = vector.broadcast %c3_i32_1048 : i32 to vector<1x256xi32>
    %2801 = arith.addi %0, %2800 : vector<1x256xi32>
    %c0_i32_1049 = arith.constant 0 : i32
    %2802 = vector.broadcast %c0_i32_1049 : i32 to vector<1x256xi32>
    %2803 = arith.cmpi sge, %2801, %2802 : vector<1x256xi32>
    %c3_i32_1050 = arith.constant 3 : i32
    %2804 = vector.broadcast %c3_i32_1050 : i32 to vector<1x256xi32>
    %2805 = arith.addi %0, %2804 : vector<1x256xi32>
    %c16_i32_1051 = arith.constant 16 : i32
    %2806 = vector.broadcast %c16_i32_1051 : i32 to vector<1x256xi32>
    %2807 = arith.cmpi slt, %2805, %2806 : vector<1x256xi32>
    %2808 = arith.andi %2803, %2807 : vector<1x256xi1>
    %c3_i32_1052 = arith.constant 3 : i32
    %2809 = vector.broadcast %c3_i32_1052 : i32 to vector<1x256xi32>
    %2810 = arith.addi %1, %2809 : vector<1x256xi32>
    %c0_i32_1053 = arith.constant 0 : i32
    %2811 = vector.broadcast %c0_i32_1053 : i32 to vector<1x256xi32>
    %2812 = arith.cmpi sge, %2810, %2811 : vector<1x256xi32>
    %2813 = arith.andi %2808, %2812 : vector<1x256xi1>
    %c3_i32_1054 = arith.constant 3 : i32
    %2814 = vector.broadcast %c3_i32_1054 : i32 to vector<1x256xi32>
    %2815 = arith.addi %1, %2814 : vector<1x256xi32>
    %c16_i32_1055 = arith.constant 16 : i32
    %2816 = vector.broadcast %c16_i32_1055 : i32 to vector<1x256xi32>
    %2817 = arith.cmpi slt, %2815, %2816 : vector<1x256xi32>
    %2818 = arith.andi %2813, %2817 : vector<1x256xi1>
    %cst_1056 = arith.constant 0.000000e+00 : f32
    %2819 = vector.broadcast %cst_1056 : f32 to vector<1x256xf32>
    %2820 = arith.select %2818, %2799, %2819 : vector<1x256xi1>, vector<1x256xf32>
    %2821 = vector.broadcast %2798 : f32 to vector<1x256xf32>
    %2822 = arith.mulf %2821, %2820 : vector<1x256xf32>
    %2823 = arith.addf %2797, %2822 : vector<1x256xf32>
    %c97 = arith.constant 97 : index
    %2824 = memref.load %arg8[%c97] : memref<98xf32, #tpu.memory_space<smem>>
    %c205_i32_1057 = arith.constant 205 : i32
    %2825 = tpu.dynamic_rotate %302 by %c205_i32_1057 dim 1 : vector<1x256xf32>, i32 -> vector<1x256xf32>
    %c3_i32_1058 = arith.constant 3 : i32
    %2826 = vector.broadcast %c3_i32_1058 : i32 to vector<1x256xi32>
    %2827 = arith.addi %0, %2826 : vector<1x256xi32>
    %c0_i32_1059 = arith.constant 0 : i32
    %2828 = vector.broadcast %c0_i32_1059 : i32 to vector<1x256xi32>
    %2829 = arith.cmpi sge, %2827, %2828 : vector<1x256xi32>
    %c3_i32_1060 = arith.constant 3 : i32
    %2830 = vector.broadcast %c3_i32_1060 : i32 to vector<1x256xi32>
    %2831 = arith.addi %0, %2830 : vector<1x256xi32>
    %c16_i32_1061 = arith.constant 16 : i32
    %2832 = vector.broadcast %c16_i32_1061 : i32 to vector<1x256xi32>
    %2833 = arith.cmpi slt, %2831, %2832 : vector<1x256xi32>
    %2834 = arith.andi %2829, %2833 : vector<1x256xi1>
    %c3_i32_1062 = arith.constant 3 : i32
    %2835 = vector.broadcast %c3_i32_1062 : i32 to vector<1x256xi32>
    %2836 = arith.addi %1, %2835 : vector<1x256xi32>
    %c0_i32_1063 = arith.constant 0 : i32
    %2837 = vector.broadcast %c0_i32_1063 : i32 to vector<1x256xi32>
    %2838 = arith.cmpi sge, %2836, %2837 : vector<1x256xi32>
    %2839 = arith.andi %2834, %2838 : vector<1x256xi1>
    %c3_i32_1064 = arith.constant 3 : i32
    %2840 = vector.broadcast %c3_i32_1064 : i32 to vector<1x256xi32>
    %2841 = arith.addi %1, %2840 : vector<1x256xi32>
    %c16_i32_1065 = arith.constant 16 : i32
    %2842 = vector.broadcast %c16_i32_1065 : i32 to vector<1x256xi32>
    %2843 = arith.cmpi slt, %2841, %2842 : vector<1x256xi32>
    %2844 = arith.andi %2839, %2843 : vector<1x256xi1>
    %cst_1066 = arith.constant 0.000000e+00 : f32
    %2845 = vector.broadcast %cst_1066 : f32 to vector<1x256xf32>
    %2846 = arith.select %2844, %2825, %2845 : vector<1x256xi1>, vector<1x256xf32>
    %2847 = vector.broadcast %2824 : f32 to vector<1x256xf32>
    %2848 = arith.mulf %2847, %2846 : vector<1x256xf32>
    %2849 = arith.addf %2823, %2848 : vector<1x256xf32>
    %2850 = arith.negf %2849 : vector<1x256xf32>
    %2851 = math.exp %2850 : vector<1x256xf32>
    %cst_1067 = arith.constant 1.000000e+00 : f32
    %2852 = vector.broadcast %cst_1067 : f32 to vector<1x256xf32>
    %2853 = arith.addf %2852, %2851 : vector<1x256xf32>
    %2854 = arith.divf %2852, %2853 : vector<1x256xf32>
    %2855 = arith.mulf %275, %288 : vector<8x256xf32>
    %2856 = vector.broadcast %2854 : vector<1x256xf32> to vector<8x256xf32>
    %2857 = arith.mulf %2855, %2856 : vector<8x256xf32>
    %c0_1068 = arith.constant 0 : index
    %c0_1069 = arith.constant 0 : index
    %2858 = vector.load %arg9[%c0_1068, %c0_1069] : memref<4x8xf32, #tpu.memory_space<vmem>>, vector<4x8xf32>
    %cst_1070 = arith.constant dense<0.000000e+00> : vector<4x256xf32>
    %2859 = tpu.matmul %2858, %2857, %cst_1070 {dimension_numbers = #tpu.dot_dimension_numbers<[1], [0], [0], [1], [0, 0, 1, 1], [], []>} : vector<4x8xf32>, vector<8x256xf32>, vector<4x256xf32> -> vector<4x256xf32>
    %c0_1071 = arith.constant 0 : index
    %c0_1072 = arith.constant 0 : index
    %2860 = vector.load %arg10[%c0_1071, %c0_1072] : memref<4x1xf32, #tpu.memory_space<vmem>>, vector<4x1xf32>
    %2861 = vector.broadcast %2860 : vector<4x1xf32> to vector<4x256xf32>
    %2862 = arith.addf %2859, %2861 : vector<4x256xf32>
    %c0_1073 = arith.constant 0 : index
    %c0_1074 = arith.constant 0 : index
    %c0_1075 = arith.constant 0 : index
    %2863 = vector.load %arg11[%c0_1073, %c0_1074, %c0_1075] : memref<1x4x256xf32, #tpu.memory_space<vmem>>, vector<1x4x256xf32>
    %2864 = vector.shape_cast %2863 : vector<1x4x256xf32> to vector<4x256xf32>
    %2865 = vector.shape_cast %2862 : vector<4x256xf32> to vector<1x4x256xf32>
    tpu.vector_store %arg11[%c0_1073, %c0_1074, %c0_1075], %2865 {strides = array<i32>} : memref<1x4x256xf32, #tpu.memory_space<vmem>>, vector<1x4x256xf32>,
    return
  }
  func.func @transform_0(%arg0: i32) -> (i32, i32, i32) {
    %c0_i32 = arith.constant 0 : i32
    %c0_i32_0 = arith.constant 0 : i32
    %c0_i32_1 = arith.constant 0 : i32
    return %arg0, %c0_i32, %c0_i32_0 : i32, i32, i32
  }
  func.func @transform_1(%arg0: i32) -> (i32, i32) {
    %c0_i32 = arith.constant 0 : i32
    %c0_i32_0 = arith.constant 0 : i32
    %c0_i32_1 = arith.constant 0 : i32
    return %c0_i32, %c0_i32_0 : i32, i32
  }
  func.func @transform_2(%arg0: i32) -> (i32, i32) {
    %c0_i32 = arith.constant 0 : i32
    %c0_i32_0 = arith.constant 0 : i32
    %c0_i32_1 = arith.constant 0 : i32
    return %c0_i32, %c0_i32_0 : i32, i32
  }
  func.func @transform_3(%arg0: i32) -> (i32, i32) {
    %c0_i32 = arith.constant 0 : i32
    %c0_i32_0 = arith.constant 0 : i32
    %c0_i32_1 = arith.constant 0 : i32
    return %c0_i32, %c0_i32_0 : i32, i32
  }
  func.func @transform_4(%arg0: i32) -> (i32, i32) {
    %c0_i32 = arith.constant 0 : i32
    %c0_i32_0 = arith.constant 0 : i32
    %c0_i32_1 = arith.constant 0 : i32
    return %c0_i32, %c0_i32_0 : i32, i32
  }
  func.func @transform_5(%arg0: i32) -> (i32, i32, i32) {
    %c0_i32 = arith.constant 0 : i32
    %c0_i32_0 = arith.constant 0 : i32
    %c0_i32_1 = arith.constant 0 : i32
    %c0_i32_2 = arith.constant 0 : i32
    return %c0_i32, %c0_i32_0, %c0_i32_1 : i32, i32, i32
  }
  func.func @transform_6(%arg0: i32) -> (i32, i32) {
    %c0_i32 = arith.constant 0 : i32
    %c0_i32_0 = arith.constant 0 : i32
    %c0_i32_1 = arith.constant 0 : i32
    return %c0_i32, %c0_i32_0 : i32, i32
  }
  func.func @transform_7(%arg0: i32) -> i32 {
    %c0_i32 = arith.constant 0 : i32
    %c0_i32_0 = arith.constant 0 : i32
    return %c0_i32 : i32
  }
  func.func @transform_8(%arg0: i32) -> (i32, i32) {
    %c0_i32 = arith.constant 0 : i32
    %c0_i32_0 = arith.constant 0 : i32
    %c0_i32_1 = arith.constant 0 : i32
    return %c0_i32, %c0_i32_0 : i32, i32
  }
  func.func @transform_9(%arg0: i32) -> (i32, i32) {
    %c0_i32 = arith.constant 0 : i32
    %c0_i32_0 = arith.constant 0 : i32
    %c0_i32_1 = arith.constant 0 : i32
    return %c0_i32, %c0_i32_0 : i32, i32
  }
  func.func @transform_10(%arg0: i32) -> (i32, i32, i32) {
    %c0_i32 = arith.constant 0 : i32
    %c0_i32_0 = arith.constant 0 : i32
    %c0_i32_1 = arith.constant 0 : i32
    return %arg0, %c0_i32, %c0_i32_0 : i32, i32, i32
  }
}

</mosaic_0001>

<llo_original>
// kernel: tpu_custom_call.1
$region0: #{tpu_custom_call.1}
  #allocation0 [shape = 'u32[]', space=smem, size = 0x4, offset = 0x4, fixed_abs, tag = 'smem constant byte address 0x4 - core index']
  #allocation1 [shape = 'u32[144,128]{1,0:T(1,128)}', space=vmem, size = 0x12000, scoped, tag = 'internal scratch']
  %s0 = inlined_call_operand.vmem [shape: f32[2,4,256], index: 0, kind: input, shape index: {}]
  %s1 = inlined_call_operand.vmem [shape: s32[1,256], index: 1, kind: input, shape index: {}]
  %s2 = inlined_call_operand.vmem [shape: s32[1,256], index: 2, kind: input, shape index: {}]
  %s3 = inlined_call_operand.vmem [shape: f32[24,4], index: 3, kind: input, shape index: {}]
  %s4 = inlined_call_operand.vmem [shape: f32[24,1], index: 4, kind: input, shape index: {}]
  %s5 = inlined_call_operand.vmem [shape: f32[9,24,1], index: 5, kind: input, shape index: {}]
  %s6 = inlined_call_operand.vmem [shape: f32[24,1], index: 6, kind: input, shape index: {}]
  %s7 = inlined_call_operand.vmem [shape: f32[98], index: 7, kind: input, shape index: {}]
  %s8 = inlined_call_operand.vmem [shape: f32[4,8], index: 8, kind: input, shape index: {}]
  %s9 = inlined_call_operand.vmem [shape: f32[4,1], index: 9, kind: input, shape index: {}]
  %s10 = inlined_call_operand.hbm [shape: f32[2,4,256], index: 10, kind: output, shape index: {}]
  %s11 = sld [smem:[#allocation0]]
  $region77: #{tpu_custom_call.1} parent=0
    _
  %s13 = ssub.s32 1, %s11
  %s14 = scalar_select 0, %s13, %s11
  $region1: #{tpu_custom_call.1} parent=0
    #allocation2 [shape = 'u8[512]{0}', space=smem, size = 0x200, scoped, tag = 'input window, operand 7, single buffered']
    #allocation3 [shape = 's32[2]{0}', space=sflag, size = 0x8, scoped, tag = 'scoped memory for tpu_custom_call.1']
    #allocation4 [shape = 's32[2]{0}', space=sflag, size = 0x8, scoped, tag = 'scoped memory for tpu_custom_call.1']
    #allocation5 [shape = 'u8[8192]{0}', space=vmem, size = 0x2000, scoped, tag = 'output window, operand 0']
    %15 = vsyncpa [#allocation4], 0
    %16 = vsyncpa [#allocation3], 0
    %s17 = scalar_lea.sflag [#allocation3], 1
    %18 = vsyncpa %s17, 0
    loop: start=0, step=1, limit=4
    $region2: #{tpu_custom_call.1} parent=1 // loop_pre_header
      _
    $region3: #{tpu_custom_call.1} parent=1 // loop_header
      %s20 = sphi 0, %s24
      %p21 = scmp.ge.s32.totalorder %s20, 4
      %s30 = sphi 0, %s32
      %s33 = sphi 0, %s30
      %s34 = sphi 0, %s33
      %s50 = sphi 0, %s34
      %s54 = sphi 0, %s54
      %s56 = sphi 0, %s54
      %s57 = sphi 0, %s56
      %s71 = sphi 0, %s57
      %s75 = sphi 0, %s75
      %s77 = sphi 0, %s75
      %s78 = sphi 0, %s77
      %s92 = sphi 0, %s78
      %s96 = sphi 0, %s96
      %s98 = sphi 0, %s96
      %s99 = sphi 0, %s98
      %s113 = sphi 0, %s99
      %s117 = sphi 0, %s117
      %s119 = sphi 0, %s117
      %s120 = sphi 0, %s119
      %s134 = sphi 0, %s120
      %s138 = sphi 0, %s138
      %s140 = sphi 0, %s138
      %s141 = sphi 0, %s140
      %s155 = sphi 0, %s141
      %s159 = sphi 0, %s159
      %s161 = sphi 0, %s159
      %s162 = sphi 0, %s161
      %s176 = sphi 0, %s162
      %s180 = sphi 0, %s180
      %s182 = sphi 0, %s180
      %s183 = sphi 0, %s182
      %s197 = sphi 0, %s183
      %s201 = sphi 0, %s201
      %s203 = sphi 0, %s201
      %s204 = sphi 0, %s203
      %s218 = sphi 0, %s204
      %s222 = sphi 0, %s222
      %s224 = sphi 0, %s222
      %s225 = sphi 0, %s224
      %s239 = sphi 0, %s225
      %s245 = sphi 0, %s247
      %s248 = sphi 0, %s245
      %s249 = sphi 0, %s248
      %s265 = sphi 0, %s249
    $region4: #{tpu_custom_call.1} parent=1 // loop_header_branch
      %23 = sbr.rel (%p21) target = $region8
    $region5: #{tpu_custom_call.1} parent=1 // loop_body
      %s25 = ssub.s32 %s20, 1
      %s26 = ssub.s32 %s20, 2
      %s27 = sadd.s32 %s20, 1
      %s28 = ssub.s32 %s20, %s27
      %p29 = scmp.eq.s32.totalorder %s28, 0
      %s31 = sadd.s32 %s30, 1
      %s32 = scalar_select %p29, %s30, %s31
      %p35 = pneg %p29
      %p36 = scmp.eq.s32.totalorder %s20, 1
      %p37 = por %p35, %p36
      %p38 = scmp.ne.s32.totalorder %s30, %s33
      %p39 = scmp.eq.s32.totalorder %s20, 0
      %p40 = por %p38, %p39
      %p41 = scmp.ne.s32.totalorder %s30, %s33
      %p42 = scmp.eq.s32.totalorder %s25, 1
      %p43 = por %p41, %p42
      %p44 = scmp.ne.s32.totalorder %s33, %s34
      %p45 = scmp.eq.s32.totalorder %s25, 0
      %p46 = por %p44, %p45
      %p47 = scmp.ne.s32.totalorder %s33, %s34
      %p48 = scmp.eq.s32.totalorder %s26, 1
      %p49 = por %p47, %p48
      %p51 = scmp.ne.s32.totalorder %s34, %s50
      %p52 = scmp.eq.s32.totalorder %s26, 0
      %p53 = por %p51, %p52
      %s55 = sadd.s32 %s54, 1
      %p58 = scmp.eq.s32.totalorder %s20, 1
      %p59 = scmp.ne.s32.totalorder %s54, %s56
      %p60 = scmp.eq.s32.totalorder %s20, 0
      %p61 = por %p59, %p60
      %p62 = scmp.ne.s32.totalorder %s54, %s56
      %p63 = scmp.eq.s32.totalorder %s25, 1
      %p64 = por %p62, %p63
      %p65 = scmp.ne.s32.totalorder %s56, %s57
      %p66 = scmp.eq.s32.totalorder %s25, 0
      %p67 = por %p65, %p66
      %p68 = scmp.ne.s32.totalorder %s56, %s57
      %p69 = scmp.eq.s32.totalorder %s26, 1
      %p70 = por %p68, %p69
      %p72 = scmp.ne.s32.totalorder %s57, %s71
      %p73 = scmp.eq.s32.totalorder %s26, 0
      %p74 = por %p72, %p73
      %s76 = sadd.s32 %s75, 1
      %p79 = scmp.eq.s32.totalorder %s20, 1
      %p80 = scmp.ne.s32.totalorder %s75, %s77
      %p81 = scmp.eq.s32.totalorder %s20, 0
      %p82 = por %p80, %p81
      %p83 = scmp.ne.s32.totalorder %s75, %s77
      %p84 = scmp.eq.s32.totalorder %s25, 1
      %p85 = por %p83, %p84
      %p86 = scmp.ne.s32.totalorder %s77, %s78
      %p87 = scmp.eq.s32.totalorder %s25, 0
      %p88 = por %p86, %p87
      %p89 = scmp.ne.s32.totalorder %s77, %s78
      %p90 = scmp.eq.s32.totalorder %s26, 1
      %p91 = por %p89, %p90
      %p93 = scmp.ne.s32.totalorder %s78, %s92
      %p94 = scmp.eq.s32.totalorder %s26, 0
      %p95 = por %p93, %p94
      %s97 = sadd.s32 %s96, 1
      %p100 = scmp.eq.s32.totalorder %s20, 1
      %p101 = scmp.ne.s32.totalorder %s96, %s98
      %p102 = scmp.eq.s32.totalorder %s20, 0
      %p103 = por %p101, %p102
      %p104 = scmp.ne.s32.totalorder %s96, %s98
      %p105 = scmp.eq.s32.totalorder %s25, 1
      %p106 = por %p104, %p105
      %p107 = scmp.ne.s32.totalorder %s98, %s99
      %p108 = scmp.eq.s32.totalorder %s25, 0
      %p109 = por %p107, %p108
      %p110 = scmp.ne.s32.totalorder %s98, %s99
      %p111 = scmp.eq.s32.totalorder %s26, 1
      %p112 = por %p110, %p111
      %p114 = scmp.ne.s32.totalorder %s99, %s113
      %p115 = scmp.eq.s32.totalorder %s26, 0
      %p116 = por %p114, %p115
      %s118 = sadd.s32 %s117, 1
      %p121 = scmp.eq.s32.totalorder %s20, 1
      %p122 = scmp.ne.s32.totalorder %s117, %s119
      %p123 = scmp.eq.s32.totalorder %s20, 0
      %p124 = por %p122, %p123
      %p125 = scmp.ne.s32.totalorder %s117, %s119
      %p126 = scmp.eq.s32.totalorder %s25, 1
      %p127 = por %p125, %p126
      %p128 = scmp.ne.s32.totalorder %s119, %s120
      %p129 = scmp.eq.s32.totalorder %s25, 0
      %p130 = por %p128, %p129
      %p131 = scmp.ne.s32.totalorder %s119, %s120
      %p132 = scmp.eq.s32.totalorder %s26, 1
      %p133 = por %p131, %p132
      %p135 = scmp.ne.s32.totalorder %s120, %s134
      %p136 = scmp.eq.s32.totalorder %s26, 0
      %p137 = por %p135, %p136
      %s139 = sadd.s32 %s138, 1
      %p142 = scmp.eq.s32.totalorder %s20, 1
      %p143 = scmp.ne.s32.totalorder %s138, %s140
      %p144 = scmp.eq.s32.totalorder %s20, 0
      %p145 = por %p143, %p144
      %p146 = scmp.ne.s32.totalorder %s138, %s140
      %p147 = scmp.eq.s32.totalorder %s25, 1
      %p148 = por %p146, %p147
      %p149 = scmp.ne.s32.totalorder %s140, %s141
      %p150 = scmp.eq.s32.totalorder %s25, 0
      %p151 = por %p149, %p150
      %p152 = scmp.ne.s32.totalorder %s140, %s141
      %p153 = scmp.eq.s32.totalorder %s26, 1
      %p154 = por %p152, %p153
      %p156 = scmp.ne.s32.totalorder %s141, %s155
      %p157 = scmp.eq.s32.totalorder %s26, 0
      %p158 = por %p156, %p157
      %s160 = sadd.s32 %s159, 1
      %p163 = scmp.eq.s32.totalorder %s20, 1
      %p164 = scmp.ne.s32.totalorder %s159, %s161
      %p165 = scmp.eq.s32.totalorder %s20, 0
      %p166 = por %p164, %p165
      %p167 = scmp.ne.s32.totalorder %s159, %s161
      %p168 = scmp.eq.s32.totalorder %s25, 1
      %p169 = por %p167, %p168
      %p170 = scmp.ne.s32.totalorder %s161, %s162
      %p171 = scmp.eq.s32.totalorder %s25, 0
      %p172 = por %p170, %p171
      %p173 = scmp.ne.s32.totalorder %s161, %s162
      %p174 = scmp.eq.s32.totalorder %s26, 1
      %p175 = por %p173, %p174
      %p177 = scmp.ne.s32.totalorder %s162, %s176
      %p178 = scmp.eq.s32.totalorder %s26, 0
      %p179 = por %p177, %p178
      %s181 = sadd.s32 %s180, 1
      %p184 = scmp.eq.s32.totalorder %s20, 1
      %p185 = scmp.ne.s32.totalorder %s180, %s182
      %p186 = scmp.eq.s32.totalorder %s20, 0
      %p187 = por %p185, %p186
      %p188 = scmp.ne.s32.totalorder %s180, %s182
      %p189 = scmp.eq.s32.totalorder %s25, 1
      %p190 = por %p188, %p189
      %p191 = scmp.ne.s32.totalorder %s182, %s183
      %p192 = scmp.eq.s32.totalorder %s25, 0
      %p193 = por %p191, %p192
      %p194 = scmp.ne.s32.totalorder %s182, %s183
      %p195 = scmp.eq.s32.totalorder %s26, 1
      %p196 = por %p194, %p195
      %p198 = scmp.ne.s32.totalorder %s183, %s197
      %p199 = scmp.eq.s32.totalorder %s26, 0
      %p200 = por %p198, %p199
      %s202 = sadd.s32 %s201, 1
      %p205 = scmp.eq.s32.totalorder %s20, 1
      %p206 = scmp.ne.s32.totalorder %s201, %s203
      %p207 = scmp.eq.s32.totalorder %s20, 0
      %p208 = por %p206, %p207
      %p209 = scmp.ne.s32.totalorder %s201, %s203
      %p210 = scmp.eq.s32.totalorder %s25, 1
      %p211 = por %p209, %p210
      %p212 = scmp.ne.s32.totalorder %s203, %s204
      %p213 = scmp.eq.s32.totalorder %s25, 0
      %p214 = por %p212, %p213
      %p215 = scmp.ne.s32.totalorder %s203, %s204
      %p216 = scmp.eq.s32.totalorder %s26, 1
      %p217 = por %p215, %p216
      %p219 = scmp.ne.s32.totalorder %s204, %s218
      %p220 = scmp.eq.s32.totalorder %s26, 0
      %p221 = por %p219, %p220
      %s223 = sadd.s32 %s222, 1
      %p226 = scmp.eq.s32.totalorder %s20, 1
      %p227 = scmp.ne.s32.totalorder %s222, %s224
      %p228 = scmp.eq.s32.totalorder %s20, 0
      %p229 = por %p227, %p228
      %p230 = scmp.ne.s32.totalorder %s222, %s224
      %p231 = scmp.eq.s32.totalorder %s25, 1
      %p232 = por %p230, %p231
      %p233 = scmp.ne.s32.totalorder %s224, %s225
      %p234 = scmp.eq.s32.totalorder %s25, 0
      %p235 = por %p233, %p234
      %p236 = scmp.ne.s32.totalorder %s224, %s225
      %p237 = scmp.eq.s32.totalorder %s26, 1
      %p238 = por %p236, %p237
      %p240 = scmp.ne.s32.totalorder %s225, %s239
      %p241 = scmp.eq.s32.totalorder %s26, 0
      %p242 = por %p240, %p241
      %s243 = ssub.s32 %s20, %s27
      %p244 = scmp.eq.s32.totalorder %s243, 0
      %s246 = sadd.s32 %s245, 1
      %s247 = scalar_select %p244, %s245, %s246
      %p250 = pneg %p244
      %p251 = scmp.eq.s32.totalorder %s20, 1
      %p252 = por %p250, %p251
      %p253 = scmp.ne.s32.totalorder %s245, %s248
      %p254 = scmp.eq.s32.totalorder %s20, 0
      %p255 = por %p253, %p254
      %p256 = scmp.ne.s32.totalorder %s245, %s248
      %p257 = scmp.eq.s32.totalorder %s25, 1
      %p258 = por %p256, %p257
      %p259 = scmp.ne.s32.totalorder %s248, %s249
      %p260 = scmp.eq.s32.totalorder %s25, 0
      %p261 = por %p259, %p260
      %p262 = scmp.ne.s32.totalorder %s248, %s249
      %p263 = scmp.eq.s32.totalorder %s26, 1
      %p264 = por %p262, %p263
      %p266 = scmp.ne.s32.totalorder %s249, %s265
      %p267 = scmp.eq.s32.totalorder %s26, 0
      %p268 = por %p266, %p267
      %p269 = scmp.le.s32.totalorder 1, %s20
      %p270 = scmp.lt.s32.totalorder %s20, 3
      %p271 = pnand %p269, %p270
      %p272 = pneg %p271
      // Predicated region
      $region9: #{tpu_custom_call.1} parent=5 // pred_check
        _
      $region10: #{tpu_custom_call.1} parent=5 // pred_check_branch
        %274 = sbr.rel (%p271) target = $region12
      $region11: #{tpu_custom_call.1} parent=5 // pred_region
        %s275 = ssub.s32 %s20, 1
        // Predicated region
        $region13: #{tpu_custom_call.1} parent=11 // pred_check
          %p276 = pneg %p67
        $region14: #{tpu_custom_call.1} parent=11 // pred_check_branch
          %278 = sbr.rel (%p276) target = $region16
        $region15: #{tpu_custom_call.1} parent=11 // pred_region
          _
        $region16: #{tpu_custom_call.1} parent=11 // pred_fallthru
          _
        // Predicated region
        $region17: #{tpu_custom_call.1} parent=11 // pred_check
          %p279 = pneg %p88
        $region18: #{tpu_custom_call.1} parent=11 // pred_check_branch
          %281 = sbr.rel (%p279) target = $region20
        $region19: #{tpu_custom_call.1} parent=11 // pred_region
          _
        $region20: #{tpu_custom_call.1} parent=11 // pred_fallthru
          _
        // Predicated region
        $region21: #{tpu_custom_call.1} parent=11 // pred_check
          %p282 = pneg %p109
        $region22: #{tpu_custom_call.1} parent=11 // pred_check_branch
          %284 = sbr.rel (%p282) target = $region24
        $region23: #{tpu_custom_call.1} parent=11 // pred_region
          _
        $region24: #{tpu_custom_call.1} parent=11 // pred_fallthru
          _
        // Predicated region
        $region25: #{tpu_custom_call.1} parent=11 // pred_check
          %p285 = pneg %p130
        $region26: #{tpu_custom_call.1} parent=11 // pred_check_branch
          %287 = sbr.rel (%p285) target = $region28
        $region27: #{tpu_custom_call.1} parent=11 // pred_region
          _
        $region28: #{tpu_custom_call.1} parent=11 // pred_fallthru
          _
        // Predicated region
        $region29: #{tpu_custom_call.1} parent=11 // pred_check
          %p288 = pneg %p151
        $region30: #{tpu_custom_call.1} parent=11 // pred_check_branch
          %290 = sbr.rel (%p288) target = $region32
        $region31: #{tpu_custom_call.1} parent=11 // pred_region
          _
        $region32: #{tpu_custom_call.1} parent=11 // pred_fallthru
          _
        // Predicated region
        $region33: #{tpu_custom_call.1} parent=11 // pred_check
          %p291 = pneg %p172
        $region34: #{tpu_custom_call.1} parent=11 // pred_check_branch
          %293 = sbr.rel (%p291) target = $region36
        $region35: #{tpu_custom_call.1} parent=11 // pred_region
          _
        $region36: #{tpu_custom_call.1} parent=11 // pred_fallthru
          _
        // Predicated region
        $region37: #{tpu_custom_call.1} parent=11 // pred_check
          %p294 = pneg %p193
        $region38: #{tpu_custom_call.1} parent=11 // pred_check_branch
          %296 = sbr.rel (%p294) target = $region40
        $region39: #{tpu_custom_call.1} parent=11 // pred_region
          %s298 = ssub.s32 16, 16
          %299 = vsyncadd [#allocation4], %s298
          %s301 = sshll.u32 %s7, 4
          %s302 = int_to_ptr.vmem [resolvable:$true] %s301
          %304 = dma.vmem_to_smem %s302, 16, [#allocation2], [#allocation4]
        $region40: #{tpu_custom_call.1} parent=11 // pred_fallthru
          _
        // Predicated region
        $region41: #{tpu_custom_call.1} parent=11 // pred_check
          %p305 = pneg %p214
        $region42: #{tpu_custom_call.1} parent=11 // pred_check_branch
          %307 = sbr.rel (%p305) target = $region44
        $region43: #{tpu_custom_call.1} parent=11 // pred_region
          _
        $region44: #{tpu_custom_call.1} parent=11 // pred_fallthru
          _
        // Predicated region
        $region45: #{tpu_custom_call.1} parent=11 // pred_check
          %p308 = pneg %p235
        $region46: #{tpu_custom_call.1} parent=11 // pred_check_branch
          %310 = sbr.rel (%p308) target = $region48
        $region47: #{tpu_custom_call.1} parent=11 // pred_region
          _
        $region48: #{tpu_custom_call.1} parent=11 // pred_fallthru
          _
      $region12: #{tpu_custom_call.1} parent=5 // pred_fallthru
        _
      %p311 = scmp.lt.s32.totalorder %s20, 2
      // Predicated region
      $region49: #{tpu_custom_call.1} parent=5 // pred_check
        %p312 = pneg %p311
      $region50: #{tpu_custom_call.1} parent=5 // pred_check_branch
        %314 = sbr.rel (%p312) target = $region52
      $region51: #{tpu_custom_call.1} parent=5 // pred_region
        // Predicated region
        $region53: #{tpu_custom_call.1} parent=51 // pred_check
          %p315 = pneg %p40
        $region54: #{tpu_custom_call.1} parent=51 // pred_check_branch
          %317 = sbr.rel (%p315) target = $region56
        $region55: #{tpu_custom_call.1} parent=51 // pred_region
          %p318 = scmp.lt.s32.totalorder %s20, 1
          %s319 = scalar_select %p318, %s20, 1
          %s320 = smul.addr %s319, 2
          %s321 = smul.addr %s320, 4
          %s322 = scalar_lea.vmem %s0, %s321
        $region56: #{tpu_custom_call.1} parent=51 // pred_fallthru
          _
      $region52: #{tpu_custom_call.1} parent=5 // pred_fallthru
        _
      %p323 = scmp.le.s32.totalorder 1, %s20
      %p324 = scmp.lt.s32.totalorder %s20, 3
      %p325 = pnand %p323, %p324
      %p326 = pneg %p325
      // Predicated region
      $region57: #{tpu_custom_call.1} parent=5 // pred_check
        _
      $region58: #{tpu_custom_call.1} parent=5 // pred_check_branch
        %328 = sbr.rel (%p325) target = $region60
      $region59: #{tpu_custom_call.1} parent=5 // pred_region
        %s329 = ssub.s32 %s20, 1
        // Predicated region
        $region61: #{tpu_custom_call.1} parent=59 // pred_check
          %p330 = pneg %p193
        $region62: #{tpu_custom_call.1} parent=59 // pred_check_branch
          %332 = sbr.rel (%p330) target = $region64
        $region63: #{tpu_custom_call.1} parent=59 // pred_region
          %333 = dma.done [#allocation4], 16
        $region64: #{tpu_custom_call.1} parent=59 // pred_fallthru
          _
        %334 = sfence
        %p335 = scmp.lt.s32.totalorder %s25, 1
        %s336 = scalar_select %p335, %s25, 1
        %s337 = smul.addr %s336, 2
        %s338 = smul.addr %s337, 4
        %s339 = scalar_lea.vmem %s0, %s338
        %p340 = pneg %p46
        %p341 = pneg %p43
        %p342 = pneg %p67
        %p343 = pneg %p64
        %p344 = pneg %p88
        %p345 = pneg %p85
        %p346 = pneg %p109
        %p347 = pneg %p106
        %p348 = pneg %p130
        %p349 = pneg %p127
        %p350 = pneg %p151
        %p351 = pneg %p148
        %p352 = pneg %p172
        %p353 = pneg %p169
        %p354 = pneg %p193
        %p355 = pneg %p190
        %p356 = pneg %p214
        %p357 = pneg %p211
        %p358 = pneg %p235
        %p359 = pneg %p232
        %p360 = pneg %p261
        %p361 = pneg %p258
        %s362 = sand.u32 %s248, 1
        %s363 = scalar_lea.sflag [#allocation3], %s362
        %s364 = sand.u32 %s248, 1
        %s365 = smul.addr %s364, 8
        %s366 = scalar_lea.vmem [#allocation5], %s365
        %p367 = scmp.lt.s32.totalorder %s25, 1
        %s368 = scalar_select %p367, %s25, 1
        %s369 = smul.addr %s368, 2
        %s370 = smul.addr %s369, 4
        %s371 = scalar_lea.vmem %s0, %s370
        %v372 = vld [vmem:[%s1] sm:$0x3]
        %v373 = vld [vmem:[%s2] sm:$0x3]
        %v374 = vld [vmem:[%s371] sm:$0xff]
        %v375 = vld [vmem:[%s3] sm:$0xff]
        %v376 = vld [vmem:[%s3 + $0x8] sm:$0xff]
        %v377 = vld [vmem:[%s3 + $0x10] sm:$0xff]
        %v378 = vld [vmem:[%s4] sm:$0xff]
        %v379 = vld [vmem:[%s4 + $0x8] sm:$0xff]
        %v380 = vld [vmem:[%s4 + $0x10] sm:$0xff]
        %382 = vset.pattern.permute.xlu0 0
        %383 = vperm.xlu0 %382, %v378
        %v384 = vpop.permute.xlu0 %383
        %387 = vset.pattern.permute.xlu0 0
        %388 = vperm.xlu0 %387, %v379
        %v389 = vpop.permute.xlu0 %388
        %392 = vset.pattern.permute.xlu0 0
        %393 = vperm.xlu0 %392, %v380
        %v394 = vpop.permute.xlu0 %393
        %v397 = vcombine.high %v374, %v374
        %vm398 = vcmask 31744
        %v400 = vsel %vm398, %v375, 0
        %v403 = vsel %vm398, %v376, 0
        %v406 = vsel %vm398, %v377, 0
        %vm408 = vcmask 1043456
        %v409 = vsel %vm408, %v374, 0
        %v411 = vsel %vm408, %v397, 0
        %413 = vmatprep.subr.mxu0 %v411
        %414 = vmatpush1.msra.mxu0 %v409
        %415 = vmatprep.subr.mxu0 0.0
        %416 = vmatpush1.msra.mxu0 0.0
        %417 = vmatprep.subr.mxu0 0.0
        %418 = vmatpush1.msra.mxu0 0.0
        %419 = vmatprep.subr.mxu0 0.0
        %420 = vmatpush1.msra.mxu0 0.0
        %421 = vmatprep.subr.mxu0 0.0
        %422 = vmatpush1.msra.mxu0 0.0
        %423 = vmatprep.subr.mxu0 0.0
        %424 = vmatpush1.msra.mxu0 0.0
        %425 = vmatprep.subr.mxu0 0.0
        %426 = vmatpush1.msra.mxu0 0.0
        %427 = vmatprep.subr.mxu0 0.0
        %428 = vmatpush1.msra.mxu0 0.0
        %429 = vmatprep.subr.mxu0 0.0
        %430 = vmatpush1.msra.mxu0 0.0
        %431 = vmatprep.subr.mxu0 0.0
        %432 = vmatpush1.msra.mxu0 0.0
        %433 = vmatprep.subr.mxu0 0.0
        %434 = vmatpush1.msra.mxu0 0.0
        %435 = vmatprep.subr.mxu0 0.0
        %436 = vmatpush1.msra.mxu0 0.0
        %437 = vmatprep.subr.mxu0 0.0
        %438 = vmatpush1.msra.mxu0 0.0
        %439 = vmatprep.subr.mxu0 0.0
        %440 = vmatpush1.msra.mxu0 0.0
        %441 = vmatprep.subr.mxu0 0.0
        %442 = vmatpush1.msra.mxu0 0.0
        %443 = vmatprep.subr.mxu0 0.0
        %444 = vmatpush1.msra.mxu0 0.0
        %445 = vmatprep.subr.mxu0 0.0
        %446 = vmatpush1.msra.mxu0 0.0
        %447 = vmatprep.subr.mxu0 0.0
        %448 = vmatpush1.msra.mxu0 0.0
        %449 = vmatprep.subr.mxu0 0.0
        %450 = vmatpush1.msra.mxu0 0.0
        %451 = vmatprep.subr.mxu0 0.0
        %452 = vmatpush1.msra.mxu0 0.0
        %453 = vmatprep.subr.mxu0 0.0
        %454 = vmatpush1.msra.mxu0 0.0
        %455 = vmatprep.subr.mxu0 0.0
        %456 = vmatpush1.msra.mxu0 0.0
        %457 = vmatprep.subr.mxu0 0.0
        %458 = vmatpush1.msra.mxu0 0.0
        %459 = vmatprep.subr.mxu0 0.0
        %460 = vmatpush1.msra.mxu0 0.0
        %461 = vmatprep.subr.mxu0 0.0
        %462 = vmatpush1.msra.mxu0 0.0
        %463 = vmatprep.subr.mxu0 0.0
        %464 = vmatpush1.msra.mxu0 0.0
        %465 = vmatprep.subr.mxu0 0.0
        %466 = vmatpush1.msra.mxu0 0.0
        %467 = vmatprep.subr.mxu0 0.0
        %468 = vmatpush1.msra.mxu0 0.0
        %469 = vmatprep.subr.mxu0 0.0
        %470 = vmatpush1.msra.mxu0 0.0
        %471 = vmatprep.subr.mxu0 0.0
        %472 = vmatpush1.msra.mxu0 0.0
        %473 = vmatprep.subr.mxu0 0.0
        %474 = vmatpush1.msra.mxu0 0.0
        %475 = vmatprep.subr.mxu0 0.0
        %476 = vmatpush1.msra.mxu0 0.0
        %477 = vmatprep.mubr.f32.mxu0 0.0
        %478 = vmatmul.mubr.f32.gmra.mrb[0].mxu0 %v400
        %v479 = vpop.f32.mrb[0].mxu0
        %v480 = vadd.f32 %v384, %v479
        %v481 = vpop.f32.mrb[0].mxu0
        %v482 = vadd.f32 %v384, %v481
        %483 = vmatprep.mubr.f32.mxu0 0.0
        %484 = vmatmul.mubr.f32.gmra.mrb[0].mxu0 %v403
        %v485 = vpop.f32.mrb[0].mxu0
        %v486 = vadd.f32 %v389, %v485
        %v487 = vpop.f32.mrb[0].mxu0
        %v488 = vadd.f32 %v389, %v487
        %489 = vmatprep.mubr.f32.mxu0 0.0
        %490 = vmatmul.mubr.f32.gmra.mrb[0].mxu0 %v406
        %v491 = vpop.f32.mrb[0].mxu0
        %v492 = vadd.f32 %v394, %v491
        %v493 = vpop.f32.mrb[0].mxu0
        %v494 = vadd.f32 %v394, %v493
        %495 = vdwg.mxu0
        %496 = vrot.lane.b32.xlu0 %v480, 17
        %v497 = vpop.permute.xlu0 %496
        %498 = vrot.lane.b32.xlu0 %v486, 17
        %v499 = vpop.permute.xlu0 %498
        %500 = vrot.lane.b32.xlu0 %v492, 17
        %v501 = vpop.permute.xlu0 %500
        %502 = vrot.lane.b32.xlu0 %v482, 17
        %v503 = vpop.permute.xlu0 %502
        %504 = vrot.lane.b32.xlu0 %v488, 17
        %v505 = vpop.permute.xlu0 %504
        %506 = vrot.lane.b32.xlu0 %v494, 17
        %v507 = vpop.permute.xlu0 %506
        %v508 = vlaneseq
        %v509 = vand.u32 %v508, 127
        %vm510 = vcmp.lt.s32.totalorder %v509, 17
        %v511 = vsel %vm510, %v497, %v503
        %v512 = vsel %vm510, %v499, %v505
        %v513 = vsel %vm510, %v501, %v507
        %v514 = vsel %vm510, %v503, %v497
        %v515 = vsel %vm510, %v505, %v499
        %v516 = vsel %vm510, %v507, %v501
        %v517 = vadd.s32 %v372, 4294967295
        %vm518 = vcmp.ge.s32.totalorder %v517, 0
        %vm519 = vcmp.lt.s32.totalorder %v517, 16
        %vm520 = vmand %vm518, %vm519
        %v521 = vadd.s32 %v373, 4294967295
        %vm522 = vcmp.ge.s32.totalorder %v521, 0
        %vm523 = vmand %vm520, %vm522
        %vm524 = vcmp.lt.s32.totalorder %v521, 16
        %vm525 = vmand %vm523, %vm524
        %v526 = vsel %vm525, 1, 0
        %v527 = vlaneseq
        %v528 = vshrl.u32 %v527, 7
        %v529 = vsub.s32 0, %v528
        %v530 = vrot.slane %v526, %v529
        %v531 = vlaneseq
        %v532 = vshrl.u32 %v531, 7
        %v533 = vsub.s32 1, %v532
        %v534 = vrot.slane %v526, %v533
        %vm535 = vcmp.eq.s32.totalorder %v530, 1
        %vm536 = vcmp.eq.s32.totalorder %v534, 1
        %v537 = vsel %vm535, %v514, 0.0
        %v538 = vsel %vm536, %v511, 0.0
        %v539 = vsel %vm535, %v515, 0.0
        %v540 = vsel %vm536, %v512, 0.0
        %v541 = vsel %vm535, %v516, 0.0
        %v542 = vsel %vm536, %v513, 0.0
        %v543 = vld [vmem:[%s5] sm:$0xff]
        %v544 = vld [vmem:[%s5 + $0x8] sm:$0xff]
        %v545 = vld [vmem:[%s5 + $0x10] sm:$0xff]
        %547 = vset.pattern.permute.xlu0 0
        %548 = vperm.xlu0 %547, %v543
        %v549 = vpop.permute.xlu0 %548
        %552 = vset.pattern.permute.xlu0 0
        %553 = vperm.xlu0 %552, %v544
        %v554 = vpop.permute.xlu0 %553
        %557 = vset.pattern.permute.xlu0 0
        %558 = vperm.xlu0 %557, %v545
        %v559 = vpop.permute.xlu0 %558
        %v561 = vmul.f32 %v537, %v549
        %v562 = vmul.f32 %v538, %v549
        %v563 = vmul.f32 %v539, %v554
        %v564 = vmul.f32 %v540, %v554
        %v565 = vmul.f32 %v541, %v559
        %v566 = vmul.f32 %v542, %v559
        %v567 = vadd.f32 %v561, 0.0
        %v568 = vadd.f32 %v562, 0.0
        %v569 = vadd.f32 %v563, 0.0
        %v570 = vadd.f32 %v564, 0.0
        %v571 = vadd.f32 %v565, 0.0
        %v572 = vadd.f32 %v566, 0.0
        %573 = vrot.lane.b32.xlu0 %v480, 16
        %v574 = vpop.permute.xlu0 %573
        %575 = vrot.lane.b32.xlu0 %v486, 16
        %v576 = vpop.permute.xlu0 %575
        %577 = vrot.lane.b32.xlu0 %v492, 16
        %v578 = vpop.permute.xlu0 %577
        %579 = vrot.lane.b32.xlu0 %v482, 16
        %v580 = vpop.permute.xlu0 %579
        %581 = vrot.lane.b32.xlu0 %v488, 16
        %v582 = vpop.permute.xlu0 %581
        %583 = vrot.lane.b32.xlu0 %v494, 16
        %v584 = vpop.permute.xlu0 %583
        %vm585 = vcmp.lt.s32.totalorder %v509, 16
        %v586 = vsel %vm585, %v574, %v580
        %v587 = vsel %vm585, %v576, %v582
        %v588 = vsel %vm585, %v578, %v584
        %v589 = vsel %vm585, %v580, %v574
        %v590 = vsel %vm585, %v582, %v576
        %v591 = vsel %vm585, %v584, %v578
        %vm592 = vcmp.ge.s32.totalorder %v373, 0
        %vm593 = vmand %vm520, %vm592
        %vm594 = vcmp.lt.s32.totalorder %v373, 16
        %vm595 = vmand %vm593, %vm594
        %v596 = vsel %vm595, 1, 0
        %v597 = vlaneseq
        %v598 = vshrl.u32 %v597, 7
        %v599 = vsub.s32 0, %v598
        %v600 = vrot.slane %v596, %v599
        %v601 = vlaneseq
        %v602 = vshrl.u32 %v601, 7
        %v603 = vsub.s32 1, %v602
        %v604 = vrot.slane %v596, %v603
        %vm605 = vcmp.eq.s32.totalorder %v600, 1
        %vm606 = vcmp.eq.s32.totalorder %v604, 1
        %v607 = vsel %vm605, %v589, 0.0
        %v608 = vsel %vm606, %v586, 0.0
        %v609 = vsel %vm605, %v590, 0.0
        %v610 = vsel %vm606, %v587, 0.0
        %v611 = vsel %vm605, %v591, 0.0
        %v612 = vsel %vm606, %v588, 0.0
        %s613 = scalar_lea.vmem %s5, 24
        %v614 = vld [vmem:[%s613] sm:$0xff]
        %v615 = vld [vmem:[%s613 + $0x8] sm:$0xff]
        %v616 = vld [vmem:[%s613 + $0x10] sm:$0xff]
        %618 = vset.pattern.permute.xlu0 0
        %619 = vperm.xlu0 %618, %v614
        %v620 = vpop.permute.xlu0 %619
        %623 = vset.pattern.permute.xlu0 0
        %624 = vperm.xlu0 %623, %v615
        %v625 = vpop.permute.xlu0 %624
        %628 = vset.pattern.permute.xlu0 0
        %629 = vperm.xlu0 %628, %v616
        %v630 = vpop.permute.xlu0 %629
        %v632 = vmul.f32 %v607, %v620
        %v633 = vmul.f32 %v608, %v620
        %v634 = vmul.f32 %v609, %v625
        %v635 = vmul.f32 %v610, %v625
        %v636 = vmul.f32 %v611, %v630
        %v637 = vmul.f32 %v612, %v630
        %v638 = vadd.f32 %v567, %v632
        %v639 = vadd.f32 %v568, %v633
        %v640 = vadd.f32 %v569, %v634
        %v641 = vadd.f32 %v570, %v635
        %v642 = vadd.f32 %v571, %v636
        %v643 = vadd.f32 %v572, %v637
        %644 = vrot.lane.b32.xlu0 %v480, 15
        %v645 = vpop.permute.xlu0 %644
        %646 = vrot.lane.b32.xlu0 %v486, 15
        %v647 = vpop.permute.xlu0 %646
        %648 = vrot.lane.b32.xlu0 %v492, 15
        %v649 = vpop.permute.xlu0 %648
        %650 = vrot.lane.b32.xlu0 %v482, 15
        %v651 = vpop.permute.xlu0 %650
        %652 = vrot.lane.b32.xlu0 %v488, 15
        %v653 = vpop.permute.xlu0 %652
        %654 = vrot.lane.b32.xlu0 %v494, 15
        %v655 = vpop.permute.xlu0 %654
        %vm656 = vcmp.lt.s32.totalorder %v509, 15
        %v657 = vsel %vm656, %v645, %v651
        %v658 = vsel %vm656, %v647, %v653
        %v659 = vsel %vm656, %v649, %v655
        %v660 = vsel %vm656, %v651, %v645
        %v661 = vsel %vm656, %v653, %v647
        %v662 = vsel %vm656, %v655, %v649
        %v663 = vadd.s32 %v373, 1
        %vm664 = vcmp.ge.s32.totalorder %v663, 0
        %vm665 = vmand %vm520, %vm664
        %vm666 = vcmp.lt.s32.totalorder %v663, 16
        %vm667 = vmand %vm665, %vm666
        %v668 = vsel %vm667, 1, 0
        %v669 = vlaneseq
        %v670 = vshrl.u32 %v669, 7
        %v671 = vsub.s32 0, %v670
        %v672 = vrot.slane %v668, %v671
        %v673 = vlaneseq
        %v674 = vshrl.u32 %v673, 7
        %v675 = vsub.s32 1, %v674
        %v676 = vrot.slane %v668, %v675
        %vm677 = vcmp.eq.s32.totalorder %v672, 1
        %vm678 = vcmp.eq.s32.totalorder %v676, 1
        %v679 = vsel %vm677, %v660, 0.0
        %v680 = vsel %vm678, %v657, 0.0
        %v681 = vsel %vm677, %v661, 0.0
        %v682 = vsel %vm678, %v658, 0.0
        %v683 = vsel %vm677, %v662, 0.0
        %v684 = vsel %vm678, %v659, 0.0
        %s685 = scalar_lea.vmem %s5, 48
        %v686 = vld [vmem:[%s685] sm:$0xff]
        %v687 = vld [vmem:[%s685 + $0x8] sm:$0xff]
        %v688 = vld [vmem:[%s685 + $0x10] sm:$0xff]
        %690 = vset.pattern.permute.xlu0 0
        %691 = vperm.xlu0 %690, %v686
        %v692 = vpop.permute.xlu0 %691
        %695 = vset.pattern.permute.xlu0 0
        %696 = vperm.xlu0 %695, %v687
        %v697 = vpop.permute.xlu0 %696
        %700 = vset.pattern.permute.xlu0 0
        %701 = vperm.xlu0 %700, %v688
        %v702 = vpop.permute.xlu0 %701
        %v704 = vmul.f32 %v679, %v692
        %v705 = vmul.f32 %v680, %v692
        %v706 = vmul.f32 %v681, %v697
        %v707 = vmul.f32 %v682, %v697
        %v708 = vmul.f32 %v683, %v702
        %v709 = vmul.f32 %v684, %v702
        %v710 = vadd.f32 %v638, %v704
        %v711 = vadd.f32 %v639, %v705
        %v712 = vadd.f32 %v640, %v706
        %v713 = vadd.f32 %v641, %v707
        %v714 = vadd.f32 %v642, %v708
        %v715 = vadd.f32 %v643, %v709
        %716 = vrot.lane.b32.xlu0 %v480, 1
        %v717 = vpop.permute.xlu0 %716
        %718 = vrot.lane.b32.xlu0 %v486, 1
        %v719 = vpop.permute.xlu0 %718
        %720 = vrot.lane.b32.xlu0 %v492, 1
        %v721 = vpop.permute.xlu0 %720
        %722 = vrot.lane.b32.xlu0 %v482, 1
        %v723 = vpop.permute.xlu0 %722
        %724 = vrot.lane.b32.xlu0 %v488, 1
        %v725 = vpop.permute.xlu0 %724
        %726 = vrot.lane.b32.xlu0 %v494, 1
        %v727 = vpop.permute.xlu0 %726
        %vm728 = vcmp.lt.s32.totalorder %v509, 1
        %v729 = vsel %vm728, %v717, %v723
        %v730 = vsel %vm728, %v719, %v725
        %v731 = vsel %vm728, %v721, %v727
        %v732 = vsel %vm728, %v723, %v717
        %v733 = vsel %vm728, %v725, %v719
        %v734 = vsel %vm728, %v727, %v721
        %vm735 = vcmp.ge.s32.totalorder %v372, 0
        %vm736 = vcmp.lt.s32.totalorder %v372, 16
        %vm737 = vmand %vm735, %vm736
        %vm738 = vmand %vm737, %vm522
        %vm739 = vmand %vm738, %vm524
        %v740 = vsel %vm739, 1, 0
        %v741 = vlaneseq
        %v742 = vshrl.u32 %v741, 7
        %v743 = vsub.s32 0, %v742
        %v744 = vrot.slane %v740, %v743
        %v745 = vlaneseq
        %v746 = vshrl.u32 %v745, 7
        %v747 = vsub.s32 1, %v746
        %v748 = vrot.slane %v740, %v747
        %vm749 = vcmp.eq.s32.totalorder %v744, 1
        %vm750 = vcmp.eq.s32.totalorder %v748, 1
        %v751 = vsel %vm749, %v732, 0.0
        %v752 = vsel %vm750, %v729, 0.0
        %v753 = vsel %vm749, %v733, 0.0
        %v754 = vsel %vm750, %v730, 0.0
        %v755 = vsel %vm749, %v734, 0.0
        %v756 = vsel %vm750, %v731, 0.0
        %s757 = scalar_lea.vmem %s5, 72
        %v758 = vld [vmem:[%s757] sm:$0xff]
        %v759 = vld [vmem:[%s757 + $0x8] sm:$0xff]
        %v760 = vld [vmem:[%s757 + $0x10] sm:$0xff]
        %762 = vset.pattern.permute.xlu0 0
        %763 = vperm.xlu0 %762, %v758
        %v764 = vpop.permute.xlu0 %763
        %767 = vset.pattern.permute.xlu0 0
        %768 = vperm.xlu0 %767, %v759
        %v769 = vpop.permute.xlu0 %768
        %772 = vset.pattern.permute.xlu0 0
        %773 = vperm.xlu0 %772, %v760
        %v774 = vpop.permute.xlu0 %773
        %v776 = vmul.f32 %v751, %v764
        %v777 = vmul.f32 %v752, %v764
        %v778 = vmul.f32 %v753, %v769
        %v779 = vmul.f32 %v754, %v769
        %v780 = vmul.f32 %v755, %v774
        %v781 = vmul.f32 %v756, %v774
        %v782 = vadd.f32 %v710, %v776
        %v783 = vadd.f32 %v711, %v777
        %v784 = vadd.f32 %v712, %v778
        %v785 = vadd.f32 %v713, %v779
        %v786 = vadd.f32 %v714, %v780
        %v787 = vadd.f32 %v715, %v781
        %vm788 = vmand %vm737, %vm592
        %vm789 = vmand %vm788, %vm594
        %v790 = vsel %vm789, 1, 0
        %v791 = vlaneseq
        %v792 = vshrl.u32 %v791, 7
        %v793 = vsub.s32 0, %v792
        %v794 = vrot.slane %v790, %v793
        %v795 = vlaneseq
        %v796 = vshrl.u32 %v795, 7
        %v797 = vsub.s32 1, %v796
        %v798 = vrot.slane %v790, %v797
        %vm799 = vcmp.eq.s32.totalorder %v794, 1
        %vm800 = vcmp.eq.s32.totalorder %v798, 1
        %v801 = vsel %vm799, %v480, 0.0
        %v802 = vsel %vm800, %v482, 0.0
        %v803 = vsel %vm799, %v486, 0.0
        %v804 = vsel %vm800, %v488, 0.0
        %v805 = vsel %vm799, %v492, 0.0
        %v806 = vsel %vm800, %v494, 0.0
        %s807 = scalar_lea.vmem %s5, 96
        %v808 = vld [vmem:[%s807] sm:$0xff]
        %v809 = vld [vmem:[%s807 + $0x8] sm:$0xff]
        %v810 = vld [vmem:[%s807 + $0x10] sm:$0xff]
        %812 = vset.pattern.permute.xlu0 0
        %813 = vperm.xlu0 %812, %v808
        %v814 = vpop.permute.xlu0 %813
        %817 = vset.pattern.permute.xlu0 0
        %818 = vperm.xlu0 %817, %v809
        %v819 = vpop.permute.xlu0 %818
        %822 = vset.pattern.permute.xlu0 0
        %823 = vperm.xlu0 %822, %v810
        %v824 = vpop.permute.xlu0 %823
        %v826 = vmul.f32 %v801, %v814
        %v827 = vmul.f32 %v802, %v814
        %v828 = vmul.f32 %v803, %v819
        %v829 = vmul.f32 %v804, %v819
        %v830 = vmul.f32 %v805, %v824
        %v831 = vmul.f32 %v806, %v824
        %v832 = vadd.f32 %v782, %v826
        %v833 = vadd.f32 %v783, %v827
        %v834 = vadd.f32 %v784, %v828
        %v835 = vadd.f32 %v785, %v829
        %v836 = vadd.f32 %v786, %v830
        %v837 = vadd.f32 %v787, %v831
        %838 = vrot.lane.b32.xlu0 %v480, 127
        %v839 = vpop.permute.xlu0 %838
        %840 = vrot.lane.b32.xlu0 %v486, 127
        %v841 = vpop.permute.xlu0 %840
        %842 = vrot.lane.b32.xlu0 %v492, 127
        %v843 = vpop.permute.xlu0 %842
        %844 = vrot.lane.b32.xlu0 %v482, 127
        %v845 = vpop.permute.xlu0 %844
        %846 = vrot.lane.b32.xlu0 %v488, 127
        %v847 = vpop.permute.xlu0 %846
        %848 = vrot.lane.b32.xlu0 %v494, 127
        %v849 = vpop.permute.xlu0 %848
        %vm850 = vcmp.lt.s32.totalorder %v509, 127
        %v851 = vsel %vm850, %v839, %v845
        %v852 = vsel %vm850, %v841, %v847
        %v853 = vsel %vm850, %v843, %v849
        %v854 = vsel %vm850, %v845, %v839
        %v855 = vsel %vm850, %v847, %v841
        %v856 = vsel %vm850, %v849, %v843
        %vm857 = vmand %vm737, %vm664
        %vm858 = vmand %vm857, %vm666
        %v859 = vsel %vm858, 1, 0
        %v860 = vlaneseq
        %v861 = vshrl.u32 %v860, 7
        %v862 = vsub.s32 0, %v861
        %v863 = vrot.slane %v859, %v862
        %v864 = vlaneseq
        %v865 = vshrl.u32 %v864, 7
        %v866 = vsub.s32 1, %v865
        %v867 = vrot.slane %v859, %v866
        %vm868 = vcmp.eq.s32.totalorder %v863, 1
        %vm869 = vcmp.eq.s32.totalorder %v867, 1
        %v870 = vsel %vm868, %v851, 0.0
        %v871 = vsel %vm869, %v854, 0.0
        %v872 = vsel %vm868, %v852, 0.0
        %v873 = vsel %vm869, %v855, 0.0
        %v874 = vsel %vm868, %v853, 0.0
        %v875 = vsel %vm869, %v856, 0.0
        %s876 = scalar_lea.vmem %s5, 120
        %v877 = vld [vmem:[%s876] sm:$0xff]
        %v878 = vld [vmem:[%s876 + $0x8] sm:$0xff]
        %v879 = vld [vmem:[%s876 + $0x10] sm:$0xff]
        %881 = vset.pattern.permute.xlu0 0
        %882 = vperm.xlu0 %881, %v877
        %v883 = vpop.permute.xlu0 %882
        %886 = vset.pattern.permute.xlu0 0
        %887 = vperm.xlu0 %886, %v878
        %v888 = vpop.permute.xlu0 %887
        %891 = vset.pattern.permute.xlu0 0
        %892 = vperm.xlu0 %891, %v879
        %v893 = vpop.permute.xlu0 %892
        %v895 = vmul.f32 %v870, %v883
        %v896 = vmul.f32 %v871, %v883
        %v897 = vmul.f32 %v872, %v888
        %v898 = vmul.f32 %v873, %v888
        %v899 = vmul.f32 %v874, %v893
        %v900 = vmul.f32 %v875, %v893
        %v901 = vadd.f32 %v832, %v895
        %v902 = vadd.f32 %v833, %v896
        %v903 = vadd.f32 %v834, %v897
        %v904 = vadd.f32 %v835, %v898
        %v905 = vadd.f32 %v836, %v899
        %v906 = vadd.f32 %v837, %v900
        %907 = vrot.lane.b32.xlu0 %v480, 113
        %v908 = vpop.permute.xlu0 %907
        %909 = vrot.lane.b32.xlu0 %v486, 113
        %v910 = vpop.permute.xlu0 %909
        %911 = vrot.lane.b32.xlu0 %v492, 113
        %v912 = vpop.permute.xlu0 %911
        %913 = vrot.lane.b32.xlu0 %v482, 113
        %v914 = vpop.permute.xlu0 %913
        %915 = vrot.lane.b32.xlu0 %v488, 113
        %v916 = vpop.permute.xlu0 %915
        %917 = vrot.lane.b32.xlu0 %v494, 113
        %v918 = vpop.permute.xlu0 %917
        %vm919 = vcmp.lt.s32.totalorder %v509, 113
        %v920 = vsel %vm919, %v908, %v914
        %v921 = vsel %vm919, %v910, %v916
        %v922 = vsel %vm919, %v912, %v918
        %v923 = vsel %vm919, %v914, %v908
        %v924 = vsel %vm919, %v916, %v910
        %v925 = vsel %vm919, %v918, %v912
        %v926 = vadd.s32 %v372, 1
        %vm927 = vcmp.ge.s32.totalorder %v926, 0
        %vm928 = vcmp.lt.s32.totalorder %v926, 16
        %vm929 = vmand %vm927, %vm928
        %vm930 = vmand %vm929, %vm522
        %vm931 = vmand %vm930, %vm524
        %v932 = vsel %vm931, 1, 0
        %v933 = vlaneseq
        %v934 = vshrl.u32 %v933, 7
        %v935 = vsub.s32 0, %v934
        %v936 = vrot.slane %v932, %v935
        %v937 = vlaneseq
        %v938 = vshrl.u32 %v937, 7
        %v939 = vsub.s32 1, %v938
        %v940 = vrot.slane %v932, %v939
        %vm941 = vcmp.eq.s32.totalorder %v936, 1
        %vm942 = vcmp.eq.s32.totalorder %v940, 1
        %v943 = vsel %vm941, %v920, 0.0
        %v944 = vsel %vm942, %v923, 0.0
        %v945 = vsel %vm941, %v921, 0.0
        %v946 = vsel %vm942, %v924, 0.0
        %v947 = vsel %vm941, %v922, 0.0
        %v948 = vsel %vm942, %v925, 0.0
        %s949 = scalar_lea.vmem %s5, 144
        %v950 = vld [vmem:[%s949] sm:$0xff]
        %v951 = vld [vmem:[%s949 + $0x8] sm:$0xff]
        %v952 = vld [vmem:[%s949 + $0x10] sm:$0xff]
        %954 = vset.pattern.permute.xlu0 0
        %955 = vperm.xlu0 %954, %v950
        %v956 = vpop.permute.xlu0 %955
        %959 = vset.pattern.permute.xlu0 0
        %960 = vperm.xlu0 %959, %v951
        %v961 = vpop.permute.xlu0 %960
        %964 = vset.pattern.permute.xlu0 0
        %965 = vperm.xlu0 %964, %v952
        %v966 = vpop.permute.xlu0 %965
        %v968 = vmul.f32 %v943, %v956
        %v969 = vmul.f32 %v944, %v956
        %v970 = vmul.f32 %v945, %v961
        %v971 = vmul.f32 %v946, %v961
        %v972 = vmul.f32 %v947, %v966
        %v973 = vmul.f32 %v948, %v966
        %v974 = vadd.f32 %v901, %v968
        %v975 = vadd.f32 %v902, %v969
        %v976 = vadd.f32 %v903, %v970
        %v977 = vadd.f32 %v904, %v971
        %v978 = vadd.f32 %v905, %v972
        %v979 = vadd.f32 %v906, %v973
        %980 = vrot.lane.b32.xlu0 %v480, 112
        %v981 = vpop.permute.xlu0 %980
        %982 = vrot.lane.b32.xlu0 %v486, 112
        %v983 = vpop.permute.xlu0 %982
        %984 = vrot.lane.b32.xlu0 %v492, 112
        %v985 = vpop.permute.xlu0 %984
        %986 = vrot.lane.b32.xlu0 %v482, 112
        %v987 = vpop.permute.xlu0 %986
        %988 = vrot.lane.b32.xlu0 %v488, 112
        %v989 = vpop.permute.xlu0 %988
        %990 = vrot.lane.b32.xlu0 %v494, 112
        %v991 = vpop.permute.xlu0 %990
        %vm992 = vcmp.lt.s32.totalorder %v509, 112
        %v993 = vsel %vm992, %v981, %v987
        %v994 = vsel %vm992, %v983, %v989
        %v995 = vsel %vm992, %v985, %v991
        %v996 = vsel %vm992, %v987, %v981
        %v997 = vsel %vm992, %v989, %v983
        %v998 = vsel %vm992, %v991, %v985
        %vm999 = vmand %vm929, %vm592
        %vm1000 = vmand %vm999, %vm594
        %v1001 = vsel %vm1000, 1, 0
        %v1002 = vlaneseq
        %v1003 = vshrl.u32 %v1002, 7
        %v1004 = vsub.s32 0, %v1003
        %v1005 = vrot.slane %v1001, %v1004
        %v1006 = vlaneseq
        %v1007 = vshrl.u32 %v1006, 7
        %v1008 = vsub.s32 1, %v1007
        %v1009 = vrot.slane %v1001, %v1008
        %vm1010 = vcmp.eq.s32.totalorder %v1005, 1
        %vm1011 = vcmp.eq.s32.totalorder %v1009, 1
        %v1012 = vsel %vm1010, %v993, 0.0
        %v1013 = vsel %vm1011, %v996, 0.0
        %v1014 = vsel %vm1010, %v994, 0.0
        %v1015 = vsel %vm1011, %v997, 0.0
        %v1016 = vsel %vm1010, %v995, 0.0
        %v1017 = vsel %vm1011, %v998, 0.0
        %s1018 = scalar_lea.vmem %s5, 168
        %v1019 = vld [vmem:[%s1018] sm:$0xff]
        %v1020 = vld [vmem:[%s1018 + $0x8] sm:$0xff]
        %v1021 = vld [vmem:[%s1018 + $0x10] sm:$0xff]
        %1023 = vset.pattern.permute.xlu0 0
        %1024 = vperm.xlu0 %1023, %v1019
        %v1025 = vpop.permute.xlu0 %1024
        %1028 = vset.pattern.permute.xlu0 0
        %1029 = vperm.xlu0 %1028, %v1020
        %v1030 = vpop.permute.xlu0 %1029
        %1033 = vset.pattern.permute.xlu0 0
        %1034 = vperm.xlu0 %1033, %v1021
        %v1035 = vpop.permute.xlu0 %1034
        %v1037 = vmul.f32 %v1012, %v1025
        %v1038 = vmul.f32 %v1013, %v1025
        %v1039 = vmul.f32 %v1014, %v1030
        %v1040 = vmul.f32 %v1015, %v1030
        %v1041 = vmul.f32 %v1016, %v1035
        %v1042 = vmul.f32 %v1017, %v1035
        %v1043 = vadd.f32 %v974, %v1037
        %v1044 = vadd.f32 %v975, %v1038
        %v1045 = vadd.f32 %v976, %v1039
        %v1046 = vadd.f32 %v977, %v1040
        %v1047 = vadd.f32 %v978, %v1041
        %v1048 = vadd.f32 %v979, %v1042
        %1049 = vrot.lane.b32.xlu0 %v480, 111
        %v1050 = vpop.permute.xlu0 %1049
        %1051 = vrot.lane.b32.xlu0 %v486, 111
        %v1052 = vpop.permute.xlu0 %1051
        %1053 = vrot.lane.b32.xlu0 %v492, 111
        %v1054 = vpop.permute.xlu0 %1053
        %1055 = vrot.lane.b32.xlu0 %v482, 111
        %v1056 = vpop.permute.xlu0 %1055
        %1057 = vrot.lane.b32.xlu0 %v488, 111
        %v1058 = vpop.permute.xlu0 %1057
        %1059 = vrot.lane.b32.xlu0 %v494, 111
        %v1060 = vpop.permute.xlu0 %1059
        %vm1061 = vcmp.lt.s32.totalorder %v509, 111
        %v1062 = vsel %vm1061, %v1050, %v1056
        %v1063 = vsel %vm1061, %v1052, %v1058
        %v1064 = vsel %vm1061, %v1054, %v1060
        %v1065 = vsel %vm1061, %v1056, %v1050
        %v1066 = vsel %vm1061, %v1058, %v1052
        %v1067 = vsel %vm1061, %v1060, %v1054
        %vm1068 = vmand %vm929, %vm664
        %vm1069 = vmand %vm1068, %vm666
        %v1070 = vsel %vm1069, 1, 0
        %v1071 = vlaneseq
        %v1072 = vshrl.u32 %v1071, 7
        %v1073 = vsub.s32 0, %v1072
        %v1074 = vrot.slane %v1070, %v1073
        %v1075 = vlaneseq
        %v1076 = vshrl.u32 %v1075, 7
        %v1077 = vsub.s32 1, %v1076
        %v1078 = vrot.slane %v1070, %v1077
        %vm1079 = vcmp.eq.s32.totalorder %v1074, 1
        %vm1080 = vcmp.eq.s32.totalorder %v1078, 1
        %v1081 = vsel %vm1079, %v1062, 0.0
        %v1082 = vsel %vm1080, %v1065, 0.0
        %v1083 = vsel %vm1079, %v1063, 0.0
        %v1084 = vsel %vm1080, %v1066, 0.0
        %v1085 = vsel %vm1079, %v1064, 0.0
        %v1086 = vsel %vm1080, %v1067, 0.0
        %s1087 = scalar_lea.vmem %s5, 192
        %v1088 = vld [vmem:[%s1087] sm:$0xff]
        %v1089 = vld [vmem:[%s1087 + $0x8] sm:$0xff]
        %v1090 = vld [vmem:[%s1087 + $0x10] sm:$0xff]
        %1092 = vset.pattern.permute.xlu0 0
        %1093 = vperm.xlu0 %1092, %v1088
        %v1094 = vpop.permute.xlu0 %1093
        %1097 = vset.pattern.permute.xlu0 0
        %1098 = vperm.xlu0 %1097, %v1089
        %v1099 = vpop.permute.xlu0 %1098
        %1102 = vset.pattern.permute.xlu0 0
        %1103 = vperm.xlu0 %1102, %v1090
        %v1104 = vpop.permute.xlu0 %1103
        %v1106 = vmul.f32 %v1081, %v1094
        %v1107 = vmul.f32 %v1082, %v1094
        %v1108 = vmul.f32 %v1083, %v1099
        %v1109 = vmul.f32 %v1084, %v1099
        %v1110 = vmul.f32 %v1085, %v1104
        %v1111 = vmul.f32 %v1086, %v1104
        %v1112 = vadd.f32 %v1043, %v1106
        %v1113 = vadd.f32 %v1044, %v1107
        %v1114 = vadd.f32 %v1045, %v1108
        %v1115 = vadd.f32 %v1046, %v1109
        %v1116 = vadd.f32 %v1047, %v1110
        %v1117 = vadd.f32 %v1048, %v1111
        %v1118 = vld [vmem:[%s6] sm:$0xff]
        %v1119 = vld [vmem:[%s6 + $0x8] sm:$0xff]
        %v1120 = vld [vmem:[%s6 + $0x10] sm:$0xff]
        %1122 = vset.pattern.permute.xlu0 0
        %1123 = vperm.xlu0 %1122, %v1118
        %v1124 = vpop.permute.xlu0 %1123
        %1127 = vset.pattern.permute.xlu0 0
        %1128 = vperm.xlu0 %1127, %v1119
        %v1129 = vpop.permute.xlu0 %1128
        %1132 = vset.pattern.permute.xlu0 0
        %1133 = vperm.xlu0 %1132, %v1120
        %v1134 = vpop.permute.xlu0 %1133
        %v1136 = vadd.f32 %v1112, %v1124
        %v1137 = vadd.f32 %v1113, %v1124
        %v1138 = vadd.f32 %v1114, %v1129
        %v1139 = vadd.f32 %v1115, %v1129
        %v1140 = vadd.f32 %v1116, %v1134
        %v1141 = vadd.f32 %v1117, %v1134
        %v1142 = vmul.f32 %v1136, 0.5
        %v1143 = vmul.f32 %v1137, 0.5
        %v1144 = vmul.f32 %v1136, 0.70710677
        %v1145 = vmul.f32 %v1137, 0.70710677
        %v1146 = verf.f32.pop %v1144
        %v1147 = verf.f32.pop %v1145
        %v1148 = vadd.f32 %v1146, 1.0
        %v1149 = vadd.f32 %v1147, 1.0
        %v1150 = vmul.f32 %v1142, %v1148
        %v1151 = vmul.f32 %v1143, %v1149
        %v1152 = vxor.u32 %v1150, 2147483648
        %v1153 = vxor.u32 %v1151, 2147483648
        %v1154 = vmul.f32 %v1152, 1.442695
        %v1155 = vpow.pop %v1154
        %v1156 = vmul.f32 %v1153, 1.442695
        %v1157 = vpow.pop %v1156
        %v1158 = vadd.f32 %v1155, 1.0
        %v1159 = vadd.f32 %v1157, 1.0
        %v1160 = vrcp.pop %v1158
        %v1161 = vmul.f32 1.0, %v1160
        %v1162 = vrcp.pop %v1159
        %v1163 = vmul.f32 1.0, %v1162
        %v1164 = vmul.f32 %v1138, 0.5
        %v1165 = vmul.f32 %v1139, 0.5
        %v1166 = vmul.f32 %v1138, 0.70710677
        %v1167 = vmul.f32 %v1139, 0.70710677
        %v1168 = verf.f32.pop %v1166
        %v1169 = verf.f32.pop %v1167
        %v1170 = vadd.f32 %v1168, 1.0
        %v1171 = vadd.f32 %v1169, 1.0
        %v1172 = vmul.f32 %v1164, %v1170
        %v1173 = vmul.f32 %v1165, %v1171
        %v1174 = vrot.slane %v1172, 4
        %v1175 = vadd.f32 %v1172, %v1174
        %v1176 = vrot.slane %v1175, 2
        %v1177 = vadd.f32 %v1175, %v1176
        %v1178 = vrot.slane %v1177, 1
        %v1179 = vadd.f32 %v1177, %v1178
        %v1180 = vrot.slane %v1173, 4
        %v1181 = vadd.f32 %v1173, %v1180
        %v1182 = vrot.slane %v1181, 2
        %v1183 = vadd.f32 %v1181, %v1182
        %v1184 = vrot.slane %v1183, 1
        %v1185 = vadd.f32 %v1183, %v1184
        %v1186 = vrcp.pop 8.0
        %v1187 = vmul.f32 %v1179, %v1186
        %v1188 = vmul.f32 %v1185, %v1186
        %v1189 = vrot.slane %v1172, 4
        %v1190 = vmax.f32 %v1172, %v1189
        %v1191 = vrot.slane %v1190, 2
        %v1192 = vmax.f32 %v1190, %v1191
        %v1193 = vrot.slane %v1192, 1
        %v1194 = vmax.f32 %v1192, %v1193
        %v1195 = vrot.slane %v1173, 4
        %v1196 = vmax.f32 %v1173, %v1195
        %v1197 = vrot.slane %v1196, 2
        %v1198 = vmax.f32 %v1196, %v1197
        %v1199 = vrot.slane %v1198, 1
        %v1200 = vmax.f32 %v1198, %v1199
        %s1201 = sld [smem:[#allocation2]]
        %1202 = vrot.lane.b32.xlu0 %v1187, 51
        %v1203 = vpop.permute.xlu0 %1202
        %1204 = vrot.lane.b32.xlu0 %v1188, 51
        %v1205 = vpop.permute.xlu0 %1204
        %vm1206 = vcmp.lt.s32.totalorder %v509, 51
        %v1207 = vsel %vm1206, %v1203, %v1205
        %v1208 = vsel %vm1206, %v1205, %v1203
        %v1209 = vadd.s32 %v372, 4294967293
        %vm1210 = vcmp.ge.s32.totalorder %v1209, 0
        %vm1211 = vcmp.lt.s32.totalorder %v1209, 16
        %vm1212 = vmand %vm1210, %vm1211
        %v1213 = vadd.s32 %v373, 4294967293
        %vm1214 = vcmp.ge.s32.totalorder %v1213, 0
        %vm1215 = vmand %vm1212, %vm1214
        %vm1216 = vcmp.lt.s32.totalorder %v1213, 16
        %vm1217 = vmand %vm1215, %vm1216
        %v1220 = vcombine.low %v1208, %v1207
        %v1222 = vunpack.c.l.s4 1966171168
        %v1223 = vunpack.c.0.s8 %v1222
        %v1224 = vlaneseq
        %v1225 = vshrl.u32 %v1224, 7
        %v1226 = vsub.s32 %v1223, %v1225
        %v1227 = vrot.slane %v1220, %v1226
        %v1229 = vunpack.c.l.s4 1966171168
        %v1230 = vunpack.c.0.s8 %v1229
        %v1231 = vlaneseq
        %v1232 = vshrl.u32 %v1231, 7
        %v1233 = vsub.s32 %v1230, %v1232
        %v1234 = vrot.slane %v1227, %v1233
        %v1236 = vsel %vm1217, %v1234, 0.0
        %v1237 = vstv %s1201
        %v1238 = vmul.f32 %v1237, %v1236
        %v1239 = vadd.f32 %v1238, 0.0
        %s1240 = sld [smem:[#allocation2 + $0x1]]
        %1241 = vrot.lane.b32.xlu0 %v1194, 51
        %v1242 = vpop.permute.xlu0 %1241
        %1243 = vrot.lane.b32.xlu0 %v1200, 51
        %v1244 = vpop.permute.xlu0 %1243
        %v1245 = vsel %vm1206, %v1242, %v1244
        %v1246 = vsel %vm1206, %v1244, %v1242
        %v1249 = vcombine.low %v1246, %v1245
        %v1251 = vunpack.c.l.s4 1966171168
        %v1252 = vunpack.c.0.s8 %v1251
        %v1253 = vlaneseq
        %v1254 = vshrl.u32 %v1253, 7
        %v1255 = vsub.s32 %v1252, %v1254
        %v1256 = vrot.slane %v1249, %v1255
        %v1258 = vunpack.c.l.s4 1966171168
        %v1259 = vunpack.c.0.s8 %v1258
        %v1260 = vlaneseq
        %v1261 = vshrl.u32 %v1260, 7
        %v1262 = vsub.s32 %v1259, %v1261
        %v1263 = vrot.slane %v1256, %v1262
        %v1265 = vsel %vm1217, %v1263, 0.0
        %v1266 = vstv %s1240
        %v1267 = vmul.f32 %v1266, %v1265
        %v1268 = vadd.f32 %v1239, %v1267
        %s1269 = sld [smem:[#allocation2 + $0x2]]
        %1270 = vrot.lane.b32.xlu0 %v1187, 50
        %v1271 = vpop.permute.xlu0 %1270
        %1272 = vrot.lane.b32.xlu0 %v1188, 50
        %v1273 = vpop.permute.xlu0 %1272
        %vm1274 = vcmp.lt.s32.totalorder %v509, 50
        %v1275 = vsel %vm1274, %v1271, %v1273
        %v1276 = vsel %vm1274, %v1273, %v1271
        %v1277 = vadd.s32 %v373, 4294967294
        %vm1278 = vcmp.ge.s32.totalorder %v1277, 0
        %vm1279 = vmand %vm1212, %vm1278
        %vm1280 = vcmp.lt.s32.totalorder %v1277, 16
        %vm1281 = vmand %vm1279, %vm1280
        %v1284 = vcombine.low %v1276, %v1275
        %v1286 = vunpack.c.l.s4 1966171168
        %v1287 = vunpack.c.0.s8 %v1286
        %v1288 = vlaneseq
        %v1289 = vshrl.u32 %v1288, 7
        %v1290 = vsub.s32 %v1287, %v1289
        %v1291 = vrot.slane %v1284, %v1290
        %v1293 = vunpack.c.l.s4 1966171168
        %v1294 = vunpack.c.0.s8 %v1293
        %v1295 = vlaneseq
        %v1296 = vshrl.u32 %v1295, 7
        %v1297 = vsub.s32 %v1294, %v1296
        %v1298 = vrot.slane %v1291, %v1297
        %v1300 = vsel %vm1281, %v1298, 0.0
        %v1301 = vstv %s1269
        %v1302 = vmul.f32 %v1301, %v1300
        %v1303 = vadd.f32 %v1268, %v1302
        %s1304 = sld [smem:[#allocation2 + $0x3]]
        %1305 = vrot.lane.b32.xlu0 %v1194, 50
        %v1306 = vpop.permute.xlu0 %1305
        %1307 = vrot.lane.b32.xlu0 %v1200, 50
        %v1308 = vpop.permute.xlu0 %1307
        %v1309 = vsel %vm1274, %v1306, %v1308
        %v1310 = vsel %vm1274, %v1308, %v1306
        %v1313 = vcombine.low %v1310, %v1309
        %v1315 = vunpack.c.l.s4 1966171168
        %v1316 = vunpack.c.0.s8 %v1315
        %v1317 = vlaneseq
        %v1318 = vshrl.u32 %v1317, 7
        %v1319 = vsub.s32 %v1316, %v1318
        %v1320 = vrot.slane %v1313, %v1319
        %v1322 = vunpack.c.l.s4 1966171168
        %v1323 = vunpack.c.0.s8 %v1322
        %v1324 = vlaneseq
        %v1325 = vshrl.u32 %v1324, 7
        %v1326 = vsub.s32 %v1323, %v1325
        %v1327 = vrot.slane %v1320, %v1326
        %v1329 = vsel %vm1281, %v1327, 0.0
        %v1330 = vstv %s1304
        %v1331 = vmul.f32 %v1330, %v1329
        %v1332 = vadd.f32 %v1303, %v1331
        %s1333 = sld [smem:[#allocation2 + $0x4]]
        %1334 = vrot.lane.b32.xlu0 %v1187, 49
        %v1335 = vpop.permute.xlu0 %1334
        %1336 = vrot.lane.b32.xlu0 %v1188, 49
        %v1337 = vpop.permute.xlu0 %1336
        %vm1338 = vcmp.lt.s32.totalorder %v509, 49
        %v1339 = vsel %vm1338, %v1335, %v1337
        %v1340 = vsel %vm1338, %v1337, %v1335
        %vm1341 = vmand %vm1212, %vm522
        %vm1342 = vmand %vm1341, %vm524
        %v1345 = vcombine.low %v1340, %v1339
        %v1347 = vunpack.c.l.s4 1966171168
        %v1348 = vunpack.c.0.s8 %v1347
        %v1349 = vlaneseq
        %v1350 = vshrl.u32 %v1349, 7
        %v1351 = vsub.s32 %v1348, %v1350
        %v1352 = vrot.slane %v1345, %v1351
        %v1354 = vunpack.c.l.s4 1966171168
        %v1355 = vunpack.c.0.s8 %v1354
        %v1356 = vlaneseq
        %v1357 = vshrl.u32 %v1356, 7
        %v1358 = vsub.s32 %v1355, %v1357
        %v1359 = vrot.slane %v1352, %v1358
        %v1361 = vsel %vm1342, %v1359, 0.0
        %v1362 = vstv %s1333
        %v1363 = vmul.f32 %v1362, %v1361
        %v1364 = vadd.f32 %v1332, %v1363
        %s1365 = sld [smem:[#allocation2 + $0x5]]
        %1366 = vrot.lane.b32.xlu0 %v1194, 49
        %v1367 = vpop.permute.xlu0 %1366
        %1368 = vrot.lane.b32.xlu0 %v1200, 49
        %v1369 = vpop.permute.xlu0 %1368
        %v1370 = vsel %vm1338, %v1367, %v1369
        %v1371 = vsel %vm1338, %v1369, %v1367
        %v1374 = vcombine.low %v1371, %v1370
        %v1376 = vunpack.c.l.s4 1966171168
        %v1377 = vunpack.c.0.s8 %v1376
        %v1378 = vlaneseq
        %v1379 = vshrl.u32 %v1378, 7
        %v1380 = vsub.s32 %v1377, %v1379
        %v1381 = vrot.slane %v1374, %v1380
        %v1383 = vunpack.c.l.s4 1966171168
        %v1384 = vunpack.c.0.s8 %v1383
        %v1385 = vlaneseq
        %v1386 = vshrl.u32 %v1385, 7
        %v1387 = vsub.s32 %v1384, %v1386
        %v1388 = vrot.slane %v1381, %v1387
        %v1390 = vsel %vm1342, %v1388, 0.0
        %v1391 = vstv %s1365
        %v1392 = vmul.f32 %v1391, %v1390
        %v1393 = vadd.f32 %v1364, %v1392
        %s1394 = sld [smem:[#allocation2 + $0x6]]
        %1395 = vrot.lane.b32.xlu0 %v1187, 48
        %v1396 = vpop.permute.xlu0 %1395
        %1397 = vrot.lane.b32.xlu0 %v1188, 48
        %v1398 = vpop.permute.xlu0 %1397
        %vm1399 = vcmp.lt.s32.totalorder %v509, 48
        %v1400 = vsel %vm1399, %v1396, %v1398
        %v1401 = vsel %vm1399, %v1398, %v1396
        %vm1402 = vmand %vm1212, %vm592
        %vm1403 = vmand %vm1402, %vm594
        %v1406 = vcombine.low %v1401, %v1400
        %v1408 = vunpack.c.l.s4 1966171168
        %v1409 = vunpack.c.0.s8 %v1408
        %v1410 = vlaneseq
        %v1411 = vshrl.u32 %v1410, 7
        %v1412 = vsub.s32 %v1409, %v1411
        %v1413 = vrot.slane %v1406, %v1412
        %v1415 = vunpack.c.l.s4 1966171168
        %v1416 = vunpack.c.0.s8 %v1415
        %v1417 = vlaneseq
        %v1418 = vshrl.u32 %v1417, 7
        %v1419 = vsub.s32 %v1416, %v1418
        %v1420 = vrot.slane %v1413, %v1419
        %v1422 = vsel %vm1403, %v1420, 0.0
        %v1423 = vstv %s1394
        %v1424 = vmul.f32 %v1423, %v1422
        %v1425 = vadd.f32 %v1393, %v1424
        %s1426 = sld [smem:[#allocation2 + $0x7]]
        %1427 = vrot.lane.b32.xlu0 %v1194, 48
        %v1428 = vpop.permute.xlu0 %1427
        %1429 = vrot.lane.b32.xlu0 %v1200, 48
        %v1430 = vpop.permute.xlu0 %1429
        %v1431 = vsel %vm1399, %v1428, %v1430
        %v1432 = vsel %vm1399, %v1430, %v1428
        %v1435 = vcombine.low %v1432, %v1431
        %v1437 = vunpack.c.l.s4 1966171168
        %v1438 = vunpack.c.0.s8 %v1437
        %v1439 = vlaneseq
        %v1440 = vshrl.u32 %v1439, 7
        %v1441 = vsub.s32 %v1438, %v1440
        %v1442 = vrot.slane %v1435, %v1441
        %v1444 = vunpack.c.l.s4 1966171168
        %v1445 = vunpack.c.0.s8 %v1444
        %v1446 = vlaneseq
        %v1447 = vshrl.u32 %v1446, 7
        %v1448 = vsub.s32 %v1445, %v1447
        %v1449 = vrot.slane %v1442, %v1448
        %v1451 = vsel %vm1403, %v1449, 0.0
        %v1452 = vstv %s1426
        %v1453 = vmul.f32 %v1452, %v1451
        %v1454 = vadd.f32 %v1425, %v1453
        %s1455 = sld [smem:[#allocation2 + $0x8]]
        %1456 = vrot.lane.b32.xlu0 %v1187, 47
        %v1457 = vpop.permute.xlu0 %1456
        %1458 = vrot.lane.b32.xlu0 %v1188, 47
        %v1459 = vpop.permute.xlu0 %1458
        %vm1460 = vcmp.lt.s32.totalorder %v509, 47
        %v1461 = vsel %vm1460, %v1457, %v1459
        %v1462 = vsel %vm1460, %v1459, %v1457
        %vm1463 = vmand %vm1212, %vm664
        %vm1464 = vmand %vm1463, %vm666
        %v1467 = vcombine.low %v1462, %v1461
        %v1469 = vunpack.c.l.s4 1966171168
        %v1470 = vunpack.c.0.s8 %v1469
        %v1471 = vlaneseq
        %v1472 = vshrl.u32 %v1471, 7
        %v1473 = vsub.s32 %v1470, %v1472
        %v1474 = vrot.slane %v1467, %v1473
        %v1476 = vunpack.c.l.s4 1966171168
        %v1477 = vunpack.c.0.s8 %v1476
        %v1478 = vlaneseq
        %v1479 = vshrl.u32 %v1478, 7
        %v1480 = vsub.s32 %v1477, %v1479
        %v1481 = vrot.slane %v1474, %v1480
        %v1483 = vsel %vm1464, %v1481, 0.0
        %v1484 = vstv %s1455
        %v1485 = vmul.f32 %v1484, %v1483
        %v1486 = vadd.f32 %v1454, %v1485
        %s1487 = sld [smem:[#allocation2 + $0x9]]
        %1488 = vrot.lane.b32.xlu0 %v1194, 47
        %v1489 = vpop.permute.xlu0 %1488
        %1490 = vrot.lane.b32.xlu0 %v1200, 47
        %v1491 = vpop.permute.xlu0 %1490
        %v1492 = vsel %vm1460, %v1489, %v1491
        %v1493 = vsel %vm1460, %v1491, %v1489
        %v1496 = vcombine.low %v1493, %v1492
        %v1498 = vunpack.c.l.s4 1966171168
        %v1499 = vunpack.c.0.s8 %v1498
        %v1500 = vlaneseq
        %v1501 = vshrl.u32 %v1500, 7
        %v1502 = vsub.s32 %v1499, %v1501
        %v1503 = vrot.slane %v1496, %v1502
        %v1505 = vunpack.c.l.s4 1966171168
        %v1506 = vunpack.c.0.s8 %v1505
        %v1507 = vlaneseq
        %v1508 = vshrl.u32 %v1507, 7
        %v1509 = vsub.s32 %v1506, %v1508
        %v1510 = vrot.slane %v1503, %v1509
        %v1512 = vsel %vm1464, %v1510, 0.0
        %v1513 = vstv %s1487
        %v1514 = vmul.f32 %v1513, %v1512
        %v1515 = vadd.f32 %v1486, %v1514
        %s1516 = sld [smem:[#allocation2 + $0xa]]
        %1517 = vrot.lane.b32.xlu0 %v1187, 46
        %v1518 = vpop.permute.xlu0 %1517
        %1519 = vrot.lane.b32.xlu0 %v1188, 46
        %v1520 = vpop.permute.xlu0 %1519
        %vm1521 = vcmp.lt.s32.totalorder %v509, 46
        %v1522 = vsel %vm1521, %v1518, %v1520
        %v1523 = vsel %vm1521, %v1520, %v1518
        %v1524 = vadd.s32 %v373, 2
        %vm1525 = vcmp.ge.s32.totalorder %v1524, 0
        %vm1526 = vmand %vm1212, %vm1525
        %vm1527 = vcmp.lt.s32.totalorder %v1524, 16
        %vm1528 = vmand %vm1526, %vm1527
        %v1531 = vcombine.low %v1523, %v1522
        %v1533 = vunpack.c.l.s4 1966171168
        %v1534 = vunpack.c.0.s8 %v1533
        %v1535 = vlaneseq
        %v1536 = vshrl.u32 %v1535, 7
        %v1537 = vsub.s32 %v1534, %v1536
        %v1538 = vrot.slane %v1531, %v1537
        %v1540 = vunpack.c.l.s4 1966171168
        %v1541 = vunpack.c.0.s8 %v1540
        %v1542 = vlaneseq
        %v1543 = vshrl.u32 %v1542, 7
        %v1544 = vsub.s32 %v1541, %v1543
        %v1545 = vrot.slane %v1538, %v1544
        %v1547 = vsel %vm1528, %v1545, 0.0
        %v1548 = vstv %s1516
        %v1549 = vmul.f32 %v1548, %v1547
        %v1550 = vadd.f32 %v1515, %v1549
        %s1551 = sld [smem:[#allocation2 + $0xb]]
        %1552 = vrot.lane.b32.xlu0 %v1194, 46
        %v1553 = vpop.permute.xlu0 %1552
        %1554 = vrot.lane.b32.xlu0 %v1200, 46
        %v1555 = vpop.permute.xlu0 %1554
        %v1556 = vsel %vm1521, %v1553, %v1555
        %v1557 = vsel %vm1521, %v1555, %v1553
        %v1560 = vcombine.low %v1557, %v1556
        %v1562 = vunpack.c.l.s4 1966171168
        %v1563 = vunpack.c.0.s8 %v1562
        %v1564 = vlaneseq
        %v1565 = vshrl.u32 %v1564, 7
        %v1566 = vsub.s32 %v1563, %v1565
        %v1567 = vrot.slane %v1560, %v1566
        %v1569 = vunpack.c.l.s4 1966171168
        %v1570 = vunpack.c.0.s8 %v1569
        %v1571 = vlaneseq
        %v1572 = vshrl.u32 %v1571, 7
        %v1573 = vsub.s32 %v1570, %v1572
        %v1574 = vrot.slane %v1567, %v1573
        %v1576 = vsel %vm1528, %v1574, 0.0
        %v1577 = vstv %s1551
        %v1578 = vmul.f32 %v1577, %v1576
        %v1579 = vadd.f32 %v1550, %v1578
        %s1580 = sld [smem:[#allocation2 + $0xc]]
        %1581 = vrot.lane.b32.xlu0 %v1187, 45
        %v1582 = vpop.permute.xlu0 %1581
        %1583 = vrot.lane.b32.xlu0 %v1188, 45
        %v1584 = vpop.permute.xlu0 %1583
        %vm1585 = vcmp.lt.s32.totalorder %v509, 45
        %v1586 = vsel %vm1585, %v1582, %v1584
        %v1587 = vsel %vm1585, %v1584, %v1582
        %v1588 = vadd.s32 %v373, 3
        %vm1589 = vcmp.ge.s32.totalorder %v1588, 0
        %vm1590 = vmand %vm1212, %vm1589
        %vm1591 = vcmp.lt.s32.totalorder %v1588, 16
        %vm1592 = vmand %vm1590, %vm1591
        %v1595 = vcombine.low %v1587, %v1586
        %v1597 = vunpack.c.l.s4 1966171168
        %v1598 = vunpack.c.0.s8 %v1597
        %v1599 = vlaneseq
        %v1600 = vshrl.u32 %v1599, 7
        %v1601 = vsub.s32 %v1598, %v1600
        %v1602 = vrot.slane %v1595, %v1601
        %v1604 = vunpack.c.l.s4 1966171168
        %v1605 = vunpack.c.0.s8 %v1604
        %v1606 = vlaneseq
        %v1607 = vshrl.u32 %v1606, 7
        %v1608 = vsub.s32 %v1605, %v1607
        %v1609 = vrot.slane %v1602, %v1608
        %v1611 = vsel %vm1592, %v1609, 0.0
        %v1612 = vstv %s1580
        %v1613 = vmul.f32 %v1612, %v1611
        %v1614 = vadd.f32 %v1579, %v1613
        %s1615 = sld [smem:[#allocation2 + $0xd]]
        %1616 = vrot.lane.b32.xlu0 %v1194, 45
        %v1617 = vpop.permute.xlu0 %1616
        %1618 = vrot.lane.b32.xlu0 %v1200, 45
        %v1619 = vpop.permute.xlu0 %1618
        %v1620 = vsel %vm1585, %v1617, %v1619
        %v1621 = vsel %vm1585, %v1619, %v1617
        %v1624 = vcombine.low %v1621, %v1620
        %v1626 = vunpack.c.l.s4 1966171168
        %v1627 = vunpack.c.0.s8 %v1626
        %v1628 = vlaneseq
        %v1629 = vshrl.u32 %v1628, 7
        %v1630 = vsub.s32 %v1627, %v1629
        %v1631 = vrot.slane %v1624, %v1630
        %v1633 = vunpack.c.l.s4 1966171168
        %v1634 = vunpack.c.0.s8 %v1633
        %v1635 = vlaneseq
        %v1636 = vshrl.u32 %v1635, 7
        %v1637 = vsub.s32 %v1634, %v1636
        %v1638 = vrot.slane %v1631, %v1637
        %v1640 = vsel %vm1592, %v1638, 0.0
        %v1641 = vstv %s1615
        %v1642 = vmul.f32 %v1641, %v1640
        %v1643 = vadd.f32 %v1614, %v1642
        %s1644 = sld [smem:[#allocation2 + $0xe]]
        %1645 = vrot.lane.b32.xlu0 %v1187, 35
        %v1646 = vpop.permute.xlu0 %1645
        %1647 = vrot.lane.b32.xlu0 %v1188, 35
        %v1648 = vpop.permute.xlu0 %1647
        %vm1649 = vcmp.lt.s32.totalorder %v509, 35
        %v1650 = vsel %vm1649, %v1646, %v1648
        %v1651 = vsel %vm1649, %v1648, %v1646
        %v1652 = vadd.s32 %v372, 4294967294
        %vm1653 = vcmp.ge.s32.totalorder %v1652, 0
        %vm1654 = vcmp.lt.s32.totalorder %v1652, 16
        %vm1655 = vmand %vm1653, %vm1654
        %vm1656 = vmand %vm1655, %vm1214
        %vm1657 = vmand %vm1656, %vm1216
        %v1660 = vcombine.low %v1651, %v1650
        %v1662 = vunpack.c.l.s4 1966171168
        %v1663 = vunpack.c.0.s8 %v1662
        %v1664 = vlaneseq
        %v1665 = vshrl.u32 %v1664, 7
        %v1666 = vsub.s32 %v1663, %v1665
        %v1667 = vrot.slane %v1660, %v1666
        %v1669 = vunpack.c.l.s4 1966171168
        %v1670 = vunpack.c.0.s8 %v1669
        %v1671 = vlaneseq
        %v1672 = vshrl.u32 %v1671, 7
        %v1673 = vsub.s32 %v1670, %v1672
        %v1674 = vrot.slane %v1667, %v1673
        %v1676 = vsel %vm1657, %v1674, 0.0
        %v1677 = vstv %s1644
        %v1678 = vmul.f32 %v1677, %v1676
        %v1679 = vadd.f32 %v1643, %v1678
        %s1680 = sld [smem:[#allocation2 + $0xf]]
        %1681 = vrot.lane.b32.xlu0 %v1194, 35
        %v1682 = vpop.permute.xlu0 %1681
        %1683 = vrot.lane.b32.xlu0 %v1200, 35
        %v1684 = vpop.permute.xlu0 %1683
        %v1685 = vsel %vm1649, %v1682, %v1684
        %v1686 = vsel %vm1649, %v1684, %v1682
        %v1689 = vcombine.low %v1686, %v1685
        %v1691 = vunpack.c.l.s4 1966171168
        %v1692 = vunpack.c.0.s8 %v1691
        %v1693 = vlaneseq
        %v1694 = vshrl.u32 %v1693, 7
        %v1695 = vsub.s32 %v1692, %v1694
        %v1696 = vrot.slane %v1689, %v1695
        %v1698 = vunpack.c.l.s4 1966171168
        %v1699 = vunpack.c.0.s8 %v1698
        %v1700 = vlaneseq
        %v1701 = vshrl.u32 %v1700, 7
        %v1702 = vsub.s32 %v1699, %v1701
        %v1703 = vrot.slane %v1696, %v1702
        %v1705 = vsel %vm1657, %v1703, 0.0
        %v1706 = vstv %s1680
        %v1707 = vmul.f32 %v1706, %v1705
        %v1708 = vadd.f32 %v1679, %v1707
        %s1709 = sld [smem:[#allocation2 + $0x10]]
        %1710 = vrot.lane.b32.xlu0 %v1187, 34
        %v1711 = vpop.permute.xlu0 %1710
        %1712 = vrot.lane.b32.xlu0 %v1188, 34
        %v1713 = vpop.permute.xlu0 %1712
        %vm1714 = vcmp.lt.s32.totalorder %v509, 34
        %v1715 = vsel %vm1714, %v1711, %v1713
        %v1716 = vsel %vm1714, %v1713, %v1711
        %vm1717 = vmand %vm1655, %vm1278
        %vm1718 = vmand %vm1717, %vm1280
        %v1721 = vcombine.low %v1716, %v1715
        %v1723 = vunpack.c.l.s4 1966171168
        %v1724 = vunpack.c.0.s8 %v1723
        %v1725 = vlaneseq
        %v1726 = vshrl.u32 %v1725, 7
        %v1727 = vsub.s32 %v1724, %v1726
        %v1728 = vrot.slane %v1721, %v1727
        %v1730 = vunpack.c.l.s4 1966171168
        %v1731 = vunpack.c.0.s8 %v1730
        %v1732 = vlaneseq
        %v1733 = vshrl.u32 %v1732, 7
        %v1734 = vsub.s32 %v1731, %v1733
        %v1735 = vrot.slane %v1728, %v1734
        %v1737 = vsel %vm1718, %v1735, 0.0
        %v1738 = vstv %s1709
        %v1739 = vmul.f32 %v1738, %v1737
        %v1740 = vadd.f32 %v1708, %v1739
        %s1741 = sld [smem:[#allocation2 + $0x11]]
        %1742 = vrot.lane.b32.xlu0 %v1194, 34
        %v1743 = vpop.permute.xlu0 %1742
        %1744 = vrot.lane.b32.xlu0 %v1200, 34
        %v1745 = vpop.permute.xlu0 %1744
        %v1746 = vsel %vm1714, %v1743, %v1745
        %v1747 = vsel %vm1714, %v1745, %v1743
        %v1750 = vcombine.low %v1747, %v1746
        %v1752 = vunpack.c.l.s4 1966171168
        %v1753 = vunpack.c.0.s8 %v1752
        %v1754 = vlaneseq
        %v1755 = vshrl.u32 %v1754, 7
        %v1756 = vsub.s32 %v1753, %v1755
        %v1757 = vrot.slane %v1750, %v1756
        %v1759 = vunpack.c.l.s4 1966171168
        %v1760 = vunpack.c.0.s8 %v1759
        %v1761 = vlaneseq
        %v1762 = vshrl.u32 %v1761, 7
        %v1763 = vsub.s32 %v1760, %v1762
        %v1764 = vrot.slane %v1757, %v1763
        %v1766 = vsel %vm1718, %v1764, 0.0
        %v1767 = vstv %s1741
        %v1768 = vmul.f32 %v1767, %v1766
        %v1769 = vadd.f32 %v1740, %v1768
        %s1770 = sld [smem:[#allocation2 + $0x12]]
        %1771 = vrot.lane.b32.xlu0 %v1187, 33
        %v1772 = vpop.permute.xlu0 %1771
        %1773 = vrot.lane.b32.xlu0 %v1188, 33
        %v1774 = vpop.permute.xlu0 %1773
        %vm1775 = vcmp.lt.s32.totalorder %v509, 33
        %v1776 = vsel %vm1775, %v1772, %v1774
        %v1777 = vsel %vm1775, %v1774, %v1772
        %vm1778 = vmand %vm1655, %vm522
        %vm1779 = vmand %vm1778, %vm524
        %v1782 = vcombine.low %v1777, %v1776
        %v1784 = vunpack.c.l.s4 1966171168
        %v1785 = vunpack.c.0.s8 %v1784
        %v1786 = vlaneseq
        %v1787 = vshrl.u32 %v1786, 7
        %v1788 = vsub.s32 %v1785, %v1787
        %v1789 = vrot.slane %v1782, %v1788
        %v1791 = vunpack.c.l.s4 1966171168
        %v1792 = vunpack.c.0.s8 %v1791
        %v1793 = vlaneseq
        %v1794 = vshrl.u32 %v1793, 7
        %v1795 = vsub.s32 %v1792, %v1794
        %v1796 = vrot.slane %v1789, %v1795
        %v1798 = vsel %vm1779, %v1796, 0.0
        %v1799 = vstv %s1770
        %v1800 = vmul.f32 %v1799, %v1798
        %v1801 = vadd.f32 %v1769, %v1800
        %s1802 = sld [smem:[#allocation2 + $0x13]]
        %1803 = vrot.lane.b32.xlu0 %v1194, 33
        %v1804 = vpop.permute.xlu0 %1803
        %1805 = vrot.lane.b32.xlu0 %v1200, 33
        %v1806 = vpop.permute.xlu0 %1805
        %v1807 = vsel %vm1775, %v1804, %v1806
        %v1808 = vsel %vm1775, %v1806, %v1804
        %v1811 = vcombine.low %v1808, %v1807
        %v1813 = vunpack.c.l.s4 1966171168
        %v1814 = vunpack.c.0.s8 %v1813
        %v1815 = vlaneseq
        %v1816 = vshrl.u32 %v1815, 7
        %v1817 = vsub.s32 %v1814, %v1816
        %v1818 = vrot.slane %v1811, %v1817
        %v1820 = vunpack.c.l.s4 1966171168
        %v1821 = vunpack.c.0.s8 %v1820
        %v1822 = vlaneseq
        %v1823 = vshrl.u32 %v1822, 7
        %v1824 = vsub.s32 %v1821, %v1823
        %v1825 = vrot.slane %v1818, %v1824
        %v1827 = vsel %vm1779, %v1825, 0.0
        %v1828 = vstv %s1802
        %v1829 = vmul.f32 %v1828, %v1827
        %v1830 = vadd.f32 %v1801, %v1829
        %s1831 = sld [smem:[#allocation2 + $0x14]]
        %1832 = vrot.lane.b32.xlu0 %v1187, 32
        %v1833 = vpop.permute.xlu0 %1832
        %1834 = vrot.lane.b32.xlu0 %v1188, 32
        %v1835 = vpop.permute.xlu0 %1834
        %vm1836 = vcmp.lt.s32.totalorder %v509, 32
        %v1837 = vsel %vm1836, %v1833, %v1835
        %v1838 = vsel %vm1836, %v1835, %v1833
        %vm1839 = vmand %vm1655, %vm592
        %vm1840 = vmand %vm1839, %vm594
        %v1843 = vcombine.low %v1838, %v1837
        %v1845 = vunpack.c.l.s4 1966171168
        %v1846 = vunpack.c.0.s8 %v1845
        %v1847 = vlaneseq
        %v1848 = vshrl.u32 %v1847, 7
        %v1849 = vsub.s32 %v1846, %v1848
        %v1850 = vrot.slane %v1843, %v1849
        %v1852 = vunpack.c.l.s4 1966171168
        %v1853 = vunpack.c.0.s8 %v1852
        %v1854 = vlaneseq
        %v1855 = vshrl.u32 %v1854, 7
        %v1856 = vsub.s32 %v1853, %v1855
        %v1857 = vrot.slane %v1850, %v1856
        %v1859 = vsel %vm1840, %v1857, 0.0
        %v1860 = vstv %s1831
        %v1861 = vmul.f32 %v1860, %v1859
        %v1862 = vadd.f32 %v1830, %v1861
        %s1863 = sld [smem:[#allocation2 + $0x15]]
        %1864 = vrot.lane.b32.xlu0 %v1194, 32
        %v1865 = vpop.permute.xlu0 %1864
        %1866 = vrot.lane.b32.xlu0 %v1200, 32
        %v1867 = vpop.permute.xlu0 %1866
        %v1868 = vsel %vm1836, %v1865, %v1867
        %v1869 = vsel %vm1836, %v1867, %v1865
        %v1872 = vcombine.low %v1869, %v1868
        %v1874 = vunpack.c.l.s4 1966171168
        %v1875 = vunpack.c.0.s8 %v1874
        %v1876 = vlaneseq
        %v1877 = vshrl.u32 %v1876, 7
        %v1878 = vsub.s32 %v1875, %v1877
        %v1879 = vrot.slane %v1872, %v1878
        %v1881 = vunpack.c.l.s4 1966171168
        %v1882 = vunpack.c.0.s8 %v1881
        %v1883 = vlaneseq
        %v1884 = vshrl.u32 %v1883, 7
        %v1885 = vsub.s32 %v1882, %v1884
        %v1886 = vrot.slane %v1879, %v1885
        %v1888 = vsel %vm1840, %v1886, 0.0
        %v1889 = vstv %s1863
        %v1890 = vmul.f32 %v1889, %v1888
        %v1891 = vadd.f32 %v1862, %v1890
        %s1892 = sld [smem:[#allocation2 + $0x16]]
        %1893 = vrot.lane.b32.xlu0 %v1187, 31
        %v1894 = vpop.permute.xlu0 %1893
        %1895 = vrot.lane.b32.xlu0 %v1188, 31
        %v1896 = vpop.permute.xlu0 %1895
        %vm1897 = vcmp.lt.s32.totalorder %v509, 31
        %v1898 = vsel %vm1897, %v1894, %v1896
        %v1899 = vsel %vm1897, %v1896, %v1894
        %vm1900 = vmand %vm1655, %vm664
        %vm1901 = vmand %vm1900, %vm666
        %v1904 = vcombine.low %v1899, %v1898
        %v1906 = vunpack.c.l.s4 1966171168
        %v1907 = vunpack.c.0.s8 %v1906
        %v1908 = vlaneseq
        %v1909 = vshrl.u32 %v1908, 7
        %v1910 = vsub.s32 %v1907, %v1909
        %v1911 = vrot.slane %v1904, %v1910
        %v1913 = vunpack.c.l.s4 1966171168
        %v1914 = vunpack.c.0.s8 %v1913
        %v1915 = vlaneseq
        %v1916 = vshrl.u32 %v1915, 7
        %v1917 = vsub.s32 %v1914, %v1916
        %v1918 = vrot.slane %v1911, %v1917
        %v1920 = vsel %vm1901, %v1918, 0.0
        %v1921 = vstv %s1892
        %v1922 = vmul.f32 %v1921, %v1920
        %v1923 = vadd.f32 %v1891, %v1922
        %s1924 = sld [smem:[#allocation2 + $0x17]]
        %1925 = vrot.lane.b32.xlu0 %v1194, 31
        %v1926 = vpop.permute.xlu0 %1925
        %1927 = vrot.lane.b32.xlu0 %v1200, 31
        %v1928 = vpop.permute.xlu0 %1927
        %v1929 = vsel %vm1897, %v1926, %v1928
        %v1930 = vsel %vm1897, %v1928, %v1926
        %v1933 = vcombine.low %v1930, %v1929
        %v1935 = vunpack.c.l.s4 1966171168
        %v1936 = vunpack.c.0.s8 %v1935
        %v1937 = vlaneseq
        %v1938 = vshrl.u32 %v1937, 7
        %v1939 = vsub.s32 %v1936, %v1938
        %v1940 = vrot.slane %v1933, %v1939
        %v1942 = vunpack.c.l.s4 1966171168
        %v1943 = vunpack.c.0.s8 %v1942
        %v1944 = vlaneseq
        %v1945 = vshrl.u32 %v1944, 7
        %v1946 = vsub.s32 %v1943, %v1945
        %v1947 = vrot.slane %v1940, %v1946
        %v1949 = vsel %vm1901, %v1947, 0.0
        %v1950 = vstv %s1924
        %v1951 = vmul.f32 %v1950, %v1949
        %v1952 = vadd.f32 %v1923, %v1951
        %s1953 = sld [smem:[#allocation2 + $0x18]]
        %1954 = vrot.lane.b32.xlu0 %v1187, 30
        %v1955 = vpop.permute.xlu0 %1954
        %1956 = vrot.lane.b32.xlu0 %v1188, 30
        %v1957 = vpop.permute.xlu0 %1956
        %vm1958 = vcmp.lt.s32.totalorder %v509, 30
        %v1959 = vsel %vm1958, %v1955, %v1957
        %v1960 = vsel %vm1958, %v1957, %v1955
        %vm1961 = vmand %vm1655, %vm1525
        %vm1962 = vmand %vm1961, %vm1527
        %v1965 = vcombine.low %v1960, %v1959
        %v1967 = vunpack.c.l.s4 1966171168
        %v1968 = vunpack.c.0.s8 %v1967
        %v1969 = vlaneseq
        %v1970 = vshrl.u32 %v1969, 7
        %v1971 = vsub.s32 %v1968, %v1970
        %v1972 = vrot.slane %v1965, %v1971
        %v1974 = vunpack.c.l.s4 1966171168
        %v1975 = vunpack.c.0.s8 %v1974
        %v1976 = vlaneseq
        %v1977 = vshrl.u32 %v1976, 7
        %v1978 = vsub.s32 %v1975, %v1977
        %v1979 = vrot.slane %v1972, %v1978
        %v1981 = vsel %vm1962, %v1979, 0.0
        %v1982 = vstv %s1953
        %v1983 = vmul.f32 %v1982, %v1981
        %v1984 = vadd.f32 %v1952, %v1983
        %s1985 = sld [smem:[#allocation2 + $0x19]]
        %1986 = vrot.lane.b32.xlu0 %v1194, 30
        %v1987 = vpop.permute.xlu0 %1986
        %1988 = vrot.lane.b32.xlu0 %v1200, 30
        %v1989 = vpop.permute.xlu0 %1988
        %v1990 = vsel %vm1958, %v1987, %v1989
        %v1991 = vsel %vm1958, %v1989, %v1987
        %v1994 = vcombine.low %v1991, %v1990
        %v1996 = vunpack.c.l.s4 1966171168
        %v1997 = vunpack.c.0.s8 %v1996
        %v1998 = vlaneseq
        %v1999 = vshrl.u32 %v1998, 7
        %v2000 = vsub.s32 %v1997, %v1999
        %v2001 = vrot.slane %v1994, %v2000
        %v2003 = vunpack.c.l.s4 1966171168
        %v2004 = vunpack.c.0.s8 %v2003
        %v2005 = vlaneseq
        %v2006 = vshrl.u32 %v2005, 7
        %v2007 = vsub.s32 %v2004, %v2006
        %v2008 = vrot.slane %v2001, %v2007
        %v2010 = vsel %vm1962, %v2008, 0.0
        %v2011 = vstv %s1985
        %v2012 = vmul.f32 %v2011, %v2010
        %v2013 = vadd.f32 %v1984, %v2012
        %s2014 = sld [smem:[#allocation2 + $0x1a]]
        %2015 = vrot.lane.b32.xlu0 %v1187, 29
        %v2016 = vpop.permute.xlu0 %2015
        %2017 = vrot.lane.b32.xlu0 %v1188, 29
        %v2018 = vpop.permute.xlu0 %2017
        %vm2019 = vcmp.lt.s32.totalorder %v509, 29
        %v2020 = vsel %vm2019, %v2016, %v2018
        %v2021 = vsel %vm2019, %v2018, %v2016
        %vm2022 = vmand %vm1655, %vm1589
        %vm2023 = vmand %vm2022, %vm1591
        %v2026 = vcombine.low %v2021, %v2020
        %v2028 = vunpack.c.l.s4 1966171168
        %v2029 = vunpack.c.0.s8 %v2028
        %v2030 = vlaneseq
        %v2031 = vshrl.u32 %v2030, 7
        %v2032 = vsub.s32 %v2029, %v2031
        %v2033 = vrot.slane %v2026, %v2032
        %v2035 = vunpack.c.l.s4 1966171168
        %v2036 = vunpack.c.0.s8 %v2035
        %v2037 = vlaneseq
        %v2038 = vshrl.u32 %v2037, 7
        %v2039 = vsub.s32 %v2036, %v2038
        %v2040 = vrot.slane %v2033, %v2039
        %v2042 = vsel %vm2023, %v2040, 0.0
        %v2043 = vstv %s2014
        %v2044 = vmul.f32 %v2043, %v2042
        %v2045 = vadd.f32 %v2013, %v2044
        %s2046 = sld [smem:[#allocation2 + $0x1b]]
        %2047 = vrot.lane.b32.xlu0 %v1194, 29
        %v2048 = vpop.permute.xlu0 %2047
        %2049 = vrot.lane.b32.xlu0 %v1200, 29
        %v2050 = vpop.permute.xlu0 %2049
        %v2051 = vsel %vm2019, %v2048, %v2050
        %v2052 = vsel %vm2019, %v2050, %v2048
        %v2055 = vcombine.low %v2052, %v2051
        %v2057 = vunpack.c.l.s4 1966171168
        %v2058 = vunpack.c.0.s8 %v2057
        %v2059 = vlaneseq
        %v2060 = vshrl.u32 %v2059, 7
        %v2061 = vsub.s32 %v2058, %v2060
        %v2062 = vrot.slane %v2055, %v2061
        %v2064 = vunpack.c.l.s4 1966171168
        %v2065 = vunpack.c.0.s8 %v2064
        %v2066 = vlaneseq
        %v2067 = vshrl.u32 %v2066, 7
        %v2068 = vsub.s32 %v2065, %v2067
        %v2069 = vrot.slane %v2062, %v2068
        %v2071 = vsel %vm2023, %v2069, 0.0
        %v2072 = vstv %s2046
        %v2073 = vmul.f32 %v2072, %v2071
        %v2074 = vadd.f32 %v2045, %v2073
        %s2075 = sld [smem:[#allocation2 + $0x1c]]
        %2076 = vrot.lane.b32.xlu0 %v1187, 19
        %v2077 = vpop.permute.xlu0 %2076
        %2078 = vrot.lane.b32.xlu0 %v1188, 19
        %v2079 = vpop.permute.xlu0 %2078
        %vm2080 = vcmp.lt.s32.totalorder %v509, 19
        %v2081 = vsel %vm2080, %v2077, %v2079
        %v2082 = vsel %vm2080, %v2079, %v2077
        %vm2083 = vmand %vm520, %vm1214
        %vm2084 = vmand %vm2083, %vm1216
        %v2087 = vcombine.low %v2082, %v2081
        %v2089 = vunpack.c.l.s4 1966171168
        %v2090 = vunpack.c.0.s8 %v2089
        %v2091 = vlaneseq
        %v2092 = vshrl.u32 %v2091, 7
        %v2093 = vsub.s32 %v2090, %v2092
        %v2094 = vrot.slane %v2087, %v2093
        %v2096 = vunpack.c.l.s4 1966171168
        %v2097 = vunpack.c.0.s8 %v2096
        %v2098 = vlaneseq
        %v2099 = vshrl.u32 %v2098, 7
        %v2100 = vsub.s32 %v2097, %v2099
        %v2101 = vrot.slane %v2094, %v2100
        %v2103 = vsel %vm2084, %v2101, 0.0
        %v2104 = vstv %s2075
        %v2105 = vmul.f32 %v2104, %v2103
        %v2106 = vadd.f32 %v2074, %v2105
        %s2107 = sld [smem:[#allocation2 + $0x1d]]
        %2108 = vrot.lane.b32.xlu0 %v1194, 19
        %v2109 = vpop.permute.xlu0 %2108
        %2110 = vrot.lane.b32.xlu0 %v1200, 19
        %v2111 = vpop.permute.xlu0 %2110
        %v2112 = vsel %vm2080, %v2109, %v2111
        %v2113 = vsel %vm2080, %v2111, %v2109
        %v2116 = vcombine.low %v2113, %v2112
        %v2118 = vunpack.c.l.s4 1966171168
        %v2119 = vunpack.c.0.s8 %v2118
        %v2120 = vlaneseq
        %v2121 = vshrl.u32 %v2120, 7
        %v2122 = vsub.s32 %v2119, %v2121
        %v2123 = vrot.slane %v2116, %v2122
        %v2125 = vunpack.c.l.s4 1966171168
        %v2126 = vunpack.c.0.s8 %v2125
        %v2127 = vlaneseq
        %v2128 = vshrl.u32 %v2127, 7
        %v2129 = vsub.s32 %v2126, %v2128
        %v2130 = vrot.slane %v2123, %v2129
        %v2132 = vsel %vm2084, %v2130, 0.0
        %v2133 = vstv %s2107
        %v2134 = vmul.f32 %v2133, %v2132
        %v2135 = vadd.f32 %v2106, %v2134
        %s2136 = sld [smem:[#allocation2 + $0x1e]]
        %2137 = vrot.lane.b32.xlu0 %v1187, 18
        %v2138 = vpop.permute.xlu0 %2137
        %2139 = vrot.lane.b32.xlu0 %v1188, 18
        %v2140 = vpop.permute.xlu0 %2139
        %vm2141 = vcmp.lt.s32.totalorder %v509, 18
        %v2142 = vsel %vm2141, %v2138, %v2140
        %v2143 = vsel %vm2141, %v2140, %v2138
        %vm2144 = vmand %vm520, %vm1278
        %vm2145 = vmand %vm2144, %vm1280
        %v2148 = vcombine.low %v2143, %v2142
        %v2150 = vunpack.c.l.s4 1966171168
        %v2151 = vunpack.c.0.s8 %v2150
        %v2152 = vlaneseq
        %v2153 = vshrl.u32 %v2152, 7
        %v2154 = vsub.s32 %v2151, %v2153
        %v2155 = vrot.slane %v2148, %v2154
        %v2157 = vunpack.c.l.s4 1966171168
        %v2158 = vunpack.c.0.s8 %v2157
        %v2159 = vlaneseq
        %v2160 = vshrl.u32 %v2159, 7
        %v2161 = vsub.s32 %v2158, %v2160
        %v2162 = vrot.slane %v2155, %v2161
        %v2164 = vsel %vm2145, %v2162, 0.0
        %v2165 = vstv %s2136
        %v2166 = vmul.f32 %v2165, %v2164
        %v2167 = vadd.f32 %v2135, %v2166
        %s2168 = sld [smem:[#allocation2 + $0x1f]]
        %2169 = vrot.lane.b32.xlu0 %v1194, 18
        %v2170 = vpop.permute.xlu0 %2169
        %2171 = vrot.lane.b32.xlu0 %v1200, 18
        %v2172 = vpop.permute.xlu0 %2171
        %v2173 = vsel %vm2141, %v2170, %v2172
        %v2174 = vsel %vm2141, %v2172, %v2170
        %v2177 = vcombine.low %v2174, %v2173
        %v2179 = vunpack.c.l.s4 1966171168
        %v2180 = vunpack.c.0.s8 %v2179
        %v2181 = vlaneseq
        %v2182 = vshrl.u32 %v2181, 7
        %v2183 = vsub.s32 %v2180, %v2182
        %v2184 = vrot.slane %v2177, %v2183
        %v2186 = vunpack.c.l.s4 1966171168
        %v2187 = vunpack.c.0.s8 %v2186
        %v2188 = vlaneseq
        %v2189 = vshrl.u32 %v2188, 7
        %v2190 = vsub.s32 %v2187, %v2189
        %v2191 = vrot.slane %v2184, %v2190
        %v2193 = vsel %vm2145, %v2191, 0.0
        %v2194 = vstv %s2168
        %v2195 = vmul.f32 %v2194, %v2193
        %v2196 = vadd.f32 %v2167, %v2195
        %s2197 = sld [smem:[#allocation2 + $0x20]]
        %2198 = vrot.lane.b32.xlu0 %v1187, 17
        %v2199 = vpop.permute.xlu0 %2198
        %2200 = vrot.lane.b32.xlu0 %v1188, 17
        %v2201 = vpop.permute.xlu0 %2200
        %v2202 = vsel %vm510, %v2199, %v2201
        %v2203 = vsel %vm510, %v2201, %v2199
        %v2206 = vcombine.low %v2203, %v2202
        %v2208 = vunpack.c.l.s4 1966171168
        %v2209 = vunpack.c.0.s8 %v2208
        %v2210 = vlaneseq
        %v2211 = vshrl.u32 %v2210, 7
        %v2212 = vsub.s32 %v2209, %v2211
        %v2213 = vrot.slane %v2206, %v2212
        %v2215 = vunpack.c.l.s4 1966171168
        %v2216 = vunpack.c.0.s8 %v2215
        %v2217 = vlaneseq
        %v2218 = vshrl.u32 %v2217, 7
        %v2219 = vsub.s32 %v2216, %v2218
        %v2220 = vrot.slane %v2213, %v2219
        %v2222 = vsel %vm525, %v2220, 0.0
        %v2223 = vstv %s2197
        %v2224 = vmul.f32 %v2223, %v2222
        %v2225 = vadd.f32 %v2196, %v2224
        %s2226 = sld [smem:[#allocation2 + $0x21]]
        %2227 = vrot.lane.b32.xlu0 %v1194, 17
        %v2228 = vpop.permute.xlu0 %2227
        %2229 = vrot.lane.b32.xlu0 %v1200, 17
        %v2230 = vpop.permute.xlu0 %2229
        %v2231 = vsel %vm510, %v2228, %v2230
        %v2232 = vsel %vm510, %v2230, %v2228
        %v2235 = vcombine.low %v2232, %v2231
        %v2237 = vunpack.c.l.s4 1966171168
        %v2238 = vunpack.c.0.s8 %v2237
        %v2239 = vlaneseq
        %v2240 = vshrl.u32 %v2239, 7
        %v2241 = vsub.s32 %v2238, %v2240
        %v2242 = vrot.slane %v2235, %v2241
        %v2244 = vunpack.c.l.s4 1966171168
        %v2245 = vunpack.c.0.s8 %v2244
        %v2246 = vlaneseq
        %v2247 = vshrl.u32 %v2246, 7
        %v2248 = vsub.s32 %v2245, %v2247
        %v2249 = vrot.slane %v2242, %v2248
        %v2251 = vsel %vm525, %v2249, 0.0
        %v2252 = vstv %s2226
        %v2253 = vmul.f32 %v2252, %v2251
        %v2254 = vadd.f32 %v2225, %v2253
        %s2255 = sld [smem:[#allocation2 + $0x22]]
        %2256 = vrot.lane.b32.xlu0 %v1187, 16
        %v2257 = vpop.permute.xlu0 %2256
        %2258 = vrot.lane.b32.xlu0 %v1188, 16
        %v2259 = vpop.permute.xlu0 %2258
        %v2260 = vsel %vm585, %v2257, %v2259
        %v2261 = vsel %vm585, %v2259, %v2257
        %v2264 = vcombine.low %v2261, %v2260
        %v2266 = vunpack.c.l.s4 1966171168
        %v2267 = vunpack.c.0.s8 %v2266
        %v2268 = vlaneseq
        %v2269 = vshrl.u32 %v2268, 7
        %v2270 = vsub.s32 %v2267, %v2269
        %v2271 = vrot.slane %v2264, %v2270
        %v2273 = vunpack.c.l.s4 1966171168
        %v2274 = vunpack.c.0.s8 %v2273
        %v2275 = vlaneseq
        %v2276 = vshrl.u32 %v2275, 7
        %v2277 = vsub.s32 %v2274, %v2276
        %v2278 = vrot.slane %v2271, %v2277
        %v2280 = vsel %vm595, %v2278, 0.0
        %v2281 = vstv %s2255
        %v2282 = vmul.f32 %v2281, %v2280
        %v2283 = vadd.f32 %v2254, %v2282
        %s2284 = sld [smem:[#allocation2 + $0x23]]
        %2285 = vrot.lane.b32.xlu0 %v1194, 16
        %v2286 = vpop.permute.xlu0 %2285
        %2287 = vrot.lane.b32.xlu0 %v1200, 16
        %v2288 = vpop.permute.xlu0 %2287
        %v2289 = vsel %vm585, %v2286, %v2288
        %v2290 = vsel %vm585, %v2288, %v2286
        %v2293 = vcombine.low %v2290, %v2289
        %v2295 = vunpack.c.l.s4 1966171168
        %v2296 = vunpack.c.0.s8 %v2295
        %v2297 = vlaneseq
        %v2298 = vshrl.u32 %v2297, 7
        %v2299 = vsub.s32 %v2296, %v2298
        %v2300 = vrot.slane %v2293, %v2299
        %v2302 = vunpack.c.l.s4 1966171168
        %v2303 = vunpack.c.0.s8 %v2302
        %v2304 = vlaneseq
        %v2305 = vshrl.u32 %v2304, 7
        %v2306 = vsub.s32 %v2303, %v2305
        %v2307 = vrot.slane %v2300, %v2306
        %v2309 = vsel %vm595, %v2307, 0.0
        %v2310 = vstv %s2284
        %v2311 = vmul.f32 %v2310, %v2309
        %v2312 = vadd.f32 %v2283, %v2311
        %s2313 = sld [smem:[#allocation2 + $0x24]]
        %2314 = vrot.lane.b32.xlu0 %v1187, 15
        %v2315 = vpop.permute.xlu0 %2314
        %2316 = vrot.lane.b32.xlu0 %v1188, 15
        %v2317 = vpop.permute.xlu0 %2316
        %v2318 = vsel %vm656, %v2315, %v2317
        %v2319 = vsel %vm656, %v2317, %v2315
        %v2322 = vcombine.low %v2319, %v2318
        %v2324 = vunpack.c.l.s4 1966171168
        %v2325 = vunpack.c.0.s8 %v2324
        %v2326 = vlaneseq
        %v2327 = vshrl.u32 %v2326, 7
        %v2328 = vsub.s32 %v2325, %v2327
        %v2329 = vrot.slane %v2322, %v2328
        %v2331 = vunpack.c.l.s4 1966171168
        %v2332 = vunpack.c.0.s8 %v2331
        %v2333 = vlaneseq
        %v2334 = vshrl.u32 %v2333, 7
        %v2335 = vsub.s32 %v2332, %v2334
        %v2336 = vrot.slane %v2329, %v2335
        %v2338 = vsel %vm667, %v2336, 0.0
        %v2339 = vstv %s2313
        %v2340 = vmul.f32 %v2339, %v2338
        %v2341 = vadd.f32 %v2312, %v2340
        %s2342 = sld [smem:[#allocation2 + $0x25]]
        %2343 = vrot.lane.b32.xlu0 %v1194, 15
        %v2344 = vpop.permute.xlu0 %2343
        %2345 = vrot.lane.b32.xlu0 %v1200, 15
        %v2346 = vpop.permute.xlu0 %2345
        %v2347 = vsel %vm656, %v2344, %v2346
        %v2348 = vsel %vm656, %v2346, %v2344
        %v2351 = vcombine.low %v2348, %v2347
        %v2353 = vunpack.c.l.s4 1966171168
        %v2354 = vunpack.c.0.s8 %v2353
        %v2355 = vlaneseq
        %v2356 = vshrl.u32 %v2355, 7
        %v2357 = vsub.s32 %v2354, %v2356
        %v2358 = vrot.slane %v2351, %v2357
        %v2360 = vunpack.c.l.s4 1966171168
        %v2361 = vunpack.c.0.s8 %v2360
        %v2362 = vlaneseq
        %v2363 = vshrl.u32 %v2362, 7
        %v2364 = vsub.s32 %v2361, %v2363
        %v2365 = vrot.slane %v2358, %v2364
        %v2367 = vsel %vm667, %v2365, 0.0
        %v2368 = vstv %s2342
        %v2369 = vmul.f32 %v2368, %v2367
        %v2370 = vadd.f32 %v2341, %v2369
        %s2371 = sld [smem:[#allocation2 + $0x26]]
        %2372 = vrot.lane.b32.xlu0 %v1187, 14
        %v2373 = vpop.permute.xlu0 %2372
        %2374 = vrot.lane.b32.xlu0 %v1188, 14
        %v2375 = vpop.permute.xlu0 %2374
        %vm2376 = vcmp.lt.s32.totalorder %v509, 14
        %v2377 = vsel %vm2376, %v2373, %v2375
        %v2378 = vsel %vm2376, %v2375, %v2373
        %vm2379 = vmand %vm520, %vm1525
        %vm2380 = vmand %vm2379, %vm1527
        %v2383 = vcombine.low %v2378, %v2377
        %v2385 = vunpack.c.l.s4 1966171168
        %v2386 = vunpack.c.0.s8 %v2385
        %v2387 = vlaneseq
        %v2388 = vshrl.u32 %v2387, 7
        %v2389 = vsub.s32 %v2386, %v2388
        %v2390 = vrot.slane %v2383, %v2389
        %v2392 = vunpack.c.l.s4 1966171168
        %v2393 = vunpack.c.0.s8 %v2392
        %v2394 = vlaneseq
        %v2395 = vshrl.u32 %v2394, 7
        %v2396 = vsub.s32 %v2393, %v2395
        %v2397 = vrot.slane %v2390, %v2396
        %v2399 = vsel %vm2380, %v2397, 0.0
        %v2400 = vstv %s2371
        %v2401 = vmul.f32 %v2400, %v2399
        %v2402 = vadd.f32 %v2370, %v2401
        %s2403 = sld [smem:[#allocation2 + $0x27]]
        %2404 = vrot.lane.b32.xlu0 %v1194, 14
        %v2405 = vpop.permute.xlu0 %2404
        %2406 = vrot.lane.b32.xlu0 %v1200, 14
        %v2407 = vpop.permute.xlu0 %2406
        %v2408 = vsel %vm2376, %v2405, %v2407
        %v2409 = vsel %vm2376, %v2407, %v2405
        %v2412 = vcombine.low %v2409, %v2408
        %v2414 = vunpack.c.l.s4 1966171168
        %v2415 = vunpack.c.0.s8 %v2414
        %v2416 = vlaneseq
        %v2417 = vshrl.u32 %v2416, 7
        %v2418 = vsub.s32 %v2415, %v2417
        %v2419 = vrot.slane %v2412, %v2418
        %v2421 = vunpack.c.l.s4 1966171168
        %v2422 = vunpack.c.0.s8 %v2421
        %v2423 = vlaneseq
        %v2424 = vshrl.u32 %v2423, 7
        %v2425 = vsub.s32 %v2422, %v2424
        %v2426 = vrot.slane %v2419, %v2425
        %v2428 = vsel %vm2380, %v2426, 0.0
        %v2429 = vstv %s2403
        %v2430 = vmul.f32 %v2429, %v2428
        %v2431 = vadd.f32 %v2402, %v2430
        %s2432 = sld [smem:[#allocation2 + $0x28]]
        %2433 = vrot.lane.b32.xlu0 %v1187, 13
        %v2434 = vpop.permute.xlu0 %2433
        %2435 = vrot.lane.b32.xlu0 %v1188, 13
        %v2436 = vpop.permute.xlu0 %2435
        %vm2437 = vcmp.lt.s32.totalorder %v509, 13
        %v2438 = vsel %vm2437, %v2434, %v2436
        %v2439 = vsel %vm2437, %v2436, %v2434
        %vm2440 = vmand %vm520, %vm1589
        %vm2441 = vmand %vm2440, %vm1591
        %v2444 = vcombine.low %v2439, %v2438
        %v2446 = vunpack.c.l.s4 1966171168
        %v2447 = vunpack.c.0.s8 %v2446
        %v2448 = vlaneseq
        %v2449 = vshrl.u32 %v2448, 7
        %v2450 = vsub.s32 %v2447, %v2449
        %v2451 = vrot.slane %v2444, %v2450
        %v2453 = vunpack.c.l.s4 1966171168
        %v2454 = vunpack.c.0.s8 %v2453
        %v2455 = vlaneseq
        %v2456 = vshrl.u32 %v2455, 7
        %v2457 = vsub.s32 %v2454, %v2456
        %v2458 = vrot.slane %v2451, %v2457
        %v2460 = vsel %vm2441, %v2458, 0.0
        %v2461 = vstv %s2432
        %v2462 = vmul.f32 %v2461, %v2460
        %v2463 = vadd.f32 %v2431, %v2462
        %s2464 = sld [smem:[#allocation2 + $0x29]]
        %2465 = vrot.lane.b32.xlu0 %v1194, 13
        %v2466 = vpop.permute.xlu0 %2465
        %2467 = vrot.lane.b32.xlu0 %v1200, 13
        %v2468 = vpop.permute.xlu0 %2467
        %v2469 = vsel %vm2437, %v2466, %v2468
        %v2470 = vsel %vm2437, %v2468, %v2466
        %v2473 = vcombine.low %v2470, %v2469
        %v2475 = vunpack.c.l.s4 1966171168
        %v2476 = vunpack.c.0.s8 %v2475
        %v2477 = vlaneseq
        %v2478 = vshrl.u32 %v2477, 7
        %v2479 = vsub.s32 %v2476, %v2478
        %v2480 = vrot.slane %v2473, %v2479
        %v2482 = vunpack.c.l.s4 1966171168
        %v2483 = vunpack.c.0.s8 %v2482
        %v2484 = vlaneseq
        %v2485 = vshrl.u32 %v2484, 7
        %v2486 = vsub.s32 %v2483, %v2485
        %v2487 = vrot.slane %v2480, %v2486
        %v2489 = vsel %vm2441, %v2487, 0.0
        %v2490 = vstv %s2464
        %v2491 = vmul.f32 %v2490, %v2489
        %v2492 = vadd.f32 %v2463, %v2491
        %s2493 = sld [smem:[#allocation2 + $0x2a]]
        %2494 = vrot.lane.b32.xlu0 %v1187, 3
        %v2495 = vpop.permute.xlu0 %2494
        %2496 = vrot.lane.b32.xlu0 %v1188, 3
        %v2497 = vpop.permute.xlu0 %2496
        %vm2498 = vcmp.lt.s32.totalorder %v509, 3
        %v2499 = vsel %vm2498, %v2495, %v2497
        %v2500 = vsel %vm2498, %v2497, %v2495
        %vm2501 = vmand %vm737, %vm1214
        %vm2502 = vmand %vm2501, %vm1216
        %v2505 = vcombine.low %v2500, %v2499
        %v2507 = vunpack.c.l.s4 1966171168
        %v2508 = vunpack.c.0.s8 %v2507
        %v2509 = vlaneseq
        %v2510 = vshrl.u32 %v2509, 7
        %v2511 = vsub.s32 %v2508, %v2510
        %v2512 = vrot.slane %v2505, %v2511
        %v2514 = vunpack.c.l.s4 1966171168
        %v2515 = vunpack.c.0.s8 %v2514
        %v2516 = vlaneseq
        %v2517 = vshrl.u32 %v2516, 7
        %v2518 = vsub.s32 %v2515, %v2517
        %v2519 = vrot.slane %v2512, %v2518
        %v2521 = vsel %vm2502, %v2519, 0.0
        %v2522 = vstv %s2493
        %v2523 = vmul.f32 %v2522, %v2521
        %v2524 = vadd.f32 %v2492, %v2523
        %s2525 = sld [smem:[#allocation2 + $0x2b]]
        %2526 = vrot.lane.b32.xlu0 %v1194, 3
        %v2527 = vpop.permute.xlu0 %2526
        %2528 = vrot.lane.b32.xlu0 %v1200, 3
        %v2529 = vpop.permute.xlu0 %2528
        %v2530 = vsel %vm2498, %v2527, %v2529
        %v2531 = vsel %vm2498, %v2529, %v2527
        %v2534 = vcombine.low %v2531, %v2530
        %v2536 = vunpack.c.l.s4 1966171168
        %v2537 = vunpack.c.0.s8 %v2536
        %v2538 = vlaneseq
        %v2539 = vshrl.u32 %v2538, 7
        %v2540 = vsub.s32 %v2537, %v2539
        %v2541 = vrot.slane %v2534, %v2540
        %v2543 = vunpack.c.l.s4 1966171168
        %v2544 = vunpack.c.0.s8 %v2543
        %v2545 = vlaneseq
        %v2546 = vshrl.u32 %v2545, 7
        %v2547 = vsub.s32 %v2544, %v2546
        %v2548 = vrot.slane %v2541, %v2547
        %v2550 = vsel %vm2502, %v2548, 0.0
        %v2551 = vstv %s2525
        %v2552 = vmul.f32 %v2551, %v2550
        %v2553 = vadd.f32 %v2524, %v2552
        %s2554 = sld [smem:[#allocation2 + $0x2c]]
        %2555 = vrot.lane.b32.xlu0 %v1187, 2
        %v2556 = vpop.permute.xlu0 %2555
        %2557 = vrot.lane.b32.xlu0 %v1188, 2
        %v2558 = vpop.permute.xlu0 %2557
        %vm2559 = vcmp.lt.s32.totalorder %v509, 2
        %v2560 = vsel %vm2559, %v2556, %v2558
        %v2561 = vsel %vm2559, %v2558, %v2556
        %vm2562 = vmand %vm737, %vm1278
        %vm2563 = vmand %vm2562, %vm1280
        %v2566 = vcombine.low %v2561, %v2560
        %v2568 = vunpack.c.l.s4 1966171168
        %v2569 = vunpack.c.0.s8 %v2568
        %v2570 = vlaneseq
        %v2571 = vshrl.u32 %v2570, 7
        %v2572 = vsub.s32 %v2569, %v2571
        %v2573 = vrot.slane %v2566, %v2572
        %v2575 = vunpack.c.l.s4 1966171168
        %v2576 = vunpack.c.0.s8 %v2575
        %v2577 = vlaneseq
        %v2578 = vshrl.u32 %v2577, 7
        %v2579 = vsub.s32 %v2576, %v2578
        %v2580 = vrot.slane %v2573, %v2579
        %v2582 = vsel %vm2563, %v2580, 0.0
        %v2583 = vstv %s2554
        %v2584 = vmul.f32 %v2583, %v2582
        %v2585 = vadd.f32 %v2553, %v2584
        %s2586 = sld [smem:[#allocation2 + $0x2d]]
        %2587 = vrot.lane.b32.xlu0 %v1194, 2
        %v2588 = vpop.permute.xlu0 %2587
        %2589 = vrot.lane.b32.xlu0 %v1200, 2
        %v2590 = vpop.permute.xlu0 %2589
        %v2591 = vsel %vm2559, %v2588, %v2590
        %v2592 = vsel %vm2559, %v2590, %v2588
        %v2595 = vcombine.low %v2592, %v2591
        %v2597 = vunpack.c.l.s4 1966171168
        %v2598 = vunpack.c.0.s8 %v2597
        %v2599 = vlaneseq
        %v2600 = vshrl.u32 %v2599, 7
        %v2601 = vsub.s32 %v2598, %v2600
        %v2602 = vrot.slane %v2595, %v2601
        %v2604 = vunpack.c.l.s4 1966171168
        %v2605 = vunpack.c.0.s8 %v2604
        %v2606 = vlaneseq
        %v2607 = vshrl.u32 %v2606, 7
        %v2608 = vsub.s32 %v2605, %v2607
        %v2609 = vrot.slane %v2602, %v2608
        %v2611 = vsel %vm2563, %v2609, 0.0
        %v2612 = vstv %s2586
        %v2613 = vmul.f32 %v2612, %v2611
        %v2614 = vadd.f32 %v2585, %v2613
        %s2615 = sld [smem:[#allocation2 + $0x2e]]
        %2616 = vrot.lane.b32.xlu0 %v1187, 1
        %v2617 = vpop.permute.xlu0 %2616
        %2618 = vrot.lane.b32.xlu0 %v1188, 1
        %v2619 = vpop.permute.xlu0 %2618
        %v2620 = vsel %vm728, %v2617, %v2619
        %v2621 = vsel %vm728, %v2619, %v2617
        %v2624 = vcombine.low %v2621, %v2620
        %v2626 = vunpack.c.l.s4 1966171168
        %v2627 = vunpack.c.0.s8 %v2626
        %v2628 = vlaneseq
        %v2629 = vshrl.u32 %v2628, 7
        %v2630 = vsub.s32 %v2627, %v2629
        %v2631 = vrot.slane %v2624, %v2630
        %v2633 = vunpack.c.l.s4 1966171168
        %v2634 = vunpack.c.0.s8 %v2633
        %v2635 = vlaneseq
        %v2636 = vshrl.u32 %v2635, 7
        %v2637 = vsub.s32 %v2634, %v2636
        %v2638 = vrot.slane %v2631, %v2637
        %v2640 = vsel %vm739, %v2638, 0.0
        %v2641 = vstv %s2615
        %v2642 = vmul.f32 %v2641, %v2640
        %v2643 = vadd.f32 %v2614, %v2642
        %s2644 = sld [smem:[#allocation2 + $0x2f]]
        %2645 = vrot.lane.b32.xlu0 %v1194, 1
        %v2646 = vpop.permute.xlu0 %2645
        %2647 = vrot.lane.b32.xlu0 %v1200, 1
        %v2648 = vpop.permute.xlu0 %2647
        %v2649 = vsel %vm728, %v2646, %v2648
        %v2650 = vsel %vm728, %v2648, %v2646
        %v2653 = vcombine.low %v2650, %v2649
        %v2655 = vunpack.c.l.s4 1966171168
        %v2656 = vunpack.c.0.s8 %v2655
        %v2657 = vlaneseq
        %v2658 = vshrl.u32 %v2657, 7
        %v2659 = vsub.s32 %v2656, %v2658
        %v2660 = vrot.slane %v2653, %v2659
        %v2662 = vunpack.c.l.s4 1966171168
        %v2663 = vunpack.c.0.s8 %v2662
        %v2664 = vlaneseq
        %v2665 = vshrl.u32 %v2664, 7
        %v2666 = vsub.s32 %v2663, %v2665
        %v2667 = vrot.slane %v2660, %v2666
        %v2669 = vsel %vm739, %v2667, 0.0
        %v2670 = vstv %s2644
        %v2671 = vmul.f32 %v2670, %v2669
        %v2672 = vadd.f32 %v2643, %v2671
        %s2673 = sld [smem:[#allocation2 + $0x30]]
        %v2676 = vcombine.low %v1187, %v1188
        %v2678 = vunpack.c.l.s4 1966171168
        %v2679 = vunpack.c.0.s8 %v2678
        %v2680 = vlaneseq
        %v2681 = vshrl.u32 %v2680, 7
        %v2682 = vsub.s32 %v2679, %v2681
        %v2683 = vrot.slane %v2676, %v2682
        %v2685 = vunpack.c.l.s4 1966171168
        %v2686 = vunpack.c.0.s8 %v2685
        %v2687 = vlaneseq
        %v2688 = vshrl.u32 %v2687, 7
        %v2689 = vsub.s32 %v2686, %v2688
        %v2690 = vrot.slane %v2683, %v2689
        %v2692 = vsel %vm789, %v2690, 0.0
        %v2693 = vstv %s2673
        %v2694 = vmul.f32 %v2693, %v2692
        %v2695 = vadd.f32 %v2672, %v2694
        %s2696 = sld [smem:[#allocation2 + $0x31]]
        %v2699 = vcombine.low %v1194, %v1200
        %v2701 = vunpack.c.l.s4 1966171168
        %v2702 = vunpack.c.0.s8 %v2701
        %v2703 = vlaneseq
        %v2704 = vshrl.u32 %v2703, 7
        %v2705 = vsub.s32 %v2702, %v2704
        %v2706 = vrot.slane %v2699, %v2705
        %v2708 = vunpack.c.l.s4 1966171168
        %v2709 = vunpack.c.0.s8 %v2708
        %v2710 = vlaneseq
        %v2711 = vshrl.u32 %v2710, 7
        %v2712 = vsub.s32 %v2709, %v2711
        %v2713 = vrot.slane %v2706, %v2712
        %v2715 = vsel %vm789, %v2713, 0.0
        %v2716 = vstv %s2696
        %v2717 = vmul.f32 %v2716, %v2715
        %v2718 = vadd.f32 %v2695, %v2717
        %s2719 = sld [smem:[#allocation2 + $0x32]]
        %2720 = vrot.lane.b32.xlu0 %v1187, 127
        %v2721 = vpop.permute.xlu0 %2720
        %2722 = vrot.lane.b32.xlu0 %v1188, 127
        %v2723 = vpop.permute.xlu0 %2722
        %v2724 = vsel %vm850, %v2721, %v2723
        %v2725 = vsel %vm850, %v2723, %v2721
        %v2728 = vcombine.low %v2724, %v2725
        %v2730 = vunpack.c.l.s4 1966171168
        %v2731 = vunpack.c.0.s8 %v2730
        %v2732 = vlaneseq
        %v2733 = vshrl.u32 %v2732, 7
        %v2734 = vsub.s32 %v2731, %v2733
        %v2735 = vrot.slane %v2728, %v2734
        %v2737 = vunpack.c.l.s4 1966171168
        %v2738 = vunpack.c.0.s8 %v2737
        %v2739 = vlaneseq
        %v2740 = vshrl.u32 %v2739, 7
        %v2741 = vsub.s32 %v2738, %v2740
        %v2742 = vrot.slane %v2735, %v2741
        %v2744 = vsel %vm858, %v2742, 0.0
        %v2745 = vstv %s2719
        %v2746 = vmul.f32 %v2745, %v2744
        %v2747 = vadd.f32 %v2718, %v2746
        %s2748 = sld [smem:[#allocation2 + $0x33]]
        %2749 = vrot.lane.b32.xlu0 %v1194, 127
        %v2750 = vpop.permute.xlu0 %2749
        %2751 = vrot.lane.b32.xlu0 %v1200, 127
        %v2752 = vpop.permute.xlu0 %2751
        %v2753 = vsel %vm850, %v2750, %v2752
        %v2754 = vsel %vm850, %v2752, %v2750
        %v2757 = vcombine.low %v2753, %v2754
        %v2759 = vunpack.c.l.s4 1966171168
        %v2760 = vunpack.c.0.s8 %v2759
        %v2761 = vlaneseq
        %v2762 = vshrl.u32 %v2761, 7
        %v2763 = vsub.s32 %v2760, %v2762
        %v2764 = vrot.slane %v2757, %v2763
        %v2766 = vunpack.c.l.s4 1966171168
        %v2767 = vunpack.c.0.s8 %v2766
        %v2768 = vlaneseq
        %v2769 = vshrl.u32 %v2768, 7
        %v2770 = vsub.s32 %v2767, %v2769
        %v2771 = vrot.slane %v2764, %v2770
        %v2773 = vsel %vm858, %v2771, 0.0
        %v2774 = vstv %s2748
        %v2775 = vmul.f32 %v2774, %v2773
        %v2776 = vadd.f32 %v2747, %v2775
        %s2777 = sld [smem:[#allocation2 + $0x34]]
        %2778 = vrot.lane.b32.xlu0 %v1187, 126
        %v2779 = vpop.permute.xlu0 %2778
        %2780 = vrot.lane.b32.xlu0 %v1188, 126
        %v2781 = vpop.permute.xlu0 %2780
        %vm2782 = vcmp.lt.s32.totalorder %v509, 126
        %v2783 = vsel %vm2782, %v2779, %v2781
        %v2784 = vsel %vm2782, %v2781, %v2779
        %vm2785 = vmand %vm737, %vm1525
        %vm2786 = vmand %vm2785, %vm1527
        %v2789 = vcombine.low %v2783, %v2784
        %v2791 = vunpack.c.l.s4 1966171168
        %v2792 = vunpack.c.0.s8 %v2791
        %v2793 = vlaneseq
        %v2794 = vshrl.u32 %v2793, 7
        %v2795 = vsub.s32 %v2792, %v2794
        %v2796 = vrot.slane %v2789, %v2795
        %v2798 = vunpack.c.l.s4 1966171168
        %v2799 = vunpack.c.0.s8 %v2798
        %v2800 = vlaneseq
        %v2801 = vshrl.u32 %v2800, 7
        %v2802 = vsub.s32 %v2799, %v2801
        %v2803 = vrot.slane %v2796, %v2802
        %v2805 = vsel %vm2786, %v2803, 0.0
        %v2806 = vstv %s2777
        %v2807 = vmul.f32 %v2806, %v2805
        %v2808 = vadd.f32 %v2776, %v2807
        %s2809 = sld [smem:[#allocation2 + $0x35]]
        %2810 = vrot.lane.b32.xlu0 %v1194, 126
        %v2811 = vpop.permute.xlu0 %2810
        %2812 = vrot.lane.b32.xlu0 %v1200, 126
        %v2813 = vpop.permute.xlu0 %2812
        %v2814 = vsel %vm2782, %v2811, %v2813
        %v2815 = vsel %vm2782, %v2813, %v2811
        %v2818 = vcombine.low %v2814, %v2815
        %v2820 = vunpack.c.l.s4 1966171168
        %v2821 = vunpack.c.0.s8 %v2820
        %v2822 = vlaneseq
        %v2823 = vshrl.u32 %v2822, 7
        %v2824 = vsub.s32 %v2821, %v2823
        %v2825 = vrot.slane %v2818, %v2824
        %v2827 = vunpack.c.l.s4 1966171168
        %v2828 = vunpack.c.0.s8 %v2827
        %v2829 = vlaneseq
        %v2830 = vshrl.u32 %v2829, 7
        %v2831 = vsub.s32 %v2828, %v2830
        %v2832 = vrot.slane %v2825, %v2831
        %v2834 = vsel %vm2786, %v2832, 0.0
        %v2835 = vstv %s2809
        %v2836 = vmul.f32 %v2835, %v2834
        %v2837 = vadd.f32 %v2808, %v2836
        %s2838 = sld [smem:[#allocation2 + $0x36]]
        %2839 = vrot.lane.b32.xlu0 %v1187, 125
        %v2840 = vpop.permute.xlu0 %2839
        %2841 = vrot.lane.b32.xlu0 %v1188, 125
        %v2842 = vpop.permute.xlu0 %2841
        %vm2843 = vcmp.lt.s32.totalorder %v509, 125
        %v2844 = vsel %vm2843, %v2840, %v2842
        %v2845 = vsel %vm2843, %v2842, %v2840
        %vm2846 = vmand %vm737, %vm1589
        %vm2847 = vmand %vm2846, %vm1591
        %v2850 = vcombine.low %v2844, %v2845
        %v2852 = vunpack.c.l.s4 1966171168
        %v2853 = vunpack.c.0.s8 %v2852
        %v2854 = vlaneseq
        %v2855 = vshrl.u32 %v2854, 7
        %v2856 = vsub.s32 %v2853, %v2855
        %v2857 = vrot.slane %v2850, %v2856
        %v2859 = vunpack.c.l.s4 1966171168
        %v2860 = vunpack.c.0.s8 %v2859
        %v2861 = vlaneseq
        %v2862 = vshrl.u32 %v2861, 7
        %v2863 = vsub.s32 %v2860, %v2862
        %v2864 = vrot.slane %v2857, %v2863
        %v2866 = vsel %vm2847, %v2864, 0.0
        %v2867 = vstv %s2838
        %v2868 = vmul.f32 %v2867, %v2866
        %v2869 = vadd.f32 %v2837, %v2868
        %s2870 = sld [smem:[#allocation2 + $0x37]]
        %2871 = vrot.lane.b32.xlu0 %v1194, 125
        %v2872 = vpop.permute.xlu0 %2871
        %2873 = vrot.lane.b32.xlu0 %v1200, 125
        %v2874 = vpop.permute.xlu0 %2873
        %v2875 = vsel %vm2843, %v2872, %v2874
        %v2876 = vsel %vm2843, %v2874, %v2872
        %v2879 = vcombine.low %v2875, %v2876
        %v2881 = vunpack.c.l.s4 1966171168
        %v2882 = vunpack.c.0.s8 %v2881
        %v2883 = vlaneseq
        %v2884 = vshrl.u32 %v2883, 7
        %v2885 = vsub.s32 %v2882, %v2884
        %v2886 = vrot.slane %v2879, %v2885
        %v2888 = vunpack.c.l.s4 1966171168
        %v2889 = vunpack.c.0.s8 %v2888
        %v2890 = vlaneseq
        %v2891 = vshrl.u32 %v2890, 7
        %v2892 = vsub.s32 %v2889, %v2891
        %v2893 = vrot.slane %v2886, %v2892
        %v2895 = vsel %vm2847, %v2893, 0.0
        %v2896 = vstv %s2870
        %v2897 = vmul.f32 %v2896, %v2895
        %v2898 = vadd.f32 %v2869, %v2897
        %s2899 = sld [smem:[#allocation2 + $0x38]]
        %2900 = vrot.lane.b32.xlu0 %v1187, 115
        %v2901 = vpop.permute.xlu0 %2900
        %2902 = vrot.lane.b32.xlu0 %v1188, 115
        %v2903 = vpop.permute.xlu0 %2902
        %vm2904 = vcmp.lt.s32.totalorder %v509, 115
        %v2905 = vsel %vm2904, %v2901, %v2903
        %v2906 = vsel %vm2904, %v2903, %v2901
        %vm2907 = vmand %vm929, %vm1214
        %vm2908 = vmand %vm2907, %vm1216
        %v2911 = vcombine.low %v2905, %v2906
        %v2913 = vunpack.c.l.s4 1966171168
        %v2914 = vunpack.c.0.s8 %v2913
        %v2915 = vlaneseq
        %v2916 = vshrl.u32 %v2915, 7
        %v2917 = vsub.s32 %v2914, %v2916
        %v2918 = vrot.slane %v2911, %v2917
        %v2920 = vunpack.c.l.s4 1966171168
        %v2921 = vunpack.c.0.s8 %v2920
        %v2922 = vlaneseq
        %v2923 = vshrl.u32 %v2922, 7
        %v2924 = vsub.s32 %v2921, %v2923
        %v2925 = vrot.slane %v2918, %v2924
        %v2927 = vsel %vm2908, %v2925, 0.0
        %v2928 = vstv %s2899
        %v2929 = vmul.f32 %v2928, %v2927
        %v2930 = vadd.f32 %v2898, %v2929
        %s2931 = sld [smem:[#allocation2 + $0x39]]
        %2932 = vrot.lane.b32.xlu0 %v1194, 115
        %v2933 = vpop.permute.xlu0 %2932
        %2934 = vrot.lane.b32.xlu0 %v1200, 115
        %v2935 = vpop.permute.xlu0 %2934
        %v2936 = vsel %vm2904, %v2933, %v2935
        %v2937 = vsel %vm2904, %v2935, %v2933
        %v2940 = vcombine.low %v2936, %v2937
        %v2942 = vunpack.c.l.s4 1966171168
        %v2943 = vunpack.c.0.s8 %v2942
        %v2944 = vlaneseq
        %v2945 = vshrl.u32 %v2944, 7
        %v2946 = vsub.s32 %v2943, %v2945
        %v2947 = vrot.slane %v2940, %v2946
        %v2949 = vunpack.c.l.s4 1966171168
        %v2950 = vunpack.c.0.s8 %v2949
        %v2951 = vlaneseq
        %v2952 = vshrl.u32 %v2951, 7
        %v2953 = vsub.s32 %v2950, %v2952
        %v2954 = vrot.slane %v2947, %v2953
        %v2956 = vsel %vm2908, %v2954, 0.0
        %v2957 = vstv %s2931
        %v2958 = vmul.f32 %v2957, %v2956
        %v2959 = vadd.f32 %v2930, %v2958
        %s2960 = sld [smem:[#allocation2 + $0x3a]]
        %2961 = vrot.lane.b32.xlu0 %v1187, 114
        %v2962 = vpop.permute.xlu0 %2961
        %2963 = vrot.lane.b32.xlu0 %v1188, 114
        %v2964 = vpop.permute.xlu0 %2963
        %vm2965 = vcmp.lt.s32.totalorder %v509, 114
        %v2966 = vsel %vm2965, %v2962, %v2964
        %v2967 = vsel %vm2965, %v2964, %v2962
        %vm2968 = vmand %vm929, %vm1278
        %vm2969 = vmand %vm2968, %vm1280
        %v2972 = vcombine.low %v2966, %v2967
        %v2974 = vunpack.c.l.s4 1966171168
        %v2975 = vunpack.c.0.s8 %v2974
        %v2976 = vlaneseq
        %v2977 = vshrl.u32 %v2976, 7
        %v2978 = vsub.s32 %v2975, %v2977
        %v2979 = vrot.slane %v2972, %v2978
        %v2981 = vunpack.c.l.s4 1966171168
        %v2982 = vunpack.c.0.s8 %v2981
        %v2983 = vlaneseq
        %v2984 = vshrl.u32 %v2983, 7
        %v2985 = vsub.s32 %v2982, %v2984
        %v2986 = vrot.slane %v2979, %v2985
        %v2988 = vsel %vm2969, %v2986, 0.0
        %v2989 = vstv %s2960
        %v2990 = vmul.f32 %v2989, %v2988
        %v2991 = vadd.f32 %v2959, %v2990
        %s2992 = sld [smem:[#allocation2 + $0x3b]]
        %2993 = vrot.lane.b32.xlu0 %v1194, 114
        %v2994 = vpop.permute.xlu0 %2993
        %2995 = vrot.lane.b32.xlu0 %v1200, 114
        %v2996 = vpop.permute.xlu0 %2995
        %v2997 = vsel %vm2965, %v2994, %v2996
        %v2998 = vsel %vm2965, %v2996, %v2994
        %v3001 = vcombine.low %v2997, %v2998
        %v3003 = vunpack.c.l.s4 1966171168
        %v3004 = vunpack.c.0.s8 %v3003
        %v3005 = vlaneseq
        %v3006 = vshrl.u32 %v3005, 7
        %v3007 = vsub.s32 %v3004, %v3006
        %v3008 = vrot.slane %v3001, %v3007
        %v3010 = vunpack.c.l.s4 1966171168
        %v3011 = vunpack.c.0.s8 %v3010
        %v3012 = vlaneseq
        %v3013 = vshrl.u32 %v3012, 7
        %v3014 = vsub.s32 %v3011, %v3013
        %v3015 = vrot.slane %v3008, %v3014
        %v3017 = vsel %vm2969, %v3015, 0.0
        %v3018 = vstv %s2992
        %v3019 = vmul.f32 %v3018, %v3017
        %v3020 = vadd.f32 %v2991, %v3019
        %s3021 = sld [smem:[#allocation2 + $0x3c]]
        %3022 = vrot.lane.b32.xlu0 %v1187, 113
        %v3023 = vpop.permute.xlu0 %3022
        %3024 = vrot.lane.b32.xlu0 %v1188, 113
        %v3025 = vpop.permute.xlu0 %3024
        %v3026 = vsel %vm919, %v3023, %v3025
        %v3027 = vsel %vm919, %v3025, %v3023
        %v3030 = vcombine.low %v3026, %v3027
        %v3032 = vunpack.c.l.s4 1966171168
        %v3033 = vunpack.c.0.s8 %v3032
        %v3034 = vlaneseq
        %v3035 = vshrl.u32 %v3034, 7
        %v3036 = vsub.s32 %v3033, %v3035
        %v3037 = vrot.slane %v3030, %v3036
        %v3039 = vunpack.c.l.s4 1966171168
        %v3040 = vunpack.c.0.s8 %v3039
        %v3041 = vlaneseq
        %v3042 = vshrl.u32 %v3041, 7
        %v3043 = vsub.s32 %v3040, %v3042
        %v3044 = vrot.slane %v3037, %v3043
        %v3046 = vsel %vm931, %v3044, 0.0
        %v3047 = vstv %s3021
        %v3048 = vmul.f32 %v3047, %v3046
        %v3049 = vadd.f32 %v3020, %v3048
        %s3050 = sld [smem:[#allocation2 + $0x3d]]
        %3051 = vrot.lane.b32.xlu0 %v1194, 113
        %v3052 = vpop.permute.xlu0 %3051
        %3053 = vrot.lane.b32.xlu0 %v1200, 113
        %v3054 = vpop.permute.xlu0 %3053
        %v3055 = vsel %vm919, %v3052, %v3054
        %v3056 = vsel %vm919, %v3054, %v3052
        %v3059 = vcombine.low %v3055, %v3056
        %v3061 = vunpack.c.l.s4 1966171168
        %v3062 = vunpack.c.0.s8 %v3061
        %v3063 = vlaneseq
        %v3064 = vshrl.u32 %v3063, 7
        %v3065 = vsub.s32 %v3062, %v3064
        %v3066 = vrot.slane %v3059, %v3065
        %v3068 = vunpack.c.l.s4 1966171168
        %v3069 = vunpack.c.0.s8 %v3068
        %v3070 = vlaneseq
        %v3071 = vshrl.u32 %v3070, 7
        %v3072 = vsub.s32 %v3069, %v3071
        %v3073 = vrot.slane %v3066, %v3072
        %v3075 = vsel %vm931, %v3073, 0.0
        %v3076 = vstv %s3050
        %v3077 = vmul.f32 %v3076, %v3075
        %v3078 = vadd.f32 %v3049, %v3077
        %s3079 = sld [smem:[#allocation2 + $0x3e]]
        %3080 = vrot.lane.b32.xlu0 %v1187, 112
        %v3081 = vpop.permute.xlu0 %3080
        %3082 = vrot.lane.b32.xlu0 %v1188, 112
        %v3083 = vpop.permute.xlu0 %3082
        %v3084 = vsel %vm992, %v3081, %v3083
        %v3085 = vsel %vm992, %v3083, %v3081
        %v3088 = vcombine.low %v3084, %v3085
        %v3090 = vunpack.c.l.s4 1966171168
        %v3091 = vunpack.c.0.s8 %v3090
        %v3092 = vlaneseq
        %v3093 = vshrl.u32 %v3092, 7
        %v3094 = vsub.s32 %v3091, %v3093
        %v3095 = vrot.slane %v3088, %v3094
        %v3097 = vunpack.c.l.s4 1966171168
        %v3098 = vunpack.c.0.s8 %v3097
        %v3099 = vlaneseq
        %v3100 = vshrl.u32 %v3099, 7
        %v3101 = vsub.s32 %v3098, %v3100
        %v3102 = vrot.slane %v3095, %v3101
        %v3104 = vsel %vm1000, %v3102, 0.0
        %v3105 = vstv %s3079
        %v3106 = vmul.f32 %v3105, %v3104
        %v3107 = vadd.f32 %v3078, %v3106
        %s3108 = sld [smem:[#allocation2 + $0x3f]]
        %3109 = vrot.lane.b32.xlu0 %v1194, 112
        %v3110 = vpop.permute.xlu0 %3109
        %3111 = vrot.lane.b32.xlu0 %v1200, 112
        %v3112 = vpop.permute.xlu0 %3111
        %v3113 = vsel %vm992, %v3110, %v3112
        %v3114 = vsel %vm992, %v3112, %v3110
        %v3117 = vcombine.low %v3113, %v3114
        %v3119 = vunpack.c.l.s4 1966171168
        %v3120 = vunpack.c.0.s8 %v3119
        %v3121 = vlaneseq
        %v3122 = vshrl.u32 %v3121, 7
        %v3123 = vsub.s32 %v3120, %v3122
        %v3124 = vrot.slane %v3117, %v3123
        %v3126 = vunpack.c.l.s4 1966171168
        %v3127 = vunpack.c.0.s8 %v3126
        %v3128 = vlaneseq
        %v3129 = vshrl.u32 %v3128, 7
        %v3130 = vsub.s32 %v3127, %v3129
        %v3131 = vrot.slane %v3124, %v3130
        %v3133 = vsel %vm1000, %v3131, 0.0
        %v3134 = vstv %s3108
        %v3135 = vmul.f32 %v3134, %v3133
        %v3136 = vadd.f32 %v3107, %v3135
        %s3137 = sld [smem:[#allocation2 + $0x40]]
        %3138 = vrot.lane.b32.xlu0 %v1187, 111
        %v3139 = vpop.permute.xlu0 %3138
        %3140 = vrot.lane.b32.xlu0 %v1188, 111
        %v3141 = vpop.permute.xlu0 %3140
        %v3142 = vsel %vm1061, %v3139, %v3141
        %v3143 = vsel %vm1061, %v3141, %v3139
        %v3146 = vcombine.low %v3142, %v3143
        %v3148 = vunpack.c.l.s4 1966171168
        %v3149 = vunpack.c.0.s8 %v3148
        %v3150 = vlaneseq
        %v3151 = vshrl.u32 %v3150, 7
        %v3152 = vsub.s32 %v3149, %v3151
        %v3153 = vrot.slane %v3146, %v3152
        %v3155 = vunpack.c.l.s4 1966171168
        %v3156 = vunpack.c.0.s8 %v3155
        %v3157 = vlaneseq
        %v3158 = vshrl.u32 %v3157, 7
        %v3159 = vsub.s32 %v3156, %v3158
        %v3160 = vrot.slane %v3153, %v3159
        %v3162 = vsel %vm1069, %v3160, 0.0
        %v3163 = vstv %s3137
        %v3164 = vmul.f32 %v3163, %v3162
        %v3165 = vadd.f32 %v3136, %v3164
        %s3166 = sld [smem:[#allocation2 + $0x41]]
        %3167 = vrot.lane.b32.xlu0 %v1194, 111
        %v3168 = vpop.permute.xlu0 %3167
        %3169 = vrot.lane.b32.xlu0 %v1200, 111
        %v3170 = vpop.permute.xlu0 %3169
        %v3171 = vsel %vm1061, %v3168, %v3170
        %v3172 = vsel %vm1061, %v3170, %v3168
        %v3175 = vcombine.low %v3171, %v3172
        %v3177 = vunpack.c.l.s4 1966171168
        %v3178 = vunpack.c.0.s8 %v3177
        %v3179 = vlaneseq
        %v3180 = vshrl.u32 %v3179, 7
        %v3181 = vsub.s32 %v3178, %v3180
        %v3182 = vrot.slane %v3175, %v3181
        %v3184 = vunpack.c.l.s4 1966171168
        %v3185 = vunpack.c.0.s8 %v3184
        %v3186 = vlaneseq
        %v3187 = vshrl.u32 %v3186, 7
        %v3188 = vsub.s32 %v3185, %v3187
        %v3189 = vrot.slane %v3182, %v3188
        %v3191 = vsel %vm1069, %v3189, 0.0
        %v3192 = vstv %s3166
        %v3193 = vmul.f32 %v3192, %v3191
        %v3194 = vadd.f32 %v3165, %v3193
        %s3195 = sld [smem:[#allocation2 + $0x42]]
        %3196 = vrot.lane.b32.xlu0 %v1187, 110
        %v3197 = vpop.permute.xlu0 %3196
        %3198 = vrot.lane.b32.xlu0 %v1188, 110
        %v3199 = vpop.permute.xlu0 %3198
        %vm3200 = vcmp.lt.s32.totalorder %v509, 110
        %v3201 = vsel %vm3200, %v3197, %v3199
        %v3202 = vsel %vm3200, %v3199, %v3197
        %vm3203 = vmand %vm929, %vm1525
        %vm3204 = vmand %vm3203, %vm1527
        %v3207 = vcombine.low %v3201, %v3202
        %v3209 = vunpack.c.l.s4 1966171168
        %v3210 = vunpack.c.0.s8 %v3209
        %v3211 = vlaneseq
        %v3212 = vshrl.u32 %v3211, 7
        %v3213 = vsub.s32 %v3210, %v3212
        %v3214 = vrot.slane %v3207, %v3213
        %v3216 = vunpack.c.l.s4 1966171168
        %v3217 = vunpack.c.0.s8 %v3216
        %v3218 = vlaneseq
        %v3219 = vshrl.u32 %v3218, 7
        %v3220 = vsub.s32 %v3217, %v3219
        %v3221 = vrot.slane %v3214, %v3220
        %v3223 = vsel %vm3204, %v3221, 0.0
        %v3224 = vstv %s3195
        %v3225 = vmul.f32 %v3224, %v3223
        %v3226 = vadd.f32 %v3194, %v3225
        %s3227 = sld [smem:[#allocation2 + $0x43]]
        %3228 = vrot.lane.b32.xlu0 %v1194, 110
        %v3229 = vpop.permute.xlu0 %3228
        %3230 = vrot.lane.b32.xlu0 %v1200, 110
        %v3231 = vpop.permute.xlu0 %3230
        %v3232 = vsel %vm3200, %v3229, %v3231
        %v3233 = vsel %vm3200, %v3231, %v3229
        %v3236 = vcombine.low %v3232, %v3233
        %v3238 = vunpack.c.l.s4 1966171168
        %v3239 = vunpack.c.0.s8 %v3238
        %v3240 = vlaneseq
        %v3241 = vshrl.u32 %v3240, 7
        %v3242 = vsub.s32 %v3239, %v3241
        %v3243 = vrot.slane %v3236, %v3242
        %v3245 = vunpack.c.l.s4 1966171168
        %v3246 = vunpack.c.0.s8 %v3245
        %v3247 = vlaneseq
        %v3248 = vshrl.u32 %v3247, 7
        %v3249 = vsub.s32 %v3246, %v3248
        %v3250 = vrot.slane %v3243, %v3249
        %v3252 = vsel %vm3204, %v3250, 0.0
        %v3253 = vstv %s3227
        %v3254 = vmul.f32 %v3253, %v3252
        %v3255 = vadd.f32 %v3226, %v3254
        %s3256 = sld [smem:[#allocation2 + $0x44]]
        %3257 = vrot.lane.b32.xlu0 %v1187, 109
        %v3258 = vpop.permute.xlu0 %3257
        %3259 = vrot.lane.b32.xlu0 %v1188, 109
        %v3260 = vpop.permute.xlu0 %3259
        %vm3261 = vcmp.lt.s32.totalorder %v509, 109
        %v3262 = vsel %vm3261, %v3258, %v3260
        %v3263 = vsel %vm3261, %v3260, %v3258
        %vm3264 = vmand %vm929, %vm1589
        %vm3265 = vmand %vm3264, %vm1591
        %v3268 = vcombine.low %v3262, %v3263
        %v3270 = vunpack.c.l.s4 1966171168
        %v3271 = vunpack.c.0.s8 %v3270
        %v3272 = vlaneseq
        %v3273 = vshrl.u32 %v3272, 7
        %v3274 = vsub.s32 %v3271, %v3273
        %v3275 = vrot.slane %v3268, %v3274
        %v3277 = vunpack.c.l.s4 1966171168
        %v3278 = vunpack.c.0.s8 %v3277
        %v3279 = vlaneseq
        %v3280 = vshrl.u32 %v3279, 7
        %v3281 = vsub.s32 %v3278, %v3280
        %v3282 = vrot.slane %v3275, %v3281
        %v3284 = vsel %vm3265, %v3282, 0.0
        %v3285 = vstv %s3256
        %v3286 = vmul.f32 %v3285, %v3284
        %v3287 = vadd.f32 %v3255, %v3286
        %s3288 = sld [smem:[#allocation2 + $0x45]]
        %3289 = vrot.lane.b32.xlu0 %v1194, 109
        %v3290 = vpop.permute.xlu0 %3289
        %3291 = vrot.lane.b32.xlu0 %v1200, 109
        %v3292 = vpop.permute.xlu0 %3291
        %v3293 = vsel %vm3261, %v3290, %v3292
        %v3294 = vsel %vm3261, %v3292, %v3290
        %v3297 = vcombine.low %v3293, %v3294
        %v3299 = vunpack.c.l.s4 1966171168
        %v3300 = vunpack.c.0.s8 %v3299
        %v3301 = vlaneseq
        %v3302 = vshrl.u32 %v3301, 7
        %v3303 = vsub.s32 %v3300, %v3302
        %v3304 = vrot.slane %v3297, %v3303
        %v3306 = vunpack.c.l.s4 1966171168
        %v3307 = vunpack.c.0.s8 %v3306
        %v3308 = vlaneseq
        %v3309 = vshrl.u32 %v3308, 7
        %v3310 = vsub.s32 %v3307, %v3309
        %v3311 = vrot.slane %v3304, %v3310
        %v3313 = vsel %vm3265, %v3311, 0.0
        %v3314 = vstv %s3288
        %v3315 = vmul.f32 %v3314, %v3313
        %v3316 = vadd.f32 %v3287, %v3315
        %s3317 = sld [smem:[#allocation2 + $0x46]]
        %3318 = vrot.lane.b32.xlu0 %v1187, 99
        %v3319 = vpop.permute.xlu0 %3318
        %3320 = vrot.lane.b32.xlu0 %v1188, 99
        %v3321 = vpop.permute.xlu0 %3320
        %vm3322 = vcmp.lt.s32.totalorder %v509, 99
        %v3323 = vsel %vm3322, %v3319, %v3321
        %v3324 = vsel %vm3322, %v3321, %v3319
        %v3325 = vadd.s32 %v372, 2
        %vm3326 = vcmp.ge.s32.totalorder %v3325, 0
        %vm3327 = vcmp.lt.s32.totalorder %v3325, 16
        %vm3328 = vmand %vm3326, %vm3327
        %vm3329 = vmand %vm3328, %vm1214
        %vm3330 = vmand %vm3329, %vm1216
        %v3333 = vcombine.low %v3323, %v3324
        %v3335 = vunpack.c.l.s4 1966171168
        %v3336 = vunpack.c.0.s8 %v3335
        %v3337 = vlaneseq
        %v3338 = vshrl.u32 %v3337, 7
        %v3339 = vsub.s32 %v3336, %v3338
        %v3340 = vrot.slane %v3333, %v3339
        %v3342 = vunpack.c.l.s4 1966171168
        %v3343 = vunpack.c.0.s8 %v3342
        %v3344 = vlaneseq
        %v3345 = vshrl.u32 %v3344, 7
        %v3346 = vsub.s32 %v3343, %v3345
        %v3347 = vrot.slane %v3340, %v3346
        %v3349 = vsel %vm3330, %v3347, 0.0
        %v3350 = vstv %s3317
        %v3351 = vmul.f32 %v3350, %v3349
        %v3352 = vadd.f32 %v3316, %v3351
        %s3353 = sld [smem:[#allocation2 + $0x47]]
        %3354 = vrot.lane.b32.xlu0 %v1194, 99
        %v3355 = vpop.permute.xlu0 %3354
        %3356 = vrot.lane.b32.xlu0 %v1200, 99
        %v3357 = vpop.permute.xlu0 %3356
        %v3358 = vsel %vm3322, %v3355, %v3357
        %v3359 = vsel %vm3322, %v3357, %v3355
        %v3362 = vcombine.low %v3358, %v3359
        %v3364 = vunpack.c.l.s4 1966171168
        %v3365 = vunpack.c.0.s8 %v3364
        %v3366 = vlaneseq
        %v3367 = vshrl.u32 %v3366, 7
        %v3368 = vsub.s32 %v3365, %v3367
        %v3369 = vrot.slane %v3362, %v3368
        %v3371 = vunpack.c.l.s4 1966171168
        %v3372 = vunpack.c.0.s8 %v3371
        %v3373 = vlaneseq
        %v3374 = vshrl.u32 %v3373, 7
        %v3375 = vsub.s32 %v3372, %v3374
        %v3376 = vrot.slane %v3369, %v3375
        %v3378 = vsel %vm3330, %v3376, 0.0
        %v3379 = vstv %s3353
        %v3380 = vmul.f32 %v3379, %v3378
        %v3381 = vadd.f32 %v3352, %v3380
        %s3382 = sld [smem:[#allocation2 + $0x48]]
        %3383 = vrot.lane.b32.xlu0 %v1187, 98
        %v3384 = vpop.permute.xlu0 %3383
        %3385 = vrot.lane.b32.xlu0 %v1188, 98
        %v3386 = vpop.permute.xlu0 %3385
        %vm3387 = vcmp.lt.s32.totalorder %v509, 98
        %v3388 = vsel %vm3387, %v3384, %v3386
        %v3389 = vsel %vm3387, %v3386, %v3384
        %vm3390 = vmand %vm3328, %vm1278
        %vm3391 = vmand %vm3390, %vm1280
        %v3394 = vcombine.low %v3388, %v3389
        %v3396 = vunpack.c.l.s4 1966171168
        %v3397 = vunpack.c.0.s8 %v3396
        %v3398 = vlaneseq
        %v3399 = vshrl.u32 %v3398, 7
        %v3400 = vsub.s32 %v3397, %v3399
        %v3401 = vrot.slane %v3394, %v3400
        %v3403 = vunpack.c.l.s4 1966171168
        %v3404 = vunpack.c.0.s8 %v3403
        %v3405 = vlaneseq
        %v3406 = vshrl.u32 %v3405, 7
        %v3407 = vsub.s32 %v3404, %v3406
        %v3408 = vrot.slane %v3401, %v3407
        %v3410 = vsel %vm3391, %v3408, 0.0
        %v3411 = vstv %s3382
        %v3412 = vmul.f32 %v3411, %v3410
        %v3413 = vadd.f32 %v3381, %v3412
        %s3414 = sld [smem:[#allocation2 + $0x49]]
        %3415 = vrot.lane.b32.xlu0 %v1194, 98
        %v3416 = vpop.permute.xlu0 %3415
        %3417 = vrot.lane.b32.xlu0 %v1200, 98
        %v3418 = vpop.permute.xlu0 %3417
        %v3419 = vsel %vm3387, %v3416, %v3418
        %v3420 = vsel %vm3387, %v3418, %v3416
        %v3423 = vcombine.low %v3419, %v3420
        %v3425 = vunpack.c.l.s4 1966171168
        %v3426 = vunpack.c.0.s8 %v3425
        %v3427 = vlaneseq
        %v3428 = vshrl.u32 %v3427, 7
        %v3429 = vsub.s32 %v3426, %v3428
        %v3430 = vrot.slane %v3423, %v3429
        %v3432 = vunpack.c.l.s4 1966171168
        %v3433 = vunpack.c.0.s8 %v3432
        %v3434 = vlaneseq
        %v3435 = vshrl.u32 %v3434, 7
        %v3436 = vsub.s32 %v3433, %v3435
        %v3437 = vrot.slane %v3430, %v3436
        %v3439 = vsel %vm3391, %v3437, 0.0
        %v3440 = vstv %s3414
        %v3441 = vmul.f32 %v3440, %v3439
        %v3442 = vadd.f32 %v3413, %v3441
        %s3443 = sld [smem:[#allocation2 + $0x4a]]
        %3444 = vrot.lane.b32.xlu0 %v1187, 97
        %v3445 = vpop.permute.xlu0 %3444
        %3446 = vrot.lane.b32.xlu0 %v1188, 97
        %v3447 = vpop.permute.xlu0 %3446
        %vm3448 = vcmp.lt.s32.totalorder %v509, 97
        %v3449 = vsel %vm3448, %v3445, %v3447
        %v3450 = vsel %vm3448, %v3447, %v3445
        %vm3451 = vmand %vm3328, %vm522
        %vm3452 = vmand %vm3451, %vm524
        %v3455 = vcombine.low %v3449, %v3450
        %v3457 = vunpack.c.l.s4 1966171168
        %v3458 = vunpack.c.0.s8 %v3457
        %v3459 = vlaneseq
        %v3460 = vshrl.u32 %v3459, 7
        %v3461 = vsub.s32 %v3458, %v3460
        %v3462 = vrot.slane %v3455, %v3461
        %v3464 = vunpack.c.l.s4 1966171168
        %v3465 = vunpack.c.0.s8 %v3464
        %v3466 = vlaneseq
        %v3467 = vshrl.u32 %v3466, 7
        %v3468 = vsub.s32 %v3465, %v3467
        %v3469 = vrot.slane %v3462, %v3468
        %v3471 = vsel %vm3452, %v3469, 0.0
        %v3472 = vstv %s3443
        %v3473 = vmul.f32 %v3472, %v3471
        %v3474 = vadd.f32 %v3442, %v3473
        %s3475 = sld [smem:[#allocation2 + $0x4b]]
        %3476 = vrot.lane.b32.xlu0 %v1194, 97
        %v3477 = vpop.permute.xlu0 %3476
        %3478 = vrot.lane.b32.xlu0 %v1200, 97
        %v3479 = vpop.permute.xlu0 %3478
        %v3480 = vsel %vm3448, %v3477, %v3479
        %v3481 = vsel %vm3448, %v3479, %v3477
        %v3484 = vcombine.low %v3480, %v3481
        %v3486 = vunpack.c.l.s4 1966171168
        %v3487 = vunpack.c.0.s8 %v3486
        %v3488 = vlaneseq
        %v3489 = vshrl.u32 %v3488, 7
        %v3490 = vsub.s32 %v3487, %v3489
        %v3491 = vrot.slane %v3484, %v3490
        %v3493 = vunpack.c.l.s4 1966171168
        %v3494 = vunpack.c.0.s8 %v3493
        %v3495 = vlaneseq
        %v3496 = vshrl.u32 %v3495, 7
        %v3497 = vsub.s32 %v3494, %v3496
        %v3498 = vrot.slane %v3491, %v3497
        %v3500 = vsel %vm3452, %v3498, 0.0
        %v3501 = vstv %s3475
        %v3502 = vmul.f32 %v3501, %v3500
        %v3503 = vadd.f32 %v3474, %v3502
        %s3504 = sld [smem:[#allocation2 + $0x4c]]
        %3505 = vrot.lane.b32.xlu0 %v1187, 96
        %v3506 = vpop.permute.xlu0 %3505
        %3507 = vrot.lane.b32.xlu0 %v1188, 96
        %v3508 = vpop.permute.xlu0 %3507
        %vm3509 = vcmp.lt.s32.totalorder %v509, 96
        %v3510 = vsel %vm3509, %v3506, %v3508
        %v3511 = vsel %vm3509, %v3508, %v3506
        %vm3512 = vmand %vm3328, %vm592
        %vm3513 = vmand %vm3512, %vm594
        %v3516 = vcombine.low %v3510, %v3511
        %v3518 = vunpack.c.l.s4 1966171168
        %v3519 = vunpack.c.0.s8 %v3518
        %v3520 = vlaneseq
        %v3521 = vshrl.u32 %v3520, 7
        %v3522 = vsub.s32 %v3519, %v3521
        %v3523 = vrot.slane %v3516, %v3522
        %v3525 = vunpack.c.l.s4 1966171168
        %v3526 = vunpack.c.0.s8 %v3525
        %v3527 = vlaneseq
        %v3528 = vshrl.u32 %v3527, 7
        %v3529 = vsub.s32 %v3526, %v3528
        %v3530 = vrot.slane %v3523, %v3529
        %v3532 = vsel %vm3513, %v3530, 0.0
        %v3533 = vstv %s3504
        %v3534 = vmul.f32 %v3533, %v3532
        %v3535 = vadd.f32 %v3503, %v3534
        %s3536 = sld [smem:[#allocation2 + $0x4d]]
        %3537 = vrot.lane.b32.xlu0 %v1194, 96
        %v3538 = vpop.permute.xlu0 %3537
        %3539 = vrot.lane.b32.xlu0 %v1200, 96
        %v3540 = vpop.permute.xlu0 %3539
        %v3541 = vsel %vm3509, %v3538, %v3540
        %v3542 = vsel %vm3509, %v3540, %v3538
        %v3545 = vcombine.low %v3541, %v3542
        %v3547 = vunpack.c.l.s4 1966171168
        %v3548 = vunpack.c.0.s8 %v3547
        %v3549 = vlaneseq
        %v3550 = vshrl.u32 %v3549, 7
        %v3551 = vsub.s32 %v3548, %v3550
        %v3552 = vrot.slane %v3545, %v3551
        %v3554 = vunpack.c.l.s4 1966171168
        %v3555 = vunpack.c.0.s8 %v3554
        %v3556 = vlaneseq
        %v3557 = vshrl.u32 %v3556, 7
        %v3558 = vsub.s32 %v3555, %v3557
        %v3559 = vrot.slane %v3552, %v3558
        %v3561 = vsel %vm3513, %v3559, 0.0
        %v3562 = vstv %s3536
        %v3563 = vmul.f32 %v3562, %v3561
        %v3564 = vadd.f32 %v3535, %v3563
        %s3565 = sld [smem:[#allocation2 + $0x4e]]
        %3566 = vrot.lane.b32.xlu0 %v1187, 95
        %v3567 = vpop.permute.xlu0 %3566
        %3568 = vrot.lane.b32.xlu0 %v1188, 95
        %v3569 = vpop.permute.xlu0 %3568
        %vm3570 = vcmp.lt.s32.totalorder %v509, 95
        %v3571 = vsel %vm3570, %v3567, %v3569
        %v3572 = vsel %vm3570, %v3569, %v3567
        %vm3573 = vmand %vm3328, %vm664
        %vm3574 = vmand %vm3573, %vm666
        %v3577 = vcombine.low %v3571, %v3572
        %v3579 = vunpack.c.l.s4 1966171168
        %v3580 = vunpack.c.0.s8 %v3579
        %v3581 = vlaneseq
        %v3582 = vshrl.u32 %v3581, 7
        %v3583 = vsub.s32 %v3580, %v3582
        %v3584 = vrot.slane %v3577, %v3583
        %v3586 = vunpack.c.l.s4 1966171168
        %v3587 = vunpack.c.0.s8 %v3586
        %v3588 = vlaneseq
        %v3589 = vshrl.u32 %v3588, 7
        %v3590 = vsub.s32 %v3587, %v3589
        %v3591 = vrot.slane %v3584, %v3590
        %v3593 = vsel %vm3574, %v3591, 0.0
        %v3594 = vstv %s3565
        %v3595 = vmul.f32 %v3594, %v3593
        %v3596 = vadd.f32 %v3564, %v3595
        %s3597 = sld [smem:[#allocation2 + $0x4f]]
        %3598 = vrot.lane.b32.xlu0 %v1194, 95
        %v3599 = vpop.permute.xlu0 %3598
        %3600 = vrot.lane.b32.xlu0 %v1200, 95
        %v3601 = vpop.permute.xlu0 %3600
        %v3602 = vsel %vm3570, %v3599, %v3601
        %v3603 = vsel %vm3570, %v3601, %v3599
        %v3606 = vcombine.low %v3602, %v3603
        %v3608 = vunpack.c.l.s4 1966171168
        %v3609 = vunpack.c.0.s8 %v3608
        %v3610 = vlaneseq
        %v3611 = vshrl.u32 %v3610, 7
        %v3612 = vsub.s32 %v3609, %v3611
        %v3613 = vrot.slane %v3606, %v3612
        %v3615 = vunpack.c.l.s4 1966171168
        %v3616 = vunpack.c.0.s8 %v3615
        %v3617 = vlaneseq
        %v3618 = vshrl.u32 %v3617, 7
        %v3619 = vsub.s32 %v3616, %v3618
        %v3620 = vrot.slane %v3613, %v3619
        %v3622 = vsel %vm3574, %v3620, 0.0
        %v3623 = vstv %s3597
        %v3624 = vmul.f32 %v3623, %v3622
        %v3625 = vadd.f32 %v3596, %v3624
        %s3626 = sld [smem:[#allocation2 + $0x50]]
        %3627 = vrot.lane.b32.xlu0 %v1187, 94
        %v3628 = vpop.permute.xlu0 %3627
        %3629 = vrot.lane.b32.xlu0 %v1188, 94
        %v3630 = vpop.permute.xlu0 %3629
        %vm3631 = vcmp.lt.s32.totalorder %v509, 94
        %v3632 = vsel %vm3631, %v3628, %v3630
        %v3633 = vsel %vm3631, %v3630, %v3628
        %vm3634 = vmand %vm3328, %vm1525
        %vm3635 = vmand %vm3634, %vm1527
        %v3638 = vcombine.low %v3632, %v3633
        %v3640 = vunpack.c.l.s4 1966171168
        %v3641 = vunpack.c.0.s8 %v3640
        %v3642 = vlaneseq
        %v3643 = vshrl.u32 %v3642, 7
        %v3644 = vsub.s32 %v3641, %v3643
        %v3645 = vrot.slane %v3638, %v3644
        %v3647 = vunpack.c.l.s4 1966171168
        %v3648 = vunpack.c.0.s8 %v3647
        %v3649 = vlaneseq
        %v3650 = vshrl.u32 %v3649, 7
        %v3651 = vsub.s32 %v3648, %v3650
        %v3652 = vrot.slane %v3645, %v3651
        %v3654 = vsel %vm3635, %v3652, 0.0
        %v3655 = vstv %s3626
        %v3656 = vmul.f32 %v3655, %v3654
        %v3657 = vadd.f32 %v3625, %v3656
        %s3658 = sld [smem:[#allocation2 + $0x51]]
        %3659 = vrot.lane.b32.xlu0 %v1194, 94
        %v3660 = vpop.permute.xlu0 %3659
        %3661 = vrot.lane.b32.xlu0 %v1200, 94
        %v3662 = vpop.permute.xlu0 %3661
        %v3663 = vsel %vm3631, %v3660, %v3662
        %v3664 = vsel %vm3631, %v3662, %v3660
        %v3667 = vcombine.low %v3663, %v3664
        %v3669 = vunpack.c.l.s4 1966171168
        %v3670 = vunpack.c.0.s8 %v3669
        %v3671 = vlaneseq
        %v3672 = vshrl.u32 %v3671, 7
        %v3673 = vsub.s32 %v3670, %v3672
        %v3674 = vrot.slane %v3667, %v3673
        %v3676 = vunpack.c.l.s4 1966171168
        %v3677 = vunpack.c.0.s8 %v3676
        %v3678 = vlaneseq
        %v3679 = vshrl.u32 %v3678, 7
        %v3680 = vsub.s32 %v3677, %v3679
        %v3681 = vrot.slane %v3674, %v3680
        %v3683 = vsel %vm3635, %v3681, 0.0
        %v3684 = vstv %s3658
        %v3685 = vmul.f32 %v3684, %v3683
        %v3686 = vadd.f32 %v3657, %v3685
        %s3687 = sld [smem:[#allocation2 + $0x52]]
        %3688 = vrot.lane.b32.xlu0 %v1187, 93
        %v3689 = vpop.permute.xlu0 %3688
        %3690 = vrot.lane.b32.xlu0 %v1188, 93
        %v3691 = vpop.permute.xlu0 %3690
        %vm3692 = vcmp.lt.s32.totalorder %v509, 93
        %v3693 = vsel %vm3692, %v3689, %v3691
        %v3694 = vsel %vm3692, %v3691, %v3689
        %vm3695 = vmand %vm3328, %vm1589
        %vm3696 = vmand %vm3695, %vm1591
        %v3699 = vcombine.low %v3693, %v3694
        %v3701 = vunpack.c.l.s4 1966171168
        %v3702 = vunpack.c.0.s8 %v3701
        %v3703 = vlaneseq
        %v3704 = vshrl.u32 %v3703, 7
        %v3705 = vsub.s32 %v3702, %v3704
        %v3706 = vrot.slane %v3699, %v3705
        %v3708 = vunpack.c.l.s4 1966171168
        %v3709 = vunpack.c.0.s8 %v3708
        %v3710 = vlaneseq
        %v3711 = vshrl.u32 %v3710, 7
        %v3712 = vsub.s32 %v3709, %v3711
        %v3713 = vrot.slane %v3706, %v3712
        %v3715 = vsel %vm3696, %v3713, 0.0
        %v3716 = vstv %s3687
        %v3717 = vmul.f32 %v3716, %v3715
        %v3718 = vadd.f32 %v3686, %v3717
        %s3719 = sld [smem:[#allocation2 + $0x53]]
        %3720 = vrot.lane.b32.xlu0 %v1194, 93
        %v3721 = vpop.permute.xlu0 %3720
        %3722 = vrot.lane.b32.xlu0 %v1200, 93
        %v3723 = vpop.permute.xlu0 %3722
        %v3724 = vsel %vm3692, %v3721, %v3723
        %v3725 = vsel %vm3692, %v3723, %v3721
        %v3728 = vcombine.low %v3724, %v3725
        %v3730 = vunpack.c.l.s4 1966171168
        %v3731 = vunpack.c.0.s8 %v3730
        %v3732 = vlaneseq
        %v3733 = vshrl.u32 %v3732, 7
        %v3734 = vsub.s32 %v3731, %v3733
        %v3735 = vrot.slane %v3728, %v3734
        %v3737 = vunpack.c.l.s4 1966171168
        %v3738 = vunpack.c.0.s8 %v3737
        %v3739 = vlaneseq
        %v3740 = vshrl.u32 %v3739, 7
        %v3741 = vsub.s32 %v3738, %v3740
        %v3742 = vrot.slane %v3735, %v3741
        %v3744 = vsel %vm3696, %v3742, 0.0
        %v3745 = vstv %s3719
        %v3746 = vmul.f32 %v3745, %v3744
        %v3747 = vadd.f32 %v3718, %v3746
        %s3748 = sld [smem:[#allocation2 + $0x54]]
        %3749 = vrot.lane.b32.xlu0 %v1187, 83
        %v3750 = vpop.permute.xlu0 %3749
        %3751 = vrot.lane.b32.xlu0 %v1188, 83
        %v3752 = vpop.permute.xlu0 %3751
        %vm3753 = vcmp.lt.s32.totalorder %v509, 83
        %v3754 = vsel %vm3753, %v3750, %v3752
        %v3755 = vsel %vm3753, %v3752, %v3750
        %v3756 = vadd.s32 %v372, 3
        %vm3757 = vcmp.ge.s32.totalorder %v3756, 0
        %vm3758 = vcmp.lt.s32.totalorder %v3756, 16
        %vm3759 = vmand %vm3757, %vm3758
        %vm3760 = vmand %vm3759, %vm1214
        %vm3761 = vmand %vm3760, %vm1216
        %v3764 = vcombine.low %v3754, %v3755
        %v3766 = vunpack.c.l.s4 1966171168
        %v3767 = vunpack.c.0.s8 %v3766
        %v3768 = vlaneseq
        %v3769 = vshrl.u32 %v3768, 7
        %v3770 = vsub.s32 %v3767, %v3769
        %v3771 = vrot.slane %v3764, %v3770
        %v3773 = vunpack.c.l.s4 1966171168
        %v3774 = vunpack.c.0.s8 %v3773
        %v3775 = vlaneseq
        %v3776 = vshrl.u32 %v3775, 7
        %v3777 = vsub.s32 %v3774, %v3776
        %v3778 = vrot.slane %v3771, %v3777
        %v3780 = vsel %vm3761, %v3778, 0.0
        %v3781 = vstv %s3748
        %v3782 = vmul.f32 %v3781, %v3780
        %v3783 = vadd.f32 %v3747, %v3782
        %s3784 = sld [smem:[#allocation2 + $0x55]]
        %3785 = vrot.lane.b32.xlu0 %v1194, 83
        %v3786 = vpop.permute.xlu0 %3785
        %3787 = vrot.lane.b32.xlu0 %v1200, 83
        %v3788 = vpop.permute.xlu0 %3787
        %v3789 = vsel %vm3753, %v3786, %v3788
        %v3790 = vsel %vm3753, %v3788, %v3786
        %v3793 = vcombine.low %v3789, %v3790
        %v3795 = vunpack.c.l.s4 1966171168
        %v3796 = vunpack.c.0.s8 %v3795
        %v3797 = vlaneseq
        %v3798 = vshrl.u32 %v3797, 7
        %v3799 = vsub.s32 %v3796, %v3798
        %v3800 = vrot.slane %v3793, %v3799
        %v3802 = vunpack.c.l.s4 1966171168
        %v3803 = vunpack.c.0.s8 %v3802
        %v3804 = vlaneseq
        %v3805 = vshrl.u32 %v3804, 7
        %v3806 = vsub.s32 %v3803, %v3805
        %v3807 = vrot.slane %v3800, %v3806
        %v3809 = vsel %vm3761, %v3807, 0.0
        %v3810 = vstv %s3784
        %v3811 = vmul.f32 %v3810, %v3809
        %v3812 = vadd.f32 %v3783, %v3811
        %s3813 = sld [smem:[#allocation2 + $0x56]]
        %3814 = vrot.lane.b32.xlu0 %v1187, 82
        %v3815 = vpop.permute.xlu0 %3814
        %3816 = vrot.lane.b32.xlu0 %v1188, 82
        %v3817 = vpop.permute.xlu0 %3816
        %vm3818 = vcmp.lt.s32.totalorder %v509, 82
        %v3819 = vsel %vm3818, %v3815, %v3817
        %v3820 = vsel %vm3818, %v3817, %v3815
        %vm3821 = vmand %vm3759, %vm1278
        %vm3822 = vmand %vm3821, %vm1280
        %v3825 = vcombine.low %v3819, %v3820
        %v3827 = vunpack.c.l.s4 1966171168
        %v3828 = vunpack.c.0.s8 %v3827
        %v3829 = vlaneseq
        %v3830 = vshrl.u32 %v3829, 7
        %v3831 = vsub.s32 %v3828, %v3830
        %v3832 = vrot.slane %v3825, %v3831
        %v3834 = vunpack.c.l.s4 1966171168
        %v3835 = vunpack.c.0.s8 %v3834
        %v3836 = vlaneseq
        %v3837 = vshrl.u32 %v3836, 7
        %v3838 = vsub.s32 %v3835, %v3837
        %v3839 = vrot.slane %v3832, %v3838
        %v3841 = vsel %vm3822, %v3839, 0.0
        %v3842 = vstv %s3813
        %v3843 = vmul.f32 %v3842, %v3841
        %v3844 = vadd.f32 %v3812, %v3843
        %s3845 = sld [smem:[#allocation2 + $0x57]]
        %3846 = vrot.lane.b32.xlu0 %v1194, 82
        %v3847 = vpop.permute.xlu0 %3846
        %3848 = vrot.lane.b32.xlu0 %v1200, 82
        %v3849 = vpop.permute.xlu0 %3848
        %v3850 = vsel %vm3818, %v3847, %v3849
        %v3851 = vsel %vm3818, %v3849, %v3847
        %v3854 = vcombine.low %v3850, %v3851
        %v3856 = vunpack.c.l.s4 1966171168
        %v3857 = vunpack.c.0.s8 %v3856
        %v3858 = vlaneseq
        %v3859 = vshrl.u32 %v3858, 7
        %v3860 = vsub.s32 %v3857, %v3859
        %v3861 = vrot.slane %v3854, %v3860
        %v3863 = vunpack.c.l.s4 1966171168
        %v3864 = vunpack.c.0.s8 %v3863
        %v3865 = vlaneseq
        %v3866 = vshrl.u32 %v3865, 7
        %v3867 = vsub.s32 %v3864, %v3866
        %v3868 = vrot.slane %v3861, %v3867
        %v3870 = vsel %vm3822, %v3868, 0.0
        %v3871 = vstv %s3845
        %v3872 = vmul.f32 %v3871, %v3870
        %v3873 = vadd.f32 %v3844, %v3872
        %s3874 = sld [smem:[#allocation2 + $0x58]]
        %3875 = vrot.lane.b32.xlu0 %v1187, 81
        %v3876 = vpop.permute.xlu0 %3875
        %3877 = vrot.lane.b32.xlu0 %v1188, 81
        %v3878 = vpop.permute.xlu0 %3877
        %vm3879 = vcmp.lt.s32.totalorder %v509, 81
        %v3880 = vsel %vm3879, %v3876, %v3878
        %v3881 = vsel %vm3879, %v3878, %v3876
        %vm3882 = vmand %vm3759, %vm522
        %vm3883 = vmand %vm3882, %vm524
        %v3886 = vcombine.low %v3880, %v3881
        %v3888 = vunpack.c.l.s4 1966171168
        %v3889 = vunpack.c.0.s8 %v3888
        %v3890 = vlaneseq
        %v3891 = vshrl.u32 %v3890, 7
        %v3892 = vsub.s32 %v3889, %v3891
        %v3893 = vrot.slane %v3886, %v3892
        %v3895 = vunpack.c.l.s4 1966171168
        %v3896 = vunpack.c.0.s8 %v3895
        %v3897 = vlaneseq
        %v3898 = vshrl.u32 %v3897, 7
        %v3899 = vsub.s32 %v3896, %v3898
        %v3900 = vrot.slane %v3893, %v3899
        %v3902 = vsel %vm3883, %v3900, 0.0
        %v3903 = vstv %s3874
        %v3904 = vmul.f32 %v3903, %v3902
        %v3905 = vadd.f32 %v3873, %v3904
        %s3906 = sld [smem:[#allocation2 + $0x59]]
        %3907 = vrot.lane.b32.xlu0 %v1194, 81
        %v3908 = vpop.permute.xlu0 %3907
        %3909 = vrot.lane.b32.xlu0 %v1200, 81
        %v3910 = vpop.permute.xlu0 %3909
        %v3911 = vsel %vm3879, %v3908, %v3910
        %v3912 = vsel %vm3879, %v3910, %v3908
        %v3915 = vcombine.low %v3911, %v3912
        %v3917 = vunpack.c.l.s4 1966171168
        %v3918 = vunpack.c.0.s8 %v3917
        %v3919 = vlaneseq
        %v3920 = vshrl.u32 %v3919, 7
        %v3921 = vsub.s32 %v3918, %v3920
        %v3922 = vrot.slane %v3915, %v3921
        %v3924 = vunpack.c.l.s4 1966171168
        %v3925 = vunpack.c.0.s8 %v3924
        %v3926 = vlaneseq
        %v3927 = vshrl.u32 %v3926, 7
        %v3928 = vsub.s32 %v3925, %v3927
        %v3929 = vrot.slane %v3922, %v3928
        %v3931 = vsel %vm3883, %v3929, 0.0
        %v3932 = vstv %s3906
        %v3933 = vmul.f32 %v3932, %v3931
        %v3934 = vadd.f32 %v3905, %v3933
        %s3935 = sld [smem:[#allocation2 + $0x5a]]
        %3936 = vrot.lane.b32.xlu0 %v1187, 80
        %v3937 = vpop.permute.xlu0 %3936
        %3938 = vrot.lane.b32.xlu0 %v1188, 80
        %v3939 = vpop.permute.xlu0 %3938
        %vm3940 = vcmp.lt.s32.totalorder %v509, 80
        %v3941 = vsel %vm3940, %v3937, %v3939
        %v3942 = vsel %vm3940, %v3939, %v3937
        %vm3943 = vmand %vm3759, %vm592
        %vm3944 = vmand %vm3943, %vm594
        %v3947 = vcombine.low %v3941, %v3942
        %v3949 = vunpack.c.l.s4 1966171168
        %v3950 = vunpack.c.0.s8 %v3949
        %v3951 = vlaneseq
        %v3952 = vshrl.u32 %v3951, 7
        %v3953 = vsub.s32 %v3950, %v3952
        %v3954 = vrot.slane %v3947, %v3953
        %v3956 = vunpack.c.l.s4 1966171168
        %v3957 = vunpack.c.0.s8 %v3956
        %v3958 = vlaneseq
        %v3959 = vshrl.u32 %v3958, 7
        %v3960 = vsub.s32 %v3957, %v3959
        %v3961 = vrot.slane %v3954, %v3960
        %v3963 = vsel %vm3944, %v3961, 0.0
        %v3964 = vstv %s3935
        %v3965 = vmul.f32 %v3964, %v3963
        %v3966 = vadd.f32 %v3934, %v3965
        %s3967 = sld [smem:[#allocation2 + $0x5b]]
        %3968 = vrot.lane.b32.xlu0 %v1194, 80
        %v3969 = vpop.permute.xlu0 %3968
        %3970 = vrot.lane.b32.xlu0 %v1200, 80
        %v3971 = vpop.permute.xlu0 %3970
        %v3972 = vsel %vm3940, %v3969, %v3971
        %v3973 = vsel %vm3940, %v3971, %v3969
        %v3976 = vcombine.low %v3972, %v3973
        %v3978 = vunpack.c.l.s4 1966171168
        %v3979 = vunpack.c.0.s8 %v3978
        %v3980 = vlaneseq
        %v3981 = vshrl.u32 %v3980, 7
        %v3982 = vsub.s32 %v3979, %v3981
        %v3983 = vrot.slane %v3976, %v3982
        %v3985 = vunpack.c.l.s4 1966171168
        %v3986 = vunpack.c.0.s8 %v3985
        %v3987 = vlaneseq
        %v3988 = vshrl.u32 %v3987, 7
        %v3989 = vsub.s32 %v3986, %v3988
        %v3990 = vrot.slane %v3983, %v3989
        %v3992 = vsel %vm3944, %v3990, 0.0
        %v3993 = vstv %s3967
        %v3994 = vmul.f32 %v3993, %v3992
        %v3995 = vadd.f32 %v3966, %v3994
        %s3996 = sld [smem:[#allocation2 + $0x5c]]
        %3997 = vrot.lane.b32.xlu0 %v1187, 79
        %v3998 = vpop.permute.xlu0 %3997
        %3999 = vrot.lane.b32.xlu0 %v1188, 79
        %v4000 = vpop.permute.xlu0 %3999
        %vm4001 = vcmp.lt.s32.totalorder %v509, 79
        %v4002 = vsel %vm4001, %v3998, %v4000
        %v4003 = vsel %vm4001, %v4000, %v3998
        %vm4004 = vmand %vm3759, %vm664
        %vm4005 = vmand %vm4004, %vm666
        %v4008 = vcombine.low %v4002, %v4003
        %v4010 = vunpack.c.l.s4 1966171168
        %v4011 = vunpack.c.0.s8 %v4010
        %v4012 = vlaneseq
        %v4013 = vshrl.u32 %v4012, 7
        %v4014 = vsub.s32 %v4011, %v4013
        %v4015 = vrot.slane %v4008, %v4014
        %v4017 = vunpack.c.l.s4 1966171168
        %v4018 = vunpack.c.0.s8 %v4017
        %v4019 = vlaneseq
        %v4020 = vshrl.u32 %v4019, 7
        %v4021 = vsub.s32 %v4018, %v4020
        %v4022 = vrot.slane %v4015, %v4021
        %v4024 = vsel %vm4005, %v4022, 0.0
        %v4025 = vstv %s3996
        %v4026 = vmul.f32 %v4025, %v4024
        %v4027 = vadd.f32 %v3995, %v4026
        %s4028 = sld [smem:[#allocation2 + $0x5d]]
        %4029 = vrot.lane.b32.xlu0 %v1194, 79
        %v4030 = vpop.permute.xlu0 %4029
        %4031 = vrot.lane.b32.xlu0 %v1200, 79
        %v4032 = vpop.permute.xlu0 %4031
        %v4033 = vsel %vm4001, %v4030, %v4032
        %v4034 = vsel %vm4001, %v4032, %v4030
        %v4037 = vcombine.low %v4033, %v4034
        %v4039 = vunpack.c.l.s4 1966171168
        %v4040 = vunpack.c.0.s8 %v4039
        %v4041 = vlaneseq
        %v4042 = vshrl.u32 %v4041, 7
        %v4043 = vsub.s32 %v4040, %v4042
        %v4044 = vrot.slane %v4037, %v4043
        %v4046 = vunpack.c.l.s4 1966171168
        %v4047 = vunpack.c.0.s8 %v4046
        %v4048 = vlaneseq
        %v4049 = vshrl.u32 %v4048, 7
        %v4050 = vsub.s32 %v4047, %v4049
        %v4051 = vrot.slane %v4044, %v4050
        %v4053 = vsel %vm4005, %v4051, 0.0
        %v4054 = vstv %s4028
        %v4055 = vmul.f32 %v4054, %v4053
        %v4056 = vadd.f32 %v4027, %v4055
        %s4057 = sld [smem:[#allocation2 + $0x5e]]
        %4058 = vrot.lane.b32.xlu0 %v1187, 78
        %v4059 = vpop.permute.xlu0 %4058
        %4060 = vrot.lane.b32.xlu0 %v1188, 78
        %v4061 = vpop.permute.xlu0 %4060
        %vm4062 = vcmp.lt.s32.totalorder %v509, 78
        %v4063 = vsel %vm4062, %v4059, %v4061
        %v4064 = vsel %vm4062, %v4061, %v4059
        %vm4065 = vmand %vm3759, %vm1525
        %vm4066 = vmand %vm4065, %vm1527
        %v4069 = vcombine.low %v4063, %v4064
        %v4071 = vunpack.c.l.s4 1966171168
        %v4072 = vunpack.c.0.s8 %v4071
        %v4073 = vlaneseq
        %v4074 = vshrl.u32 %v4073, 7
        %v4075 = vsub.s32 %v4072, %v4074
        %v4076 = vrot.slane %v4069, %v4075
        %v4078 = vunpack.c.l.s4 1966171168
        %v4079 = vunpack.c.0.s8 %v4078
        %v4080 = vlaneseq
        %v4081 = vshrl.u32 %v4080, 7
        %v4082 = vsub.s32 %v4079, %v4081
        %v4083 = vrot.slane %v4076, %v4082
        %v4085 = vsel %vm4066, %v4083, 0.0
        %v4086 = vstv %s4057
        %v4087 = vmul.f32 %v4086, %v4085
        %v4088 = vadd.f32 %v4056, %v4087
        %s4089 = sld [smem:[#allocation2 + $0x5f]]
        %4090 = vrot.lane.b32.xlu0 %v1194, 78
        %v4091 = vpop.permute.xlu0 %4090
        %4092 = vrot.lane.b32.xlu0 %v1200, 78
        %v4093 = vpop.permute.xlu0 %4092
        %v4094 = vsel %vm4062, %v4091, %v4093
        %v4095 = vsel %vm4062, %v4093, %v4091
        %v4098 = vcombine.low %v4094, %v4095
        %v4100 = vunpack.c.l.s4 1966171168
        %v4101 = vunpack.c.0.s8 %v4100
        %v4102 = vlaneseq
        %v4103 = vshrl.u32 %v4102, 7
        %v4104 = vsub.s32 %v4101, %v4103
        %v4105 = vrot.slane %v4098, %v4104
        %v4107 = vunpack.c.l.s4 1966171168
        %v4108 = vunpack.c.0.s8 %v4107
        %v4109 = vlaneseq
        %v4110 = vshrl.u32 %v4109, 7
        %v4111 = vsub.s32 %v4108, %v4110
        %v4112 = vrot.slane %v4105, %v4111
        %v4114 = vsel %vm4066, %v4112, 0.0
        %v4115 = vstv %s4089
        %v4116 = vmul.f32 %v4115, %v4114
        %v4117 = vadd.f32 %v4088, %v4116
        %s4118 = sld [smem:[#allocation2 + $0x60]]
        %4119 = vrot.lane.b32.xlu0 %v1187, 77
        %v4120 = vpop.permute.xlu0 %4119
        %4121 = vrot.lane.b32.xlu0 %v1188, 77
        %v4122 = vpop.permute.xlu0 %4121
        %vm4123 = vcmp.lt.s32.totalorder %v509, 77
        %v4124 = vsel %vm4123, %v4120, %v4122
        %v4125 = vsel %vm4123, %v4122, %v4120
        %vm4126 = vmand %vm3759, %vm1589
        %vm4127 = vmand %vm4126, %vm1591
        %v4130 = vcombine.low %v4124, %v4125
        %v4132 = vunpack.c.l.s4 1966171168
        %v4133 = vunpack.c.0.s8 %v4132
        %v4134 = vlaneseq
        %v4135 = vshrl.u32 %v4134, 7
        %v4136 = vsub.s32 %v4133, %v4135
        %v4137 = vrot.slane %v4130, %v4136
        %v4139 = vunpack.c.l.s4 1966171168
        %v4140 = vunpack.c.0.s8 %v4139
        %v4141 = vlaneseq
        %v4142 = vshrl.u32 %v4141, 7
        %v4143 = vsub.s32 %v4140, %v4142
        %v4144 = vrot.slane %v4137, %v4143
        %v4146 = vsel %vm4127, %v4144, 0.0
        %v4147 = vstv %s4118
        %v4148 = vmul.f32 %v4147, %v4146
        %v4149 = vadd.f32 %v4117, %v4148
        %s4150 = sld [smem:[#allocation2 + $0x61]]
        %4151 = vrot.lane.b32.xlu0 %v1194, 77
        %v4152 = vpop.permute.xlu0 %4151
        %4153 = vrot.lane.b32.xlu0 %v1200, 77
        %v4154 = vpop.permute.xlu0 %4153
        %v4155 = vsel %vm4123, %v4152, %v4154
        %v4156 = vsel %vm4123, %v4154, %v4152
        %v4159 = vcombine.low %v4155, %v4156
        %v4161 = vunpack.c.l.s4 1966171168
        %v4162 = vunpack.c.0.s8 %v4161
        %v4163 = vlaneseq
        %v4164 = vshrl.u32 %v4163, 7
        %v4165 = vsub.s32 %v4162, %v4164
        %v4166 = vrot.slane %v4159, %v4165
        %v4168 = vunpack.c.l.s4 1966171168
        %v4169 = vunpack.c.0.s8 %v4168
        %v4170 = vlaneseq
        %v4171 = vshrl.u32 %v4170, 7
        %v4172 = vsub.s32 %v4169, %v4171
        %v4173 = vrot.slane %v4166, %v4172
        %v4175 = vsel %vm4127, %v4173, 0.0
        %v4176 = vstv %s4150
        %v4177 = vmul.f32 %v4176, %v4175
        %v4178 = vadd.f32 %v4149, %v4177
        %v4179 = vxor.u32 %v4178, 2147483648
        %v4180 = vmul.f32 %v4179, 1.442695
        %v4181 = vpow.pop %v4180
        %v4182 = vadd.f32 %v4181, 1.0
        %v4183 = vrcp.pop %v4182
        %v4184 = vmul.f32 1.0, %v4183
        %v4185 = vmul.f32 %v1140, %v1161
        %v4186 = vmul.f32 %v1141, %v1163
        %v4188 = vlaneseq
        %v4189 = vshrl.u32 %v4188, 7
        %v4190 = vsub.s32 0, %v4189
        %v4191 = vrot.slane %v4184, %v4190
        %v4192 = vlaneseq
        %v4193 = vshrl.u32 %v4192, 7
        %v4194 = vsub.s32 1, %v4193
        %v4195 = vrot.slane %v4184, %v4194
        %v4198 = vmul.f32 %v4185, %v4191
        %v4199 = vmul.f32 %v4186, %v4195
        %v4200 = vld [vmem:[%s8] sm:$0xf]
        %v4201 = vld [vmem:[%s9] sm:$0xf]
        %4203 = vset.pattern.permute.xlu0 0
        %4204 = vperm.xlu0 %4203, %v4201
        %v4205 = vpop.permute.xlu0 %4204
        %vm4207 = vcmask 64512
        %v4209 = vsel %vm4207, %v4200, 0
        %4211 = vmatprep.subr.mxu0 %v4199
        %4212 = vmatpush1.msra.mxu0 %v4198
        %4213 = vmatprep.subr.mxu0 0.0
        %4214 = vmatpush1.msra.mxu0 0.0
        %4215 = vmatprep.subr.mxu0 0.0
        %4216 = vmatpush1.msra.mxu0 0.0
        %4217 = vmatprep.subr.mxu0 0.0
        %4218 = vmatpush1.msra.mxu0 0.0
        %4219 = vmatprep.subr.mxu0 0.0
        %4220 = vmatpush1.msra.mxu0 0.0
        %4221 = vmatprep.subr.mxu0 0.0
        %4222 = vmatpush1.msra.mxu0 0.0
        %4223 = vmatprep.subr.mxu0 0.0
        %4224 = vmatpush1.msra.mxu0 0.0
        %4225 = vmatprep.subr.mxu0 0.0
        %4226 = vmatpush1.msra.mxu0 0.0
        %4227 = vmatprep.subr.mxu0 0.0
        %4228 = vmatpush1.msra.mxu0 0.0
        %4229 = vmatprep.subr.mxu0 0.0
        %4230 = vmatpush1.msra.mxu0 0.0
        %4231 = vmatprep.subr.mxu0 0.0
        %4232 = vmatpush1.msra.mxu0 0.0
        %4233 = vmatprep.subr.mxu0 0.0
        %4234 = vmatpush1.msra.mxu0 0.0
        %4235 = vmatprep.subr.mxu0 0.0
        %4236 = vmatpush1.msra.mxu0 0.0
        %4237 = vmatprep.subr.mxu0 0.0
        %4238 = vmatpush1.msra.mxu0 0.0
        %4239 = vmatprep.subr.mxu0 0.0
        %4240 = vmatpush1.msra.mxu0 0.0
        %4241 = vmatprep.subr.mxu0 0.0
        %4242 = vmatpush1.msra.mxu0 0.0
        %4243 = vmatprep.subr.mxu0 0.0
        %4244 = vmatpush1.msra.mxu0 0.0
        %4245 = vmatprep.subr.mxu0 0.0
        %4246 = vmatpush1.msra.mxu0 0.0
        %4247 = vmatprep.subr.mxu0 0.0
        %4248 = vmatpush1.msra.mxu0 0.0
        %4249 = vmatprep.subr.mxu0 0.0
        %4250 = vmatpush1.msra.mxu0 0.0
        %4251 = vmatprep.subr.mxu0 0.0
        %4252 = vmatpush1.msra.mxu0 0.0
        %4253 = vmatprep.subr.mxu0 0.0
        %4254 = vmatpush1.msra.mxu0 0.0
        %4255 = vmatprep.subr.mxu0 0.0
        %4256 = vmatpush1.msra.mxu0 0.0
        %4257 = vmatprep.subr.mxu0 0.0
        %4258 = vmatpush1.msra.mxu0 0.0
        %4259 = vmatprep.subr.mxu0 0.0
        %4260 = vmatpush1.msra.mxu0 0.0
        %4261 = vmatprep.subr.mxu0 0.0
        %4262 = vmatpush1.msra.mxu0 0.0
        %4263 = vmatprep.subr.mxu0 0.0
        %4264 = vmatpush1.msra.mxu0 0.0
        %4265 = vmatprep.subr.mxu0 0.0
        %4266 = vmatpush1.msra.mxu0 0.0
        %4267 = vmatprep.subr.mxu0 0.0
        %4268 = vmatpush1.msra.mxu0 0.0
        %4269 = vmatprep.subr.mxu0 0.0
        %4270 = vmatpush1.msra.mxu0 0.0
        %4271 = vmatprep.subr.mxu0 0.0
        %4272 = vmatpush1.msra.mxu0 0.0
        %4273 = vmatprep.subr.mxu0 0.0
        %4274 = vmatpush1.msra.mxu0 0.0
        %4275 = vmatprep.mubr.f32.mxu0 0.0
        %4276 = vmatmul.mubr.f32.gmra.mrb[0].mxu0 %v4209
        %v4277 = vpop.f32.mrb[0].mxu0
        %v4278 = vadd.f32 %v4205, %v4277
        %v4279 = vpop.f32.mrb[0].mxu0
        %v4280 = vadd.f32 %v4205, %v4279
        %4281 = vdwg.mxu0
        %v4284 = vcombine.low %v4278, %v4280
        %4286 = vst [vmem:[%s366] sm:$0xff] %v4284
        %s4287 = sand.u32 %s248, 1
        %s4288 = scalar_lea.sflag [#allocation3], %s4287
        %s4289 = sand.u32 %s248, 1
        %s4290 = smul.addr %s4289, 8
        %s4291 = scalar_lea.vmem [#allocation5], %s4290
        // Predicated region
        $region65: #{tpu_custom_call.1} parent=59 // pred_check
          %p4292 = pneg %p258
        $region66: #{tpu_custom_call.1} parent=59 // pred_check_branch
          %4294 = sbr.rel (%p4292) target = $region68
        $region67: #{tpu_custom_call.1} parent=59 // pred_region
          %s4296 = ssub.s32 128, 128
          %4297 = vsyncadd %s4288, %s4296
          %s4298 = smul.addr %s25, 2
          %s4299 = smul.addr %s4298, 64
          %s4300 = scalar_lea.hbm %s10, %s4299
          %s4302 = sshll.u32 %s4291, 4
          %s4303 = int_to_ptr.vmem [resolvable:$true] %s4302
          %4305 = dma.vmem_to_hbm [thread:$0]  %s4303, 128, %s4300, %s4288
        $region68: #{tpu_custom_call.1} parent=59 // pred_fallthru
          _
      $region60: #{tpu_custom_call.1} parent=5 // pred_fallthru
        _
      %p4306 = scmp.le.s32.totalorder 2, %s20
      // Predicated region
      $region69: #{tpu_custom_call.1} parent=5 // pred_check
        %p4307 = pneg %p4306
      $region70: #{tpu_custom_call.1} parent=5 // pred_check_branch
        %4309 = sbr.rel (%p4307) target = $region72
      $region71: #{tpu_custom_call.1} parent=5 // pred_region
        %s4310 = ssub.s32 %s20, 2
        // Predicated region
        $region73: #{tpu_custom_call.1} parent=71 // pred_check
          %p4311 = pneg %p264
        $region74: #{tpu_custom_call.1} parent=71 // pred_check_branch
          %4313 = sbr.rel (%p4311) target = $region76
        $region75: #{tpu_custom_call.1} parent=71 // pred_region
          %s4314 = sand.u32 %s249, 1
          %s4315 = scalar_lea.sflag [#allocation3], %s4314
          %s4316 = sand.u32 %s249, 1
          %s4317 = smul.addr %s4316, 8
          %s4318 = scalar_lea.vmem [#allocation5], %s4317
          %4319 = dma.done %s4315, 128
        $region76: #{tpu_custom_call.1} parent=71 // pred_fallthru
          _
      $region72: #{tpu_custom_call.1} parent=5 // pred_fallthru
        _
    $region6: #{tpu_custom_call.1} parent=1 // loop_footer
      %s24 = sadd.s32 1, %s20
    $region7: #{tpu_custom_call.1} parent=1 // loop_footer_branch
      %19 = sbr.rel target = $region3
    $region8: #{tpu_custom_call.1} parent=1 // loop_exit
      _
    %4320 = vsyncpa [#allocation3], 1
    %s4321 = scalar_lea.sflag [#allocation3], 1
    %4322 = vsyncpa %s4321, 1
    %4323 = vsyncpa [#allocation4], 1
    %s4324 = scalar_lea.sflag [#allocation4], 1
    %4325 = vsyncpa %s4324, 1

</llo_original>
